<compile_context>
chip_gen: v7x
topology: tpu7x:2x2x1
jax: 0.10.0
libtpu: 0.0.40
codegen_flags: <defaults>
</compile_context>

<pallas_src>
import numpy as np
import jax
import jax.numpy as jnp
from jax.experimental import pallas as pl
from jax.experimental.pallas import tpu as pltpu

LEAK = 0.01
EPS = 1e-5


def _boundary_masks(D, H, W):
    """Separable validity masks for the 3x3x3 taps (padding=1)."""
    S = H * W
    dmask = np.zeros((3, D, 1), np.float32)
    for kz in range(3):
        dz = kz - 1
        for d in range(D):
            if 0 <= d + dz < D:
                dmask[kz, d, 0] = 1.0
    smask = np.zeros((9, 1, S), np.float32)
    for kh in range(3):
        for kw in range(3):
            dh, dw = kh - 1, kw - 1
            for h in range(H):
                if not (0 <= h + dh < H):
                    continue
                for w in range(W):
                    if 0 <= w + dw < W:
                        smask[kh * 3 + kw, 0, h * W + w] = 1.0
    return dmask, smask


def out_conv_forward(x1, x2, p):
    """x1: (N, C1, D, H, W), x2: (N, C2, D, H, W); p: parameter dict."""
    N, C1, D, H, W = x1.shape
    C2 = x2.shape[1]
    C = C1 + C2                       # input_channels after concat
    Ch = C // 2                       # hidden channels
    Co = int(p["w3"].shape[0])        # output_channels
    S = H * W

    # ---- layout glue: NCDHW -> (N, C, D, S); spatial (lane-dense) axis last.
    x1_k = x1.reshape(N, C1, D, S)
    x2_k = x2.reshape(N, C2, D, S)

    dmask_np, smask_np = _boundary_masks(D, H, W)
    dmask = jnp.asarray(dmask_np)
    smask = jnp.asarray(smask_np)

    # ---- pack all small parameters into flat 1-D SMEM arrays (scalar reads).
    norm_parts = [p["in0_g"], p["in0_b"], p["in1_g"], p["in1_b"],
                  p["in2_g"], p["in2_b"], p["in3_g"], p["in3_b"]]
    off, n_off = 0, []
    for q in norm_parts:
        n_off.append(off)
        off += int(q.shape[0])
    G0, B0, G1, B1, G2, B2, G3, B3 = n_off
    nparams = jnp.concatenate([q.reshape(-1).astype(jnp.float32)
                               for q in norm_parts])

    w_parts = [p["w0"], p["w1"], p["w2"], p["w3"]]
    off, w_off = 0, []
    for q in w_parts:
        w_off.append(off)
        off += int(np.prod(q.shape))
    W0, W1, W2, W3 = w_off
    cweights = jnp.concatenate([q.reshape(-1).astype(jnp.float32)
                                for q in w_parts])

    b_parts = [p["b0"], p["b1"], p["b2"], p["b3"]]
    off, b_off = 0, []
    for q in b_parts:
        b_off.append(off)
        off += int(q.shape[0])
    BC0, BC1, BC2, BC3 = b_off
    cbiases = jnp.concatenate([q.reshape(-1).astype(jnp.float32)
                               for q in b_parts])

    def kernel(x1_ref, x2_ref, dm_ref, sm_ref, nrm_ref, cw_ref, cb_ref, o_ref):
        # Grid-invariant boundary masks, materialized ONCE per invocation as
        # full (D, S) tiles so the hot loop never re-does (D,1)/(1,S)
        # broadcasts.  All-ones masks (center taps) are skipped entirely.
        dmask_full = [None, None, None]
        for kz in (0, 2):
            dmask_full[kz] = jnp.broadcast_to(dm_ref[kz], (D, S))
        smask_full = [None] * 9
        for k in range(9):
            if k != 4:                              # (dh,dw)=(0,0) -> all ones
                smask_full[k] = jnp.broadcast_to(sm_ref[k], (D, S))

        def roll(x, shift, axis):
            s = shift % x.shape[axis]               # pltpu.roll: positive shift
            return x if s == 0 else pltpu.roll(x, s, axis)

        def inorm_lrelu(chs, g_off, be_off):
            out = []
            for i, xc in enumerate(chs):
                mu = jnp.mean(xc)
                c = xc - mu                         # reused for var + normalize
                var = jnp.mean(c * c)               # biased variance
                y = c * (jax.lax.rsqrt(var + EPS) * nrm_ref[g_off + i]) \
                    + nrm_ref[be_off + i]
                out.append(jnp.maximum(y, LEAK * y))  # leaky_relu(0.01)
            return out

        def conv3x3x3(chs, wt_off, bias_off, cin, cout):
            # accumulators start at the (broadcast) bias -> no trailing add
            accs = [jnp.full((D, S), cb_ref[bias_off + co], jnp.float32)
                    for co in range(cout)]
            for ci in range(cin):
                xc = chs[ci]
                # Hoisted: 3 depth-rolled bases (sublane rolls), depth-masked
                # once here; only one wrapped row is affected per non-zero dz.
                bases = []
                for kz in range(3):
                    dz = kz - 1
                    b = xc if dz == 0 else roll(xc, -dz, 0)
                    if dmask_full[kz] is not None:
                        b = b * dmask_full[kz]
                    bases.append(b)
                # Inner 9 taps: only a lane roll by dh*W+dw plus the spatial
                # mask; shared across all output channels.
                for kh in range(3):
                    for kw in range(3):
                        soff = (kh - 1) * W + (kw - 1)
                        sm = smask_full[kh * 3 + kw]
                        for kz in range(3):
                            xs = bases[kz]
                            if soff != 0:
                                xs = roll(xs, -soff, 1)
                            if sm is not None:
                                xs = xs * sm
                            for co in range(cout):
                                wv = cw_ref[wt_off + (co * cin + ci) * 27
                                            + kz * 9 + kh * 3 + kw]
                                accs[co] = accs[co] + wv * xs
            return accs

        # fused channel concat: list of per-channel (D, S) tiles
        ch = ([x1_ref[0, i] for i in range(C1)] +
              [x2_ref[0, i] for i in range(C2)])

        x = inorm_lrelu(ch, G0, B0)                 # lrelu(in_0(cat))
        x = conv3x3x3(x, W0, BC0, C, Ch)            # conv0
        skip = x
        x = inorm_lrelu(x, G1, B1)                  # lrelu(in_1)
        x = conv3x3x3(x, W1, BC1, Ch, Ch)           # conv1
        x = inorm_lrelu(x, G2, B2)                  # lrelu(in_2)
        x = conv3x3x3(x, W2, BC2, Ch, Ch)           # conv2
        x = [a + s for a, s in zip(x, skip)]        # residual
        x = inorm_lrelu(x, G3, B3)                  # lrelu(in_3)
        for co in range(Co):                        # 1x1x1 conv + sigmoid
            acc = jnp.full((D, S), cb_ref[BC3 + co], jnp.float32)
            for ci in range(Ch):
                acc = acc + cw_ref[W3 + co * Ch + ci] * x[ci]
            o_ref[0, co] = jax.nn.sigmoid(acc).astype(o_ref.dtype)

    grid_spec = pltpu.PrefetchScalarGridSpec(
        num_scalar_prefetch=0,
        grid=(N,),
        in_specs=[
            pl.BlockSpec((1, C1, D, S), lambda n: (n, 0, 0, 0)),
            pl.BlockSpec((1, C2, D, S), lambda n: (n, 0, 0, 0)),
            pl.BlockSpec((3, D, 1), lambda n: (0, 0, 0)),
            pl.BlockSpec((9, 1, S), lambda n: (0, 0, 0)),
            pl.BlockSpec(memory_space=pltpu.MemorySpace.SMEM),
            pl.BlockSpec(memory_space=pltpu.MemorySpace.SMEM),
            pl.BlockSpec(memory_space=pltpu.MemorySpace.SMEM),
        ],
        out_specs=pl.BlockSpec((1, Co, D, S), lambda n: (n, 0, 0, 0)),
    )

    # Right-size the VMEM budget from the actual working set:
    #   double-buffered in/out blocks + materialized masks + live activation
    #   tiles, x2 headroom; floor 8 MiB, cap 48 MiB (safe on v7x's 64 MiB).
    tile_bytes = D * S * 4
    io_bytes = 2 * (C1 + C2 + Co) * tile_bytes
    mask_bytes = (3 * D + 9 * S) * 4 + 11 * tile_bytes
    live_bytes = (C + 4 * Ch + 8) * tile_bytes
    vmem_limit = int(min(48 * 1024 * 1024,
                         max(8 * 1024 * 1024,
                             2 * (io_bytes + mask_bytes + live_bytes))))

    out = pl.pallas_call(
        kernel,
        out_shape=jax.ShapeDtypeStruct((N, Co, D, S), jnp.float32),
        grid_spec=grid_spec,
        compiler_params=pltpu.CompilerParams(
            dimension_semantics=("parallel",),
            vmem_limit_bytes=vmem_limit),
    )(x1_k, x2_k, dmask, smask, nparams, cweights, cbiases)

    return out.reshape(N, Co, D, H, W)


def reference(x1, x2, p):
    """Pure-JAX reference of out_conv.forward (training-mode instance norm)."""
    x = jnp.concatenate([x1, x2], axis=1)

    def inorm(y, g, b):
        mu = jnp.mean(y, axis=(2, 3, 4), keepdims=True)
        var = jnp.mean(jnp.square(y - mu), axis=(2, 3, 4), keepdims=True)
        yh = (y - mu) * jax.lax.rsqrt(var + EPS)
        return yh * g.reshape(1, -1, 1, 1, 1) + b.reshape(1, -1, 1, 1, 1)

    def lrelu(y):
        return jnp.maximum(y, LEAK * y)

    def conv(y, w, b, pad):
        out = jax.lax.conv_general_dilated(
            y, w, window_strides=(1, 1, 1), padding=[(pad, pad)] * 3,
            dimension_numbers=("NCDHW", "OIDHW", "NCDHW"),
            precision=jax.lax.Precision.HIGHEST)
        return out + b.reshape(1, -1, 1, 1, 1)

    x = lrelu(inorm(x, p["in0_g"], p["in0_b"]))
    x = conv(x, p["w0"], p["b0"], 1)
    skip = x
    x = lrelu(inorm(x, p["in1_g"], p["in1_b"]))
    x = lrelu(inorm(conv(x, p["w1"], p["b1"], 1), p["in2_g"], p["in2_b"]))
    x = conv(x, p["w2"], p["b2"], 1)
    x = x + skip
    x = lrelu(inorm(x, p["in3_g"], p["in3_b"]))
    return jax.nn.sigmoid(conv(x, p["w3"], p["b3"], 0))


if __name__ == "__main__":
    key = jax.random.PRNGKey(0)
    keys = jax.random.split(key, 20)

    N = 2
    IN_CH = 4            # input_channels (after the channel concat)
    OUT_CH = 2           # output_channels
    D, H, W = 8, 16, 16
    CH = IN_CH // 2

    x1 = jax.random.normal(keys[0], (N, IN_CH // 2, D, H, W), jnp.float32)
    x2 = jax.random.normal(keys[1], (N, IN_CH // 2, D, H, W), jnp.float32)

    def unif(k, shape, fan_in):
        bound = 1.0 / float(np.sqrt(fan_in))
        return jax.random.uniform(k, shape, jnp.float32, -bound, bound)

    p = {
        "in0_g": 1.0 + 0.1 * jax.random.normal(keys[2], (IN_CH,), jnp.float32),
        "in0_b": 0.1 * jax.random.normal(keys[3], (IN_CH,), jnp.float32),
        "in1_g": 1.0 + 0.1 * jax.random.normal(keys[4], (CH,), jnp.float32),
        "in1_b": 0.1 * jax.random.normal(keys[5], (CH,), jnp.float32),
        "in2_g": 1.0 + 0.1 * jax.random.normal(keys[6], (CH,), jnp.float32),
        "in2_b": 0.1 * jax.random.normal(keys[7], (CH,), jnp.float32),
        "in3_g": 1.0 + 0.1 * jax.random.normal(keys[8], (CH,), jnp.float32),
        "in3_b": 0.1 * jax.random.normal(keys[9], (CH,), jnp.float32),
        "w0": unif(keys[10], (CH, IN_CH, 3, 3, 3), IN_CH * 27),
        "b0": unif(keys[11], (CH,), IN_CH * 27),
        "w1": unif(keys[12], (CH, CH, 3, 3, 3), CH * 27),
        "b1": unif(keys[13], (CH,), CH * 27),
        "w2": unif(keys[14], (CH, CH, 3, 3, 3), CH * 27),
        "b2": unif(keys[15], (CH,), CH * 27),
        "w3": unif(keys[16], (OUT_CH, CH, 1, 1, 1), CH),
        "b3": unif(keys[17], (OUT_CH,), CH),
    }

    out = jax.block_until_ready(out_conv_forward(x1, x2, p))
    assert out.shape == (N, OUT_CH, D, H, W), out.shape

    ref = jax.block_until_ready(reference(x1, x2, p))
    err = float(jnp.max(jnp.abs(out - ref)))
    assert np.allclose(np.asarray(out), np.asarray(ref),
                       rtol=2e-3, atol=2e-3), err

    print("KERNEL_OK")
</pallas_src>

<mosaic_0001>
module attributes {stable_mosaic.version = 11 : i64} {
  func.func @kernel(%arg0: i32, %arg1: memref<1x2x8x256xf32, #tpu.memory_space<vmem>>, %arg2: memref<1x2x8x256xf32, #tpu.memory_space<vmem>>, %arg3: memref<3x8x1xf32, #tpu.memory_space<vmem>>, %arg4: memref<9x1x256xf32, #tpu.memory_space<vmem>>, %arg5: memref<20xf32, #tpu.memory_space<smem>>, %arg6: memref<436xf32, #tpu.memory_space<smem>>, %arg7: memref<8xf32, #tpu.memory_space<smem>>, %arg8: memref<1x2x8x256xf32, #tpu.memory_space<vmem>>) attributes {dimension_semantics = [#tpu.dimension_semantics<parallel>], iteration_bounds = array<i64: 2>, scalar_prefetch = 0 : i64, scratch_operands = 0 : i64, tpu.core_type = #tpu.core_type<tc>, window_params = [{transform_indices = @transform_0, window_bounds = array<i64: 1, 2, 8, 256>}, {transform_indices = @transform_1, window_bounds = array<i64: 1, 2, 8, 256>}, {pipeline_mode = #tpu.pipeline_mode<synchronous>, transform_indices = @transform_2, window_bounds = array<i64: 3, 8, 1>}, {pipeline_mode = #tpu.pipeline_mode<synchronous>, transform_indices = @transform_3, window_bounds = array<i64: 9, 1, 256>}, {transform_indices = @transform_4, window_bounds = array<i64: 20>}, {transform_indices = @transform_5, window_bounds = array<i64: 436>}, {transform_indices = @transform_6, window_bounds = array<i64: 8>}, {transform_indices = @transform_7, window_bounds = array<i64: 1, 2, 8, 256>}]} {
    %c0 = arith.constant 0 : index
    %c0_0 = arith.constant 0 : index
    %c0_1 = arith.constant 0 : index
    %0 = vector.load %arg3[%c0, %c0_0, %c0_1] : memref<3x8x1xf32, #tpu.memory_space<vmem>>, vector<1x8x1xf32>
    %1 = vector.shape_cast %0 : vector<1x8x1xf32> to vector<8x1xf32>
    %2 = vector.shape_cast %1 : vector<8x1xf32> to vector<8x1xf32>
    %3 = vector.broadcast %2 : vector<8x1xf32> to vector<8x256xf32>
    %c2 = arith.constant 2 : index
    %c0_2 = arith.constant 0 : index
    %c0_3 = arith.constant 0 : index
    %4 = vector.load %arg3[%c2, %c0_2, %c0_3] : memref<3x8x1xf32, #tpu.memory_space<vmem>>, vector<1x8x1xf32>
    %5 = vector.shape_cast %4 : vector<1x8x1xf32> to vector<8x1xf32>
    %6 = vector.shape_cast %5 : vector<8x1xf32> to vector<8x1xf32>
    %7 = vector.broadcast %6 : vector<8x1xf32> to vector<8x256xf32>
    %c0_4 = arith.constant 0 : index
    %c0_5 = arith.constant 0 : index
    %c0_6 = arith.constant 0 : index
    %8 = vector.load %arg4[%c0_4, %c0_5, %c0_6] : memref<9x1x256xf32, #tpu.memory_space<vmem>>, vector<1x1x256xf32>
    %9 = vector.shape_cast %8 : vector<1x1x256xf32> to vector<1x256xf32>
    %10 = vector.shape_cast %9 : vector<1x256xf32> to vector<1x256xf32>
    %11 = vector.broadcast %10 : vector<1x256xf32> to vector<8x256xf32>
    %c1 = arith.constant 1 : index
    %c0_7 = arith.constant 0 : index
    %c0_8 = arith.constant 0 : index
    %12 = vector.load %arg4[%c1, %c0_7, %c0_8] : memref<9x1x256xf32, #tpu.memory_space<vmem>>, vector<1x1x256xf32>
    %13 = vector.shape_cast %12 : vector<1x1x256xf32> to vector<1x256xf32>
    %14 = vector.shape_cast %13 : vector<1x256xf32> to vector<1x256xf32>
    %15 = vector.broadcast %14 : vector<1x256xf32> to vector<8x256xf32>
    %c2_9 = arith.constant 2 : index
    %c0_10 = arith.constant 0 : index
    %c0_11 = arith.constant 0 : index
    %16 = vector.load %arg4[%c2_9, %c0_10, %c0_11] : memref<9x1x256xf32, #tpu.memory_space<vmem>>, vector<1x1x256xf32>
    %17 = vector.shape_cast %16 : vector<1x1x256xf32> to vector<1x256xf32>
    %18 = vector.shape_cast %17 : vector<1x256xf32> to vector<1x256xf32>
    %19 = vector.broadcast %18 : vector<1x256xf32> to vector<8x256xf32>
    %c3 = arith.constant 3 : index
    %c0_12 = arith.constant 0 : index
    %c0_13 = arith.constant 0 : index
    %20 = vector.load %arg4[%c3, %c0_12, %c0_13] : memref<9x1x256xf32, #tpu.memory_space<vmem>>, vector<1x1x256xf32>
    %21 = vector.shape_cast %20 : vector<1x1x256xf32> to vector<1x256xf32>
    %22 = vector.shape_cast %21 : vector<1x256xf32> to vector<1x256xf32>
    %23 = vector.broadcast %22 : vector<1x256xf32> to vector<8x256xf32>
    %c5 = arith.constant 5 : index
    %c0_14 = arith.constant 0 : index
    %c0_15 = arith.constant 0 : index
    %24 = vector.load %arg4[%c5, %c0_14, %c0_15] : memref<9x1x256xf32, #tpu.memory_space<vmem>>, vector<1x1x256xf32>
    %25 = vector.shape_cast %24 : vector<1x1x256xf32> to vector<1x256xf32>
    %26 = vector.shape_cast %25 : vector<1x256xf32> to vector<1x256xf32>
    %27 = vector.broadcast %26 : vector<1x256xf32> to vector<8x256xf32>
    %c6 = arith.constant 6 : index
    %c0_16 = arith.constant 0 : index
    %c0_17 = arith.constant 0 : index
    %28 = vector.load %arg4[%c6, %c0_16, %c0_17] : memref<9x1x256xf32, #tpu.memory_space<vmem>>, vector<1x1x256xf32>
    %29 = vector.shape_cast %28 : vector<1x1x256xf32> to vector<1x256xf32>
    %30 = vector.shape_cast %29 : vector<1x256xf32> to vector<1x256xf32>
    %31 = vector.broadcast %30 : vector<1x256xf32> to vector<8x256xf32>
    %c7 = arith.constant 7 : index
    %c0_18 = arith.constant 0 : index
    %c0_19 = arith.constant 0 : index
    %32 = vector.load %arg4[%c7, %c0_18, %c0_19] : memref<9x1x256xf32, #tpu.memory_space<vmem>>, vector<1x1x256xf32>
    %33 = vector.shape_cast %32 : vector<1x1x256xf32> to vector<1x256xf32>
    %34 = vector.shape_cast %33 : vector<1x256xf32> to vector<1x256xf32>
    %35 = vector.broadcast %34 : vector<1x256xf32> to vector<8x256xf32>
    %c8 = arith.constant 8 : index
    %c0_20 = arith.constant 0 : index
    %c0_21 = arith.constant 0 : index
    %36 = vector.load %arg4[%c8, %c0_20, %c0_21] : memref<9x1x256xf32, #tpu.memory_space<vmem>>, vector<1x1x256xf32>
    %37 = vector.shape_cast %36 : vector<1x1x256xf32> to vector<1x256xf32>
    %38 = vector.shape_cast %37 : vector<1x256xf32> to vector<1x256xf32>
    %39 = vector.broadcast %38 : vector<1x256xf32> to vector<8x256xf32>
    %c0_22 = arith.constant 0 : index
    %c0_23 = arith.constant 0 : index
    %c0_24 = arith.constant 0 : index
    %c0_25 = arith.constant 0 : index
    %40 = vector.load %arg1[%c0_22, %c0_23, %c0_24, %c0_25] : memref<1x2x8x256xf32, #tpu.memory_space<vmem>>, vector<1x1x8x256xf32>
    %41 = vector.shape_cast %40 : vector<1x1x8x256xf32> to vector<8x256xf32>
    %c0_26 = arith.constant 0 : index
    %c1_27 = arith.constant 1 : index
    %c0_28 = arith.constant 0 : index
    %c0_29 = arith.constant 0 : index
    %42 = vector.load %arg1[%c0_26, %c1_27, %c0_28, %c0_29] : memref<1x2x8x256xf32, #tpu.memory_space<vmem>>, vector<1x1x8x256xf32>
    %43 = vector.shape_cast %42 : vector<1x1x8x256xf32> to vector<8x256xf32>
    %c0_30 = arith.constant 0 : index
    %c0_31 = arith.constant 0 : index
    %c0_32 = arith.constant 0 : index
    %c0_33 = arith.constant 0 : index
    %44 = vector.load %arg2[%c0_30, %c0_31, %c0_32, %c0_33] : memref<1x2x8x256xf32, #tpu.memory_space<vmem>>, vector<1x1x8x256xf32>
    %45 = vector.shape_cast %44 : vector<1x1x8x256xf32> to vector<8x256xf32>
    %c0_34 = arith.constant 0 : index
    %c1_35 = arith.constant 1 : index
    %c0_36 = arith.constant 0 : index
    %c0_37 = arith.constant 0 : index
    %46 = vector.load %arg2[%c0_34, %c1_35, %c0_36, %c0_37] : memref<1x2x8x256xf32, #tpu.memory_space<vmem>>, vector<1x1x8x256xf32>
    %47 = vector.shape_cast %46 : vector<1x1x8x256xf32> to vector<8x256xf32>
    %48 = vector.shape_cast %41 : vector<8x256xf32> to vector<1x8x256xf32>
    %cst = arith.constant dense<0.000000e+00> : vector<1xf32>
    %49 = vector.multi_reduction <add>, %48, %cst [1, 2] : vector<1x8x256xf32> to vector<1xf32>
    %50 = vector.shape_cast %49 : vector<1xf32> to vector<1x1x1xf32>
    %51 = vector.extract %50[0, 0, 0] : f32 from vector<1x1x1xf32>
    %cst_38 = arith.constant 2.048000e+03 : f32
    %52 = arith.divf %51, %cst_38 : f32
    %53 = vector.broadcast %52 : f32 to vector<8x256xf32>
    %54 = arith.subf %41, %53 : vector<8x256xf32>
    %55 = arith.mulf %54, %54 : vector<8x256xf32>
    %56 = vector.shape_cast %55 : vector<8x256xf32> to vector<1x8x256xf32>
    %cst_39 = arith.constant dense<0.000000e+00> : vector<1xf32>
    %57 = vector.multi_reduction <add>, %56, %cst_39 [1, 2] : vector<1x8x256xf32> to vector<1xf32>
    %58 = vector.shape_cast %57 : vector<1xf32> to vector<1x1x1xf32>
    %59 = vector.extract %58[0, 0, 0] : f32 from vector<1x1x1xf32>
    %cst_40 = arith.constant 2.048000e+03 : f32
    %60 = arith.divf %59, %cst_40 : f32
    %cst_41 = arith.constant 9.99999974E-6 : f32
    %61 = arith.addf %60, %cst_41 : f32
    %62 = math.rsqrt %61 : f32
    %c0_42 = arith.constant 0 : index
    %63 = memref.load %arg5[%c0_42] : memref<20xf32, #tpu.memory_space<smem>>
    %64 = arith.mulf %62, %63 : f32
    %65 = vector.broadcast %64 : f32 to vector<8x256xf32>
    %66 = arith.mulf %54, %65 : vector<8x256xf32>
    %c4 = arith.constant 4 : index
    %67 = memref.load %arg5[%c4] : memref<20xf32, #tpu.memory_space<smem>>
    %68 = vector.broadcast %67 : f32 to vector<8x256xf32>
    %69 = arith.addf %66, %68 : vector<8x256xf32>
    %cst_43 = arith.constant 0.00999999977 : f32
    %70 = vector.broadcast %cst_43 : f32 to vector<8x256xf32>
    %71 = arith.mulf %70, %69 : vector<8x256xf32>
    %72 = arith.maximumf %69, %71 : vector<8x256xf32>
    %73 = vector.shape_cast %43 : vector<8x256xf32> to vector<1x8x256xf32>
    %cst_44 = arith.constant dense<0.000000e+00> : vector<1xf32>
    %74 = vector.multi_reduction <add>, %73, %cst_44 [1, 2] : vector<1x8x256xf32> to vector<1xf32>
    %75 = vector.shape_cast %74 : vector<1xf32> to vector<1x1x1xf32>
    %76 = vector.extract %75[0, 0, 0] : f32 from vector<1x1x1xf32>
    %cst_45 = arith.constant 2.048000e+03 : f32
    %77 = arith.divf %76, %cst_45 : f32
    %78 = vector.broadcast %77 : f32 to vector<8x256xf32>
    %79 = arith.subf %43, %78 : vector<8x256xf32>
    %80 = arith.mulf %79, %79 : vector<8x256xf32>
    %81 = vector.shape_cast %80 : vector<8x256xf32> to vector<1x8x256xf32>
    %cst_46 = arith.constant dense<0.000000e+00> : vector<1xf32>
    %82 = vector.multi_reduction <add>, %81, %cst_46 [1, 2] : vector<1x8x256xf32> to vector<1xf32>
    %83 = vector.shape_cast %82 : vector<1xf32> to vector<1x1x1xf32>
    %84 = vector.extract %83[0, 0, 0] : f32 from vector<1x1x1xf32>
    %cst_47 = arith.constant 2.048000e+03 : f32
    %85 = arith.divf %84, %cst_47 : f32
    %cst_48 = arith.constant 9.99999974E-6 : f32
    %86 = arith.addf %85, %cst_48 : f32
    %87 = math.rsqrt %86 : f32
    %c1_49 = arith.constant 1 : index
    %88 = memref.load %arg5[%c1_49] : memref<20xf32, #tpu.memory_space<smem>>
    %89 = arith.mulf %87, %88 : f32
    %90 = vector.broadcast %89 : f32 to vector<8x256xf32>
    %91 = arith.mulf %79, %90 : vector<8x256xf32>
    %c5_50 = arith.constant 5 : index
    %92 = memref.load %arg5[%c5_50] : memref<20xf32, #tpu.memory_space<smem>>
    %93 = vector.broadcast %92 : f32 to vector<8x256xf32>
    %94 = arith.addf %91, %93 : vector<8x256xf32>
    %cst_51 = arith.constant 0.00999999977 : f32
    %95 = vector.broadcast %cst_51 : f32 to vector<8x256xf32>
    %96 = arith.mulf %95, %94 : vector<8x256xf32>
    %97 = arith.maximumf %94, %96 : vector<8x256xf32>
    %98 = vector.shape_cast %45 : vector<8x256xf32> to vector<1x8x256xf32>
    %cst_52 = arith.constant dense<0.000000e+00> : vector<1xf32>
    %99 = vector.multi_reduction <add>, %98, %cst_52 [1, 2] : vector<1x8x256xf32> to vector<1xf32>
    %100 = vector.shape_cast %99 : vector<1xf32> to vector<1x1x1xf32>
    %101 = vector.extract %100[0, 0, 0] : f32 from vector<1x1x1xf32>
    %cst_53 = arith.constant 2.048000e+03 : f32
    %102 = arith.divf %101, %cst_53 : f32
    %103 = vector.broadcast %102 : f32 to vector<8x256xf32>
    %104 = arith.subf %45, %103 : vector<8x256xf32>
    %105 = arith.mulf %104, %104 : vector<8x256xf32>
    %106 = vector.shape_cast %105 : vector<8x256xf32> to vector<1x8x256xf32>
    %cst_54 = arith.constant dense<0.000000e+00> : vector<1xf32>
    %107 = vector.multi_reduction <add>, %106, %cst_54 [1, 2] : vector<1x8x256xf32> to vector<1xf32>
    %108 = vector.shape_cast %107 : vector<1xf32> to vector<1x1x1xf32>
    %109 = vector.extract %108[0, 0, 0] : f32 from vector<1x1x1xf32>
    %cst_55 = arith.constant 2.048000e+03 : f32
    %110 = arith.divf %109, %cst_55 : f32
    %cst_56 = arith.constant 9.99999974E-6 : f32
    %111 = arith.addf %110, %cst_56 : f32
    %112 = math.rsqrt %111 : f32
    %c2_57 = arith.constant 2 : index
    %113 = memref.load %arg5[%c2_57] : memref<20xf32, #tpu.memory_space<smem>>
    %114 = arith.mulf %112, %113 : f32
    %115 = vector.broadcast %114 : f32 to vector<8x256xf32>
    %116 = arith.mulf %104, %115 : vector<8x256xf32>
    %c6_58 = arith.constant 6 : index
    %117 = memref.load %arg5[%c6_58] : memref<20xf32, #tpu.memory_space<smem>>
    %118 = vector.broadcast %117 : f32 to vector<8x256xf32>
    %119 = arith.addf %116, %118 : vector<8x256xf32>
    %cst_59 = arith.constant 0.00999999977 : f32
    %120 = vector.broadcast %cst_59 : f32 to vector<8x256xf32>
    %121 = arith.mulf %120, %119 : vector<8x256xf32>
    %122 = arith.maximumf %119, %121 : vector<8x256xf32>
    %123 = vector.shape_cast %47 : vector<8x256xf32> to vector<1x8x256xf32>
    %cst_60 = arith.constant dense<0.000000e+00> : vector<1xf32>
    %124 = vector.multi_reduction <add>, %123, %cst_60 [1, 2] : vector<1x8x256xf32> to vector<1xf32>
    %125 = vector.shape_cast %124 : vector<1xf32> to vector<1x1x1xf32>
    %126 = vector.extract %125[0, 0, 0] : f32 from vector<1x1x1xf32>
    %cst_61 = arith.constant 2.048000e+03 : f32
    %127 = arith.divf %126, %cst_61 : f32
    %128 = vector.broadcast %127 : f32 to vector<8x256xf32>
    %129 = arith.subf %47, %128 : vector<8x256xf32>
    %130 = arith.mulf %129, %129 : vector<8x256xf32>
    %131 = vector.shape_cast %130 : vector<8x256xf32> to vector<1x8x256xf32>
    %cst_62 = arith.constant dense<0.000000e+00> : vector<1xf32>
    %132 = vector.multi_reduction <add>, %131, %cst_62 [1, 2] : vector<1x8x256xf32> to vector<1xf32>
    %133 = vector.shape_cast %132 : vector<1xf32> to vector<1x1x1xf32>
    %134 = vector.extract %133[0, 0, 0] : f32 from vector<1x1x1xf32>
    %cst_63 = arith.constant 2.048000e+03 : f32
    %135 = arith.divf %134, %cst_63 : f32
    %cst_64 = arith.constant 9.99999974E-6 : f32
    %136 = arith.addf %135, %cst_64 : f32
    %137 = math.rsqrt %136 : f32
    %c3_65 = arith.constant 3 : index
    %138 = memref.load %arg5[%c3_65] : memref<20xf32, #tpu.memory_space<smem>>
    %139 = arith.mulf %137, %138 : f32
    %140 = vector.broadcast %139 : f32 to vector<8x256xf32>
    %141 = arith.mulf %129, %140 : vector<8x256xf32>
    %c7_66 = arith.constant 7 : index
    %142 = memref.load %arg5[%c7_66] : memref<20xf32, #tpu.memory_space<smem>>
    %143 = vector.broadcast %142 : f32 to vector<8x256xf32>
    %144 = arith.addf %141, %143 : vector<8x256xf32>
    %cst_67 = arith.constant 0.00999999977 : f32
    %145 = vector.broadcast %cst_67 : f32 to vector<8x256xf32>
    %146 = arith.mulf %145, %144 : vector<8x256xf32>
    %147 = arith.maximumf %144, %146 : vector<8x256xf32>
    %c0_68 = arith.constant 0 : index
    %148 = memref.load %arg7[%c0_68] : memref<8xf32, #tpu.memory_space<smem>>
    %149 = vector.broadcast %148 : f32 to vector<8x256xf32>
    %c1_69 = arith.constant 1 : index
    %150 = memref.load %arg7[%c1_69] : memref<8xf32, #tpu.memory_space<smem>>
    %151 = vector.broadcast %150 : f32 to vector<8x256xf32>
    %c1_i32 = arith.constant 1 : i32
    %152 = tpu.dynamic_rotate %72 by %c1_i32 dim 0 : vector<8x256xf32>, i32 -> vector<8x256xf32>
    %153 = arith.mulf %152, %3 : vector<8x256xf32>
    %c7_i32 = arith.constant 7 : i32
    %154 = tpu.dynamic_rotate %72 by %c7_i32 dim 0 : vector<8x256xf32>, i32 -> vector<8x256xf32>
    %155 = arith.mulf %154, %7 : vector<8x256xf32>
    %c17_i32 = arith.constant 17 : i32
    %156 = tpu.dynamic_rotate %153 by %c17_i32 dim 1 : vector<8x256xf32>, i32 -> vector<8x256xf32>
    %157 = arith.mulf %156, %11 : vector<8x256xf32>
    %c0_70 = arith.constant 0 : index
    %158 = memref.load %arg6[%c0_70] : memref<436xf32, #tpu.memory_space<smem>>
    %159 = vector.broadcast %158 : f32 to vector<8x256xf32>
    %160 = arith.mulf %159, %157 : vector<8x256xf32>
    %161 = arith.addf %149, %160 : vector<8x256xf32>
    %c108 = arith.constant 108 : index
    %162 = memref.load %arg6[%c108] : memref<436xf32, #tpu.memory_space<smem>>
    %163 = vector.broadcast %162 : f32 to vector<8x256xf32>
    %164 = arith.mulf %163, %157 : vector<8x256xf32>
    %165 = arith.addf %151, %164 : vector<8x256xf32>
    %c17_i32_71 = arith.constant 17 : i32
    %166 = tpu.dynamic_rotate %72 by %c17_i32_71 dim 1 : vector<8x256xf32>, i32 -> vector<8x256xf32>
    %167 = arith.mulf %166, %11 : vector<8x256xf32>
    %c9 = arith.constant 9 : index
    %168 = memref.load %arg6[%c9] : memref<436xf32, #tpu.memory_space<smem>>
    %169 = vector.broadcast %168 : f32 to vector<8x256xf32>
    %170 = arith.mulf %169, %167 : vector<8x256xf32>
    %171 = arith.addf %161, %170 : vector<8x256xf32>
    %c117 = arith.constant 117 : index
    %172 = memref.load %arg6[%c117] : memref<436xf32, #tpu.memory_space<smem>>
    %173 = vector.broadcast %172 : f32 to vector<8x256xf32>
    %174 = arith.mulf %173, %167 : vector<8x256xf32>
    %175 = arith.addf %165, %174 : vector<8x256xf32>
    %c17_i32_72 = arith.constant 17 : i32
    %176 = tpu.dynamic_rotate %155 by %c17_i32_72 dim 1 : vector<8x256xf32>, i32 -> vector<8x256xf32>
    %177 = arith.mulf %176, %11 : vector<8x256xf32>
    %c18 = arith.constant 18 : index
    %178 = memref.load %arg6[%c18] : memref<436xf32, #tpu.memory_space<smem>>
    %179 = vector.broadcast %178 : f32 to vector<8x256xf32>
    %180 = arith.mulf %179, %177 : vector<8x256xf32>
    %181 = arith.addf %171, %180 : vector<8x256xf32>
    %c126 = arith.constant 126 : index
    %182 = memref.load %arg6[%c126] : memref<436xf32, #tpu.memory_space<smem>>
    %183 = vector.broadcast %182 : f32 to vector<8x256xf32>
    %184 = arith.mulf %183, %177 : vector<8x256xf32>
    %185 = arith.addf %175, %184 : vector<8x256xf32>
    %c16_i32 = arith.constant 16 : i32
    %186 = tpu.dynamic_rotate %153 by %c16_i32 dim 1 : vector<8x256xf32>, i32 -> vector<8x256xf32>
    %187 = arith.mulf %186, %15 : vector<8x256xf32>
    %c1_73 = arith.constant 1 : index
    %188 = memref.load %arg6[%c1_73] : memref<436xf32, #tpu.memory_space<smem>>
    %189 = vector.broadcast %188 : f32 to vector<8x256xf32>
    %190 = arith.mulf %189, %187 : vector<8x256xf32>
    %191 = arith.addf %181, %190 : vector<8x256xf32>
    %c109 = arith.constant 109 : index
    %192 = memref.load %arg6[%c109] : memref<436xf32, #tpu.memory_space<smem>>
    %193 = vector.broadcast %192 : f32 to vector<8x256xf32>
    %194 = arith.mulf %193, %187 : vector<8x256xf32>
    %195 = arith.addf %185, %194 : vector<8x256xf32>
    %c16_i32_74 = arith.constant 16 : i32
    %196 = tpu.dynamic_rotate %72 by %c16_i32_74 dim 1 : vector<8x256xf32>, i32 -> vector<8x256xf32>
    %197 = arith.mulf %196, %15 : vector<8x256xf32>
    %c10 = arith.constant 10 : index
    %198 = memref.load %arg6[%c10] : memref<436xf32, #tpu.memory_space<smem>>
    %199 = vector.broadcast %198 : f32 to vector<8x256xf32>
    %200 = arith.mulf %199, %197 : vector<8x256xf32>
    %201 = arith.addf %191, %200 : vector<8x256xf32>
    %c118 = arith.constant 118 : index
    %202 = memref.load %arg6[%c118] : memref<436xf32, #tpu.memory_space<smem>>
    %203 = vector.broadcast %202 : f32 to vector<8x256xf32>
    %204 = arith.mulf %203, %197 : vector<8x256xf32>
    %205 = arith.addf %195, %204 : vector<8x256xf32>
    %c16_i32_75 = arith.constant 16 : i32
    %206 = tpu.dynamic_rotate %155 by %c16_i32_75 dim 1 : vector<8x256xf32>, i32 -> vector<8x256xf32>
    %207 = arith.mulf %206, %15 : vector<8x256xf32>
    %c19 = arith.constant 19 : index
    %208 = memref.load %arg6[%c19] : memref<436xf32, #tpu.memory_space<smem>>
    %209 = vector.broadcast %208 : f32 to vector<8x256xf32>
    %210 = arith.mulf %209, %207 : vector<8x256xf32>
    %211 = arith.addf %201, %210 : vector<8x256xf32>
    %c127 = arith.constant 127 : index
    %212 = memref.load %arg6[%c127] : memref<436xf32, #tpu.memory_space<smem>>
    %213 = vector.broadcast %212 : f32 to vector<8x256xf32>
    %214 = arith.mulf %213, %207 : vector<8x256xf32>
    %215 = arith.addf %205, %214 : vector<8x256xf32>
    %c15_i32 = arith.constant 15 : i32
    %216 = tpu.dynamic_rotate %153 by %c15_i32 dim 1 : vector<8x256xf32>, i32 -> vector<8x256xf32>
    %217 = arith.mulf %216, %19 : vector<8x256xf32>
    %c2_76 = arith.constant 2 : index
    %218 = memref.load %arg6[%c2_76] : memref<436xf32, #tpu.memory_space<smem>>
    %219 = vector.broadcast %218 : f32 to vector<8x256xf32>
    %220 = arith.mulf %219, %217 : vector<8x256xf32>
    %221 = arith.addf %211, %220 : vector<8x256xf32>
    %c110 = arith.constant 110 : index
    %222 = memref.load %arg6[%c110] : memref<436xf32, #tpu.memory_space<smem>>
    %223 = vector.broadcast %222 : f32 to vector<8x256xf32>
    %224 = arith.mulf %223, %217 : vector<8x256xf32>
    %225 = arith.addf %215, %224 : vector<8x256xf32>
    %c15_i32_77 = arith.constant 15 : i32
    %226 = tpu.dynamic_rotate %72 by %c15_i32_77 dim 1 : vector<8x256xf32>, i32 -> vector<8x256xf32>
    %227 = arith.mulf %226, %19 : vector<8x256xf32>
    %c11 = arith.constant 11 : index
    %228 = memref.load %arg6[%c11] : memref<436xf32, #tpu.memory_space<smem>>
    %229 = vector.broadcast %228 : f32 to vector<8x256xf32>
    %230 = arith.mulf %229, %227 : vector<8x256xf32>
    %231 = arith.addf %221, %230 : vector<8x256xf32>
    %c119 = arith.constant 119 : index
    %232 = memref.load %arg6[%c119] : memref<436xf32, #tpu.memory_space<smem>>
    %233 = vector.broadcast %232 : f32 to vector<8x256xf32>
    %234 = arith.mulf %233, %227 : vector<8x256xf32>
    %235 = arith.addf %225, %234 : vector<8x256xf32>
    %c15_i32_78 = arith.constant 15 : i32
    %236 = tpu.dynamic_rotate %155 by %c15_i32_78 dim 1 : vector<8x256xf32>, i32 -> vector<8x256xf32>
    %237 = arith.mulf %236, %19 : vector<8x256xf32>
    %c20 = arith.constant 20 : index
    %238 = memref.load %arg6[%c20] : memref<436xf32, #tpu.memory_space<smem>>
    %239 = vector.broadcast %238 : f32 to vector<8x256xf32>
    %240 = arith.mulf %239, %237 : vector<8x256xf32>
    %241 = arith.addf %231, %240 : vector<8x256xf32>
    %c128 = arith.constant 128 : index
    %242 = memref.load %arg6[%c128] : memref<436xf32, #tpu.memory_space<smem>>
    %243 = vector.broadcast %242 : f32 to vector<8x256xf32>
    %244 = arith.mulf %243, %237 : vector<8x256xf32>
    %245 = arith.addf %235, %244 : vector<8x256xf32>
    %c1_i32_79 = arith.constant 1 : i32
    %246 = tpu.dynamic_rotate %153 by %c1_i32_79 dim 1 : vector<8x256xf32>, i32 -> vector<8x256xf32>
    %247 = arith.mulf %246, %23 : vector<8x256xf32>
    %c3_80 = arith.constant 3 : index
    %248 = memref.load %arg6[%c3_80] : memref<436xf32, #tpu.memory_space<smem>>
    %249 = vector.broadcast %248 : f32 to vector<8x256xf32>
    %250 = arith.mulf %249, %247 : vector<8x256xf32>
    %251 = arith.addf %241, %250 : vector<8x256xf32>
    %c111 = arith.constant 111 : index
    %252 = memref.load %arg6[%c111] : memref<436xf32, #tpu.memory_space<smem>>
    %253 = vector.broadcast %252 : f32 to vector<8x256xf32>
    %254 = arith.mulf %253, %247 : vector<8x256xf32>
    %255 = arith.addf %245, %254 : vector<8x256xf32>
    %c1_i32_81 = arith.constant 1 : i32
    %256 = tpu.dynamic_rotate %72 by %c1_i32_81 dim 1 : vector<8x256xf32>, i32 -> vector<8x256xf32>
    %257 = arith.mulf %256, %23 : vector<8x256xf32>
    %c12 = arith.constant 12 : index
    %258 = memref.load %arg6[%c12] : memref<436xf32, #tpu.memory_space<smem>>
    %259 = vector.broadcast %258 : f32 to vector<8x256xf32>
    %260 = arith.mulf %259, %257 : vector<8x256xf32>
    %261 = arith.addf %251, %260 : vector<8x256xf32>
    %c120 = arith.constant 120 : index
    %262 = memref.load %arg6[%c120] : memref<436xf32, #tpu.memory_space<smem>>
    %263 = vector.broadcast %262 : f32 to vector<8x256xf32>
    %264 = arith.mulf %263, %257 : vector<8x256xf32>
    %265 = arith.addf %255, %264 : vector<8x256xf32>
    %c1_i32_82 = arith.constant 1 : i32
    %266 = tpu.dynamic_rotate %155 by %c1_i32_82 dim 1 : vector<8x256xf32>, i32 -> vector<8x256xf32>
    %267 = arith.mulf %266, %23 : vector<8x256xf32>
    %c21 = arith.constant 21 : index
    %268 = memref.load %arg6[%c21] : memref<436xf32, #tpu.memory_space<smem>>
    %269 = vector.broadcast %268 : f32 to vector<8x256xf32>
    %270 = arith.mulf %269, %267 : vector<8x256xf32>
    %271 = arith.addf %261, %270 : vector<8x256xf32>
    %c129 = arith.constant 129 : index
    %272 = memref.load %arg6[%c129] : memref<436xf32, #tpu.memory_space<smem>>
    %273 = vector.broadcast %272 : f32 to vector<8x256xf32>
    %274 = arith.mulf %273, %267 : vector<8x256xf32>
    %275 = arith.addf %265, %274 : vector<8x256xf32>
    %c4_83 = arith.constant 4 : index
    %276 = memref.load %arg6[%c4_83] : memref<436xf32, #tpu.memory_space<smem>>
    %277 = vector.broadcast %276 : f32 to vector<8x256xf32>
    %278 = arith.mulf %277, %153 : vector<8x256xf32>
    %279 = arith.addf %271, %278 : vector<8x256xf32>
    %c112 = arith.constant 112 : index
    %280 = memref.load %arg6[%c112] : memref<436xf32, #tpu.memory_space<smem>>
    %281 = vector.broadcast %280 : f32 to vector<8x256xf32>
    %282 = arith.mulf %281, %153 : vector<8x256xf32>
    %283 = arith.addf %275, %282 : vector<8x256xf32>
    %c13 = arith.constant 13 : index
    %284 = memref.load %arg6[%c13] : memref<436xf32, #tpu.memory_space<smem>>
    %285 = vector.broadcast %284 : f32 to vector<8x256xf32>
    %286 = arith.mulf %285, %72 : vector<8x256xf32>
    %287 = arith.addf %279, %286 : vector<8x256xf32>
    %c121 = arith.constant 121 : index
    %288 = memref.load %arg6[%c121] : memref<436xf32, #tpu.memory_space<smem>>
    %289 = vector.broadcast %288 : f32 to vector<8x256xf32>
    %290 = arith.mulf %289, %72 : vector<8x256xf32>
    %291 = arith.addf %283, %290 : vector<8x256xf32>
    %c22 = arith.constant 22 : index
    %292 = memref.load %arg6[%c22] : memref<436xf32, #tpu.memory_space<smem>>
    %293 = vector.broadcast %292 : f32 to vector<8x256xf32>
    %294 = arith.mulf %293, %155 : vector<8x256xf32>
    %295 = arith.addf %287, %294 : vector<8x256xf32>
    %c130 = arith.constant 130 : index
    %296 = memref.load %arg6[%c130] : memref<436xf32, #tpu.memory_space<smem>>
    %297 = vector.broadcast %296 : f32 to vector<8x256xf32>
    %298 = arith.mulf %297, %155 : vector<8x256xf32>
    %299 = arith.addf %291, %298 : vector<8x256xf32>
    %c255_i32 = arith.constant 255 : i32
    %300 = tpu.dynamic_rotate %153 by %c255_i32 dim 1 : vector<8x256xf32>, i32 -> vector<8x256xf32>
    %301 = arith.mulf %300, %27 : vector<8x256xf32>
    %c5_84 = arith.constant 5 : index
    %302 = memref.load %arg6[%c5_84] : memref<436xf32, #tpu.memory_space<smem>>
    %303 = vector.broadcast %302 : f32 to vector<8x256xf32>
    %304 = arith.mulf %303, %301 : vector<8x256xf32>
    %305 = arith.addf %295, %304 : vector<8x256xf32>
    %c113 = arith.constant 113 : index
    %306 = memref.load %arg6[%c113] : memref<436xf32, #tpu.memory_space<smem>>
    %307 = vector.broadcast %306 : f32 to vector<8x256xf32>
    %308 = arith.mulf %307, %301 : vector<8x256xf32>
    %309 = arith.addf %299, %308 : vector<8x256xf32>
    %c255_i32_85 = arith.constant 255 : i32
    %310 = tpu.dynamic_rotate %72 by %c255_i32_85 dim 1 : vector<8x256xf32>, i32 -> vector<8x256xf32>
    %311 = arith.mulf %310, %27 : vector<8x256xf32>
    %c14 = arith.constant 14 : index
    %312 = memref.load %arg6[%c14] : memref<436xf32, #tpu.memory_space<smem>>
    %313 = vector.broadcast %312 : f32 to vector<8x256xf32>
    %314 = arith.mulf %313, %311 : vector<8x256xf32>
    %315 = arith.addf %305, %314 : vector<8x256xf32>
    %c122 = arith.constant 122 : index
    %316 = memref.load %arg6[%c122] : memref<436xf32, #tpu.memory_space<smem>>
    %317 = vector.broadcast %316 : f32 to vector<8x256xf32>
    %318 = arith.mulf %317, %311 : vector<8x256xf32>
    %319 = arith.addf %309, %318 : vector<8x256xf32>
    %c255_i32_86 = arith.constant 255 : i32
    %320 = tpu.dynamic_rotate %155 by %c255_i32_86 dim 1 : vector<8x256xf32>, i32 -> vector<8x256xf32>
    %321 = arith.mulf %320, %27 : vector<8x256xf32>
    %c23 = arith.constant 23 : index
    %322 = memref.load %arg6[%c23] : memref<436xf32, #tpu.memory_space<smem>>
    %323 = vector.broadcast %322 : f32 to vector<8x256xf32>
    %324 = arith.mulf %323, %321 : vector<8x256xf32>
    %325 = arith.addf %315, %324 : vector<8x256xf32>
    %c131 = arith.constant 131 : index
    %326 = memref.load %arg6[%c131] : memref<436xf32, #tpu.memory_space<smem>>
    %327 = vector.broadcast %326 : f32 to vector<8x256xf32>
    %328 = arith.mulf %327, %321 : vector<8x256xf32>
    %329 = arith.addf %319, %328 : vector<8x256xf32>
    %c241_i32 = arith.constant 241 : i32
    %330 = tpu.dynamic_rotate %153 by %c241_i32 dim 1 : vector<8x256xf32>, i32 -> vector<8x256xf32>
    %331 = arith.mulf %330, %31 : vector<8x256xf32>
    %c6_87 = arith.constant 6 : index
    %332 = memref.load %arg6[%c6_87] : memref<436xf32, #tpu.memory_space<smem>>
    %333 = vector.broadcast %332 : f32 to vector<8x256xf32>
    %334 = arith.mulf %333, %331 : vector<8x256xf32>
    %335 = arith.addf %325, %334 : vector<8x256xf32>
    %c114 = arith.constant 114 : index
    %336 = memref.load %arg6[%c114] : memref<436xf32, #tpu.memory_space<smem>>
    %337 = vector.broadcast %336 : f32 to vector<8x256xf32>
    %338 = arith.mulf %337, %331 : vector<8x256xf32>
    %339 = arith.addf %329, %338 : vector<8x256xf32>
    %c241_i32_88 = arith.constant 241 : i32
    %340 = tpu.dynamic_rotate %72 by %c241_i32_88 dim 1 : vector<8x256xf32>, i32 -> vector<8x256xf32>
    %341 = arith.mulf %340, %31 : vector<8x256xf32>
    %c15 = arith.constant 15 : index
    %342 = memref.load %arg6[%c15] : memref<436xf32, #tpu.memory_space<smem>>
    %343 = vector.broadcast %342 : f32 to vector<8x256xf32>
    %344 = arith.mulf %343, %341 : vector<8x256xf32>
    %345 = arith.addf %335, %344 : vector<8x256xf32>
    %c123 = arith.constant 123 : index
    %346 = memref.load %arg6[%c123] : memref<436xf32, #tpu.memory_space<smem>>
    %347 = vector.broadcast %346 : f32 to vector<8x256xf32>
    %348 = arith.mulf %347, %341 : vector<8x256xf32>
    %349 = arith.addf %339, %348 : vector<8x256xf32>
    %c241_i32_89 = arith.constant 241 : i32
    %350 = tpu.dynamic_rotate %155 by %c241_i32_89 dim 1 : vector<8x256xf32>, i32 -> vector<8x256xf32>
    %351 = arith.mulf %350, %31 : vector<8x256xf32>
    %c24 = arith.constant 24 : index
    %352 = memref.load %arg6[%c24] : memref<436xf32, #tpu.memory_space<smem>>
    %353 = vector.broadcast %352 : f32 to vector<8x256xf32>
    %354 = arith.mulf %353, %351 : vector<8x256xf32>
    %355 = arith.addf %345, %354 : vector<8x256xf32>
    %c132 = arith.constant 132 : index
    %356 = memref.load %arg6[%c132] : memref<436xf32, #tpu.memory_space<smem>>
    %357 = vector.broadcast %356 : f32 to vector<8x256xf32>
    %358 = arith.mulf %357, %351 : vector<8x256xf32>
    %359 = arith.addf %349, %358 : vector<8x256xf32>
    %c240_i32 = arith.constant 240 : i32
    %360 = tpu.dynamic_rotate %153 by %c240_i32 dim 1 : vector<8x256xf32>, i32 -> vector<8x256xf32>
    %361 = arith.mulf %360, %35 : vector<8x256xf32>
    %c7_90 = arith.constant 7 : index
    %362 = memref.load %arg6[%c7_90] : memref<436xf32, #tpu.memory_space<smem>>
    %363 = vector.broadcast %362 : f32 to vector<8x256xf32>
    %364 = arith.mulf %363, %361 : vector<8x256xf32>
    %365 = arith.addf %355, %364 : vector<8x256xf32>
    %c115 = arith.constant 115 : index
    %366 = memref.load %arg6[%c115] : memref<436xf32, #tpu.memory_space<smem>>
    %367 = vector.broadcast %366 : f32 to vector<8x256xf32>
    %368 = arith.mulf %367, %361 : vector<8x256xf32>
    %369 = arith.addf %359, %368 : vector<8x256xf32>
    %c240_i32_91 = arith.constant 240 : i32
    %370 = tpu.dynamic_rotate %72 by %c240_i32_91 dim 1 : vector<8x256xf32>, i32 -> vector<8x256xf32>
    %371 = arith.mulf %370, %35 : vector<8x256xf32>
    %c16 = arith.constant 16 : index
    %372 = memref.load %arg6[%c16] : memref<436xf32, #tpu.memory_space<smem>>
    %373 = vector.broadcast %372 : f32 to vector<8x256xf32>
    %374 = arith.mulf %373, %371 : vector<8x256xf32>
    %375 = arith.addf %365, %374 : vector<8x256xf32>
    %c124 = arith.constant 124 : index
    %376 = memref.load %arg6[%c124] : memref<436xf32, #tpu.memory_space<smem>>
    %377 = vector.broadcast %376 : f32 to vector<8x256xf32>
    %378 = arith.mulf %377, %371 : vector<8x256xf32>
    %379 = arith.addf %369, %378 : vector<8x256xf32>
    %c240_i32_92 = arith.constant 240 : i32
    %380 = tpu.dynamic_rotate %155 by %c240_i32_92 dim 1 : vector<8x256xf32>, i32 -> vector<8x256xf32>
    %381 = arith.mulf %380, %35 : vector<8x256xf32>
    %c25 = arith.constant 25 : index
    %382 = memref.load %arg6[%c25] : memref<436xf32, #tpu.memory_space<smem>>
    %383 = vector.broadcast %382 : f32 to vector<8x256xf32>
    %384 = arith.mulf %383, %381 : vector<8x256xf32>
    %385 = arith.addf %375, %384 : vector<8x256xf32>
    %c133 = arith.constant 133 : index
    %386 = memref.load %arg6[%c133] : memref<436xf32, #tpu.memory_space<smem>>
    %387 = vector.broadcast %386 : f32 to vector<8x256xf32>
    %388 = arith.mulf %387, %381 : vector<8x256xf32>
    %389 = arith.addf %379, %388 : vector<8x256xf32>
    %c239_i32 = arith.constant 239 : i32
    %390 = tpu.dynamic_rotate %153 by %c239_i32 dim 1 : vector<8x256xf32>, i32 -> vector<8x256xf32>
    %391 = arith.mulf %390, %39 : vector<8x256xf32>
    %c8_93 = arith.constant 8 : index
    %392 = memref.load %arg6[%c8_93] : memref<436xf32, #tpu.memory_space<smem>>
    %393 = vector.broadcast %392 : f32 to vector<8x256xf32>
    %394 = arith.mulf %393, %391 : vector<8x256xf32>
    %395 = arith.addf %385, %394 : vector<8x256xf32>
    %c116 = arith.constant 116 : index
    %396 = memref.load %arg6[%c116] : memref<436xf32, #tpu.memory_space<smem>>
    %397 = vector.broadcast %396 : f32 to vector<8x256xf32>
    %398 = arith.mulf %397, %391 : vector<8x256xf32>
    %399 = arith.addf %389, %398 : vector<8x256xf32>
    %c239_i32_94 = arith.constant 239 : i32
    %400 = tpu.dynamic_rotate %72 by %c239_i32_94 dim 1 : vector<8x256xf32>, i32 -> vector<8x256xf32>
    %401 = arith.mulf %400, %39 : vector<8x256xf32>
    %c17 = arith.constant 17 : index
    %402 = memref.load %arg6[%c17] : memref<436xf32, #tpu.memory_space<smem>>
    %403 = vector.broadcast %402 : f32 to vector<8x256xf32>
    %404 = arith.mulf %403, %401 : vector<8x256xf32>
    %405 = arith.addf %395, %404 : vector<8x256xf32>
    %c125 = arith.constant 125 : index
    %406 = memref.load %arg6[%c125] : memref<436xf32, #tpu.memory_space<smem>>
    %407 = vector.broadcast %406 : f32 to vector<8x256xf32>
    %408 = arith.mulf %407, %401 : vector<8x256xf32>
    %409 = arith.addf %399, %408 : vector<8x256xf32>
    %c239_i32_95 = arith.constant 239 : i32
    %410 = tpu.dynamic_rotate %155 by %c239_i32_95 dim 1 : vector<8x256xf32>, i32 -> vector<8x256xf32>
    %411 = arith.mulf %410, %39 : vector<8x256xf32>
    %c26 = arith.constant 26 : index
    %412 = memref.load %arg6[%c26] : memref<436xf32, #tpu.memory_space<smem>>
    %413 = vector.broadcast %412 : f32 to vector<8x256xf32>
    %414 = arith.mulf %413, %411 : vector<8x256xf32>
    %415 = arith.addf %405, %414 : vector<8x256xf32>
    %c134 = arith.constant 134 : index
    %416 = memref.load %arg6[%c134] : memref<436xf32, #tpu.memory_space<smem>>
    %417 = vector.broadcast %416 : f32 to vector<8x256xf32>
    %418 = arith.mulf %417, %411 : vector<8x256xf32>
    %419 = arith.addf %409, %418 : vector<8x256xf32>
    %c1_i32_96 = arith.constant 1 : i32
    %420 = tpu.dynamic_rotate %97 by %c1_i32_96 dim 0 : vector<8x256xf32>, i32 -> vector<8x256xf32>
    %421 = arith.mulf %420, %3 : vector<8x256xf32>
    %c7_i32_97 = arith.constant 7 : i32
    %422 = tpu.dynamic_rotate %97 by %c7_i32_97 dim 0 : vector<8x256xf32>, i32 -> vector<8x256xf32>
    %423 = arith.mulf %422, %7 : vector<8x256xf32>
    %c17_i32_98 = arith.constant 17 : i32
    %424 = tpu.dynamic_rotate %421 by %c17_i32_98 dim 1 : vector<8x256xf32>, i32 -> vector<8x256xf32>
    %425 = arith.mulf %424, %11 : vector<8x256xf32>
    %c27 = arith.constant 27 : index
    %426 = memref.load %arg6[%c27] : memref<436xf32, #tpu.memory_space<smem>>
    %427 = vector.broadcast %426 : f32 to vector<8x256xf32>
    %428 = arith.mulf %427, %425 : vector<8x256xf32>
    %429 = arith.addf %415, %428 : vector<8x256xf32>
    %c135 = arith.constant 135 : index
    %430 = memref.load %arg6[%c135] : memref<436xf32, #tpu.memory_space<smem>>
    %431 = vector.broadcast %430 : f32 to vector<8x256xf32>
    %432 = arith.mulf %431, %425 : vector<8x256xf32>
    %433 = arith.addf %419, %432 : vector<8x256xf32>
    %c17_i32_99 = arith.constant 17 : i32
    %434 = tpu.dynamic_rotate %97 by %c17_i32_99 dim 1 : vector<8x256xf32>, i32 -> vector<8x256xf32>
    %435 = arith.mulf %434, %11 : vector<8x256xf32>
    %c36 = arith.constant 36 : index
    %436 = memref.load %arg6[%c36] : memref<436xf32, #tpu.memory_space<smem>>
    %437 = vector.broadcast %436 : f32 to vector<8x256xf32>
    %438 = arith.mulf %437, %435 : vector<8x256xf32>
    %439 = arith.addf %429, %438 : vector<8x256xf32>
    %c144 = arith.constant 144 : index
    %440 = memref.load %arg6[%c144] : memref<436xf32, #tpu.memory_space<smem>>
    %441 = vector.broadcast %440 : f32 to vector<8x256xf32>
    %442 = arith.mulf %441, %435 : vector<8x256xf32>
    %443 = arith.addf %433, %442 : vector<8x256xf32>
    %c17_i32_100 = arith.constant 17 : i32
    %444 = tpu.dynamic_rotate %423 by %c17_i32_100 dim 1 : vector<8x256xf32>, i32 -> vector<8x256xf32>
    %445 = arith.mulf %444, %11 : vector<8x256xf32>
    %c45 = arith.constant 45 : index
    %446 = memref.load %arg6[%c45] : memref<436xf32, #tpu.memory_space<smem>>
    %447 = vector.broadcast %446 : f32 to vector<8x256xf32>
    %448 = arith.mulf %447, %445 : vector<8x256xf32>
    %449 = arith.addf %439, %448 : vector<8x256xf32>
    %c153 = arith.constant 153 : index
    %450 = memref.load %arg6[%c153] : memref<436xf32, #tpu.memory_space<smem>>
    %451 = vector.broadcast %450 : f32 to vector<8x256xf32>
    %452 = arith.mulf %451, %445 : vector<8x256xf32>
    %453 = arith.addf %443, %452 : vector<8x256xf32>
    %c16_i32_101 = arith.constant 16 : i32
    %454 = tpu.dynamic_rotate %421 by %c16_i32_101 dim 1 : vector<8x256xf32>, i32 -> vector<8x256xf32>
    %455 = arith.mulf %454, %15 : vector<8x256xf32>
    %c28 = arith.constant 28 : index
    %456 = memref.load %arg6[%c28] : memref<436xf32, #tpu.memory_space<smem>>
    %457 = vector.broadcast %456 : f32 to vector<8x256xf32>
    %458 = arith.mulf %457, %455 : vector<8x256xf32>
    %459 = arith.addf %449, %458 : vector<8x256xf32>
    %c136 = arith.constant 136 : index
    %460 = memref.load %arg6[%c136] : memref<436xf32, #tpu.memory_space<smem>>
    %461 = vector.broadcast %460 : f32 to vector<8x256xf32>
    %462 = arith.mulf %461, %455 : vector<8x256xf32>
    %463 = arith.addf %453, %462 : vector<8x256xf32>
    %c16_i32_102 = arith.constant 16 : i32
    %464 = tpu.dynamic_rotate %97 by %c16_i32_102 dim 1 : vector<8x256xf32>, i32 -> vector<8x256xf32>
    %465 = arith.mulf %464, %15 : vector<8x256xf32>
    %c37 = arith.constant 37 : index
    %466 = memref.load %arg6[%c37] : memref<436xf32, #tpu.memory_space<smem>>
    %467 = vector.broadcast %466 : f32 to vector<8x256xf32>
    %468 = arith.mulf %467, %465 : vector<8x256xf32>
    %469 = arith.addf %459, %468 : vector<8x256xf32>
    %c145 = arith.constant 145 : index
    %470 = memref.load %arg6[%c145] : memref<436xf32, #tpu.memory_space<smem>>
    %471 = vector.broadcast %470 : f32 to vector<8x256xf32>
    %472 = arith.mulf %471, %465 : vector<8x256xf32>
    %473 = arith.addf %463, %472 : vector<8x256xf32>
    %c16_i32_103 = arith.constant 16 : i32
    %474 = tpu.dynamic_rotate %423 by %c16_i32_103 dim 1 : vector<8x256xf32>, i32 -> vector<8x256xf32>
    %475 = arith.mulf %474, %15 : vector<8x256xf32>
    %c46 = arith.constant 46 : index
    %476 = memref.load %arg6[%c46] : memref<436xf32, #tpu.memory_space<smem>>
    %477 = vector.broadcast %476 : f32 to vector<8x256xf32>
    %478 = arith.mulf %477, %475 : vector<8x256xf32>
    %479 = arith.addf %469, %478 : vector<8x256xf32>
    %c154 = arith.constant 154 : index
    %480 = memref.load %arg6[%c154] : memref<436xf32, #tpu.memory_space<smem>>
    %481 = vector.broadcast %480 : f32 to vector<8x256xf32>
    %482 = arith.mulf %481, %475 : vector<8x256xf32>
    %483 = arith.addf %473, %482 : vector<8x256xf32>
    %c15_i32_104 = arith.constant 15 : i32
    %484 = tpu.dynamic_rotate %421 by %c15_i32_104 dim 1 : vector<8x256xf32>, i32 -> vector<8x256xf32>
    %485 = arith.mulf %484, %19 : vector<8x256xf32>
    %c29 = arith.constant 29 : index
    %486 = memref.load %arg6[%c29] : memref<436xf32, #tpu.memory_space<smem>>
    %487 = vector.broadcast %486 : f32 to vector<8x256xf32>
    %488 = arith.mulf %487, %485 : vector<8x256xf32>
    %489 = arith.addf %479, %488 : vector<8x256xf32>
    %c137 = arith.constant 137 : index
    %490 = memref.load %arg6[%c137] : memref<436xf32, #tpu.memory_space<smem>>
    %491 = vector.broadcast %490 : f32 to vector<8x256xf32>
    %492 = arith.mulf %491, %485 : vector<8x256xf32>
    %493 = arith.addf %483, %492 : vector<8x256xf32>
    %c15_i32_105 = arith.constant 15 : i32
    %494 = tpu.dynamic_rotate %97 by %c15_i32_105 dim 1 : vector<8x256xf32>, i32 -> vector<8x256xf32>
    %495 = arith.mulf %494, %19 : vector<8x256xf32>
    %c38 = arith.constant 38 : index
    %496 = memref.load %arg6[%c38] : memref<436xf32, #tpu.memory_space<smem>>
    %497 = vector.broadcast %496 : f32 to vector<8x256xf32>
    %498 = arith.mulf %497, %495 : vector<8x256xf32>
    %499 = arith.addf %489, %498 : vector<8x256xf32>
    %c146 = arith.constant 146 : index
    %500 = memref.load %arg6[%c146] : memref<436xf32, #tpu.memory_space<smem>>
    %501 = vector.broadcast %500 : f32 to vector<8x256xf32>
    %502 = arith.mulf %501, %495 : vector<8x256xf32>
    %503 = arith.addf %493, %502 : vector<8x256xf32>
    %c15_i32_106 = arith.constant 15 : i32
    %504 = tpu.dynamic_rotate %423 by %c15_i32_106 dim 1 : vector<8x256xf32>, i32 -> vector<8x256xf32>
    %505 = arith.mulf %504, %19 : vector<8x256xf32>
    %c47 = arith.constant 47 : index
    %506 = memref.load %arg6[%c47] : memref<436xf32, #tpu.memory_space<smem>>
    %507 = vector.broadcast %506 : f32 to vector<8x256xf32>
    %508 = arith.mulf %507, %505 : vector<8x256xf32>
    %509 = arith.addf %499, %508 : vector<8x256xf32>
    %c155 = arith.constant 155 : index
    %510 = memref.load %arg6[%c155] : memref<436xf32, #tpu.memory_space<smem>>
    %511 = vector.broadcast %510 : f32 to vector<8x256xf32>
    %512 = arith.mulf %511, %505 : vector<8x256xf32>
    %513 = arith.addf %503, %512 : vector<8x256xf32>
    %c1_i32_107 = arith.constant 1 : i32
    %514 = tpu.dynamic_rotate %421 by %c1_i32_107 dim 1 : vector<8x256xf32>, i32 -> vector<8x256xf32>
    %515 = arith.mulf %514, %23 : vector<8x256xf32>
    %c30 = arith.constant 30 : index
    %516 = memref.load %arg6[%c30] : memref<436xf32, #tpu.memory_space<smem>>
    %517 = vector.broadcast %516 : f32 to vector<8x256xf32>
    %518 = arith.mulf %517, %515 : vector<8x256xf32>
    %519 = arith.addf %509, %518 : vector<8x256xf32>
    %c138 = arith.constant 138 : index
    %520 = memref.load %arg6[%c138] : memref<436xf32, #tpu.memory_space<smem>>
    %521 = vector.broadcast %520 : f32 to vector<8x256xf32>
    %522 = arith.mulf %521, %515 : vector<8x256xf32>
    %523 = arith.addf %513, %522 : vector<8x256xf32>
    %c1_i32_108 = arith.constant 1 : i32
    %524 = tpu.dynamic_rotate %97 by %c1_i32_108 dim 1 : vector<8x256xf32>, i32 -> vector<8x256xf32>
    %525 = arith.mulf %524, %23 : vector<8x256xf32>
    %c39 = arith.constant 39 : index
    %526 = memref.load %arg6[%c39] : memref<436xf32, #tpu.memory_space<smem>>
    %527 = vector.broadcast %526 : f32 to vector<8x256xf32>
    %528 = arith.mulf %527, %525 : vector<8x256xf32>
    %529 = arith.addf %519, %528 : vector<8x256xf32>
    %c147 = arith.constant 147 : index
    %530 = memref.load %arg6[%c147] : memref<436xf32, #tpu.memory_space<smem>>
    %531 = vector.broadcast %530 : f32 to vector<8x256xf32>
    %532 = arith.mulf %531, %525 : vector<8x256xf32>
    %533 = arith.addf %523, %532 : vector<8x256xf32>
    %c1_i32_109 = arith.constant 1 : i32
    %534 = tpu.dynamic_rotate %423 by %c1_i32_109 dim 1 : vector<8x256xf32>, i32 -> vector<8x256xf32>
    %535 = arith.mulf %534, %23 : vector<8x256xf32>
    %c48 = arith.constant 48 : index
    %536 = memref.load %arg6[%c48] : memref<436xf32, #tpu.memory_space<smem>>
    %537 = vector.broadcast %536 : f32 to vector<8x256xf32>
    %538 = arith.mulf %537, %535 : vector<8x256xf32>
    %539 = arith.addf %529, %538 : vector<8x256xf32>
    %c156 = arith.constant 156 : index
    %540 = memref.load %arg6[%c156] : memref<436xf32, #tpu.memory_space<smem>>
    %541 = vector.broadcast %540 : f32 to vector<8x256xf32>
    %542 = arith.mulf %541, %535 : vector<8x256xf32>
    %543 = arith.addf %533, %542 : vector<8x256xf32>
    %c31 = arith.constant 31 : index
    %544 = memref.load %arg6[%c31] : memref<436xf32, #tpu.memory_space<smem>>
    %545 = vector.broadcast %544 : f32 to vector<8x256xf32>
    %546 = arith.mulf %545, %421 : vector<8x256xf32>
    %547 = arith.addf %539, %546 : vector<8x256xf32>
    %c139 = arith.constant 139 : index
    %548 = memref.load %arg6[%c139] : memref<436xf32, #tpu.memory_space<smem>>
    %549 = vector.broadcast %548 : f32 to vector<8x256xf32>
    %550 = arith.mulf %549, %421 : vector<8x256xf32>
    %551 = arith.addf %543, %550 : vector<8x256xf32>
    %c40 = arith.constant 40 : index
    %552 = memref.load %arg6[%c40] : memref<436xf32, #tpu.memory_space<smem>>
    %553 = vector.broadcast %552 : f32 to vector<8x256xf32>
    %554 = arith.mulf %553, %97 : vector<8x256xf32>
    %555 = arith.addf %547, %554 : vector<8x256xf32>
    %c148 = arith.constant 148 : index
    %556 = memref.load %arg6[%c148] : memref<436xf32, #tpu.memory_space<smem>>
    %557 = vector.broadcast %556 : f32 to vector<8x256xf32>
    %558 = arith.mulf %557, %97 : vector<8x256xf32>
    %559 = arith.addf %551, %558 : vector<8x256xf32>
    %c49 = arith.constant 49 : index
    %560 = memref.load %arg6[%c49] : memref<436xf32, #tpu.memory_space<smem>>
    %561 = vector.broadcast %560 : f32 to vector<8x256xf32>
    %562 = arith.mulf %561, %423 : vector<8x256xf32>
    %563 = arith.addf %555, %562 : vector<8x256xf32>
    %c157 = arith.constant 157 : index
    %564 = memref.load %arg6[%c157] : memref<436xf32, #tpu.memory_space<smem>>
    %565 = vector.broadcast %564 : f32 to vector<8x256xf32>
    %566 = arith.mulf %565, %423 : vector<8x256xf32>
    %567 = arith.addf %559, %566 : vector<8x256xf32>
    %c255_i32_110 = arith.constant 255 : i32
    %568 = tpu.dynamic_rotate %421 by %c255_i32_110 dim 1 : vector<8x256xf32>, i32 -> vector<8x256xf32>
    %569 = arith.mulf %568, %27 : vector<8x256xf32>
    %c32 = arith.constant 32 : index
    %570 = memref.load %arg6[%c32] : memref<436xf32, #tpu.memory_space<smem>>
    %571 = vector.broadcast %570 : f32 to vector<8x256xf32>
    %572 = arith.mulf %571, %569 : vector<8x256xf32>
    %573 = arith.addf %563, %572 : vector<8x256xf32>
    %c140 = arith.constant 140 : index
    %574 = memref.load %arg6[%c140] : memref<436xf32, #tpu.memory_space<smem>>
    %575 = vector.broadcast %574 : f32 to vector<8x256xf32>
    %576 = arith.mulf %575, %569 : vector<8x256xf32>
    %577 = arith.addf %567, %576 : vector<8x256xf32>
    %c255_i32_111 = arith.constant 255 : i32
    %578 = tpu.dynamic_rotate %97 by %c255_i32_111 dim 1 : vector<8x256xf32>, i32 -> vector<8x256xf32>
    %579 = arith.mulf %578, %27 : vector<8x256xf32>
    %c41 = arith.constant 41 : index
    %580 = memref.load %arg6[%c41] : memref<436xf32, #tpu.memory_space<smem>>
    %581 = vector.broadcast %580 : f32 to vector<8x256xf32>
    %582 = arith.mulf %581, %579 : vector<8x256xf32>
    %583 = arith.addf %573, %582 : vector<8x256xf32>
    %c149 = arith.constant 149 : index
    %584 = memref.load %arg6[%c149] : memref<436xf32, #tpu.memory_space<smem>>
    %585 = vector.broadcast %584 : f32 to vector<8x256xf32>
    %586 = arith.mulf %585, %579 : vector<8x256xf32>
    %587 = arith.addf %577, %586 : vector<8x256xf32>
    %c255_i32_112 = arith.constant 255 : i32
    %588 = tpu.dynamic_rotate %423 by %c255_i32_112 dim 1 : vector<8x256xf32>, i32 -> vector<8x256xf32>
    %589 = arith.mulf %588, %27 : vector<8x256xf32>
    %c50 = arith.constant 50 : index
    %590 = memref.load %arg6[%c50] : memref<436xf32, #tpu.memory_space<smem>>
    %591 = vector.broadcast %590 : f32 to vector<8x256xf32>
    %592 = arith.mulf %591, %589 : vector<8x256xf32>
    %593 = arith.addf %583, %592 : vector<8x256xf32>
    %c158 = arith.constant 158 : index
    %594 = memref.load %arg6[%c158] : memref<436xf32, #tpu.memory_space<smem>>
    %595 = vector.broadcast %594 : f32 to vector<8x256xf32>
    %596 = arith.mulf %595, %589 : vector<8x256xf32>
    %597 = arith.addf %587, %596 : vector<8x256xf32>
    %c241_i32_113 = arith.constant 241 : i32
    %598 = tpu.dynamic_rotate %421 by %c241_i32_113 dim 1 : vector<8x256xf32>, i32 -> vector<8x256xf32>
    %599 = arith.mulf %598, %31 : vector<8x256xf32>
    %c33 = arith.constant 33 : index
    %600 = memref.load %arg6[%c33] : memref<436xf32, #tpu.memory_space<smem>>
    %601 = vector.broadcast %600 : f32 to vector<8x256xf32>
    %602 = arith.mulf %601, %599 : vector<8x256xf32>
    %603 = arith.addf %593, %602 : vector<8x256xf32>
    %c141 = arith.constant 141 : index
    %604 = memref.load %arg6[%c141] : memref<436xf32, #tpu.memory_space<smem>>
    %605 = vector.broadcast %604 : f32 to vector<8x256xf32>
    %606 = arith.mulf %605, %599 : vector<8x256xf32>
    %607 = arith.addf %597, %606 : vector<8x256xf32>
    %c241_i32_114 = arith.constant 241 : i32
    %608 = tpu.dynamic_rotate %97 by %c241_i32_114 dim 1 : vector<8x256xf32>, i32 -> vector<8x256xf32>
    %609 = arith.mulf %608, %31 : vector<8x256xf32>
    %c42 = arith.constant 42 : index
    %610 = memref.load %arg6[%c42] : memref<436xf32, #tpu.memory_space<smem>>
    %611 = vector.broadcast %610 : f32 to vector<8x256xf32>
    %612 = arith.mulf %611, %609 : vector<8x256xf32>
    %613 = arith.addf %603, %612 : vector<8x256xf32>
    %c150 = arith.constant 150 : index
    %614 = memref.load %arg6[%c150] : memref<436xf32, #tpu.memory_space<smem>>
    %615 = vector.broadcast %614 : f32 to vector<8x256xf32>
    %616 = arith.mulf %615, %609 : vector<8x256xf32>
    %617 = arith.addf %607, %616 : vector<8x256xf32>
    %c241_i32_115 = arith.constant 241 : i32
    %618 = tpu.dynamic_rotate %423 by %c241_i32_115 dim 1 : vector<8x256xf32>, i32 -> vector<8x256xf32>
    %619 = arith.mulf %618, %31 : vector<8x256xf32>
    %c51 = arith.constant 51 : index
    %620 = memref.load %arg6[%c51] : memref<436xf32, #tpu.memory_space<smem>>
    %621 = vector.broadcast %620 : f32 to vector<8x256xf32>
    %622 = arith.mulf %621, %619 : vector<8x256xf32>
    %623 = arith.addf %613, %622 : vector<8x256xf32>
    %c159 = arith.constant 159 : index
    %624 = memref.load %arg6[%c159] : memref<436xf32, #tpu.memory_space<smem>>
    %625 = vector.broadcast %624 : f32 to vector<8x256xf32>
    %626 = arith.mulf %625, %619 : vector<8x256xf32>
    %627 = arith.addf %617, %626 : vector<8x256xf32>
    %c240_i32_116 = arith.constant 240 : i32
    %628 = tpu.dynamic_rotate %421 by %c240_i32_116 dim 1 : vector<8x256xf32>, i32 -> vector<8x256xf32>
    %629 = arith.mulf %628, %35 : vector<8x256xf32>
    %c34 = arith.constant 34 : index
    %630 = memref.load %arg6[%c34] : memref<436xf32, #tpu.memory_space<smem>>
    %631 = vector.broadcast %630 : f32 to vector<8x256xf32>
    %632 = arith.mulf %631, %629 : vector<8x256xf32>
    %633 = arith.addf %623, %632 : vector<8x256xf32>
    %c142 = arith.constant 142 : index
    %634 = memref.load %arg6[%c142] : memref<436xf32, #tpu.memory_space<smem>>
    %635 = vector.broadcast %634 : f32 to vector<8x256xf32>
    %636 = arith.mulf %635, %629 : vector<8x256xf32>
    %637 = arith.addf %627, %636 : vector<8x256xf32>
    %c240_i32_117 = arith.constant 240 : i32
    %638 = tpu.dynamic_rotate %97 by %c240_i32_117 dim 1 : vector<8x256xf32>, i32 -> vector<8x256xf32>
    %639 = arith.mulf %638, %35 : vector<8x256xf32>
    %c43 = arith.constant 43 : index
    %640 = memref.load %arg6[%c43] : memref<436xf32, #tpu.memory_space<smem>>
    %641 = vector.broadcast %640 : f32 to vector<8x256xf32>
    %642 = arith.mulf %641, %639 : vector<8x256xf32>
    %643 = arith.addf %633, %642 : vector<8x256xf32>
    %c151 = arith.constant 151 : index
    %644 = memref.load %arg6[%c151] : memref<436xf32, #tpu.memory_space<smem>>
    %645 = vector.broadcast %644 : f32 to vector<8x256xf32>
    %646 = arith.mulf %645, %639 : vector<8x256xf32>
    %647 = arith.addf %637, %646 : vector<8x256xf32>
    %c240_i32_118 = arith.constant 240 : i32
    %648 = tpu.dynamic_rotate %423 by %c240_i32_118 dim 1 : vector<8x256xf32>, i32 -> vector<8x256xf32>
    %649 = arith.mulf %648, %35 : vector<8x256xf32>
    %c52 = arith.constant 52 : index
    %650 = memref.load %arg6[%c52] : memref<436xf32, #tpu.memory_space<smem>>
    %651 = vector.broadcast %650 : f32 to vector<8x256xf32>
    %652 = arith.mulf %651, %649 : vector<8x256xf32>
    %653 = arith.addf %643, %652 : vector<8x256xf32>
    %c160 = arith.constant 160 : index
    %654 = memref.load %arg6[%c160] : memref<436xf32, #tpu.memory_space<smem>>
    %655 = vector.broadcast %654 : f32 to vector<8x256xf32>
    %656 = arith.mulf %655, %649 : vector<8x256xf32>
    %657 = arith.addf %647, %656 : vector<8x256xf32>
    %c239_i32_119 = arith.constant 239 : i32
    %658 = tpu.dynamic_rotate %421 by %c239_i32_119 dim 1 : vector<8x256xf32>, i32 -> vector<8x256xf32>
    %659 = arith.mulf %658, %39 : vector<8x256xf32>
    %c35 = arith.constant 35 : index
    %660 = memref.load %arg6[%c35] : memref<436xf32, #tpu.memory_space<smem>>
    %661 = vector.broadcast %660 : f32 to vector<8x256xf32>
    %662 = arith.mulf %661, %659 : vector<8x256xf32>
    %663 = arith.addf %653, %662 : vector<8x256xf32>
    %c143 = arith.constant 143 : index
    %664 = memref.load %arg6[%c143] : memref<436xf32, #tpu.memory_space<smem>>
    %665 = vector.broadcast %664 : f32 to vector<8x256xf32>
    %666 = arith.mulf %665, %659 : vector<8x256xf32>
    %667 = arith.addf %657, %666 : vector<8x256xf32>
    %c239_i32_120 = arith.constant 239 : i32
    %668 = tpu.dynamic_rotate %97 by %c239_i32_120 dim 1 : vector<8x256xf32>, i32 -> vector<8x256xf32>
    %669 = arith.mulf %668, %39 : vector<8x256xf32>
    %c44 = arith.constant 44 : index
    %670 = memref.load %arg6[%c44] : memref<436xf32, #tpu.memory_space<smem>>
    %671 = vector.broadcast %670 : f32 to vector<8x256xf32>
    %672 = arith.mulf %671, %669 : vector<8x256xf32>
    %673 = arith.addf %663, %672 : vector<8x256xf32>
    %c152 = arith.constant 152 : index
    %674 = memref.load %arg6[%c152] : memref<436xf32, #tpu.memory_space<smem>>
    %675 = vector.broadcast %674 : f32 to vector<8x256xf32>
    %676 = arith.mulf %675, %669 : vector<8x256xf32>
    %677 = arith.addf %667, %676 : vector<8x256xf32>
    %c239_i32_121 = arith.constant 239 : i32
    %678 = tpu.dynamic_rotate %423 by %c239_i32_121 dim 1 : vector<8x256xf32>, i32 -> vector<8x256xf32>
    %679 = arith.mulf %678, %39 : vector<8x256xf32>
    %c53 = arith.constant 53 : index
    %680 = memref.load %arg6[%c53] : memref<436xf32, #tpu.memory_space<smem>>
    %681 = vector.broadcast %680 : f32 to vector<8x256xf32>
    %682 = arith.mulf %681, %679 : vector<8x256xf32>
    %683 = arith.addf %673, %682 : vector<8x256xf32>
    %c161 = arith.constant 161 : index
    %684 = memref.load %arg6[%c161] : memref<436xf32, #tpu.memory_space<smem>>
    %685 = vector.broadcast %684 : f32 to vector<8x256xf32>
    %686 = arith.mulf %685, %679 : vector<8x256xf32>
    %687 = arith.addf %677, %686 : vector<8x256xf32>
    %c1_i32_122 = arith.constant 1 : i32
    %688 = tpu.dynamic_rotate %122 by %c1_i32_122 dim 0 : vector<8x256xf32>, i32 -> vector<8x256xf32>
    %689 = arith.mulf %688, %3 : vector<8x256xf32>
    %c7_i32_123 = arith.constant 7 : i32
    %690 = tpu.dynamic_rotate %122 by %c7_i32_123 dim 0 : vector<8x256xf32>, i32 -> vector<8x256xf32>
    %691 = arith.mulf %690, %7 : vector<8x256xf32>
    %c17_i32_124 = arith.constant 17 : i32
    %692 = tpu.dynamic_rotate %689 by %c17_i32_124 dim 1 : vector<8x256xf32>, i32 -> vector<8x256xf32>
    %693 = arith.mulf %692, %11 : vector<8x256xf32>
    %c54 = arith.constant 54 : index
    %694 = memref.load %arg6[%c54] : memref<436xf32, #tpu.memory_space<smem>>
    %695 = vector.broadcast %694 : f32 to vector<8x256xf32>
    %696 = arith.mulf %695, %693 : vector<8x256xf32>
    %697 = arith.addf %683, %696 : vector<8x256xf32>
    %c162 = arith.constant 162 : index
    %698 = memref.load %arg6[%c162] : memref<436xf32, #tpu.memory_space<smem>>
    %699 = vector.broadcast %698 : f32 to vector<8x256xf32>
    %700 = arith.mulf %699, %693 : vector<8x256xf32>
    %701 = arith.addf %687, %700 : vector<8x256xf32>
    %c17_i32_125 = arith.constant 17 : i32
    %702 = tpu.dynamic_rotate %122 by %c17_i32_125 dim 1 : vector<8x256xf32>, i32 -> vector<8x256xf32>
    %703 = arith.mulf %702, %11 : vector<8x256xf32>
    %c63 = arith.constant 63 : index
    %704 = memref.load %arg6[%c63] : memref<436xf32, #tpu.memory_space<smem>>
    %705 = vector.broadcast %704 : f32 to vector<8x256xf32>
    %706 = arith.mulf %705, %703 : vector<8x256xf32>
    %707 = arith.addf %697, %706 : vector<8x256xf32>
    %c171 = arith.constant 171 : index
    %708 = memref.load %arg6[%c171] : memref<436xf32, #tpu.memory_space<smem>>
    %709 = vector.broadcast %708 : f32 to vector<8x256xf32>
    %710 = arith.mulf %709, %703 : vector<8x256xf32>
    %711 = arith.addf %701, %710 : vector<8x256xf32>
    %c17_i32_126 = arith.constant 17 : i32
    %712 = tpu.dynamic_rotate %691 by %c17_i32_126 dim 1 : vector<8x256xf32>, i32 -> vector<8x256xf32>
    %713 = arith.mulf %712, %11 : vector<8x256xf32>
    %c72 = arith.constant 72 : index
    %714 = memref.load %arg6[%c72] : memref<436xf32, #tpu.memory_space<smem>>
    %715 = vector.broadcast %714 : f32 to vector<8x256xf32>
    %716 = arith.mulf %715, %713 : vector<8x256xf32>
    %717 = arith.addf %707, %716 : vector<8x256xf32>
    %c180 = arith.constant 180 : index
    %718 = memref.load %arg6[%c180] : memref<436xf32, #tpu.memory_space<smem>>
    %719 = vector.broadcast %718 : f32 to vector<8x256xf32>
    %720 = arith.mulf %719, %713 : vector<8x256xf32>
    %721 = arith.addf %711, %720 : vector<8x256xf32>
    %c16_i32_127 = arith.constant 16 : i32
    %722 = tpu.dynamic_rotate %689 by %c16_i32_127 dim 1 : vector<8x256xf32>, i32 -> vector<8x256xf32>
    %723 = arith.mulf %722, %15 : vector<8x256xf32>
    %c55 = arith.constant 55 : index
    %724 = memref.load %arg6[%c55] : memref<436xf32, #tpu.memory_space<smem>>
    %725 = vector.broadcast %724 : f32 to vector<8x256xf32>
    %726 = arith.mulf %725, %723 : vector<8x256xf32>
    %727 = arith.addf %717, %726 : vector<8x256xf32>
    %c163 = arith.constant 163 : index
    %728 = memref.load %arg6[%c163] : memref<436xf32, #tpu.memory_space<smem>>
    %729 = vector.broadcast %728 : f32 to vector<8x256xf32>
    %730 = arith.mulf %729, %723 : vector<8x256xf32>
    %731 = arith.addf %721, %730 : vector<8x256xf32>
    %c16_i32_128 = arith.constant 16 : i32
    %732 = tpu.dynamic_rotate %122 by %c16_i32_128 dim 1 : vector<8x256xf32>, i32 -> vector<8x256xf32>
    %733 = arith.mulf %732, %15 : vector<8x256xf32>
    %c64 = arith.constant 64 : index
    %734 = memref.load %arg6[%c64] : memref<436xf32, #tpu.memory_space<smem>>
    %735 = vector.broadcast %734 : f32 to vector<8x256xf32>
    %736 = arith.mulf %735, %733 : vector<8x256xf32>
    %737 = arith.addf %727, %736 : vector<8x256xf32>
    %c172 = arith.constant 172 : index
    %738 = memref.load %arg6[%c172] : memref<436xf32, #tpu.memory_space<smem>>
    %739 = vector.broadcast %738 : f32 to vector<8x256xf32>
    %740 = arith.mulf %739, %733 : vector<8x256xf32>
    %741 = arith.addf %731, %740 : vector<8x256xf32>
    %c16_i32_129 = arith.constant 16 : i32
    %742 = tpu.dynamic_rotate %691 by %c16_i32_129 dim 1 : vector<8x256xf32>, i32 -> vector<8x256xf32>
    %743 = arith.mulf %742, %15 : vector<8x256xf32>
    %c73 = arith.constant 73 : index
    %744 = memref.load %arg6[%c73] : memref<436xf32, #tpu.memory_space<smem>>
    %745 = vector.broadcast %744 : f32 to vector<8x256xf32>
    %746 = arith.mulf %745, %743 : vector<8x256xf32>
    %747 = arith.addf %737, %746 : vector<8x256xf32>
    %c181 = arith.constant 181 : index
    %748 = memref.load %arg6[%c181] : memref<436xf32, #tpu.memory_space<smem>>
    %749 = vector.broadcast %748 : f32 to vector<8x256xf32>
    %750 = arith.mulf %749, %743 : vector<8x256xf32>
    %751 = arith.addf %741, %750 : vector<8x256xf32>
    %c15_i32_130 = arith.constant 15 : i32
    %752 = tpu.dynamic_rotate %689 by %c15_i32_130 dim 1 : vector<8x256xf32>, i32 -> vector<8x256xf32>
    %753 = arith.mulf %752, %19 : vector<8x256xf32>
    %c56 = arith.constant 56 : index
    %754 = memref.load %arg6[%c56] : memref<436xf32, #tpu.memory_space<smem>>
    %755 = vector.broadcast %754 : f32 to vector<8x256xf32>
    %756 = arith.mulf %755, %753 : vector<8x256xf32>
    %757 = arith.addf %747, %756 : vector<8x256xf32>
    %c164 = arith.constant 164 : index
    %758 = memref.load %arg6[%c164] : memref<436xf32, #tpu.memory_space<smem>>
    %759 = vector.broadcast %758 : f32 to vector<8x256xf32>
    %760 = arith.mulf %759, %753 : vector<8x256xf32>
    %761 = arith.addf %751, %760 : vector<8x256xf32>
    %c15_i32_131 = arith.constant 15 : i32
    %762 = tpu.dynamic_rotate %122 by %c15_i32_131 dim 1 : vector<8x256xf32>, i32 -> vector<8x256xf32>
    %763 = arith.mulf %762, %19 : vector<8x256xf32>
    %c65 = arith.constant 65 : index
    %764 = memref.load %arg6[%c65] : memref<436xf32, #tpu.memory_space<smem>>
    %765 = vector.broadcast %764 : f32 to vector<8x256xf32>
    %766 = arith.mulf %765, %763 : vector<8x256xf32>
    %767 = arith.addf %757, %766 : vector<8x256xf32>
    %c173 = arith.constant 173 : index
    %768 = memref.load %arg6[%c173] : memref<436xf32, #tpu.memory_space<smem>>
    %769 = vector.broadcast %768 : f32 to vector<8x256xf32>
    %770 = arith.mulf %769, %763 : vector<8x256xf32>
    %771 = arith.addf %761, %770 : vector<8x256xf32>
    %c15_i32_132 = arith.constant 15 : i32
    %772 = tpu.dynamic_rotate %691 by %c15_i32_132 dim 1 : vector<8x256xf32>, i32 -> vector<8x256xf32>
    %773 = arith.mulf %772, %19 : vector<8x256xf32>
    %c74 = arith.constant 74 : index
    %774 = memref.load %arg6[%c74] : memref<436xf32, #tpu.memory_space<smem>>
    %775 = vector.broadcast %774 : f32 to vector<8x256xf32>
    %776 = arith.mulf %775, %773 : vector<8x256xf32>
    %777 = arith.addf %767, %776 : vector<8x256xf32>
    %c182 = arith.constant 182 : index
    %778 = memref.load %arg6[%c182] : memref<436xf32, #tpu.memory_space<smem>>
    %779 = vector.broadcast %778 : f32 to vector<8x256xf32>
    %780 = arith.mulf %779, %773 : vector<8x256xf32>
    %781 = arith.addf %771, %780 : vector<8x256xf32>
    %c1_i32_133 = arith.constant 1 : i32
    %782 = tpu.dynamic_rotate %689 by %c1_i32_133 dim 1 : vector<8x256xf32>, i32 -> vector<8x256xf32>
    %783 = arith.mulf %782, %23 : vector<8x256xf32>
    %c57 = arith.constant 57 : index
    %784 = memref.load %arg6[%c57] : memref<436xf32, #tpu.memory_space<smem>>
    %785 = vector.broadcast %784 : f32 to vector<8x256xf32>
    %786 = arith.mulf %785, %783 : vector<8x256xf32>
    %787 = arith.addf %777, %786 : vector<8x256xf32>
    %c165 = arith.constant 165 : index
    %788 = memref.load %arg6[%c165] : memref<436xf32, #tpu.memory_space<smem>>
    %789 = vector.broadcast %788 : f32 to vector<8x256xf32>
    %790 = arith.mulf %789, %783 : vector<8x256xf32>
    %791 = arith.addf %781, %790 : vector<8x256xf32>
    %c1_i32_134 = arith.constant 1 : i32
    %792 = tpu.dynamic_rotate %122 by %c1_i32_134 dim 1 : vector<8x256xf32>, i32 -> vector<8x256xf32>
    %793 = arith.mulf %792, %23 : vector<8x256xf32>
    %c66 = arith.constant 66 : index
    %794 = memref.load %arg6[%c66] : memref<436xf32, #tpu.memory_space<smem>>
    %795 = vector.broadcast %794 : f32 to vector<8x256xf32>
    %796 = arith.mulf %795, %793 : vector<8x256xf32>
    %797 = arith.addf %787, %796 : vector<8x256xf32>
    %c174 = arith.constant 174 : index
    %798 = memref.load %arg6[%c174] : memref<436xf32, #tpu.memory_space<smem>>
    %799 = vector.broadcast %798 : f32 to vector<8x256xf32>
    %800 = arith.mulf %799, %793 : vector<8x256xf32>
    %801 = arith.addf %791, %800 : vector<8x256xf32>
    %c1_i32_135 = arith.constant 1 : i32
    %802 = tpu.dynamic_rotate %691 by %c1_i32_135 dim 1 : vector<8x256xf32>, i32 -> vector<8x256xf32>
    %803 = arith.mulf %802, %23 : vector<8x256xf32>
    %c75 = arith.constant 75 : index
    %804 = memref.load %arg6[%c75] : memref<436xf32, #tpu.memory_space<smem>>
    %805 = vector.broadcast %804 : f32 to vector<8x256xf32>
    %806 = arith.mulf %805, %803 : vector<8x256xf32>
    %807 = arith.addf %797, %806 : vector<8x256xf32>
    %c183 = arith.constant 183 : index
    %808 = memref.load %arg6[%c183] : memref<436xf32, #tpu.memory_space<smem>>
    %809 = vector.broadcast %808 : f32 to vector<8x256xf32>
    %810 = arith.mulf %809, %803 : vector<8x256xf32>
    %811 = arith.addf %801, %810 : vector<8x256xf32>
    %c58 = arith.constant 58 : index
    %812 = memref.load %arg6[%c58] : memref<436xf32, #tpu.memory_space<smem>>
    %813 = vector.broadcast %812 : f32 to vector<8x256xf32>
    %814 = arith.mulf %813, %689 : vector<8x256xf32>
    %815 = arith.addf %807, %814 : vector<8x256xf32>
    %c166 = arith.constant 166 : index
    %816 = memref.load %arg6[%c166] : memref<436xf32, #tpu.memory_space<smem>>
    %817 = vector.broadcast %816 : f32 to vector<8x256xf32>
    %818 = arith.mulf %817, %689 : vector<8x256xf32>
    %819 = arith.addf %811, %818 : vector<8x256xf32>
    %c67 = arith.constant 67 : index
    %820 = memref.load %arg6[%c67] : memref<436xf32, #tpu.memory_space<smem>>
    %821 = vector.broadcast %820 : f32 to vector<8x256xf32>
    %822 = arith.mulf %821, %122 : vector<8x256xf32>
    %823 = arith.addf %815, %822 : vector<8x256xf32>
    %c175 = arith.constant 175 : index
    %824 = memref.load %arg6[%c175] : memref<436xf32, #tpu.memory_space<smem>>
    %825 = vector.broadcast %824 : f32 to vector<8x256xf32>
    %826 = arith.mulf %825, %122 : vector<8x256xf32>
    %827 = arith.addf %819, %826 : vector<8x256xf32>
    %c76 = arith.constant 76 : index
    %828 = memref.load %arg6[%c76] : memref<436xf32, #tpu.memory_space<smem>>
    %829 = vector.broadcast %828 : f32 to vector<8x256xf32>
    %830 = arith.mulf %829, %691 : vector<8x256xf32>
    %831 = arith.addf %823, %830 : vector<8x256xf32>
    %c184 = arith.constant 184 : index
    %832 = memref.load %arg6[%c184] : memref<436xf32, #tpu.memory_space<smem>>
    %833 = vector.broadcast %832 : f32 to vector<8x256xf32>
    %834 = arith.mulf %833, %691 : vector<8x256xf32>
    %835 = arith.addf %827, %834 : vector<8x256xf32>
    %c255_i32_136 = arith.constant 255 : i32
    %836 = tpu.dynamic_rotate %689 by %c255_i32_136 dim 1 : vector<8x256xf32>, i32 -> vector<8x256xf32>
    %837 = arith.mulf %836, %27 : vector<8x256xf32>
    %c59 = arith.constant 59 : index
    %838 = memref.load %arg6[%c59] : memref<436xf32, #tpu.memory_space<smem>>
    %839 = vector.broadcast %838 : f32 to vector<8x256xf32>
    %840 = arith.mulf %839, %837 : vector<8x256xf32>
    %841 = arith.addf %831, %840 : vector<8x256xf32>
    %c167 = arith.constant 167 : index
    %842 = memref.load %arg6[%c167] : memref<436xf32, #tpu.memory_space<smem>>
    %843 = vector.broadcast %842 : f32 to vector<8x256xf32>
    %844 = arith.mulf %843, %837 : vector<8x256xf32>
    %845 = arith.addf %835, %844 : vector<8x256xf32>
    %c255_i32_137 = arith.constant 255 : i32
    %846 = tpu.dynamic_rotate %122 by %c255_i32_137 dim 1 : vector<8x256xf32>, i32 -> vector<8x256xf32>
    %847 = arith.mulf %846, %27 : vector<8x256xf32>
    %c68 = arith.constant 68 : index
    %848 = memref.load %arg6[%c68] : memref<436xf32, #tpu.memory_space<smem>>
    %849 = vector.broadcast %848 : f32 to vector<8x256xf32>
    %850 = arith.mulf %849, %847 : vector<8x256xf32>
    %851 = arith.addf %841, %850 : vector<8x256xf32>
    %c176 = arith.constant 176 : index
    %852 = memref.load %arg6[%c176] : memref<436xf32, #tpu.memory_space<smem>>
    %853 = vector.broadcast %852 : f32 to vector<8x256xf32>
    %854 = arith.mulf %853, %847 : vector<8x256xf32>
    %855 = arith.addf %845, %854 : vector<8x256xf32>
    %c255_i32_138 = arith.constant 255 : i32
    %856 = tpu.dynamic_rotate %691 by %c255_i32_138 dim 1 : vector<8x256xf32>, i32 -> vector<8x256xf32>
    %857 = arith.mulf %856, %27 : vector<8x256xf32>
    %c77 = arith.constant 77 : index
    %858 = memref.load %arg6[%c77] : memref<436xf32, #tpu.memory_space<smem>>
    %859 = vector.broadcast %858 : f32 to vector<8x256xf32>
    %860 = arith.mulf %859, %857 : vector<8x256xf32>
    %861 = arith.addf %851, %860 : vector<8x256xf32>
    %c185 = arith.constant 185 : index
    %862 = memref.load %arg6[%c185] : memref<436xf32, #tpu.memory_space<smem>>
    %863 = vector.broadcast %862 : f32 to vector<8x256xf32>
    %864 = arith.mulf %863, %857 : vector<8x256xf32>
    %865 = arith.addf %855, %864 : vector<8x256xf32>
    %c241_i32_139 = arith.constant 241 : i32
    %866 = tpu.dynamic_rotate %689 by %c241_i32_139 dim 1 : vector<8x256xf32>, i32 -> vector<8x256xf32>
    %867 = arith.mulf %866, %31 : vector<8x256xf32>
    %c60 = arith.constant 60 : index
    %868 = memref.load %arg6[%c60] : memref<436xf32, #tpu.memory_space<smem>>
    %869 = vector.broadcast %868 : f32 to vector<8x256xf32>
    %870 = arith.mulf %869, %867 : vector<8x256xf32>
    %871 = arith.addf %861, %870 : vector<8x256xf32>
    %c168 = arith.constant 168 : index
    %872 = memref.load %arg6[%c168] : memref<436xf32, #tpu.memory_space<smem>>
    %873 = vector.broadcast %872 : f32 to vector<8x256xf32>
    %874 = arith.mulf %873, %867 : vector<8x256xf32>
    %875 = arith.addf %865, %874 : vector<8x256xf32>
    %c241_i32_140 = arith.constant 241 : i32
    %876 = tpu.dynamic_rotate %122 by %c241_i32_140 dim 1 : vector<8x256xf32>, i32 -> vector<8x256xf32>
    %877 = arith.mulf %876, %31 : vector<8x256xf32>
    %c69 = arith.constant 69 : index
    %878 = memref.load %arg6[%c69] : memref<436xf32, #tpu.memory_space<smem>>
    %879 = vector.broadcast %878 : f32 to vector<8x256xf32>
    %880 = arith.mulf %879, %877 : vector<8x256xf32>
    %881 = arith.addf %871, %880 : vector<8x256xf32>
    %c177 = arith.constant 177 : index
    %882 = memref.load %arg6[%c177] : memref<436xf32, #tpu.memory_space<smem>>
    %883 = vector.broadcast %882 : f32 to vector<8x256xf32>
    %884 = arith.mulf %883, %877 : vector<8x256xf32>
    %885 = arith.addf %875, %884 : vector<8x256xf32>
    %c241_i32_141 = arith.constant 241 : i32
    %886 = tpu.dynamic_rotate %691 by %c241_i32_141 dim 1 : vector<8x256xf32>, i32 -> vector<8x256xf32>
    %887 = arith.mulf %886, %31 : vector<8x256xf32>
    %c78 = arith.constant 78 : index
    %888 = memref.load %arg6[%c78] : memref<436xf32, #tpu.memory_space<smem>>
    %889 = vector.broadcast %888 : f32 to vector<8x256xf32>
    %890 = arith.mulf %889, %887 : vector<8x256xf32>
    %891 = arith.addf %881, %890 : vector<8x256xf32>
    %c186 = arith.constant 186 : index
    %892 = memref.load %arg6[%c186] : memref<436xf32, #tpu.memory_space<smem>>
    %893 = vector.broadcast %892 : f32 to vector<8x256xf32>
    %894 = arith.mulf %893, %887 : vector<8x256xf32>
    %895 = arith.addf %885, %894 : vector<8x256xf32>
    %c240_i32_142 = arith.constant 240 : i32
    %896 = tpu.dynamic_rotate %689 by %c240_i32_142 dim 1 : vector<8x256xf32>, i32 -> vector<8x256xf32>
    %897 = arith.mulf %896, %35 : vector<8x256xf32>
    %c61 = arith.constant 61 : index
    %898 = memref.load %arg6[%c61] : memref<436xf32, #tpu.memory_space<smem>>
    %899 = vector.broadcast %898 : f32 to vector<8x256xf32>
    %900 = arith.mulf %899, %897 : vector<8x256xf32>
    %901 = arith.addf %891, %900 : vector<8x256xf32>
    %c169 = arith.constant 169 : index
    %902 = memref.load %arg6[%c169] : memref<436xf32, #tpu.memory_space<smem>>
    %903 = vector.broadcast %902 : f32 to vector<8x256xf32>
    %904 = arith.mulf %903, %897 : vector<8x256xf32>
    %905 = arith.addf %895, %904 : vector<8x256xf32>
    %c240_i32_143 = arith.constant 240 : i32
    %906 = tpu.dynamic_rotate %122 by %c240_i32_143 dim 1 : vector<8x256xf32>, i32 -> vector<8x256xf32>
    %907 = arith.mulf %906, %35 : vector<8x256xf32>
    %c70 = arith.constant 70 : index
    %908 = memref.load %arg6[%c70] : memref<436xf32, #tpu.memory_space<smem>>
    %909 = vector.broadcast %908 : f32 to vector<8x256xf32>
    %910 = arith.mulf %909, %907 : vector<8x256xf32>
    %911 = arith.addf %901, %910 : vector<8x256xf32>
    %c178 = arith.constant 178 : index
    %912 = memref.load %arg6[%c178] : memref<436xf32, #tpu.memory_space<smem>>
    %913 = vector.broadcast %912 : f32 to vector<8x256xf32>
    %914 = arith.mulf %913, %907 : vector<8x256xf32>
    %915 = arith.addf %905, %914 : vector<8x256xf32>
    %c240_i32_144 = arith.constant 240 : i32
    %916 = tpu.dynamic_rotate %691 by %c240_i32_144 dim 1 : vector<8x256xf32>, i32 -> vector<8x256xf32>
    %917 = arith.mulf %916, %35 : vector<8x256xf32>
    %c79 = arith.constant 79 : index
    %918 = memref.load %arg6[%c79] : memref<436xf32, #tpu.memory_space<smem>>
    %919 = vector.broadcast %918 : f32 to vector<8x256xf32>
    %920 = arith.mulf %919, %917 : vector<8x256xf32>
    %921 = arith.addf %911, %920 : vector<8x256xf32>
    %c187 = arith.constant 187 : index
    %922 = memref.load %arg6[%c187] : memref<436xf32, #tpu.memory_space<smem>>
    %923 = vector.broadcast %922 : f32 to vector<8x256xf32>
    %924 = arith.mulf %923, %917 : vector<8x256xf32>
    %925 = arith.addf %915, %924 : vector<8x256xf32>
    %c239_i32_145 = arith.constant 239 : i32
    %926 = tpu.dynamic_rotate %689 by %c239_i32_145 dim 1 : vector<8x256xf32>, i32 -> vector<8x256xf32>
    %927 = arith.mulf %926, %39 : vector<8x256xf32>
    %c62 = arith.constant 62 : index
    %928 = memref.load %arg6[%c62] : memref<436xf32, #tpu.memory_space<smem>>
    %929 = vector.broadcast %928 : f32 to vector<8x256xf32>
    %930 = arith.mulf %929, %927 : vector<8x256xf32>
    %931 = arith.addf %921, %930 : vector<8x256xf32>
    %c170 = arith.constant 170 : index
    %932 = memref.load %arg6[%c170] : memref<436xf32, #tpu.memory_space<smem>>
    %933 = vector.broadcast %932 : f32 to vector<8x256xf32>
    %934 = arith.mulf %933, %927 : vector<8x256xf32>
    %935 = arith.addf %925, %934 : vector<8x256xf32>
    %c239_i32_146 = arith.constant 239 : i32
    %936 = tpu.dynamic_rotate %122 by %c239_i32_146 dim 1 : vector<8x256xf32>, i32 -> vector<8x256xf32>
    %937 = arith.mulf %936, %39 : vector<8x256xf32>
    %c71 = arith.constant 71 : index
    %938 = memref.load %arg6[%c71] : memref<436xf32, #tpu.memory_space<smem>>
    %939 = vector.broadcast %938 : f32 to vector<8x256xf32>
    %940 = arith.mulf %939, %937 : vector<8x256xf32>
    %941 = arith.addf %931, %940 : vector<8x256xf32>
    %c179 = arith.constant 179 : index
    %942 = memref.load %arg6[%c179] : memref<436xf32, #tpu.memory_space<smem>>
    %943 = vector.broadcast %942 : f32 to vector<8x256xf32>
    %944 = arith.mulf %943, %937 : vector<8x256xf32>
    %945 = arith.addf %935, %944 : vector<8x256xf32>
    %c239_i32_147 = arith.constant 239 : i32
    %946 = tpu.dynamic_rotate %691 by %c239_i32_147 dim 1 : vector<8x256xf32>, i32 -> vector<8x256xf32>
    %947 = arith.mulf %946, %39 : vector<8x256xf32>
    %c80 = arith.constant 80 : index
    %948 = memref.load %arg6[%c80] : memref<436xf32, #tpu.memory_space<smem>>
    %949 = vector.broadcast %948 : f32 to vector<8x256xf32>
    %950 = arith.mulf %949, %947 : vector<8x256xf32>
    %951 = arith.addf %941, %950 : vector<8x256xf32>
    %c188 = arith.constant 188 : index
    %952 = memref.load %arg6[%c188] : memref<436xf32, #tpu.memory_space<smem>>
    %953 = vector.broadcast %952 : f32 to vector<8x256xf32>
    %954 = arith.mulf %953, %947 : vector<8x256xf32>
    %955 = arith.addf %945, %954 : vector<8x256xf32>
    %c1_i32_148 = arith.constant 1 : i32
    %956 = tpu.dynamic_rotate %147 by %c1_i32_148 dim 0 : vector<8x256xf32>, i32 -> vector<8x256xf32>
    %957 = arith.mulf %956, %3 : vector<8x256xf32>
    %c7_i32_149 = arith.constant 7 : i32
    %958 = tpu.dynamic_rotate %147 by %c7_i32_149 dim 0 : vector<8x256xf32>, i32 -> vector<8x256xf32>
    %959 = arith.mulf %958, %7 : vector<8x256xf32>
    %c17_i32_150 = arith.constant 17 : i32
    %960 = tpu.dynamic_rotate %957 by %c17_i32_150 dim 1 : vector<8x256xf32>, i32 -> vector<8x256xf32>
    %961 = arith.mulf %960, %11 : vector<8x256xf32>
    %c81 = arith.constant 81 : index
    %962 = memref.load %arg6[%c81] : memref<436xf32, #tpu.memory_space<smem>>
    %963 = vector.broadcast %962 : f32 to vector<8x256xf32>
    %964 = arith.mulf %963, %961 : vector<8x256xf32>
    %965 = arith.addf %951, %964 : vector<8x256xf32>
    %c189 = arith.constant 189 : index
    %966 = memref.load %arg6[%c189] : memref<436xf32, #tpu.memory_space<smem>>
    %967 = vector.broadcast %966 : f32 to vector<8x256xf32>
    %968 = arith.mulf %967, %961 : vector<8x256xf32>
    %969 = arith.addf %955, %968 : vector<8x256xf32>
    %c17_i32_151 = arith.constant 17 : i32
    %970 = tpu.dynamic_rotate %147 by %c17_i32_151 dim 1 : vector<8x256xf32>, i32 -> vector<8x256xf32>
    %971 = arith.mulf %970, %11 : vector<8x256xf32>
    %c90 = arith.constant 90 : index
    %972 = memref.load %arg6[%c90] : memref<436xf32, #tpu.memory_space<smem>>
    %973 = vector.broadcast %972 : f32 to vector<8x256xf32>
    %974 = arith.mulf %973, %971 : vector<8x256xf32>
    %975 = arith.addf %965, %974 : vector<8x256xf32>
    %c198 = arith.constant 198 : index
    %976 = memref.load %arg6[%c198] : memref<436xf32, #tpu.memory_space<smem>>
    %977 = vector.broadcast %976 : f32 to vector<8x256xf32>
    %978 = arith.mulf %977, %971 : vector<8x256xf32>
    %979 = arith.addf %969, %978 : vector<8x256xf32>
    %c17_i32_152 = arith.constant 17 : i32
    %980 = tpu.dynamic_rotate %959 by %c17_i32_152 dim 1 : vector<8x256xf32>, i32 -> vector<8x256xf32>
    %981 = arith.mulf %980, %11 : vector<8x256xf32>
    %c99 = arith.constant 99 : index
    %982 = memref.load %arg6[%c99] : memref<436xf32, #tpu.memory_space<smem>>
    %983 = vector.broadcast %982 : f32 to vector<8x256xf32>
    %984 = arith.mulf %983, %981 : vector<8x256xf32>
    %985 = arith.addf %975, %984 : vector<8x256xf32>
    %c207 = arith.constant 207 : index
    %986 = memref.load %arg6[%c207] : memref<436xf32, #tpu.memory_space<smem>>
    %987 = vector.broadcast %986 : f32 to vector<8x256xf32>
    %988 = arith.mulf %987, %981 : vector<8x256xf32>
    %989 = arith.addf %979, %988 : vector<8x256xf32>
    %c16_i32_153 = arith.constant 16 : i32
    %990 = tpu.dynamic_rotate %957 by %c16_i32_153 dim 1 : vector<8x256xf32>, i32 -> vector<8x256xf32>
    %991 = arith.mulf %990, %15 : vector<8x256xf32>
    %c82 = arith.constant 82 : index
    %992 = memref.load %arg6[%c82] : memref<436xf32, #tpu.memory_space<smem>>
    %993 = vector.broadcast %992 : f32 to vector<8x256xf32>
    %994 = arith.mulf %993, %991 : vector<8x256xf32>
    %995 = arith.addf %985, %994 : vector<8x256xf32>
    %c190 = arith.constant 190 : index
    %996 = memref.load %arg6[%c190] : memref<436xf32, #tpu.memory_space<smem>>
    %997 = vector.broadcast %996 : f32 to vector<8x256xf32>
    %998 = arith.mulf %997, %991 : vector<8x256xf32>
    %999 = arith.addf %989, %998 : vector<8x256xf32>
    %c16_i32_154 = arith.constant 16 : i32
    %1000 = tpu.dynamic_rotate %147 by %c16_i32_154 dim 1 : vector<8x256xf32>, i32 -> vector<8x256xf32>
    %1001 = arith.mulf %1000, %15 : vector<8x256xf32>
    %c91 = arith.constant 91 : index
    %1002 = memref.load %arg6[%c91] : memref<436xf32, #tpu.memory_space<smem>>
    %1003 = vector.broadcast %1002 : f32 to vector<8x256xf32>
    %1004 = arith.mulf %1003, %1001 : vector<8x256xf32>
    %1005 = arith.addf %995, %1004 : vector<8x256xf32>
    %c199 = arith.constant 199 : index
    %1006 = memref.load %arg6[%c199] : memref<436xf32, #tpu.memory_space<smem>>
    %1007 = vector.broadcast %1006 : f32 to vector<8x256xf32>
    %1008 = arith.mulf %1007, %1001 : vector<8x256xf32>
    %1009 = arith.addf %999, %1008 : vector<8x256xf32>
    %c16_i32_155 = arith.constant 16 : i32
    %1010 = tpu.dynamic_rotate %959 by %c16_i32_155 dim 1 : vector<8x256xf32>, i32 -> vector<8x256xf32>
    %1011 = arith.mulf %1010, %15 : vector<8x256xf32>
    %c100 = arith.constant 100 : index
    %1012 = memref.load %arg6[%c100] : memref<436xf32, #tpu.memory_space<smem>>
    %1013 = vector.broadcast %1012 : f32 to vector<8x256xf32>
    %1014 = arith.mulf %1013, %1011 : vector<8x256xf32>
    %1015 = arith.addf %1005, %1014 : vector<8x256xf32>
    %c208 = arith.constant 208 : index
    %1016 = memref.load %arg6[%c208] : memref<436xf32, #tpu.memory_space<smem>>
    %1017 = vector.broadcast %1016 : f32 to vector<8x256xf32>
    %1018 = arith.mulf %1017, %1011 : vector<8x256xf32>
    %1019 = arith.addf %1009, %1018 : vector<8x256xf32>
    %c15_i32_156 = arith.constant 15 : i32
    %1020 = tpu.dynamic_rotate %957 by %c15_i32_156 dim 1 : vector<8x256xf32>, i32 -> vector<8x256xf32>
    %1021 = arith.mulf %1020, %19 : vector<8x256xf32>
    %c83 = arith.constant 83 : index
    %1022 = memref.load %arg6[%c83] : memref<436xf32, #tpu.memory_space<smem>>
    %1023 = vector.broadcast %1022 : f32 to vector<8x256xf32>
    %1024 = arith.mulf %1023, %1021 : vector<8x256xf32>
    %1025 = arith.addf %1015, %1024 : vector<8x256xf32>
    %c191 = arith.constant 191 : index
    %1026 = memref.load %arg6[%c191] : memref<436xf32, #tpu.memory_space<smem>>
    %1027 = vector.broadcast %1026 : f32 to vector<8x256xf32>
    %1028 = arith.mulf %1027, %1021 : vector<8x256xf32>
    %1029 = arith.addf %1019, %1028 : vector<8x256xf32>
    %c15_i32_157 = arith.constant 15 : i32
    %1030 = tpu.dynamic_rotate %147 by %c15_i32_157 dim 1 : vector<8x256xf32>, i32 -> vector<8x256xf32>
    %1031 = arith.mulf %1030, %19 : vector<8x256xf32>
    %c92 = arith.constant 92 : index
    %1032 = memref.load %arg6[%c92] : memref<436xf32, #tpu.memory_space<smem>>
    %1033 = vector.broadcast %1032 : f32 to vector<8x256xf32>
    %1034 = arith.mulf %1033, %1031 : vector<8x256xf32>
    %1035 = arith.addf %1025, %1034 : vector<8x256xf32>
    %c200 = arith.constant 200 : index
    %1036 = memref.load %arg6[%c200] : memref<436xf32, #tpu.memory_space<smem>>
    %1037 = vector.broadcast %1036 : f32 to vector<8x256xf32>
    %1038 = arith.mulf %1037, %1031 : vector<8x256xf32>
    %1039 = arith.addf %1029, %1038 : vector<8x256xf32>
    %c15_i32_158 = arith.constant 15 : i32
    %1040 = tpu.dynamic_rotate %959 by %c15_i32_158 dim 1 : vector<8x256xf32>, i32 -> vector<8x256xf32>
    %1041 = arith.mulf %1040, %19 : vector<8x256xf32>
    %c101 = arith.constant 101 : index
    %1042 = memref.load %arg6[%c101] : memref<436xf32, #tpu.memory_space<smem>>
    %1043 = vector.broadcast %1042 : f32 to vector<8x256xf32>
    %1044 = arith.mulf %1043, %1041 : vector<8x256xf32>
    %1045 = arith.addf %1035, %1044 : vector<8x256xf32>
    %c209 = arith.constant 209 : index
    %1046 = memref.load %arg6[%c209] : memref<436xf32, #tpu.memory_space<smem>>
    %1047 = vector.broadcast %1046 : f32 to vector<8x256xf32>
    %1048 = arith.mulf %1047, %1041 : vector<8x256xf32>
    %1049 = arith.addf %1039, %1048 : vector<8x256xf32>
    %c1_i32_159 = arith.constant 1 : i32
    %1050 = tpu.dynamic_rotate %957 by %c1_i32_159 dim 1 : vector<8x256xf32>, i32 -> vector<8x256xf32>
    %1051 = arith.mulf %1050, %23 : vector<8x256xf32>
    %c84 = arith.constant 84 : index
    %1052 = memref.load %arg6[%c84] : memref<436xf32, #tpu.memory_space<smem>>
    %1053 = vector.broadcast %1052 : f32 to vector<8x256xf32>
    %1054 = arith.mulf %1053, %1051 : vector<8x256xf32>
    %1055 = arith.addf %1045, %1054 : vector<8x256xf32>
    %c192 = arith.constant 192 : index
    %1056 = memref.load %arg6[%c192] : memref<436xf32, #tpu.memory_space<smem>>
    %1057 = vector.broadcast %1056 : f32 to vector<8x256xf32>
    %1058 = arith.mulf %1057, %1051 : vector<8x256xf32>
    %1059 = arith.addf %1049, %1058 : vector<8x256xf32>
    %c1_i32_160 = arith.constant 1 : i32
    %1060 = tpu.dynamic_rotate %147 by %c1_i32_160 dim 1 : vector<8x256xf32>, i32 -> vector<8x256xf32>
    %1061 = arith.mulf %1060, %23 : vector<8x256xf32>
    %c93 = arith.constant 93 : index
    %1062 = memref.load %arg6[%c93] : memref<436xf32, #tpu.memory_space<smem>>
    %1063 = vector.broadcast %1062 : f32 to vector<8x256xf32>
    %1064 = arith.mulf %1063, %1061 : vector<8x256xf32>
    %1065 = arith.addf %1055, %1064 : vector<8x256xf32>
    %c201 = arith.constant 201 : index
    %1066 = memref.load %arg6[%c201] : memref<436xf32, #tpu.memory_space<smem>>
    %1067 = vector.broadcast %1066 : f32 to vector<8x256xf32>
    %1068 = arith.mulf %1067, %1061 : vector<8x256xf32>
    %1069 = arith.addf %1059, %1068 : vector<8x256xf32>
    %c1_i32_161 = arith.constant 1 : i32
    %1070 = tpu.dynamic_rotate %959 by %c1_i32_161 dim 1 : vector<8x256xf32>, i32 -> vector<8x256xf32>
    %1071 = arith.mulf %1070, %23 : vector<8x256xf32>
    %c102 = arith.constant 102 : index
    %1072 = memref.load %arg6[%c102] : memref<436xf32, #tpu.memory_space<smem>>
    %1073 = vector.broadcast %1072 : f32 to vector<8x256xf32>
    %1074 = arith.mulf %1073, %1071 : vector<8x256xf32>
    %1075 = arith.addf %1065, %1074 : vector<8x256xf32>
    %c210 = arith.constant 210 : index
    %1076 = memref.load %arg6[%c210] : memref<436xf32, #tpu.memory_space<smem>>
    %1077 = vector.broadcast %1076 : f32 to vector<8x256xf32>
    %1078 = arith.mulf %1077, %1071 : vector<8x256xf32>
    %1079 = arith.addf %1069, %1078 : vector<8x256xf32>
    %c85 = arith.constant 85 : index
    %1080 = memref.load %arg6[%c85] : memref<436xf32, #tpu.memory_space<smem>>
    %1081 = vector.broadcast %1080 : f32 to vector<8x256xf32>
    %1082 = arith.mulf %1081, %957 : vector<8x256xf32>
    %1083 = arith.addf %1075, %1082 : vector<8x256xf32>
    %c193 = arith.constant 193 : index
    %1084 = memref.load %arg6[%c193] : memref<436xf32, #tpu.memory_space<smem>>
    %1085 = vector.broadcast %1084 : f32 to vector<8x256xf32>
    %1086 = arith.mulf %1085, %957 : vector<8x256xf32>
    %1087 = arith.addf %1079, %1086 : vector<8x256xf32>
    %c94 = arith.constant 94 : index
    %1088 = memref.load %arg6[%c94] : memref<436xf32, #tpu.memory_space<smem>>
    %1089 = vector.broadcast %1088 : f32 to vector<8x256xf32>
    %1090 = arith.mulf %1089, %147 : vector<8x256xf32>
    %1091 = arith.addf %1083, %1090 : vector<8x256xf32>
    %c202 = arith.constant 202 : index
    %1092 = memref.load %arg6[%c202] : memref<436xf32, #tpu.memory_space<smem>>
    %1093 = vector.broadcast %1092 : f32 to vector<8x256xf32>
    %1094 = arith.mulf %1093, %147 : vector<8x256xf32>
    %1095 = arith.addf %1087, %1094 : vector<8x256xf32>
    %c103 = arith.constant 103 : index
    %1096 = memref.load %arg6[%c103] : memref<436xf32, #tpu.memory_space<smem>>
    %1097 = vector.broadcast %1096 : f32 to vector<8x256xf32>
    %1098 = arith.mulf %1097, %959 : vector<8x256xf32>
    %1099 = arith.addf %1091, %1098 : vector<8x256xf32>
    %c211 = arith.constant 211 : index
    %1100 = memref.load %arg6[%c211] : memref<436xf32, #tpu.memory_space<smem>>
    %1101 = vector.broadcast %1100 : f32 to vector<8x256xf32>
    %1102 = arith.mulf %1101, %959 : vector<8x256xf32>
    %1103 = arith.addf %1095, %1102 : vector<8x256xf32>
    %c255_i32_162 = arith.constant 255 : i32
    %1104 = tpu.dynamic_rotate %957 by %c255_i32_162 dim 1 : vector<8x256xf32>, i32 -> vector<8x256xf32>
    %1105 = arith.mulf %1104, %27 : vector<8x256xf32>
    %c86 = arith.constant 86 : index
    %1106 = memref.load %arg6[%c86] : memref<436xf32, #tpu.memory_space<smem>>
    %1107 = vector.broadcast %1106 : f32 to vector<8x256xf32>
    %1108 = arith.mulf %1107, %1105 : vector<8x256xf32>
    %1109 = arith.addf %1099, %1108 : vector<8x256xf32>
    %c194 = arith.constant 194 : index
    %1110 = memref.load %arg6[%c194] : memref<436xf32, #tpu.memory_space<smem>>
    %1111 = vector.broadcast %1110 : f32 to vector<8x256xf32>
    %1112 = arith.mulf %1111, %1105 : vector<8x256xf32>
    %1113 = arith.addf %1103, %1112 : vector<8x256xf32>
    %c255_i32_163 = arith.constant 255 : i32
    %1114 = tpu.dynamic_rotate %147 by %c255_i32_163 dim 1 : vector<8x256xf32>, i32 -> vector<8x256xf32>
    %1115 = arith.mulf %1114, %27 : vector<8x256xf32>
    %c95 = arith.constant 95 : index
    %1116 = memref.load %arg6[%c95] : memref<436xf32, #tpu.memory_space<smem>>
    %1117 = vector.broadcast %1116 : f32 to vector<8x256xf32>
    %1118 = arith.mulf %1117, %1115 : vector<8x256xf32>
    %1119 = arith.addf %1109, %1118 : vector<8x256xf32>
    %c203 = arith.constant 203 : index
    %1120 = memref.load %arg6[%c203] : memref<436xf32, #tpu.memory_space<smem>>
    %1121 = vector.broadcast %1120 : f32 to vector<8x256xf32>
    %1122 = arith.mulf %1121, %1115 : vector<8x256xf32>
    %1123 = arith.addf %1113, %1122 : vector<8x256xf32>
    %c255_i32_164 = arith.constant 255 : i32
    %1124 = tpu.dynamic_rotate %959 by %c255_i32_164 dim 1 : vector<8x256xf32>, i32 -> vector<8x256xf32>
    %1125 = arith.mulf %1124, %27 : vector<8x256xf32>
    %c104 = arith.constant 104 : index
    %1126 = memref.load %arg6[%c104] : memref<436xf32, #tpu.memory_space<smem>>
    %1127 = vector.broadcast %1126 : f32 to vector<8x256xf32>
    %1128 = arith.mulf %1127, %1125 : vector<8x256xf32>
    %1129 = arith.addf %1119, %1128 : vector<8x256xf32>
    %c212 = arith.constant 212 : index
    %1130 = memref.load %arg6[%c212] : memref<436xf32, #tpu.memory_space<smem>>
    %1131 = vector.broadcast %1130 : f32 to vector<8x256xf32>
    %1132 = arith.mulf %1131, %1125 : vector<8x256xf32>
    %1133 = arith.addf %1123, %1132 : vector<8x256xf32>
    %c241_i32_165 = arith.constant 241 : i32
    %1134 = tpu.dynamic_rotate %957 by %c241_i32_165 dim 1 : vector<8x256xf32>, i32 -> vector<8x256xf32>
    %1135 = arith.mulf %1134, %31 : vector<8x256xf32>
    %c87 = arith.constant 87 : index
    %1136 = memref.load %arg6[%c87] : memref<436xf32, #tpu.memory_space<smem>>
    %1137 = vector.broadcast %1136 : f32 to vector<8x256xf32>
    %1138 = arith.mulf %1137, %1135 : vector<8x256xf32>
    %1139 = arith.addf %1129, %1138 : vector<8x256xf32>
    %c195 = arith.constant 195 : index
    %1140 = memref.load %arg6[%c195] : memref<436xf32, #tpu.memory_space<smem>>
    %1141 = vector.broadcast %1140 : f32 to vector<8x256xf32>
    %1142 = arith.mulf %1141, %1135 : vector<8x256xf32>
    %1143 = arith.addf %1133, %1142 : vector<8x256xf32>
    %c241_i32_166 = arith.constant 241 : i32
    %1144 = tpu.dynamic_rotate %147 by %c241_i32_166 dim 1 : vector<8x256xf32>, i32 -> vector<8x256xf32>
    %1145 = arith.mulf %1144, %31 : vector<8x256xf32>
    %c96 = arith.constant 96 : index
    %1146 = memref.load %arg6[%c96] : memref<436xf32, #tpu.memory_space<smem>>
    %1147 = vector.broadcast %1146 : f32 to vector<8x256xf32>
    %1148 = arith.mulf %1147, %1145 : vector<8x256xf32>
    %1149 = arith.addf %1139, %1148 : vector<8x256xf32>
    %c204 = arith.constant 204 : index
    %1150 = memref.load %arg6[%c204] : memref<436xf32, #tpu.memory_space<smem>>
    %1151 = vector.broadcast %1150 : f32 to vector<8x256xf32>
    %1152 = arith.mulf %1151, %1145 : vector<8x256xf32>
    %1153 = arith.addf %1143, %1152 : vector<8x256xf32>
    %c241_i32_167 = arith.constant 241 : i32
    %1154 = tpu.dynamic_rotate %959 by %c241_i32_167 dim 1 : vector<8x256xf32>, i32 -> vector<8x256xf32>
    %1155 = arith.mulf %1154, %31 : vector<8x256xf32>
    %c105 = arith.constant 105 : index
    %1156 = memref.load %arg6[%c105] : memref<436xf32, #tpu.memory_space<smem>>
    %1157 = vector.broadcast %1156 : f32 to vector<8x256xf32>
    %1158 = arith.mulf %1157, %1155 : vector<8x256xf32>
    %1159 = arith.addf %1149, %1158 : vector<8x256xf32>
    %c213 = arith.constant 213 : index
    %1160 = memref.load %arg6[%c213] : memref<436xf32, #tpu.memory_space<smem>>
    %1161 = vector.broadcast %1160 : f32 to vector<8x256xf32>
    %1162 = arith.mulf %1161, %1155 : vector<8x256xf32>
    %1163 = arith.addf %1153, %1162 : vector<8x256xf32>
    %c240_i32_168 = arith.constant 240 : i32
    %1164 = tpu.dynamic_rotate %957 by %c240_i32_168 dim 1 : vector<8x256xf32>, i32 -> vector<8x256xf32>
    %1165 = arith.mulf %1164, %35 : vector<8x256xf32>
    %c88 = arith.constant 88 : index
    %1166 = memref.load %arg6[%c88] : memref<436xf32, #tpu.memory_space<smem>>
    %1167 = vector.broadcast %1166 : f32 to vector<8x256xf32>
    %1168 = arith.mulf %1167, %1165 : vector<8x256xf32>
    %1169 = arith.addf %1159, %1168 : vector<8x256xf32>
    %c196 = arith.constant 196 : index
    %1170 = memref.load %arg6[%c196] : memref<436xf32, #tpu.memory_space<smem>>
    %1171 = vector.broadcast %1170 : f32 to vector<8x256xf32>
    %1172 = arith.mulf %1171, %1165 : vector<8x256xf32>
    %1173 = arith.addf %1163, %1172 : vector<8x256xf32>
    %c240_i32_169 = arith.constant 240 : i32
    %1174 = tpu.dynamic_rotate %147 by %c240_i32_169 dim 1 : vector<8x256xf32>, i32 -> vector<8x256xf32>
    %1175 = arith.mulf %1174, %35 : vector<8x256xf32>
    %c97 = arith.constant 97 : index
    %1176 = memref.load %arg6[%c97] : memref<436xf32, #tpu.memory_space<smem>>
    %1177 = vector.broadcast %1176 : f32 to vector<8x256xf32>
    %1178 = arith.mulf %1177, %1175 : vector<8x256xf32>
    %1179 = arith.addf %1169, %1178 : vector<8x256xf32>
    %c205 = arith.constant 205 : index
    %1180 = memref.load %arg6[%c205] : memref<436xf32, #tpu.memory_space<smem>>
    %1181 = vector.broadcast %1180 : f32 to vector<8x256xf32>
    %1182 = arith.mulf %1181, %1175 : vector<8x256xf32>
    %1183 = arith.addf %1173, %1182 : vector<8x256xf32>
    %c240_i32_170 = arith.constant 240 : i32
    %1184 = tpu.dynamic_rotate %959 by %c240_i32_170 dim 1 : vector<8x256xf32>, i32 -> vector<8x256xf32>
    %1185 = arith.mulf %1184, %35 : vector<8x256xf32>
    %c106 = arith.constant 106 : index
    %1186 = memref.load %arg6[%c106] : memref<436xf32, #tpu.memory_space<smem>>
    %1187 = vector.broadcast %1186 : f32 to vector<8x256xf32>
    %1188 = arith.mulf %1187, %1185 : vector<8x256xf32>
    %1189 = arith.addf %1179, %1188 : vector<8x256xf32>
    %c214 = arith.constant 214 : index
    %1190 = memref.load %arg6[%c214] : memref<436xf32, #tpu.memory_space<smem>>
    %1191 = vector.broadcast %1190 : f32 to vector<8x256xf32>
    %1192 = arith.mulf %1191, %1185 : vector<8x256xf32>
    %1193 = arith.addf %1183, %1192 : vector<8x256xf32>
    %c239_i32_171 = arith.constant 239 : i32
    %1194 = tpu.dynamic_rotate %957 by %c239_i32_171 dim 1 : vector<8x256xf32>, i32 -> vector<8x256xf32>
    %1195 = arith.mulf %1194, %39 : vector<8x256xf32>
    %c89 = arith.constant 89 : index
    %1196 = memref.load %arg6[%c89] : memref<436xf32, #tpu.memory_space<smem>>
    %1197 = vector.broadcast %1196 : f32 to vector<8x256xf32>
    %1198 = arith.mulf %1197, %1195 : vector<8x256xf32>
    %1199 = arith.addf %1189, %1198 : vector<8x256xf32>
    %c197 = arith.constant 197 : index
    %1200 = memref.load %arg6[%c197] : memref<436xf32, #tpu.memory_space<smem>>
    %1201 = vector.broadcast %1200 : f32 to vector<8x256xf32>
    %1202 = arith.mulf %1201, %1195 : vector<8x256xf32>
    %1203 = arith.addf %1193, %1202 : vector<8x256xf32>
    %c239_i32_172 = arith.constant 239 : i32
    %1204 = tpu.dynamic_rotate %147 by %c239_i32_172 dim 1 : vector<8x256xf32>, i32 -> vector<8x256xf32>
    %1205 = arith.mulf %1204, %39 : vector<8x256xf32>
    %c98 = arith.constant 98 : index
    %1206 = memref.load %arg6[%c98] : memref<436xf32, #tpu.memory_space<smem>>
    %1207 = vector.broadcast %1206 : f32 to vector<8x256xf32>
    %1208 = arith.mulf %1207, %1205 : vector<8x256xf32>
    %1209 = arith.addf %1199, %1208 : vector<8x256xf32>
    %c206 = arith.constant 206 : index
    %1210 = memref.load %arg6[%c206] : memref<436xf32, #tpu.memory_space<smem>>
    %1211 = vector.broadcast %1210 : f32 to vector<8x256xf32>
    %1212 = arith.mulf %1211, %1205 : vector<8x256xf32>
    %1213 = arith.addf %1203, %1212 : vector<8x256xf32>
    %c239_i32_173 = arith.constant 239 : i32
    %1214 = tpu.dynamic_rotate %959 by %c239_i32_173 dim 1 : vector<8x256xf32>, i32 -> vector<8x256xf32>
    %1215 = arith.mulf %1214, %39 : vector<8x256xf32>
    %c107 = arith.constant 107 : index
    %1216 = memref.load %arg6[%c107] : memref<436xf32, #tpu.memory_space<smem>>
    %1217 = vector.broadcast %1216 : f32 to vector<8x256xf32>
    %1218 = arith.mulf %1217, %1215 : vector<8x256xf32>
    %1219 = arith.addf %1209, %1218 : vector<8x256xf32>
    %c215 = arith.constant 215 : index
    %1220 = memref.load %arg6[%c215] : memref<436xf32, #tpu.memory_space<smem>>
    %1221 = vector.broadcast %1220 : f32 to vector<8x256xf32>
    %1222 = arith.mulf %1221, %1215 : vector<8x256xf32>
    %1223 = arith.addf %1213, %1222 : vector<8x256xf32>
    %1224 = vector.shape_cast %1219 : vector<8x256xf32> to vector<1x8x256xf32>
    %cst_174 = arith.constant dense<0.000000e+00> : vector<1xf32>
    %1225 = vector.multi_reduction <add>, %1224, %cst_174 [1, 2] : vector<1x8x256xf32> to vector<1xf32>
    %1226 = vector.shape_cast %1225 : vector<1xf32> to vector<1x1x1xf32>
    %1227 = vector.extract %1226[0, 0, 0] : f32 from vector<1x1x1xf32>
    %cst_175 = arith.constant 2.048000e+03 : f32
    %1228 = arith.divf %1227, %cst_175 : f32
    %1229 = vector.broadcast %1228 : f32 to vector<8x256xf32>
    %1230 = arith.subf %1219, %1229 : vector<8x256xf32>
    %1231 = arith.mulf %1230, %1230 : vector<8x256xf32>
    %1232 = vector.shape_cast %1231 : vector<8x256xf32> to vector<1x8x256xf32>
    %cst_176 = arith.constant dense<0.000000e+00> : vector<1xf32>
    %1233 = vector.multi_reduction <add>, %1232, %cst_176 [1, 2] : vector<1x8x256xf32> to vector<1xf32>
    %1234 = vector.shape_cast %1233 : vector<1xf32> to vector<1x1x1xf32>
    %1235 = vector.extract %1234[0, 0, 0] : f32 from vector<1x1x1xf32>
    %cst_177 = arith.constant 2.048000e+03 : f32
    %1236 = arith.divf %1235, %cst_177 : f32
    %cst_178 = arith.constant 9.99999974E-6 : f32
    %1237 = arith.addf %1236, %cst_178 : f32
    %1238 = math.rsqrt %1237 : f32
    %c8_179 = arith.constant 8 : index
    %1239 = memref.load %arg5[%c8_179] : memref<20xf32, #tpu.memory_space<smem>>
    %1240 = arith.mulf %1238, %1239 : f32
    %1241 = vector.broadcast %1240 : f32 to vector<8x256xf32>
    %1242 = arith.mulf %1230, %1241 : vector<8x256xf32>
    %c10_180 = arith.constant 10 : index
    %1243 = memref.load %arg5[%c10_180] : memref<20xf32, #tpu.memory_space<smem>>
    %1244 = vector.broadcast %1243 : f32 to vector<8x256xf32>
    %1245 = arith.addf %1242, %1244 : vector<8x256xf32>
    %cst_181 = arith.constant 0.00999999977 : f32
    %1246 = vector.broadcast %cst_181 : f32 to vector<8x256xf32>
    %1247 = arith.mulf %1246, %1245 : vector<8x256xf32>
    %1248 = arith.maximumf %1245, %1247 : vector<8x256xf32>
    %1249 = vector.shape_cast %1223 : vector<8x256xf32> to vector<1x8x256xf32>
    %cst_182 = arith.constant dense<0.000000e+00> : vector<1xf32>
    %1250 = vector.multi_reduction <add>, %1249, %cst_182 [1, 2] : vector<1x8x256xf32> to vector<1xf32>
    %1251 = vector.shape_cast %1250 : vector<1xf32> to vector<1x1x1xf32>
    %1252 = vector.extract %1251[0, 0, 0] : f32 from vector<1x1x1xf32>
    %cst_183 = arith.constant 2.048000e+03 : f32
    %1253 = arith.divf %1252, %cst_183 : f32
    %1254 = vector.broadcast %1253 : f32 to vector<8x256xf32>
    %1255 = arith.subf %1223, %1254 : vector<8x256xf32>
    %1256 = arith.mulf %1255, %1255 : vector<8x256xf32>
    %1257 = vector.shape_cast %1256 : vector<8x256xf32> to vector<1x8x256xf32>
    %cst_184 = arith.constant dense<0.000000e+00> : vector<1xf32>
    %1258 = vector.multi_reduction <add>, %1257, %cst_184 [1, 2] : vector<1x8x256xf32> to vector<1xf32>
    %1259 = vector.shape_cast %1258 : vector<1xf32> to vector<1x1x1xf32>
    %1260 = vector.extract %1259[0, 0, 0] : f32 from vector<1x1x1xf32>
    %cst_185 = arith.constant 2.048000e+03 : f32
    %1261 = arith.divf %1260, %cst_185 : f32
    %cst_186 = arith.constant 9.99999974E-6 : f32
    %1262 = arith.addf %1261, %cst_186 : f32
    %1263 = math.rsqrt %1262 : f32
    %c9_187 = arith.constant 9 : index
    %1264 = memref.load %arg5[%c9_187] : memref<20xf32, #tpu.memory_space<smem>>
    %1265 = arith.mulf %1263, %1264 : f32
    %1266 = vector.broadcast %1265 : f32 to vector<8x256xf32>
    %1267 = arith.mulf %1255, %1266 : vector<8x256xf32>
    %c11_188 = arith.constant 11 : index
    %1268 = memref.load %arg5[%c11_188] : memref<20xf32, #tpu.memory_space<smem>>
    %1269 = vector.broadcast %1268 : f32 to vector<8x256xf32>
    %1270 = arith.addf %1267, %1269 : vector<8x256xf32>
    %cst_189 = arith.constant 0.00999999977 : f32
    %1271 = vector.broadcast %cst_189 : f32 to vector<8x256xf32>
    %1272 = arith.mulf %1271, %1270 : vector<8x256xf32>
    %1273 = arith.maximumf %1270, %1272 : vector<8x256xf32>
    %c2_190 = arith.constant 2 : index
    %1274 = memref.load %arg7[%c2_190] : memref<8xf32, #tpu.memory_space<smem>>
    %1275 = vector.broadcast %1274 : f32 to vector<8x256xf32>
    %c3_191 = arith.constant 3 : index
    %1276 = memref.load %arg7[%c3_191] : memref<8xf32, #tpu.memory_space<smem>>
    %1277 = vector.broadcast %1276 : f32 to vector<8x256xf32>
    %c1_i32_192 = arith.constant 1 : i32
    %1278 = tpu.dynamic_rotate %1248 by %c1_i32_192 dim 0 : vector<8x256xf32>, i32 -> vector<8x256xf32>
    %1279 = arith.mulf %1278, %3 : vector<8x256xf32>
    %c7_i32_193 = arith.constant 7 : i32
    %1280 = tpu.dynamic_rotate %1248 by %c7_i32_193 dim 0 : vector<8x256xf32>, i32 -> vector<8x256xf32>
    %1281 = arith.mulf %1280, %7 : vector<8x256xf32>
    %c17_i32_194 = arith.constant 17 : i32
    %1282 = tpu.dynamic_rotate %1279 by %c17_i32_194 dim 1 : vector<8x256xf32>, i32 -> vector<8x256xf32>
    %1283 = arith.mulf %1282, %11 : vector<8x256xf32>
    %c216 = arith.constant 216 : index
    %1284 = memref.load %arg6[%c216] : memref<436xf32, #tpu.memory_space<smem>>
    %1285 = vector.broadcast %1284 : f32 to vector<8x256xf32>
    %1286 = arith.mulf %1285, %1283 : vector<8x256xf32>
    %1287 = arith.addf %1275, %1286 : vector<8x256xf32>
    %c270 = arith.constant 270 : index
    %1288 = memref.load %arg6[%c270] : memref<436xf32, #tpu.memory_space<smem>>
    %1289 = vector.broadcast %1288 : f32 to vector<8x256xf32>
    %1290 = arith.mulf %1289, %1283 : vector<8x256xf32>
    %1291 = arith.addf %1277, %1290 : vector<8x256xf32>
    %c17_i32_195 = arith.constant 17 : i32
    %1292 = tpu.dynamic_rotate %1248 by %c17_i32_195 dim 1 : vector<8x256xf32>, i32 -> vector<8x256xf32>
    %1293 = arith.mulf %1292, %11 : vector<8x256xf32>
    %c225 = arith.constant 225 : index
    %1294 = memref.load %arg6[%c225] : memref<436xf32, #tpu.memory_space<smem>>
    %1295 = vector.broadcast %1294 : f32 to vector<8x256xf32>
    %1296 = arith.mulf %1295, %1293 : vector<8x256xf32>
    %1297 = arith.addf %1287, %1296 : vector<8x256xf32>
    %c279 = arith.constant 279 : index
    %1298 = memref.load %arg6[%c279] : memref<436xf32, #tpu.memory_space<smem>>
    %1299 = vector.broadcast %1298 : f32 to vector<8x256xf32>
    %1300 = arith.mulf %1299, %1293 : vector<8x256xf32>
    %1301 = arith.addf %1291, %1300 : vector<8x256xf32>
    %c17_i32_196 = arith.constant 17 : i32
    %1302 = tpu.dynamic_rotate %1281 by %c17_i32_196 dim 1 : vector<8x256xf32>, i32 -> vector<8x256xf32>
    %1303 = arith.mulf %1302, %11 : vector<8x256xf32>
    %c234 = arith.constant 234 : index
    %1304 = memref.load %arg6[%c234] : memref<436xf32, #tpu.memory_space<smem>>
    %1305 = vector.broadcast %1304 : f32 to vector<8x256xf32>
    %1306 = arith.mulf %1305, %1303 : vector<8x256xf32>
    %1307 = arith.addf %1297, %1306 : vector<8x256xf32>
    %c288 = arith.constant 288 : index
    %1308 = memref.load %arg6[%c288] : memref<436xf32, #tpu.memory_space<smem>>
    %1309 = vector.broadcast %1308 : f32 to vector<8x256xf32>
    %1310 = arith.mulf %1309, %1303 : vector<8x256xf32>
    %1311 = arith.addf %1301, %1310 : vector<8x256xf32>
    %c16_i32_197 = arith.constant 16 : i32
    %1312 = tpu.dynamic_rotate %1279 by %c16_i32_197 dim 1 : vector<8x256xf32>, i32 -> vector<8x256xf32>
    %1313 = arith.mulf %1312, %15 : vector<8x256xf32>
    %c217 = arith.constant 217 : index
    %1314 = memref.load %arg6[%c217] : memref<436xf32, #tpu.memory_space<smem>>
    %1315 = vector.broadcast %1314 : f32 to vector<8x256xf32>
    %1316 = arith.mulf %1315, %1313 : vector<8x256xf32>
    %1317 = arith.addf %1307, %1316 : vector<8x256xf32>
    %c271 = arith.constant 271 : index
    %1318 = memref.load %arg6[%c271] : memref<436xf32, #tpu.memory_space<smem>>
    %1319 = vector.broadcast %1318 : f32 to vector<8x256xf32>
    %1320 = arith.mulf %1319, %1313 : vector<8x256xf32>
    %1321 = arith.addf %1311, %1320 : vector<8x256xf32>
    %c16_i32_198 = arith.constant 16 : i32
    %1322 = tpu.dynamic_rotate %1248 by %c16_i32_198 dim 1 : vector<8x256xf32>, i32 -> vector<8x256xf32>
    %1323 = arith.mulf %1322, %15 : vector<8x256xf32>
    %c226 = arith.constant 226 : index
    %1324 = memref.load %arg6[%c226] : memref<436xf32, #tpu.memory_space<smem>>
    %1325 = vector.broadcast %1324 : f32 to vector<8x256xf32>
    %1326 = arith.mulf %1325, %1323 : vector<8x256xf32>
    %1327 = arith.addf %1317, %1326 : vector<8x256xf32>
    %c280 = arith.constant 280 : index
    %1328 = memref.load %arg6[%c280] : memref<436xf32, #tpu.memory_space<smem>>
    %1329 = vector.broadcast %1328 : f32 to vector<8x256xf32>
    %1330 = arith.mulf %1329, %1323 : vector<8x256xf32>
    %1331 = arith.addf %1321, %1330 : vector<8x256xf32>
    %c16_i32_199 = arith.constant 16 : i32
    %1332 = tpu.dynamic_rotate %1281 by %c16_i32_199 dim 1 : vector<8x256xf32>, i32 -> vector<8x256xf32>
    %1333 = arith.mulf %1332, %15 : vector<8x256xf32>
    %c235 = arith.constant 235 : index
    %1334 = memref.load %arg6[%c235] : memref<436xf32, #tpu.memory_space<smem>>
    %1335 = vector.broadcast %1334 : f32 to vector<8x256xf32>
    %1336 = arith.mulf %1335, %1333 : vector<8x256xf32>
    %1337 = arith.addf %1327, %1336 : vector<8x256xf32>
    %c289 = arith.constant 289 : index
    %1338 = memref.load %arg6[%c289] : memref<436xf32, #tpu.memory_space<smem>>
    %1339 = vector.broadcast %1338 : f32 to vector<8x256xf32>
    %1340 = arith.mulf %1339, %1333 : vector<8x256xf32>
    %1341 = arith.addf %1331, %1340 : vector<8x256xf32>
    %c15_i32_200 = arith.constant 15 : i32
    %1342 = tpu.dynamic_rotate %1279 by %c15_i32_200 dim 1 : vector<8x256xf32>, i32 -> vector<8x256xf32>
    %1343 = arith.mulf %1342, %19 : vector<8x256xf32>
    %c218 = arith.constant 218 : index
    %1344 = memref.load %arg6[%c218] : memref<436xf32, #tpu.memory_space<smem>>
    %1345 = vector.broadcast %1344 : f32 to vector<8x256xf32>
    %1346 = arith.mulf %1345, %1343 : vector<8x256xf32>
    %1347 = arith.addf %1337, %1346 : vector<8x256xf32>
    %c272 = arith.constant 272 : index
    %1348 = memref.load %arg6[%c272] : memref<436xf32, #tpu.memory_space<smem>>
    %1349 = vector.broadcast %1348 : f32 to vector<8x256xf32>
    %1350 = arith.mulf %1349, %1343 : vector<8x256xf32>
    %1351 = arith.addf %1341, %1350 : vector<8x256xf32>
    %c15_i32_201 = arith.constant 15 : i32
    %1352 = tpu.dynamic_rotate %1248 by %c15_i32_201 dim 1 : vector<8x256xf32>, i32 -> vector<8x256xf32>
    %1353 = arith.mulf %1352, %19 : vector<8x256xf32>
    %c227 = arith.constant 227 : index
    %1354 = memref.load %arg6[%c227] : memref<436xf32, #tpu.memory_space<smem>>
    %1355 = vector.broadcast %1354 : f32 to vector<8x256xf32>
    %1356 = arith.mulf %1355, %1353 : vector<8x256xf32>
    %1357 = arith.addf %1347, %1356 : vector<8x256xf32>
    %c281 = arith.constant 281 : index
    %1358 = memref.load %arg6[%c281] : memref<436xf32, #tpu.memory_space<smem>>
    %1359 = vector.broadcast %1358 : f32 to vector<8x256xf32>
    %1360 = arith.mulf %1359, %1353 : vector<8x256xf32>
    %1361 = arith.addf %1351, %1360 : vector<8x256xf32>
    %c15_i32_202 = arith.constant 15 : i32
    %1362 = tpu.dynamic_rotate %1281 by %c15_i32_202 dim 1 : vector<8x256xf32>, i32 -> vector<8x256xf32>
    %1363 = arith.mulf %1362, %19 : vector<8x256xf32>
    %c236 = arith.constant 236 : index
    %1364 = memref.load %arg6[%c236] : memref<436xf32, #tpu.memory_space<smem>>
    %1365 = vector.broadcast %1364 : f32 to vector<8x256xf32>
    %1366 = arith.mulf %1365, %1363 : vector<8x256xf32>
    %1367 = arith.addf %1357, %1366 : vector<8x256xf32>
    %c290 = arith.constant 290 : index
    %1368 = memref.load %arg6[%c290] : memref<436xf32, #tpu.memory_space<smem>>
    %1369 = vector.broadcast %1368 : f32 to vector<8x256xf32>
    %1370 = arith.mulf %1369, %1363 : vector<8x256xf32>
    %1371 = arith.addf %1361, %1370 : vector<8x256xf32>
    %c1_i32_203 = arith.constant 1 : i32
    %1372 = tpu.dynamic_rotate %1279 by %c1_i32_203 dim 1 : vector<8x256xf32>, i32 -> vector<8x256xf32>
    %1373 = arith.mulf %1372, %23 : vector<8x256xf32>
    %c219 = arith.constant 219 : index
    %1374 = memref.load %arg6[%c219] : memref<436xf32, #tpu.memory_space<smem>>
    %1375 = vector.broadcast %1374 : f32 to vector<8x256xf32>
    %1376 = arith.mulf %1375, %1373 : vector<8x256xf32>
    %1377 = arith.addf %1367, %1376 : vector<8x256xf32>
    %c273 = arith.constant 273 : index
    %1378 = memref.load %arg6[%c273] : memref<436xf32, #tpu.memory_space<smem>>
    %1379 = vector.broadcast %1378 : f32 to vector<8x256xf32>
    %1380 = arith.mulf %1379, %1373 : vector<8x256xf32>
    %1381 = arith.addf %1371, %1380 : vector<8x256xf32>
    %c1_i32_204 = arith.constant 1 : i32
    %1382 = tpu.dynamic_rotate %1248 by %c1_i32_204 dim 1 : vector<8x256xf32>, i32 -> vector<8x256xf32>
    %1383 = arith.mulf %1382, %23 : vector<8x256xf32>
    %c228 = arith.constant 228 : index
    %1384 = memref.load %arg6[%c228] : memref<436xf32, #tpu.memory_space<smem>>
    %1385 = vector.broadcast %1384 : f32 to vector<8x256xf32>
    %1386 = arith.mulf %1385, %1383 : vector<8x256xf32>
    %1387 = arith.addf %1377, %1386 : vector<8x256xf32>
    %c282 = arith.constant 282 : index
    %1388 = memref.load %arg6[%c282] : memref<436xf32, #tpu.memory_space<smem>>
    %1389 = vector.broadcast %1388 : f32 to vector<8x256xf32>
    %1390 = arith.mulf %1389, %1383 : vector<8x256xf32>
    %1391 = arith.addf %1381, %1390 : vector<8x256xf32>
    %c1_i32_205 = arith.constant 1 : i32
    %1392 = tpu.dynamic_rotate %1281 by %c1_i32_205 dim 1 : vector<8x256xf32>, i32 -> vector<8x256xf32>
    %1393 = arith.mulf %1392, %23 : vector<8x256xf32>
    %c237 = arith.constant 237 : index
    %1394 = memref.load %arg6[%c237] : memref<436xf32, #tpu.memory_space<smem>>
    %1395 = vector.broadcast %1394 : f32 to vector<8x256xf32>
    %1396 = arith.mulf %1395, %1393 : vector<8x256xf32>
    %1397 = arith.addf %1387, %1396 : vector<8x256xf32>
    %c291 = arith.constant 291 : index
    %1398 = memref.load %arg6[%c291] : memref<436xf32, #tpu.memory_space<smem>>
    %1399 = vector.broadcast %1398 : f32 to vector<8x256xf32>
    %1400 = arith.mulf %1399, %1393 : vector<8x256xf32>
    %1401 = arith.addf %1391, %1400 : vector<8x256xf32>
    %c220 = arith.constant 220 : index
    %1402 = memref.load %arg6[%c220] : memref<436xf32, #tpu.memory_space<smem>>
    %1403 = vector.broadcast %1402 : f32 to vector<8x256xf32>
    %1404 = arith.mulf %1403, %1279 : vector<8x256xf32>
    %1405 = arith.addf %1397, %1404 : vector<8x256xf32>
    %c274 = arith.constant 274 : index
    %1406 = memref.load %arg6[%c274] : memref<436xf32, #tpu.memory_space<smem>>
    %1407 = vector.broadcast %1406 : f32 to vector<8x256xf32>
    %1408 = arith.mulf %1407, %1279 : vector<8x256xf32>
    %1409 = arith.addf %1401, %1408 : vector<8x256xf32>
    %c229 = arith.constant 229 : index
    %1410 = memref.load %arg6[%c229] : memref<436xf32, #tpu.memory_space<smem>>
    %1411 = vector.broadcast %1410 : f32 to vector<8x256xf32>
    %1412 = arith.mulf %1411, %1248 : vector<8x256xf32>
    %1413 = arith.addf %1405, %1412 : vector<8x256xf32>
    %c283 = arith.constant 283 : index
    %1414 = memref.load %arg6[%c283] : memref<436xf32, #tpu.memory_space<smem>>
    %1415 = vector.broadcast %1414 : f32 to vector<8x256xf32>
    %1416 = arith.mulf %1415, %1248 : vector<8x256xf32>
    %1417 = arith.addf %1409, %1416 : vector<8x256xf32>
    %c238 = arith.constant 238 : index
    %1418 = memref.load %arg6[%c238] : memref<436xf32, #tpu.memory_space<smem>>
    %1419 = vector.broadcast %1418 : f32 to vector<8x256xf32>
    %1420 = arith.mulf %1419, %1281 : vector<8x256xf32>
    %1421 = arith.addf %1413, %1420 : vector<8x256xf32>
    %c292 = arith.constant 292 : index
    %1422 = memref.load %arg6[%c292] : memref<436xf32, #tpu.memory_space<smem>>
    %1423 = vector.broadcast %1422 : f32 to vector<8x256xf32>
    %1424 = arith.mulf %1423, %1281 : vector<8x256xf32>
    %1425 = arith.addf %1417, %1424 : vector<8x256xf32>
    %c255_i32_206 = arith.constant 255 : i32
    %1426 = tpu.dynamic_rotate %1279 by %c255_i32_206 dim 1 : vector<8x256xf32>, i32 -> vector<8x256xf32>
    %1427 = arith.mulf %1426, %27 : vector<8x256xf32>
    %c221 = arith.constant 221 : index
    %1428 = memref.load %arg6[%c221] : memref<436xf32, #tpu.memory_space<smem>>
    %1429 = vector.broadcast %1428 : f32 to vector<8x256xf32>
    %1430 = arith.mulf %1429, %1427 : vector<8x256xf32>
    %1431 = arith.addf %1421, %1430 : vector<8x256xf32>
    %c275 = arith.constant 275 : index
    %1432 = memref.load %arg6[%c275] : memref<436xf32, #tpu.memory_space<smem>>
    %1433 = vector.broadcast %1432 : f32 to vector<8x256xf32>
    %1434 = arith.mulf %1433, %1427 : vector<8x256xf32>
    %1435 = arith.addf %1425, %1434 : vector<8x256xf32>
    %c255_i32_207 = arith.constant 255 : i32
    %1436 = tpu.dynamic_rotate %1248 by %c255_i32_207 dim 1 : vector<8x256xf32>, i32 -> vector<8x256xf32>
    %1437 = arith.mulf %1436, %27 : vector<8x256xf32>
    %c230 = arith.constant 230 : index
    %1438 = memref.load %arg6[%c230] : memref<436xf32, #tpu.memory_space<smem>>
    %1439 = vector.broadcast %1438 : f32 to vector<8x256xf32>
    %1440 = arith.mulf %1439, %1437 : vector<8x256xf32>
    %1441 = arith.addf %1431, %1440 : vector<8x256xf32>
    %c284 = arith.constant 284 : index
    %1442 = memref.load %arg6[%c284] : memref<436xf32, #tpu.memory_space<smem>>
    %1443 = vector.broadcast %1442 : f32 to vector<8x256xf32>
    %1444 = arith.mulf %1443, %1437 : vector<8x256xf32>
    %1445 = arith.addf %1435, %1444 : vector<8x256xf32>
    %c255_i32_208 = arith.constant 255 : i32
    %1446 = tpu.dynamic_rotate %1281 by %c255_i32_208 dim 1 : vector<8x256xf32>, i32 -> vector<8x256xf32>
    %1447 = arith.mulf %1446, %27 : vector<8x256xf32>
    %c239 = arith.constant 239 : index
    %1448 = memref.load %arg6[%c239] : memref<436xf32, #tpu.memory_space<smem>>
    %1449 = vector.broadcast %1448 : f32 to vector<8x256xf32>
    %1450 = arith.mulf %1449, %1447 : vector<8x256xf32>
    %1451 = arith.addf %1441, %1450 : vector<8x256xf32>
    %c293 = arith.constant 293 : index
    %1452 = memref.load %arg6[%c293] : memref<436xf32, #tpu.memory_space<smem>>
    %1453 = vector.broadcast %1452 : f32 to vector<8x256xf32>
    %1454 = arith.mulf %1453, %1447 : vector<8x256xf32>
    %1455 = arith.addf %1445, %1454 : vector<8x256xf32>
    %c241_i32_209 = arith.constant 241 : i32
    %1456 = tpu.dynamic_rotate %1279 by %c241_i32_209 dim 1 : vector<8x256xf32>, i32 -> vector<8x256xf32>
    %1457 = arith.mulf %1456, %31 : vector<8x256xf32>
    %c222 = arith.constant 222 : index
    %1458 = memref.load %arg6[%c222] : memref<436xf32, #tpu.memory_space<smem>>
    %1459 = vector.broadcast %1458 : f32 to vector<8x256xf32>
    %1460 = arith.mulf %1459, %1457 : vector<8x256xf32>
    %1461 = arith.addf %1451, %1460 : vector<8x256xf32>
    %c276 = arith.constant 276 : index
    %1462 = memref.load %arg6[%c276] : memref<436xf32, #tpu.memory_space<smem>>
    %1463 = vector.broadcast %1462 : f32 to vector<8x256xf32>
    %1464 = arith.mulf %1463, %1457 : vector<8x256xf32>
    %1465 = arith.addf %1455, %1464 : vector<8x256xf32>
    %c241_i32_210 = arith.constant 241 : i32
    %1466 = tpu.dynamic_rotate %1248 by %c241_i32_210 dim 1 : vector<8x256xf32>, i32 -> vector<8x256xf32>
    %1467 = arith.mulf %1466, %31 : vector<8x256xf32>
    %c231 = arith.constant 231 : index
    %1468 = memref.load %arg6[%c231] : memref<436xf32, #tpu.memory_space<smem>>
    %1469 = vector.broadcast %1468 : f32 to vector<8x256xf32>
    %1470 = arith.mulf %1469, %1467 : vector<8x256xf32>
    %1471 = arith.addf %1461, %1470 : vector<8x256xf32>
    %c285 = arith.constant 285 : index
    %1472 = memref.load %arg6[%c285] : memref<436xf32, #tpu.memory_space<smem>>
    %1473 = vector.broadcast %1472 : f32 to vector<8x256xf32>
    %1474 = arith.mulf %1473, %1467 : vector<8x256xf32>
    %1475 = arith.addf %1465, %1474 : vector<8x256xf32>
    %c241_i32_211 = arith.constant 241 : i32
    %1476 = tpu.dynamic_rotate %1281 by %c241_i32_211 dim 1 : vector<8x256xf32>, i32 -> vector<8x256xf32>
    %1477 = arith.mulf %1476, %31 : vector<8x256xf32>
    %c240 = arith.constant 240 : index
    %1478 = memref.load %arg6[%c240] : memref<436xf32, #tpu.memory_space<smem>>
    %1479 = vector.broadcast %1478 : f32 to vector<8x256xf32>
    %1480 = arith.mulf %1479, %1477 : vector<8x256xf32>
    %1481 = arith.addf %1471, %1480 : vector<8x256xf32>
    %c294 = arith.constant 294 : index
    %1482 = memref.load %arg6[%c294] : memref<436xf32, #tpu.memory_space<smem>>
    %1483 = vector.broadcast %1482 : f32 to vector<8x256xf32>
    %1484 = arith.mulf %1483, %1477 : vector<8x256xf32>
    %1485 = arith.addf %1475, %1484 : vector<8x256xf32>
    %c240_i32_212 = arith.constant 240 : i32
    %1486 = tpu.dynamic_rotate %1279 by %c240_i32_212 dim 1 : vector<8x256xf32>, i32 -> vector<8x256xf32>
    %1487 = arith.mulf %1486, %35 : vector<8x256xf32>
    %c223 = arith.constant 223 : index
    %1488 = memref.load %arg6[%c223] : memref<436xf32, #tpu.memory_space<smem>>
    %1489 = vector.broadcast %1488 : f32 to vector<8x256xf32>
    %1490 = arith.mulf %1489, %1487 : vector<8x256xf32>
    %1491 = arith.addf %1481, %1490 : vector<8x256xf32>
    %c277 = arith.constant 277 : index
    %1492 = memref.load %arg6[%c277] : memref<436xf32, #tpu.memory_space<smem>>
    %1493 = vector.broadcast %1492 : f32 to vector<8x256xf32>
    %1494 = arith.mulf %1493, %1487 : vector<8x256xf32>
    %1495 = arith.addf %1485, %1494 : vector<8x256xf32>
    %c240_i32_213 = arith.constant 240 : i32
    %1496 = tpu.dynamic_rotate %1248 by %c240_i32_213 dim 1 : vector<8x256xf32>, i32 -> vector<8x256xf32>
    %1497 = arith.mulf %1496, %35 : vector<8x256xf32>
    %c232 = arith.constant 232 : index
    %1498 = memref.load %arg6[%c232] : memref<436xf32, #tpu.memory_space<smem>>
    %1499 = vector.broadcast %1498 : f32 to vector<8x256xf32>
    %1500 = arith.mulf %1499, %1497 : vector<8x256xf32>
    %1501 = arith.addf %1491, %1500 : vector<8x256xf32>
    %c286 = arith.constant 286 : index
    %1502 = memref.load %arg6[%c286] : memref<436xf32, #tpu.memory_space<smem>>
    %1503 = vector.broadcast %1502 : f32 to vector<8x256xf32>
    %1504 = arith.mulf %1503, %1497 : vector<8x256xf32>
    %1505 = arith.addf %1495, %1504 : vector<8x256xf32>
    %c240_i32_214 = arith.constant 240 : i32
    %1506 = tpu.dynamic_rotate %1281 by %c240_i32_214 dim 1 : vector<8x256xf32>, i32 -> vector<8x256xf32>
    %1507 = arith.mulf %1506, %35 : vector<8x256xf32>
    %c241 = arith.constant 241 : index
    %1508 = memref.load %arg6[%c241] : memref<436xf32, #tpu.memory_space<smem>>
    %1509 = vector.broadcast %1508 : f32 to vector<8x256xf32>
    %1510 = arith.mulf %1509, %1507 : vector<8x256xf32>
    %1511 = arith.addf %1501, %1510 : vector<8x256xf32>
    %c295 = arith.constant 295 : index
    %1512 = memref.load %arg6[%c295] : memref<436xf32, #tpu.memory_space<smem>>
    %1513 = vector.broadcast %1512 : f32 to vector<8x256xf32>
    %1514 = arith.mulf %1513, %1507 : vector<8x256xf32>
    %1515 = arith.addf %1505, %1514 : vector<8x256xf32>
    %c239_i32_215 = arith.constant 239 : i32
    %1516 = tpu.dynamic_rotate %1279 by %c239_i32_215 dim 1 : vector<8x256xf32>, i32 -> vector<8x256xf32>
    %1517 = arith.mulf %1516, %39 : vector<8x256xf32>
    %c224 = arith.constant 224 : index
    %1518 = memref.load %arg6[%c224] : memref<436xf32, #tpu.memory_space<smem>>
    %1519 = vector.broadcast %1518 : f32 to vector<8x256xf32>
    %1520 = arith.mulf %1519, %1517 : vector<8x256xf32>
    %1521 = arith.addf %1511, %1520 : vector<8x256xf32>
    %c278 = arith.constant 278 : index
    %1522 = memref.load %arg6[%c278] : memref<436xf32, #tpu.memory_space<smem>>
    %1523 = vector.broadcast %1522 : f32 to vector<8x256xf32>
    %1524 = arith.mulf %1523, %1517 : vector<8x256xf32>
    %1525 = arith.addf %1515, %1524 : vector<8x256xf32>
    %c239_i32_216 = arith.constant 239 : i32
    %1526 = tpu.dynamic_rotate %1248 by %c239_i32_216 dim 1 : vector<8x256xf32>, i32 -> vector<8x256xf32>
    %1527 = arith.mulf %1526, %39 : vector<8x256xf32>
    %c233 = arith.constant 233 : index
    %1528 = memref.load %arg6[%c233] : memref<436xf32, #tpu.memory_space<smem>>
    %1529 = vector.broadcast %1528 : f32 to vector<8x256xf32>
    %1530 = arith.mulf %1529, %1527 : vector<8x256xf32>
    %1531 = arith.addf %1521, %1530 : vector<8x256xf32>
    %c287 = arith.constant 287 : index
    %1532 = memref.load %arg6[%c287] : memref<436xf32, #tpu.memory_space<smem>>
    %1533 = vector.broadcast %1532 : f32 to vector<8x256xf32>
    %1534 = arith.mulf %1533, %1527 : vector<8x256xf32>
    %1535 = arith.addf %1525, %1534 : vector<8x256xf32>
    %c239_i32_217 = arith.constant 239 : i32
    %1536 = tpu.dynamic_rotate %1281 by %c239_i32_217 dim 1 : vector<8x256xf32>, i32 -> vector<8x256xf32>
    %1537 = arith.mulf %1536, %39 : vector<8x256xf32>
    %c242 = arith.constant 242 : index
    %1538 = memref.load %arg6[%c242] : memref<436xf32, #tpu.memory_space<smem>>
    %1539 = vector.broadcast %1538 : f32 to vector<8x256xf32>
    %1540 = arith.mulf %1539, %1537 : vector<8x256xf32>
    %1541 = arith.addf %1531, %1540 : vector<8x256xf32>
    %c296 = arith.constant 296 : index
    %1542 = memref.load %arg6[%c296] : memref<436xf32, #tpu.memory_space<smem>>
    %1543 = vector.broadcast %1542 : f32 to vector<8x256xf32>
    %1544 = arith.mulf %1543, %1537 : vector<8x256xf32>
    %1545 = arith.addf %1535, %1544 : vector<8x256xf32>
    %c1_i32_218 = arith.constant 1 : i32
    %1546 = tpu.dynamic_rotate %1273 by %c1_i32_218 dim 0 : vector<8x256xf32>, i32 -> vector<8x256xf32>
    %1547 = arith.mulf %1546, %3 : vector<8x256xf32>
    %c7_i32_219 = arith.constant 7 : i32
    %1548 = tpu.dynamic_rotate %1273 by %c7_i32_219 dim 0 : vector<8x256xf32>, i32 -> vector<8x256xf32>
    %1549 = arith.mulf %1548, %7 : vector<8x256xf32>
    %c17_i32_220 = arith.constant 17 : i32
    %1550 = tpu.dynamic_rotate %1547 by %c17_i32_220 dim 1 : vector<8x256xf32>, i32 -> vector<8x256xf32>
    %1551 = arith.mulf %1550, %11 : vector<8x256xf32>
    %c243 = arith.constant 243 : index
    %1552 = memref.load %arg6[%c243] : memref<436xf32, #tpu.memory_space<smem>>
    %1553 = vector.broadcast %1552 : f32 to vector<8x256xf32>
    %1554 = arith.mulf %1553, %1551 : vector<8x256xf32>
    %1555 = arith.addf %1541, %1554 : vector<8x256xf32>
    %c297 = arith.constant 297 : index
    %1556 = memref.load %arg6[%c297] : memref<436xf32, #tpu.memory_space<smem>>
    %1557 = vector.broadcast %1556 : f32 to vector<8x256xf32>
    %1558 = arith.mulf %1557, %1551 : vector<8x256xf32>
    %1559 = arith.addf %1545, %1558 : vector<8x256xf32>
    %c17_i32_221 = arith.constant 17 : i32
    %1560 = tpu.dynamic_rotate %1273 by %c17_i32_221 dim 1 : vector<8x256xf32>, i32 -> vector<8x256xf32>
    %1561 = arith.mulf %1560, %11 : vector<8x256xf32>
    %c252 = arith.constant 252 : index
    %1562 = memref.load %arg6[%c252] : memref<436xf32, #tpu.memory_space<smem>>
    %1563 = vector.broadcast %1562 : f32 to vector<8x256xf32>
    %1564 = arith.mulf %1563, %1561 : vector<8x256xf32>
    %1565 = arith.addf %1555, %1564 : vector<8x256xf32>
    %c306 = arith.constant 306 : index
    %1566 = memref.load %arg6[%c306] : memref<436xf32, #tpu.memory_space<smem>>
    %1567 = vector.broadcast %1566 : f32 to vector<8x256xf32>
    %1568 = arith.mulf %1567, %1561 : vector<8x256xf32>
    %1569 = arith.addf %1559, %1568 : vector<8x256xf32>
    %c17_i32_222 = arith.constant 17 : i32
    %1570 = tpu.dynamic_rotate %1549 by %c17_i32_222 dim 1 : vector<8x256xf32>, i32 -> vector<8x256xf32>
    %1571 = arith.mulf %1570, %11 : vector<8x256xf32>
    %c261 = arith.constant 261 : index
    %1572 = memref.load %arg6[%c261] : memref<436xf32, #tpu.memory_space<smem>>
    %1573 = vector.broadcast %1572 : f32 to vector<8x256xf32>
    %1574 = arith.mulf %1573, %1571 : vector<8x256xf32>
    %1575 = arith.addf %1565, %1574 : vector<8x256xf32>
    %c315 = arith.constant 315 : index
    %1576 = memref.load %arg6[%c315] : memref<436xf32, #tpu.memory_space<smem>>
    %1577 = vector.broadcast %1576 : f32 to vector<8x256xf32>
    %1578 = arith.mulf %1577, %1571 : vector<8x256xf32>
    %1579 = arith.addf %1569, %1578 : vector<8x256xf32>
    %c16_i32_223 = arith.constant 16 : i32
    %1580 = tpu.dynamic_rotate %1547 by %c16_i32_223 dim 1 : vector<8x256xf32>, i32 -> vector<8x256xf32>
    %1581 = arith.mulf %1580, %15 : vector<8x256xf32>
    %c244 = arith.constant 244 : index
    %1582 = memref.load %arg6[%c244] : memref<436xf32, #tpu.memory_space<smem>>
    %1583 = vector.broadcast %1582 : f32 to vector<8x256xf32>
    %1584 = arith.mulf %1583, %1581 : vector<8x256xf32>
    %1585 = arith.addf %1575, %1584 : vector<8x256xf32>
    %c298 = arith.constant 298 : index
    %1586 = memref.load %arg6[%c298] : memref<436xf32, #tpu.memory_space<smem>>
    %1587 = vector.broadcast %1586 : f32 to vector<8x256xf32>
    %1588 = arith.mulf %1587, %1581 : vector<8x256xf32>
    %1589 = arith.addf %1579, %1588 : vector<8x256xf32>
    %c16_i32_224 = arith.constant 16 : i32
    %1590 = tpu.dynamic_rotate %1273 by %c16_i32_224 dim 1 : vector<8x256xf32>, i32 -> vector<8x256xf32>
    %1591 = arith.mulf %1590, %15 : vector<8x256xf32>
    %c253 = arith.constant 253 : index
    %1592 = memref.load %arg6[%c253] : memref<436xf32, #tpu.memory_space<smem>>
    %1593 = vector.broadcast %1592 : f32 to vector<8x256xf32>
    %1594 = arith.mulf %1593, %1591 : vector<8x256xf32>
    %1595 = arith.addf %1585, %1594 : vector<8x256xf32>
    %c307 = arith.constant 307 : index
    %1596 = memref.load %arg6[%c307] : memref<436xf32, #tpu.memory_space<smem>>
    %1597 = vector.broadcast %1596 : f32 to vector<8x256xf32>
    %1598 = arith.mulf %1597, %1591 : vector<8x256xf32>
    %1599 = arith.addf %1589, %1598 : vector<8x256xf32>
    %c16_i32_225 = arith.constant 16 : i32
    %1600 = tpu.dynamic_rotate %1549 by %c16_i32_225 dim 1 : vector<8x256xf32>, i32 -> vector<8x256xf32>
    %1601 = arith.mulf %1600, %15 : vector<8x256xf32>
    %c262 = arith.constant 262 : index
    %1602 = memref.load %arg6[%c262] : memref<436xf32, #tpu.memory_space<smem>>
    %1603 = vector.broadcast %1602 : f32 to vector<8x256xf32>
    %1604 = arith.mulf %1603, %1601 : vector<8x256xf32>
    %1605 = arith.addf %1595, %1604 : vector<8x256xf32>
    %c316 = arith.constant 316 : index
    %1606 = memref.load %arg6[%c316] : memref<436xf32, #tpu.memory_space<smem>>
    %1607 = vector.broadcast %1606 : f32 to vector<8x256xf32>
    %1608 = arith.mulf %1607, %1601 : vector<8x256xf32>
    %1609 = arith.addf %1599, %1608 : vector<8x256xf32>
    %c15_i32_226 = arith.constant 15 : i32
    %1610 = tpu.dynamic_rotate %1547 by %c15_i32_226 dim 1 : vector<8x256xf32>, i32 -> vector<8x256xf32>
    %1611 = arith.mulf %1610, %19 : vector<8x256xf32>
    %c245 = arith.constant 245 : index
    %1612 = memref.load %arg6[%c245] : memref<436xf32, #tpu.memory_space<smem>>
    %1613 = vector.broadcast %1612 : f32 to vector<8x256xf32>
    %1614 = arith.mulf %1613, %1611 : vector<8x256xf32>
    %1615 = arith.addf %1605, %1614 : vector<8x256xf32>
    %c299 = arith.constant 299 : index
    %1616 = memref.load %arg6[%c299] : memref<436xf32, #tpu.memory_space<smem>>
    %1617 = vector.broadcast %1616 : f32 to vector<8x256xf32>
    %1618 = arith.mulf %1617, %1611 : vector<8x256xf32>
    %1619 = arith.addf %1609, %1618 : vector<8x256xf32>
    %c15_i32_227 = arith.constant 15 : i32
    %1620 = tpu.dynamic_rotate %1273 by %c15_i32_227 dim 1 : vector<8x256xf32>, i32 -> vector<8x256xf32>
    %1621 = arith.mulf %1620, %19 : vector<8x256xf32>
    %c254 = arith.constant 254 : index
    %1622 = memref.load %arg6[%c254] : memref<436xf32, #tpu.memory_space<smem>>
    %1623 = vector.broadcast %1622 : f32 to vector<8x256xf32>
    %1624 = arith.mulf %1623, %1621 : vector<8x256xf32>
    %1625 = arith.addf %1615, %1624 : vector<8x256xf32>
    %c308 = arith.constant 308 : index
    %1626 = memref.load %arg6[%c308] : memref<436xf32, #tpu.memory_space<smem>>
    %1627 = vector.broadcast %1626 : f32 to vector<8x256xf32>
    %1628 = arith.mulf %1627, %1621 : vector<8x256xf32>
    %1629 = arith.addf %1619, %1628 : vector<8x256xf32>
    %c15_i32_228 = arith.constant 15 : i32
    %1630 = tpu.dynamic_rotate %1549 by %c15_i32_228 dim 1 : vector<8x256xf32>, i32 -> vector<8x256xf32>
    %1631 = arith.mulf %1630, %19 : vector<8x256xf32>
    %c263 = arith.constant 263 : index
    %1632 = memref.load %arg6[%c263] : memref<436xf32, #tpu.memory_space<smem>>
    %1633 = vector.broadcast %1632 : f32 to vector<8x256xf32>
    %1634 = arith.mulf %1633, %1631 : vector<8x256xf32>
    %1635 = arith.addf %1625, %1634 : vector<8x256xf32>
    %c317 = arith.constant 317 : index
    %1636 = memref.load %arg6[%c317] : memref<436xf32, #tpu.memory_space<smem>>
    %1637 = vector.broadcast %1636 : f32 to vector<8x256xf32>
    %1638 = arith.mulf %1637, %1631 : vector<8x256xf32>
    %1639 = arith.addf %1629, %1638 : vector<8x256xf32>
    %c1_i32_229 = arith.constant 1 : i32
    %1640 = tpu.dynamic_rotate %1547 by %c1_i32_229 dim 1 : vector<8x256xf32>, i32 -> vector<8x256xf32>
    %1641 = arith.mulf %1640, %23 : vector<8x256xf32>
    %c246 = arith.constant 246 : index
    %1642 = memref.load %arg6[%c246] : memref<436xf32, #tpu.memory_space<smem>>
    %1643 = vector.broadcast %1642 : f32 to vector<8x256xf32>
    %1644 = arith.mulf %1643, %1641 : vector<8x256xf32>
    %1645 = arith.addf %1635, %1644 : vector<8x256xf32>
    %c300 = arith.constant 300 : index
    %1646 = memref.load %arg6[%c300] : memref<436xf32, #tpu.memory_space<smem>>
    %1647 = vector.broadcast %1646 : f32 to vector<8x256xf32>
    %1648 = arith.mulf %1647, %1641 : vector<8x256xf32>
    %1649 = arith.addf %1639, %1648 : vector<8x256xf32>
    %c1_i32_230 = arith.constant 1 : i32
    %1650 = tpu.dynamic_rotate %1273 by %c1_i32_230 dim 1 : vector<8x256xf32>, i32 -> vector<8x256xf32>
    %1651 = arith.mulf %1650, %23 : vector<8x256xf32>
    %c255 = arith.constant 255 : index
    %1652 = memref.load %arg6[%c255] : memref<436xf32, #tpu.memory_space<smem>>
    %1653 = vector.broadcast %1652 : f32 to vector<8x256xf32>
    %1654 = arith.mulf %1653, %1651 : vector<8x256xf32>
    %1655 = arith.addf %1645, %1654 : vector<8x256xf32>
    %c309 = arith.constant 309 : index
    %1656 = memref.load %arg6[%c309] : memref<436xf32, #tpu.memory_space<smem>>
    %1657 = vector.broadcast %1656 : f32 to vector<8x256xf32>
    %1658 = arith.mulf %1657, %1651 : vector<8x256xf32>
    %1659 = arith.addf %1649, %1658 : vector<8x256xf32>
    %c1_i32_231 = arith.constant 1 : i32
    %1660 = tpu.dynamic_rotate %1549 by %c1_i32_231 dim 1 : vector<8x256xf32>, i32 -> vector<8x256xf32>
    %1661 = arith.mulf %1660, %23 : vector<8x256xf32>
    %c264 = arith.constant 264 : index
    %1662 = memref.load %arg6[%c264] : memref<436xf32, #tpu.memory_space<smem>>
    %1663 = vector.broadcast %1662 : f32 to vector<8x256xf32>
    %1664 = arith.mulf %1663, %1661 : vector<8x256xf32>
    %1665 = arith.addf %1655, %1664 : vector<8x256xf32>
    %c318 = arith.constant 318 : index
    %1666 = memref.load %arg6[%c318] : memref<436xf32, #tpu.memory_space<smem>>
    %1667 = vector.broadcast %1666 : f32 to vector<8x256xf32>
    %1668 = arith.mulf %1667, %1661 : vector<8x256xf32>
    %1669 = arith.addf %1659, %1668 : vector<8x256xf32>
    %c247 = arith.constant 247 : index
    %1670 = memref.load %arg6[%c247] : memref<436xf32, #tpu.memory_space<smem>>
    %1671 = vector.broadcast %1670 : f32 to vector<8x256xf32>
    %1672 = arith.mulf %1671, %1547 : vector<8x256xf32>
    %1673 = arith.addf %1665, %1672 : vector<8x256xf32>
    %c301 = arith.constant 301 : index
    %1674 = memref.load %arg6[%c301] : memref<436xf32, #tpu.memory_space<smem>>
    %1675 = vector.broadcast %1674 : f32 to vector<8x256xf32>
    %1676 = arith.mulf %1675, %1547 : vector<8x256xf32>
    %1677 = arith.addf %1669, %1676 : vector<8x256xf32>
    %c256 = arith.constant 256 : index
    %1678 = memref.load %arg6[%c256] : memref<436xf32, #tpu.memory_space<smem>>
    %1679 = vector.broadcast %1678 : f32 to vector<8x256xf32>
    %1680 = arith.mulf %1679, %1273 : vector<8x256xf32>
    %1681 = arith.addf %1673, %1680 : vector<8x256xf32>
    %c310 = arith.constant 310 : index
    %1682 = memref.load %arg6[%c310] : memref<436xf32, #tpu.memory_space<smem>>
    %1683 = vector.broadcast %1682 : f32 to vector<8x256xf32>
    %1684 = arith.mulf %1683, %1273 : vector<8x256xf32>
    %1685 = arith.addf %1677, %1684 : vector<8x256xf32>
    %c265 = arith.constant 265 : index
    %1686 = memref.load %arg6[%c265] : memref<436xf32, #tpu.memory_space<smem>>
    %1687 = vector.broadcast %1686 : f32 to vector<8x256xf32>
    %1688 = arith.mulf %1687, %1549 : vector<8x256xf32>
    %1689 = arith.addf %1681, %1688 : vector<8x256xf32>
    %c319 = arith.constant 319 : index
    %1690 = memref.load %arg6[%c319] : memref<436xf32, #tpu.memory_space<smem>>
    %1691 = vector.broadcast %1690 : f32 to vector<8x256xf32>
    %1692 = arith.mulf %1691, %1549 : vector<8x256xf32>
    %1693 = arith.addf %1685, %1692 : vector<8x256xf32>
    %c255_i32_232 = arith.constant 255 : i32
    %1694 = tpu.dynamic_rotate %1547 by %c255_i32_232 dim 1 : vector<8x256xf32>, i32 -> vector<8x256xf32>
    %1695 = arith.mulf %1694, %27 : vector<8x256xf32>
    %c248 = arith.constant 248 : index
    %1696 = memref.load %arg6[%c248] : memref<436xf32, #tpu.memory_space<smem>>
    %1697 = vector.broadcast %1696 : f32 to vector<8x256xf32>
    %1698 = arith.mulf %1697, %1695 : vector<8x256xf32>
    %1699 = arith.addf %1689, %1698 : vector<8x256xf32>
    %c302 = arith.constant 302 : index
    %1700 = memref.load %arg6[%c302] : memref<436xf32, #tpu.memory_space<smem>>
    %1701 = vector.broadcast %1700 : f32 to vector<8x256xf32>
    %1702 = arith.mulf %1701, %1695 : vector<8x256xf32>
    %1703 = arith.addf %1693, %1702 : vector<8x256xf32>
    %c255_i32_233 = arith.constant 255 : i32
    %1704 = tpu.dynamic_rotate %1273 by %c255_i32_233 dim 1 : vector<8x256xf32>, i32 -> vector<8x256xf32>
    %1705 = arith.mulf %1704, %27 : vector<8x256xf32>
    %c257 = arith.constant 257 : index
    %1706 = memref.load %arg6[%c257] : memref<436xf32, #tpu.memory_space<smem>>
    %1707 = vector.broadcast %1706 : f32 to vector<8x256xf32>
    %1708 = arith.mulf %1707, %1705 : vector<8x256xf32>
    %1709 = arith.addf %1699, %1708 : vector<8x256xf32>
    %c311 = arith.constant 311 : index
    %1710 = memref.load %arg6[%c311] : memref<436xf32, #tpu.memory_space<smem>>
    %1711 = vector.broadcast %1710 : f32 to vector<8x256xf32>
    %1712 = arith.mulf %1711, %1705 : vector<8x256xf32>
    %1713 = arith.addf %1703, %1712 : vector<8x256xf32>
    %c255_i32_234 = arith.constant 255 : i32
    %1714 = tpu.dynamic_rotate %1549 by %c255_i32_234 dim 1 : vector<8x256xf32>, i32 -> vector<8x256xf32>
    %1715 = arith.mulf %1714, %27 : vector<8x256xf32>
    %c266 = arith.constant 266 : index
    %1716 = memref.load %arg6[%c266] : memref<436xf32, #tpu.memory_space<smem>>
    %1717 = vector.broadcast %1716 : f32 to vector<8x256xf32>
    %1718 = arith.mulf %1717, %1715 : vector<8x256xf32>
    %1719 = arith.addf %1709, %1718 : vector<8x256xf32>
    %c320 = arith.constant 320 : index
    %1720 = memref.load %arg6[%c320] : memref<436xf32, #tpu.memory_space<smem>>
    %1721 = vector.broadcast %1720 : f32 to vector<8x256xf32>
    %1722 = arith.mulf %1721, %1715 : vector<8x256xf32>
    %1723 = arith.addf %1713, %1722 : vector<8x256xf32>
    %c241_i32_235 = arith.constant 241 : i32
    %1724 = tpu.dynamic_rotate %1547 by %c241_i32_235 dim 1 : vector<8x256xf32>, i32 -> vector<8x256xf32>
    %1725 = arith.mulf %1724, %31 : vector<8x256xf32>
    %c249 = arith.constant 249 : index
    %1726 = memref.load %arg6[%c249] : memref<436xf32, #tpu.memory_space<smem>>
    %1727 = vector.broadcast %1726 : f32 to vector<8x256xf32>
    %1728 = arith.mulf %1727, %1725 : vector<8x256xf32>
    %1729 = arith.addf %1719, %1728 : vector<8x256xf32>
    %c303 = arith.constant 303 : index
    %1730 = memref.load %arg6[%c303] : memref<436xf32, #tpu.memory_space<smem>>
    %1731 = vector.broadcast %1730 : f32 to vector<8x256xf32>
    %1732 = arith.mulf %1731, %1725 : vector<8x256xf32>
    %1733 = arith.addf %1723, %1732 : vector<8x256xf32>
    %c241_i32_236 = arith.constant 241 : i32
    %1734 = tpu.dynamic_rotate %1273 by %c241_i32_236 dim 1 : vector<8x256xf32>, i32 -> vector<8x256xf32>
    %1735 = arith.mulf %1734, %31 : vector<8x256xf32>
    %c258 = arith.constant 258 : index
    %1736 = memref.load %arg6[%c258] : memref<436xf32, #tpu.memory_space<smem>>
    %1737 = vector.broadcast %1736 : f32 to vector<8x256xf32>
    %1738 = arith.mulf %1737, %1735 : vector<8x256xf32>
    %1739 = arith.addf %1729, %1738 : vector<8x256xf32>
    %c312 = arith.constant 312 : index
    %1740 = memref.load %arg6[%c312] : memref<436xf32, #tpu.memory_space<smem>>
    %1741 = vector.broadcast %1740 : f32 to vector<8x256xf32>
    %1742 = arith.mulf %1741, %1735 : vector<8x256xf32>
    %1743 = arith.addf %1733, %1742 : vector<8x256xf32>
    %c241_i32_237 = arith.constant 241 : i32
    %1744 = tpu.dynamic_rotate %1549 by %c241_i32_237 dim 1 : vector<8x256xf32>, i32 -> vector<8x256xf32>
    %1745 = arith.mulf %1744, %31 : vector<8x256xf32>
    %c267 = arith.constant 267 : index
    %1746 = memref.load %arg6[%c267] : memref<436xf32, #tpu.memory_space<smem>>
    %1747 = vector.broadcast %1746 : f32 to vector<8x256xf32>
    %1748 = arith.mulf %1747, %1745 : vector<8x256xf32>
    %1749 = arith.addf %1739, %1748 : vector<8x256xf32>
    %c321 = arith.constant 321 : index
    %1750 = memref.load %arg6[%c321] : memref<436xf32, #tpu.memory_space<smem>>
    %1751 = vector.broadcast %1750 : f32 to vector<8x256xf32>
    %1752 = arith.mulf %1751, %1745 : vector<8x256xf32>
    %1753 = arith.addf %1743, %1752 : vector<8x256xf32>
    %c240_i32_238 = arith.constant 240 : i32
    %1754 = tpu.dynamic_rotate %1547 by %c240_i32_238 dim 1 : vector<8x256xf32>, i32 -> vector<8x256xf32>
    %1755 = arith.mulf %1754, %35 : vector<8x256xf32>
    %c250 = arith.constant 250 : index
    %1756 = memref.load %arg6[%c250] : memref<436xf32, #tpu.memory_space<smem>>
    %1757 = vector.broadcast %1756 : f32 to vector<8x256xf32>
    %1758 = arith.mulf %1757, %1755 : vector<8x256xf32>
    %1759 = arith.addf %1749, %1758 : vector<8x256xf32>
    %c304 = arith.constant 304 : index
    %1760 = memref.load %arg6[%c304] : memref<436xf32, #tpu.memory_space<smem>>
    %1761 = vector.broadcast %1760 : f32 to vector<8x256xf32>
    %1762 = arith.mulf %1761, %1755 : vector<8x256xf32>
    %1763 = arith.addf %1753, %1762 : vector<8x256xf32>
    %c240_i32_239 = arith.constant 240 : i32
    %1764 = tpu.dynamic_rotate %1273 by %c240_i32_239 dim 1 : vector<8x256xf32>, i32 -> vector<8x256xf32>
    %1765 = arith.mulf %1764, %35 : vector<8x256xf32>
    %c259 = arith.constant 259 : index
    %1766 = memref.load %arg6[%c259] : memref<436xf32, #tpu.memory_space<smem>>
    %1767 = vector.broadcast %1766 : f32 to vector<8x256xf32>
    %1768 = arith.mulf %1767, %1765 : vector<8x256xf32>
    %1769 = arith.addf %1759, %1768 : vector<8x256xf32>
    %c313 = arith.constant 313 : index
    %1770 = memref.load %arg6[%c313] : memref<436xf32, #tpu.memory_space<smem>>
    %1771 = vector.broadcast %1770 : f32 to vector<8x256xf32>
    %1772 = arith.mulf %1771, %1765 : vector<8x256xf32>
    %1773 = arith.addf %1763, %1772 : vector<8x256xf32>
    %c240_i32_240 = arith.constant 240 : i32
    %1774 = tpu.dynamic_rotate %1549 by %c240_i32_240 dim 1 : vector<8x256xf32>, i32 -> vector<8x256xf32>
    %1775 = arith.mulf %1774, %35 : vector<8x256xf32>
    %c268 = arith.constant 268 : index
    %1776 = memref.load %arg6[%c268] : memref<436xf32, #tpu.memory_space<smem>>
    %1777 = vector.broadcast %1776 : f32 to vector<8x256xf32>
    %1778 = arith.mulf %1777, %1775 : vector<8x256xf32>
    %1779 = arith.addf %1769, %1778 : vector<8x256xf32>
    %c322 = arith.constant 322 : index
    %1780 = memref.load %arg6[%c322] : memref<436xf32, #tpu.memory_space<smem>>
    %1781 = vector.broadcast %1780 : f32 to vector<8x256xf32>
    %1782 = arith.mulf %1781, %1775 : vector<8x256xf32>
    %1783 = arith.addf %1773, %1782 : vector<8x256xf32>
    %c239_i32_241 = arith.constant 239 : i32
    %1784 = tpu.dynamic_rotate %1547 by %c239_i32_241 dim 1 : vector<8x256xf32>, i32 -> vector<8x256xf32>
    %1785 = arith.mulf %1784, %39 : vector<8x256xf32>
    %c251 = arith.constant 251 : index
    %1786 = memref.load %arg6[%c251] : memref<436xf32, #tpu.memory_space<smem>>
    %1787 = vector.broadcast %1786 : f32 to vector<8x256xf32>
    %1788 = arith.mulf %1787, %1785 : vector<8x256xf32>
    %1789 = arith.addf %1779, %1788 : vector<8x256xf32>
    %c305 = arith.constant 305 : index
    %1790 = memref.load %arg6[%c305] : memref<436xf32, #tpu.memory_space<smem>>
    %1791 = vector.broadcast %1790 : f32 to vector<8x256xf32>
    %1792 = arith.mulf %1791, %1785 : vector<8x256xf32>
    %1793 = arith.addf %1783, %1792 : vector<8x256xf32>
    %c239_i32_242 = arith.constant 239 : i32
    %1794 = tpu.dynamic_rotate %1273 by %c239_i32_242 dim 1 : vector<8x256xf32>, i32 -> vector<8x256xf32>
    %1795 = arith.mulf %1794, %39 : vector<8x256xf32>
    %c260 = arith.constant 260 : index
    %1796 = memref.load %arg6[%c260] : memref<436xf32, #tpu.memory_space<smem>>
    %1797 = vector.broadcast %1796 : f32 to vector<8x256xf32>
    %1798 = arith.mulf %1797, %1795 : vector<8x256xf32>
    %1799 = arith.addf %1789, %1798 : vector<8x256xf32>
    %c314 = arith.constant 314 : index
    %1800 = memref.load %arg6[%c314] : memref<436xf32, #tpu.memory_space<smem>>
    %1801 = vector.broadcast %1800 : f32 to vector<8x256xf32>
    %1802 = arith.mulf %1801, %1795 : vector<8x256xf32>
    %1803 = arith.addf %1793, %1802 : vector<8x256xf32>
    %c239_i32_243 = arith.constant 239 : i32
    %1804 = tpu.dynamic_rotate %1549 by %c239_i32_243 dim 1 : vector<8x256xf32>, i32 -> vector<8x256xf32>
    %1805 = arith.mulf %1804, %39 : vector<8x256xf32>
    %c269 = arith.constant 269 : index
    %1806 = memref.load %arg6[%c269] : memref<436xf32, #tpu.memory_space<smem>>
    %1807 = vector.broadcast %1806 : f32 to vector<8x256xf32>
    %1808 = arith.mulf %1807, %1805 : vector<8x256xf32>
    %1809 = arith.addf %1799, %1808 : vector<8x256xf32>
    %c323 = arith.constant 323 : index
    %1810 = memref.load %arg6[%c323] : memref<436xf32, #tpu.memory_space<smem>>
    %1811 = vector.broadcast %1810 : f32 to vector<8x256xf32>
    %1812 = arith.mulf %1811, %1805 : vector<8x256xf32>
    %1813 = arith.addf %1803, %1812 : vector<8x256xf32>
    %1814 = vector.shape_cast %1809 : vector<8x256xf32> to vector<1x8x256xf32>
    %cst_244 = arith.constant dense<0.000000e+00> : vector<1xf32>
    %1815 = vector.multi_reduction <add>, %1814, %cst_244 [1, 2] : vector<1x8x256xf32> to vector<1xf32>
    %1816 = vector.shape_cast %1815 : vector<1xf32> to vector<1x1x1xf32>
    %1817 = vector.extract %1816[0, 0, 0] : f32 from vector<1x1x1xf32>
    %cst_245 = arith.constant 2.048000e+03 : f32
    %1818 = arith.divf %1817, %cst_245 : f32
    %1819 = vector.broadcast %1818 : f32 to vector<8x256xf32>
    %1820 = arith.subf %1809, %1819 : vector<8x256xf32>
    %1821 = arith.mulf %1820, %1820 : vector<8x256xf32>
    %1822 = vector.shape_cast %1821 : vector<8x256xf32> to vector<1x8x256xf32>
    %cst_246 = arith.constant dense<0.000000e+00> : vector<1xf32>
    %1823 = vector.multi_reduction <add>, %1822, %cst_246 [1, 2] : vector<1x8x256xf32> to vector<1xf32>
    %1824 = vector.shape_cast %1823 : vector<1xf32> to vector<1x1x1xf32>
    %1825 = vector.extract %1824[0, 0, 0] : f32 from vector<1x1x1xf32>
    %cst_247 = arith.constant 2.048000e+03 : f32
    %1826 = arith.divf %1825, %cst_247 : f32
    %cst_248 = arith.constant 9.99999974E-6 : f32
    %1827 = arith.addf %1826, %cst_248 : f32
    %1828 = math.rsqrt %1827 : f32
    %c12_249 = arith.constant 12 : index
    %1829 = memref.load %arg5[%c12_249] : memref<20xf32, #tpu.memory_space<smem>>
    %1830 = arith.mulf %1828, %1829 : f32
    %1831 = vector.broadcast %1830 : f32 to vector<8x256xf32>
    %1832 = arith.mulf %1820, %1831 : vector<8x256xf32>
    %c14_250 = arith.constant 14 : index
    %1833 = memref.load %arg5[%c14_250] : memref<20xf32, #tpu.memory_space<smem>>
    %1834 = vector.broadcast %1833 : f32 to vector<8x256xf32>
    %1835 = arith.addf %1832, %1834 : vector<8x256xf32>
    %cst_251 = arith.constant 0.00999999977 : f32
    %1836 = vector.broadcast %cst_251 : f32 to vector<8x256xf32>
    %1837 = arith.mulf %1836, %1835 : vector<8x256xf32>
    %1838 = arith.maximumf %1835, %1837 : vector<8x256xf32>
    %1839 = vector.shape_cast %1813 : vector<8x256xf32> to vector<1x8x256xf32>
    %cst_252 = arith.constant dense<0.000000e+00> : vector<1xf32>
    %1840 = vector.multi_reduction <add>, %1839, %cst_252 [1, 2] : vector<1x8x256xf32> to vector<1xf32>
    %1841 = vector.shape_cast %1840 : vector<1xf32> to vector<1x1x1xf32>
    %1842 = vector.extract %1841[0, 0, 0] : f32 from vector<1x1x1xf32>
    %cst_253 = arith.constant 2.048000e+03 : f32
    %1843 = arith.divf %1842, %cst_253 : f32
    %1844 = vector.broadcast %1843 : f32 to vector<8x256xf32>
    %1845 = arith.subf %1813, %1844 : vector<8x256xf32>
    %1846 = arith.mulf %1845, %1845 : vector<8x256xf32>
    %1847 = vector.shape_cast %1846 : vector<8x256xf32> to vector<1x8x256xf32>
    %cst_254 = arith.constant dense<0.000000e+00> : vector<1xf32>
    %1848 = vector.multi_reduction <add>, %1847, %cst_254 [1, 2] : vector<1x8x256xf32> to vector<1xf32>
    %1849 = vector.shape_cast %1848 : vector<1xf32> to vector<1x1x1xf32>
    %1850 = vector.extract %1849[0, 0, 0] : f32 from vector<1x1x1xf32>
    %cst_255 = arith.constant 2.048000e+03 : f32
    %1851 = arith.divf %1850, %cst_255 : f32
    %cst_256 = arith.constant 9.99999974E-6 : f32
    %1852 = arith.addf %1851, %cst_256 : f32
    %1853 = math.rsqrt %1852 : f32
    %c13_257 = arith.constant 13 : index
    %1854 = memref.load %arg5[%c13_257] : memref<20xf32, #tpu.memory_space<smem>>
    %1855 = arith.mulf %1853, %1854 : f32
    %1856 = vector.broadcast %1855 : f32 to vector<8x256xf32>
    %1857 = arith.mulf %1845, %1856 : vector<8x256xf32>
    %c15_258 = arith.constant 15 : index
    %1858 = memref.load %arg5[%c15_258] : memref<20xf32, #tpu.memory_space<smem>>
    %1859 = vector.broadcast %1858 : f32 to vector<8x256xf32>
    %1860 = arith.addf %1857, %1859 : vector<8x256xf32>
    %cst_259 = arith.constant 0.00999999977 : f32
    %1861 = vector.broadcast %cst_259 : f32 to vector<8x256xf32>
    %1862 = arith.mulf %1861, %1860 : vector<8x256xf32>
    %1863 = arith.maximumf %1860, %1862 : vector<8x256xf32>
    %c4_260 = arith.constant 4 : index
    %1864 = memref.load %arg7[%c4_260] : memref<8xf32, #tpu.memory_space<smem>>
    %1865 = vector.broadcast %1864 : f32 to vector<8x256xf32>
    %c5_261 = arith.constant 5 : index
    %1866 = memref.load %arg7[%c5_261] : memref<8xf32, #tpu.memory_space<smem>>
    %1867 = vector.broadcast %1866 : f32 to vector<8x256xf32>
    %c1_i32_262 = arith.constant 1 : i32
    %1868 = tpu.dynamic_rotate %1838 by %c1_i32_262 dim 0 : vector<8x256xf32>, i32 -> vector<8x256xf32>
    %1869 = arith.mulf %1868, %3 : vector<8x256xf32>
    %c7_i32_263 = arith.constant 7 : i32
    %1870 = tpu.dynamic_rotate %1838 by %c7_i32_263 dim 0 : vector<8x256xf32>, i32 -> vector<8x256xf32>
    %1871 = arith.mulf %1870, %7 : vector<8x256xf32>
    %c17_i32_264 = arith.constant 17 : i32
    %1872 = tpu.dynamic_rotate %1869 by %c17_i32_264 dim 1 : vector<8x256xf32>, i32 -> vector<8x256xf32>
    %1873 = arith.mulf %1872, %11 : vector<8x256xf32>
    %c324 = arith.constant 324 : index
    %1874 = memref.load %arg6[%c324] : memref<436xf32, #tpu.memory_space<smem>>
    %1875 = vector.broadcast %1874 : f32 to vector<8x256xf32>
    %1876 = arith.mulf %1875, %1873 : vector<8x256xf32>
    %1877 = arith.addf %1865, %1876 : vector<8x256xf32>
    %c378 = arith.constant 378 : index
    %1878 = memref.load %arg6[%c378] : memref<436xf32, #tpu.memory_space<smem>>
    %1879 = vector.broadcast %1878 : f32 to vector<8x256xf32>
    %1880 = arith.mulf %1879, %1873 : vector<8x256xf32>
    %1881 = arith.addf %1867, %1880 : vector<8x256xf32>
    %c17_i32_265 = arith.constant 17 : i32
    %1882 = tpu.dynamic_rotate %1838 by %c17_i32_265 dim 1 : vector<8x256xf32>, i32 -> vector<8x256xf32>
    %1883 = arith.mulf %1882, %11 : vector<8x256xf32>
    %c333 = arith.constant 333 : index
    %1884 = memref.load %arg6[%c333] : memref<436xf32, #tpu.memory_space<smem>>
    %1885 = vector.broadcast %1884 : f32 to vector<8x256xf32>
    %1886 = arith.mulf %1885, %1883 : vector<8x256xf32>
    %1887 = arith.addf %1877, %1886 : vector<8x256xf32>
    %c387 = arith.constant 387 : index
    %1888 = memref.load %arg6[%c387] : memref<436xf32, #tpu.memory_space<smem>>
    %1889 = vector.broadcast %1888 : f32 to vector<8x256xf32>
    %1890 = arith.mulf %1889, %1883 : vector<8x256xf32>
    %1891 = arith.addf %1881, %1890 : vector<8x256xf32>
    %c17_i32_266 = arith.constant 17 : i32
    %1892 = tpu.dynamic_rotate %1871 by %c17_i32_266 dim 1 : vector<8x256xf32>, i32 -> vector<8x256xf32>
    %1893 = arith.mulf %1892, %11 : vector<8x256xf32>
    %c342 = arith.constant 342 : index
    %1894 = memref.load %arg6[%c342] : memref<436xf32, #tpu.memory_space<smem>>
    %1895 = vector.broadcast %1894 : f32 to vector<8x256xf32>
    %1896 = arith.mulf %1895, %1893 : vector<8x256xf32>
    %1897 = arith.addf %1887, %1896 : vector<8x256xf32>
    %c396 = arith.constant 396 : index
    %1898 = memref.load %arg6[%c396] : memref<436xf32, #tpu.memory_space<smem>>
    %1899 = vector.broadcast %1898 : f32 to vector<8x256xf32>
    %1900 = arith.mulf %1899, %1893 : vector<8x256xf32>
    %1901 = arith.addf %1891, %1900 : vector<8x256xf32>
    %c16_i32_267 = arith.constant 16 : i32
    %1902 = tpu.dynamic_rotate %1869 by %c16_i32_267 dim 1 : vector<8x256xf32>, i32 -> vector<8x256xf32>
    %1903 = arith.mulf %1902, %15 : vector<8x256xf32>
    %c325 = arith.constant 325 : index
    %1904 = memref.load %arg6[%c325] : memref<436xf32, #tpu.memory_space<smem>>
    %1905 = vector.broadcast %1904 : f32 to vector<8x256xf32>
    %1906 = arith.mulf %1905, %1903 : vector<8x256xf32>
    %1907 = arith.addf %1897, %1906 : vector<8x256xf32>
    %c379 = arith.constant 379 : index
    %1908 = memref.load %arg6[%c379] : memref<436xf32, #tpu.memory_space<smem>>
    %1909 = vector.broadcast %1908 : f32 to vector<8x256xf32>
    %1910 = arith.mulf %1909, %1903 : vector<8x256xf32>
    %1911 = arith.addf %1901, %1910 : vector<8x256xf32>
    %c16_i32_268 = arith.constant 16 : i32
    %1912 = tpu.dynamic_rotate %1838 by %c16_i32_268 dim 1 : vector<8x256xf32>, i32 -> vector<8x256xf32>
    %1913 = arith.mulf %1912, %15 : vector<8x256xf32>
    %c334 = arith.constant 334 : index
    %1914 = memref.load %arg6[%c334] : memref<436xf32, #tpu.memory_space<smem>>
    %1915 = vector.broadcast %1914 : f32 to vector<8x256xf32>
    %1916 = arith.mulf %1915, %1913 : vector<8x256xf32>
    %1917 = arith.addf %1907, %1916 : vector<8x256xf32>
    %c388 = arith.constant 388 : index
    %1918 = memref.load %arg6[%c388] : memref<436xf32, #tpu.memory_space<smem>>
    %1919 = vector.broadcast %1918 : f32 to vector<8x256xf32>
    %1920 = arith.mulf %1919, %1913 : vector<8x256xf32>
    %1921 = arith.addf %1911, %1920 : vector<8x256xf32>
    %c16_i32_269 = arith.constant 16 : i32
    %1922 = tpu.dynamic_rotate %1871 by %c16_i32_269 dim 1 : vector<8x256xf32>, i32 -> vector<8x256xf32>
    %1923 = arith.mulf %1922, %15 : vector<8x256xf32>
    %c343 = arith.constant 343 : index
    %1924 = memref.load %arg6[%c343] : memref<436xf32, #tpu.memory_space<smem>>
    %1925 = vector.broadcast %1924 : f32 to vector<8x256xf32>
    %1926 = arith.mulf %1925, %1923 : vector<8x256xf32>
    %1927 = arith.addf %1917, %1926 : vector<8x256xf32>
    %c397 = arith.constant 397 : index
    %1928 = memref.load %arg6[%c397] : memref<436xf32, #tpu.memory_space<smem>>
    %1929 = vector.broadcast %1928 : f32 to vector<8x256xf32>
    %1930 = arith.mulf %1929, %1923 : vector<8x256xf32>
    %1931 = arith.addf %1921, %1930 : vector<8x256xf32>
    %c15_i32_270 = arith.constant 15 : i32
    %1932 = tpu.dynamic_rotate %1869 by %c15_i32_270 dim 1 : vector<8x256xf32>, i32 -> vector<8x256xf32>
    %1933 = arith.mulf %1932, %19 : vector<8x256xf32>
    %c326 = arith.constant 326 : index
    %1934 = memref.load %arg6[%c326] : memref<436xf32, #tpu.memory_space<smem>>
    %1935 = vector.broadcast %1934 : f32 to vector<8x256xf32>
    %1936 = arith.mulf %1935, %1933 : vector<8x256xf32>
    %1937 = arith.addf %1927, %1936 : vector<8x256xf32>
    %c380 = arith.constant 380 : index
    %1938 = memref.load %arg6[%c380] : memref<436xf32, #tpu.memory_space<smem>>
    %1939 = vector.broadcast %1938 : f32 to vector<8x256xf32>
    %1940 = arith.mulf %1939, %1933 : vector<8x256xf32>
    %1941 = arith.addf %1931, %1940 : vector<8x256xf32>
    %c15_i32_271 = arith.constant 15 : i32
    %1942 = tpu.dynamic_rotate %1838 by %c15_i32_271 dim 1 : vector<8x256xf32>, i32 -> vector<8x256xf32>
    %1943 = arith.mulf %1942, %19 : vector<8x256xf32>
    %c335 = arith.constant 335 : index
    %1944 = memref.load %arg6[%c335] : memref<436xf32, #tpu.memory_space<smem>>
    %1945 = vector.broadcast %1944 : f32 to vector<8x256xf32>
    %1946 = arith.mulf %1945, %1943 : vector<8x256xf32>
    %1947 = arith.addf %1937, %1946 : vector<8x256xf32>
    %c389 = arith.constant 389 : index
    %1948 = memref.load %arg6[%c389] : memref<436xf32, #tpu.memory_space<smem>>
    %1949 = vector.broadcast %1948 : f32 to vector<8x256xf32>
    %1950 = arith.mulf %1949, %1943 : vector<8x256xf32>
    %1951 = arith.addf %1941, %1950 : vector<8x256xf32>
    %c15_i32_272 = arith.constant 15 : i32
    %1952 = tpu.dynamic_rotate %1871 by %c15_i32_272 dim 1 : vector<8x256xf32>, i32 -> vector<8x256xf32>
    %1953 = arith.mulf %1952, %19 : vector<8x256xf32>
    %c344 = arith.constant 344 : index
    %1954 = memref.load %arg6[%c344] : memref<436xf32, #tpu.memory_space<smem>>
    %1955 = vector.broadcast %1954 : f32 to vector<8x256xf32>
    %1956 = arith.mulf %1955, %1953 : vector<8x256xf32>
    %1957 = arith.addf %1947, %1956 : vector<8x256xf32>
    %c398 = arith.constant 398 : index
    %1958 = memref.load %arg6[%c398] : memref<436xf32, #tpu.memory_space<smem>>
    %1959 = vector.broadcast %1958 : f32 to vector<8x256xf32>
    %1960 = arith.mulf %1959, %1953 : vector<8x256xf32>
    %1961 = arith.addf %1951, %1960 : vector<8x256xf32>
    %c1_i32_273 = arith.constant 1 : i32
    %1962 = tpu.dynamic_rotate %1869 by %c1_i32_273 dim 1 : vector<8x256xf32>, i32 -> vector<8x256xf32>
    %1963 = arith.mulf %1962, %23 : vector<8x256xf32>
    %c327 = arith.constant 327 : index
    %1964 = memref.load %arg6[%c327] : memref<436xf32, #tpu.memory_space<smem>>
    %1965 = vector.broadcast %1964 : f32 to vector<8x256xf32>
    %1966 = arith.mulf %1965, %1963 : vector<8x256xf32>
    %1967 = arith.addf %1957, %1966 : vector<8x256xf32>
    %c381 = arith.constant 381 : index
    %1968 = memref.load %arg6[%c381] : memref<436xf32, #tpu.memory_space<smem>>
    %1969 = vector.broadcast %1968 : f32 to vector<8x256xf32>
    %1970 = arith.mulf %1969, %1963 : vector<8x256xf32>
    %1971 = arith.addf %1961, %1970 : vector<8x256xf32>
    %c1_i32_274 = arith.constant 1 : i32
    %1972 = tpu.dynamic_rotate %1838 by %c1_i32_274 dim 1 : vector<8x256xf32>, i32 -> vector<8x256xf32>
    %1973 = arith.mulf %1972, %23 : vector<8x256xf32>
    %c336 = arith.constant 336 : index
    %1974 = memref.load %arg6[%c336] : memref<436xf32, #tpu.memory_space<smem>>
    %1975 = vector.broadcast %1974 : f32 to vector<8x256xf32>
    %1976 = arith.mulf %1975, %1973 : vector<8x256xf32>
    %1977 = arith.addf %1967, %1976 : vector<8x256xf32>
    %c390 = arith.constant 390 : index
    %1978 = memref.load %arg6[%c390] : memref<436xf32, #tpu.memory_space<smem>>
    %1979 = vector.broadcast %1978 : f32 to vector<8x256xf32>
    %1980 = arith.mulf %1979, %1973 : vector<8x256xf32>
    %1981 = arith.addf %1971, %1980 : vector<8x256xf32>
    %c1_i32_275 = arith.constant 1 : i32
    %1982 = tpu.dynamic_rotate %1871 by %c1_i32_275 dim 1 : vector<8x256xf32>, i32 -> vector<8x256xf32>
    %1983 = arith.mulf %1982, %23 : vector<8x256xf32>
    %c345 = arith.constant 345 : index
    %1984 = memref.load %arg6[%c345] : memref<436xf32, #tpu.memory_space<smem>>
    %1985 = vector.broadcast %1984 : f32 to vector<8x256xf32>
    %1986 = arith.mulf %1985, %1983 : vector<8x256xf32>
    %1987 = arith.addf %1977, %1986 : vector<8x256xf32>
    %c399 = arith.constant 399 : index
    %1988 = memref.load %arg6[%c399] : memref<436xf32, #tpu.memory_space<smem>>
    %1989 = vector.broadcast %1988 : f32 to vector<8x256xf32>
    %1990 = arith.mulf %1989, %1983 : vector<8x256xf32>
    %1991 = arith.addf %1981, %1990 : vector<8x256xf32>
    %c328 = arith.constant 328 : index
    %1992 = memref.load %arg6[%c328] : memref<436xf32, #tpu.memory_space<smem>>
    %1993 = vector.broadcast %1992 : f32 to vector<8x256xf32>
    %1994 = arith.mulf %1993, %1869 : vector<8x256xf32>
    %1995 = arith.addf %1987, %1994 : vector<8x256xf32>
    %c382 = arith.constant 382 : index
    %1996 = memref.load %arg6[%c382] : memref<436xf32, #tpu.memory_space<smem>>
    %1997 = vector.broadcast %1996 : f32 to vector<8x256xf32>
    %1998 = arith.mulf %1997, %1869 : vector<8x256xf32>
    %1999 = arith.addf %1991, %1998 : vector<8x256xf32>
    %c337 = arith.constant 337 : index
    %2000 = memref.load %arg6[%c337] : memref<436xf32, #tpu.memory_space<smem>>
    %2001 = vector.broadcast %2000 : f32 to vector<8x256xf32>
    %2002 = arith.mulf %2001, %1838 : vector<8x256xf32>
    %2003 = arith.addf %1995, %2002 : vector<8x256xf32>
    %c391 = arith.constant 391 : index
    %2004 = memref.load %arg6[%c391] : memref<436xf32, #tpu.memory_space<smem>>
    %2005 = vector.broadcast %2004 : f32 to vector<8x256xf32>
    %2006 = arith.mulf %2005, %1838 : vector<8x256xf32>
    %2007 = arith.addf %1999, %2006 : vector<8x256xf32>
    %c346 = arith.constant 346 : index
    %2008 = memref.load %arg6[%c346] : memref<436xf32, #tpu.memory_space<smem>>
    %2009 = vector.broadcast %2008 : f32 to vector<8x256xf32>
    %2010 = arith.mulf %2009, %1871 : vector<8x256xf32>
    %2011 = arith.addf %2003, %2010 : vector<8x256xf32>
    %c400 = arith.constant 400 : index
    %2012 = memref.load %arg6[%c400] : memref<436xf32, #tpu.memory_space<smem>>
    %2013 = vector.broadcast %2012 : f32 to vector<8x256xf32>
    %2014 = arith.mulf %2013, %1871 : vector<8x256xf32>
    %2015 = arith.addf %2007, %2014 : vector<8x256xf32>
    %c255_i32_276 = arith.constant 255 : i32
    %2016 = tpu.dynamic_rotate %1869 by %c255_i32_276 dim 1 : vector<8x256xf32>, i32 -> vector<8x256xf32>
    %2017 = arith.mulf %2016, %27 : vector<8x256xf32>
    %c329 = arith.constant 329 : index
    %2018 = memref.load %arg6[%c329] : memref<436xf32, #tpu.memory_space<smem>>
    %2019 = vector.broadcast %2018 : f32 to vector<8x256xf32>
    %2020 = arith.mulf %2019, %2017 : vector<8x256xf32>
    %2021 = arith.addf %2011, %2020 : vector<8x256xf32>
    %c383 = arith.constant 383 : index
    %2022 = memref.load %arg6[%c383] : memref<436xf32, #tpu.memory_space<smem>>
    %2023 = vector.broadcast %2022 : f32 to vector<8x256xf32>
    %2024 = arith.mulf %2023, %2017 : vector<8x256xf32>
    %2025 = arith.addf %2015, %2024 : vector<8x256xf32>
    %c255_i32_277 = arith.constant 255 : i32
    %2026 = tpu.dynamic_rotate %1838 by %c255_i32_277 dim 1 : vector<8x256xf32>, i32 -> vector<8x256xf32>
    %2027 = arith.mulf %2026, %27 : vector<8x256xf32>
    %c338 = arith.constant 338 : index
    %2028 = memref.load %arg6[%c338] : memref<436xf32, #tpu.memory_space<smem>>
    %2029 = vector.broadcast %2028 : f32 to vector<8x256xf32>
    %2030 = arith.mulf %2029, %2027 : vector<8x256xf32>
    %2031 = arith.addf %2021, %2030 : vector<8x256xf32>
    %c392 = arith.constant 392 : index
    %2032 = memref.load %arg6[%c392] : memref<436xf32, #tpu.memory_space<smem>>
    %2033 = vector.broadcast %2032 : f32 to vector<8x256xf32>
    %2034 = arith.mulf %2033, %2027 : vector<8x256xf32>
    %2035 = arith.addf %2025, %2034 : vector<8x256xf32>
    %c255_i32_278 = arith.constant 255 : i32
    %2036 = tpu.dynamic_rotate %1871 by %c255_i32_278 dim 1 : vector<8x256xf32>, i32 -> vector<8x256xf32>
    %2037 = arith.mulf %2036, %27 : vector<8x256xf32>
    %c347 = arith.constant 347 : index
    %2038 = memref.load %arg6[%c347] : memref<436xf32, #tpu.memory_space<smem>>
    %2039 = vector.broadcast %2038 : f32 to vector<8x256xf32>
    %2040 = arith.mulf %2039, %2037 : vector<8x256xf32>
    %2041 = arith.addf %2031, %2040 : vector<8x256xf32>
    %c401 = arith.constant 401 : index
    %2042 = memref.load %arg6[%c401] : memref<436xf32, #tpu.memory_space<smem>>
    %2043 = vector.broadcast %2042 : f32 to vector<8x256xf32>
    %2044 = arith.mulf %2043, %2037 : vector<8x256xf32>
    %2045 = arith.addf %2035, %2044 : vector<8x256xf32>
    %c241_i32_279 = arith.constant 241 : i32
    %2046 = tpu.dynamic_rotate %1869 by %c241_i32_279 dim 1 : vector<8x256xf32>, i32 -> vector<8x256xf32>
    %2047 = arith.mulf %2046, %31 : vector<8x256xf32>
    %c330 = arith.constant 330 : index
    %2048 = memref.load %arg6[%c330] : memref<436xf32, #tpu.memory_space<smem>>
    %2049 = vector.broadcast %2048 : f32 to vector<8x256xf32>
    %2050 = arith.mulf %2049, %2047 : vector<8x256xf32>
    %2051 = arith.addf %2041, %2050 : vector<8x256xf32>
    %c384 = arith.constant 384 : index
    %2052 = memref.load %arg6[%c384] : memref<436xf32, #tpu.memory_space<smem>>
    %2053 = vector.broadcast %2052 : f32 to vector<8x256xf32>
    %2054 = arith.mulf %2053, %2047 : vector<8x256xf32>
    %2055 = arith.addf %2045, %2054 : vector<8x256xf32>
    %c241_i32_280 = arith.constant 241 : i32
    %2056 = tpu.dynamic_rotate %1838 by %c241_i32_280 dim 1 : vector<8x256xf32>, i32 -> vector<8x256xf32>
    %2057 = arith.mulf %2056, %31 : vector<8x256xf32>
    %c339 = arith.constant 339 : index
    %2058 = memref.load %arg6[%c339] : memref<436xf32, #tpu.memory_space<smem>>
    %2059 = vector.broadcast %2058 : f32 to vector<8x256xf32>
    %2060 = arith.mulf %2059, %2057 : vector<8x256xf32>
    %2061 = arith.addf %2051, %2060 : vector<8x256xf32>
    %c393 = arith.constant 393 : index
    %2062 = memref.load %arg6[%c393] : memref<436xf32, #tpu.memory_space<smem>>
    %2063 = vector.broadcast %2062 : f32 to vector<8x256xf32>
    %2064 = arith.mulf %2063, %2057 : vector<8x256xf32>
    %2065 = arith.addf %2055, %2064 : vector<8x256xf32>
    %c241_i32_281 = arith.constant 241 : i32
    %2066 = tpu.dynamic_rotate %1871 by %c241_i32_281 dim 1 : vector<8x256xf32>, i32 -> vector<8x256xf32>
    %2067 = arith.mulf %2066, %31 : vector<8x256xf32>
    %c348 = arith.constant 348 : index
    %2068 = memref.load %arg6[%c348] : memref<436xf32, #tpu.memory_space<smem>>
    %2069 = vector.broadcast %2068 : f32 to vector<8x256xf32>
    %2070 = arith.mulf %2069, %2067 : vector<8x256xf32>
    %2071 = arith.addf %2061, %2070 : vector<8x256xf32>
    %c402 = arith.constant 402 : index
    %2072 = memref.load %arg6[%c402] : memref<436xf32, #tpu.memory_space<smem>>
    %2073 = vector.broadcast %2072 : f32 to vector<8x256xf32>
    %2074 = arith.mulf %2073, %2067 : vector<8x256xf32>
    %2075 = arith.addf %2065, %2074 : vector<8x256xf32>
    %c240_i32_282 = arith.constant 240 : i32
    %2076 = tpu.dynamic_rotate %1869 by %c240_i32_282 dim 1 : vector<8x256xf32>, i32 -> vector<8x256xf32>
    %2077 = arith.mulf %2076, %35 : vector<8x256xf32>
    %c331 = arith.constant 331 : index
    %2078 = memref.load %arg6[%c331] : memref<436xf32, #tpu.memory_space<smem>>
    %2079 = vector.broadcast %2078 : f32 to vector<8x256xf32>
    %2080 = arith.mulf %2079, %2077 : vector<8x256xf32>
    %2081 = arith.addf %2071, %2080 : vector<8x256xf32>
    %c385 = arith.constant 385 : index
    %2082 = memref.load %arg6[%c385] : memref<436xf32, #tpu.memory_space<smem>>
    %2083 = vector.broadcast %2082 : f32 to vector<8x256xf32>
    %2084 = arith.mulf %2083, %2077 : vector<8x256xf32>
    %2085 = arith.addf %2075, %2084 : vector<8x256xf32>
    %c240_i32_283 = arith.constant 240 : i32
    %2086 = tpu.dynamic_rotate %1838 by %c240_i32_283 dim 1 : vector<8x256xf32>, i32 -> vector<8x256xf32>
    %2087 = arith.mulf %2086, %35 : vector<8x256xf32>
    %c340 = arith.constant 340 : index
    %2088 = memref.load %arg6[%c340] : memref<436xf32, #tpu.memory_space<smem>>
    %2089 = vector.broadcast %2088 : f32 to vector<8x256xf32>
    %2090 = arith.mulf %2089, %2087 : vector<8x256xf32>
    %2091 = arith.addf %2081, %2090 : vector<8x256xf32>
    %c394 = arith.constant 394 : index
    %2092 = memref.load %arg6[%c394] : memref<436xf32, #tpu.memory_space<smem>>
    %2093 = vector.broadcast %2092 : f32 to vector<8x256xf32>
    %2094 = arith.mulf %2093, %2087 : vector<8x256xf32>
    %2095 = arith.addf %2085, %2094 : vector<8x256xf32>
    %c240_i32_284 = arith.constant 240 : i32
    %2096 = tpu.dynamic_rotate %1871 by %c240_i32_284 dim 1 : vector<8x256xf32>, i32 -> vector<8x256xf32>
    %2097 = arith.mulf %2096, %35 : vector<8x256xf32>
    %c349 = arith.constant 349 : index
    %2098 = memref.load %arg6[%c349] : memref<436xf32, #tpu.memory_space<smem>>
    %2099 = vector.broadcast %2098 : f32 to vector<8x256xf32>
    %2100 = arith.mulf %2099, %2097 : vector<8x256xf32>
    %2101 = arith.addf %2091, %2100 : vector<8x256xf32>
    %c403 = arith.constant 403 : index
    %2102 = memref.load %arg6[%c403] : memref<436xf32, #tpu.memory_space<smem>>
    %2103 = vector.broadcast %2102 : f32 to vector<8x256xf32>
    %2104 = arith.mulf %2103, %2097 : vector<8x256xf32>
    %2105 = arith.addf %2095, %2104 : vector<8x256xf32>
    %c239_i32_285 = arith.constant 239 : i32
    %2106 = tpu.dynamic_rotate %1869 by %c239_i32_285 dim 1 : vector<8x256xf32>, i32 -> vector<8x256xf32>
    %2107 = arith.mulf %2106, %39 : vector<8x256xf32>
    %c332 = arith.constant 332 : index
    %2108 = memref.load %arg6[%c332] : memref<436xf32, #tpu.memory_space<smem>>
    %2109 = vector.broadcast %2108 : f32 to vector<8x256xf32>
    %2110 = arith.mulf %2109, %2107 : vector<8x256xf32>
    %2111 = arith.addf %2101, %2110 : vector<8x256xf32>
    %c386 = arith.constant 386 : index
    %2112 = memref.load %arg6[%c386] : memref<436xf32, #tpu.memory_space<smem>>
    %2113 = vector.broadcast %2112 : f32 to vector<8x256xf32>
    %2114 = arith.mulf %2113, %2107 : vector<8x256xf32>
    %2115 = arith.addf %2105, %2114 : vector<8x256xf32>
    %c239_i32_286 = arith.constant 239 : i32
    %2116 = tpu.dynamic_rotate %1838 by %c239_i32_286 dim 1 : vector<8x256xf32>, i32 -> vector<8x256xf32>
    %2117 = arith.mulf %2116, %39 : vector<8x256xf32>
    %c341 = arith.constant 341 : index
    %2118 = memref.load %arg6[%c341] : memref<436xf32, #tpu.memory_space<smem>>
    %2119 = vector.broadcast %2118 : f32 to vector<8x256xf32>
    %2120 = arith.mulf %2119, %2117 : vector<8x256xf32>
    %2121 = arith.addf %2111, %2120 : vector<8x256xf32>
    %c395 = arith.constant 395 : index
    %2122 = memref.load %arg6[%c395] : memref<436xf32, #tpu.memory_space<smem>>
    %2123 = vector.broadcast %2122 : f32 to vector<8x256xf32>
    %2124 = arith.mulf %2123, %2117 : vector<8x256xf32>
    %2125 = arith.addf %2115, %2124 : vector<8x256xf32>
    %c239_i32_287 = arith.constant 239 : i32
    %2126 = tpu.dynamic_rotate %1871 by %c239_i32_287 dim 1 : vector<8x256xf32>, i32 -> vector<8x256xf32>
    %2127 = arith.mulf %2126, %39 : vector<8x256xf32>
    %c350 = arith.constant 350 : index
    %2128 = memref.load %arg6[%c350] : memref<436xf32, #tpu.memory_space<smem>>
    %2129 = vector.broadcast %2128 : f32 to vector<8x256xf32>
    %2130 = arith.mulf %2129, %2127 : vector<8x256xf32>
    %2131 = arith.addf %2121, %2130 : vector<8x256xf32>
    %c404 = arith.constant 404 : index
    %2132 = memref.load %arg6[%c404] : memref<436xf32, #tpu.memory_space<smem>>
    %2133 = vector.broadcast %2132 : f32 to vector<8x256xf32>
    %2134 = arith.mulf %2133, %2127 : vector<8x256xf32>
    %2135 = arith.addf %2125, %2134 : vector<8x256xf32>
    %c1_i32_288 = arith.constant 1 : i32
    %2136 = tpu.dynamic_rotate %1863 by %c1_i32_288 dim 0 : vector<8x256xf32>, i32 -> vector<8x256xf32>
    %2137 = arith.mulf %2136, %3 : vector<8x256xf32>
    %c7_i32_289 = arith.constant 7 : i32
    %2138 = tpu.dynamic_rotate %1863 by %c7_i32_289 dim 0 : vector<8x256xf32>, i32 -> vector<8x256xf32>
    %2139 = arith.mulf %2138, %7 : vector<8x256xf32>
    %c17_i32_290 = arith.constant 17 : i32
    %2140 = tpu.dynamic_rotate %2137 by %c17_i32_290 dim 1 : vector<8x256xf32>, i32 -> vector<8x256xf32>
    %2141 = arith.mulf %2140, %11 : vector<8x256xf32>
    %c351 = arith.constant 351 : index
    %2142 = memref.load %arg6[%c351] : memref<436xf32, #tpu.memory_space<smem>>
    %2143 = vector.broadcast %2142 : f32 to vector<8x256xf32>
    %2144 = arith.mulf %2143, %2141 : vector<8x256xf32>
    %2145 = arith.addf %2131, %2144 : vector<8x256xf32>
    %c405 = arith.constant 405 : index
    %2146 = memref.load %arg6[%c405] : memref<436xf32, #tpu.memory_space<smem>>
    %2147 = vector.broadcast %2146 : f32 to vector<8x256xf32>
    %2148 = arith.mulf %2147, %2141 : vector<8x256xf32>
    %2149 = arith.addf %2135, %2148 : vector<8x256xf32>
    %c17_i32_291 = arith.constant 17 : i32
    %2150 = tpu.dynamic_rotate %1863 by %c17_i32_291 dim 1 : vector<8x256xf32>, i32 -> vector<8x256xf32>
    %2151 = arith.mulf %2150, %11 : vector<8x256xf32>
    %c360 = arith.constant 360 : index
    %2152 = memref.load %arg6[%c360] : memref<436xf32, #tpu.memory_space<smem>>
    %2153 = vector.broadcast %2152 : f32 to vector<8x256xf32>
    %2154 = arith.mulf %2153, %2151 : vector<8x256xf32>
    %2155 = arith.addf %2145, %2154 : vector<8x256xf32>
    %c414 = arith.constant 414 : index
    %2156 = memref.load %arg6[%c414] : memref<436xf32, #tpu.memory_space<smem>>
    %2157 = vector.broadcast %2156 : f32 to vector<8x256xf32>
    %2158 = arith.mulf %2157, %2151 : vector<8x256xf32>
    %2159 = arith.addf %2149, %2158 : vector<8x256xf32>
    %c17_i32_292 = arith.constant 17 : i32
    %2160 = tpu.dynamic_rotate %2139 by %c17_i32_292 dim 1 : vector<8x256xf32>, i32 -> vector<8x256xf32>
    %2161 = arith.mulf %2160, %11 : vector<8x256xf32>
    %c369 = arith.constant 369 : index
    %2162 = memref.load %arg6[%c369] : memref<436xf32, #tpu.memory_space<smem>>
    %2163 = vector.broadcast %2162 : f32 to vector<8x256xf32>
    %2164 = arith.mulf %2163, %2161 : vector<8x256xf32>
    %2165 = arith.addf %2155, %2164 : vector<8x256xf32>
    %c423 = arith.constant 423 : index
    %2166 = memref.load %arg6[%c423] : memref<436xf32, #tpu.memory_space<smem>>
    %2167 = vector.broadcast %2166 : f32 to vector<8x256xf32>
    %2168 = arith.mulf %2167, %2161 : vector<8x256xf32>
    %2169 = arith.addf %2159, %2168 : vector<8x256xf32>
    %c16_i32_293 = arith.constant 16 : i32
    %2170 = tpu.dynamic_rotate %2137 by %c16_i32_293 dim 1 : vector<8x256xf32>, i32 -> vector<8x256xf32>
    %2171 = arith.mulf %2170, %15 : vector<8x256xf32>
    %c352 = arith.constant 352 : index
    %2172 = memref.load %arg6[%c352] : memref<436xf32, #tpu.memory_space<smem>>
    %2173 = vector.broadcast %2172 : f32 to vector<8x256xf32>
    %2174 = arith.mulf %2173, %2171 : vector<8x256xf32>
    %2175 = arith.addf %2165, %2174 : vector<8x256xf32>
    %c406 = arith.constant 406 : index
    %2176 = memref.load %arg6[%c406] : memref<436xf32, #tpu.memory_space<smem>>
    %2177 = vector.broadcast %2176 : f32 to vector<8x256xf32>
    %2178 = arith.mulf %2177, %2171 : vector<8x256xf32>
    %2179 = arith.addf %2169, %2178 : vector<8x256xf32>
    %c16_i32_294 = arith.constant 16 : i32
    %2180 = tpu.dynamic_rotate %1863 by %c16_i32_294 dim 1 : vector<8x256xf32>, i32 -> vector<8x256xf32>
    %2181 = arith.mulf %2180, %15 : vector<8x256xf32>
    %c361 = arith.constant 361 : index
    %2182 = memref.load %arg6[%c361] : memref<436xf32, #tpu.memory_space<smem>>
    %2183 = vector.broadcast %2182 : f32 to vector<8x256xf32>
    %2184 = arith.mulf %2183, %2181 : vector<8x256xf32>
    %2185 = arith.addf %2175, %2184 : vector<8x256xf32>
    %c415 = arith.constant 415 : index
    %2186 = memref.load %arg6[%c415] : memref<436xf32, #tpu.memory_space<smem>>
    %2187 = vector.broadcast %2186 : f32 to vector<8x256xf32>
    %2188 = arith.mulf %2187, %2181 : vector<8x256xf32>
    %2189 = arith.addf %2179, %2188 : vector<8x256xf32>
    %c16_i32_295 = arith.constant 16 : i32
    %2190 = tpu.dynamic_rotate %2139 by %c16_i32_295 dim 1 : vector<8x256xf32>, i32 -> vector<8x256xf32>
    %2191 = arith.mulf %2190, %15 : vector<8x256xf32>
    %c370 = arith.constant 370 : index
    %2192 = memref.load %arg6[%c370] : memref<436xf32, #tpu.memory_space<smem>>
    %2193 = vector.broadcast %2192 : f32 to vector<8x256xf32>
    %2194 = arith.mulf %2193, %2191 : vector<8x256xf32>
    %2195 = arith.addf %2185, %2194 : vector<8x256xf32>
    %c424 = arith.constant 424 : index
    %2196 = memref.load %arg6[%c424] : memref<436xf32, #tpu.memory_space<smem>>
    %2197 = vector.broadcast %2196 : f32 to vector<8x256xf32>
    %2198 = arith.mulf %2197, %2191 : vector<8x256xf32>
    %2199 = arith.addf %2189, %2198 : vector<8x256xf32>
    %c15_i32_296 = arith.constant 15 : i32
    %2200 = tpu.dynamic_rotate %2137 by %c15_i32_296 dim 1 : vector<8x256xf32>, i32 -> vector<8x256xf32>
    %2201 = arith.mulf %2200, %19 : vector<8x256xf32>
    %c353 = arith.constant 353 : index
    %2202 = memref.load %arg6[%c353] : memref<436xf32, #tpu.memory_space<smem>>
    %2203 = vector.broadcast %2202 : f32 to vector<8x256xf32>
    %2204 = arith.mulf %2203, %2201 : vector<8x256xf32>
    %2205 = arith.addf %2195, %2204 : vector<8x256xf32>
    %c407 = arith.constant 407 : index
    %2206 = memref.load %arg6[%c407] : memref<436xf32, #tpu.memory_space<smem>>
    %2207 = vector.broadcast %2206 : f32 to vector<8x256xf32>
    %2208 = arith.mulf %2207, %2201 : vector<8x256xf32>
    %2209 = arith.addf %2199, %2208 : vector<8x256xf32>
    %c15_i32_297 = arith.constant 15 : i32
    %2210 = tpu.dynamic_rotate %1863 by %c15_i32_297 dim 1 : vector<8x256xf32>, i32 -> vector<8x256xf32>
    %2211 = arith.mulf %2210, %19 : vector<8x256xf32>
    %c362 = arith.constant 362 : index
    %2212 = memref.load %arg6[%c362] : memref<436xf32, #tpu.memory_space<smem>>
    %2213 = vector.broadcast %2212 : f32 to vector<8x256xf32>
    %2214 = arith.mulf %2213, %2211 : vector<8x256xf32>
    %2215 = arith.addf %2205, %2214 : vector<8x256xf32>
    %c416 = arith.constant 416 : index
    %2216 = memref.load %arg6[%c416] : memref<436xf32, #tpu.memory_space<smem>>
    %2217 = vector.broadcast %2216 : f32 to vector<8x256xf32>
    %2218 = arith.mulf %2217, %2211 : vector<8x256xf32>
    %2219 = arith.addf %2209, %2218 : vector<8x256xf32>
    %c15_i32_298 = arith.constant 15 : i32
    %2220 = tpu.dynamic_rotate %2139 by %c15_i32_298 dim 1 : vector<8x256xf32>, i32 -> vector<8x256xf32>
    %2221 = arith.mulf %2220, %19 : vector<8x256xf32>
    %c371 = arith.constant 371 : index
    %2222 = memref.load %arg6[%c371] : memref<436xf32, #tpu.memory_space<smem>>
    %2223 = vector.broadcast %2222 : f32 to vector<8x256xf32>
    %2224 = arith.mulf %2223, %2221 : vector<8x256xf32>
    %2225 = arith.addf %2215, %2224 : vector<8x256xf32>
    %c425 = arith.constant 425 : index
    %2226 = memref.load %arg6[%c425] : memref<436xf32, #tpu.memory_space<smem>>
    %2227 = vector.broadcast %2226 : f32 to vector<8x256xf32>
    %2228 = arith.mulf %2227, %2221 : vector<8x256xf32>
    %2229 = arith.addf %2219, %2228 : vector<8x256xf32>
    %c1_i32_299 = arith.constant 1 : i32
    %2230 = tpu.dynamic_rotate %2137 by %c1_i32_299 dim 1 : vector<8x256xf32>, i32 -> vector<8x256xf32>
    %2231 = arith.mulf %2230, %23 : vector<8x256xf32>
    %c354 = arith.constant 354 : index
    %2232 = memref.load %arg6[%c354] : memref<436xf32, #tpu.memory_space<smem>>
    %2233 = vector.broadcast %2232 : f32 to vector<8x256xf32>
    %2234 = arith.mulf %2233, %2231 : vector<8x256xf32>
    %2235 = arith.addf %2225, %2234 : vector<8x256xf32>
    %c408 = arith.constant 408 : index
    %2236 = memref.load %arg6[%c408] : memref<436xf32, #tpu.memory_space<smem>>
    %2237 = vector.broadcast %2236 : f32 to vector<8x256xf32>
    %2238 = arith.mulf %2237, %2231 : vector<8x256xf32>
    %2239 = arith.addf %2229, %2238 : vector<8x256xf32>
    %c1_i32_300 = arith.constant 1 : i32
    %2240 = tpu.dynamic_rotate %1863 by %c1_i32_300 dim 1 : vector<8x256xf32>, i32 -> vector<8x256xf32>
    %2241 = arith.mulf %2240, %23 : vector<8x256xf32>
    %c363 = arith.constant 363 : index
    %2242 = memref.load %arg6[%c363] : memref<436xf32, #tpu.memory_space<smem>>
    %2243 = vector.broadcast %2242 : f32 to vector<8x256xf32>
    %2244 = arith.mulf %2243, %2241 : vector<8x256xf32>
    %2245 = arith.addf %2235, %2244 : vector<8x256xf32>
    %c417 = arith.constant 417 : index
    %2246 = memref.load %arg6[%c417] : memref<436xf32, #tpu.memory_space<smem>>
    %2247 = vector.broadcast %2246 : f32 to vector<8x256xf32>
    %2248 = arith.mulf %2247, %2241 : vector<8x256xf32>
    %2249 = arith.addf %2239, %2248 : vector<8x256xf32>
    %c1_i32_301 = arith.constant 1 : i32
    %2250 = tpu.dynamic_rotate %2139 by %c1_i32_301 dim 1 : vector<8x256xf32>, i32 -> vector<8x256xf32>
    %2251 = arith.mulf %2250, %23 : vector<8x256xf32>
    %c372 = arith.constant 372 : index
    %2252 = memref.load %arg6[%c372] : memref<436xf32, #tpu.memory_space<smem>>
    %2253 = vector.broadcast %2252 : f32 to vector<8x256xf32>
    %2254 = arith.mulf %2253, %2251 : vector<8x256xf32>
    %2255 = arith.addf %2245, %2254 : vector<8x256xf32>
    %c426 = arith.constant 426 : index
    %2256 = memref.load %arg6[%c426] : memref<436xf32, #tpu.memory_space<smem>>
    %2257 = vector.broadcast %2256 : f32 to vector<8x256xf32>
    %2258 = arith.mulf %2257, %2251 : vector<8x256xf32>
    %2259 = arith.addf %2249, %2258 : vector<8x256xf32>
    %c355 = arith.constant 355 : index
    %2260 = memref.load %arg6[%c355] : memref<436xf32, #tpu.memory_space<smem>>
    %2261 = vector.broadcast %2260 : f32 to vector<8x256xf32>
    %2262 = arith.mulf %2261, %2137 : vector<8x256xf32>
    %2263 = arith.addf %2255, %2262 : vector<8x256xf32>
    %c409 = arith.constant 409 : index
    %2264 = memref.load %arg6[%c409] : memref<436xf32, #tpu.memory_space<smem>>
    %2265 = vector.broadcast %2264 : f32 to vector<8x256xf32>
    %2266 = arith.mulf %2265, %2137 : vector<8x256xf32>
    %2267 = arith.addf %2259, %2266 : vector<8x256xf32>
    %c364 = arith.constant 364 : index
    %2268 = memref.load %arg6[%c364] : memref<436xf32, #tpu.memory_space<smem>>
    %2269 = vector.broadcast %2268 : f32 to vector<8x256xf32>
    %2270 = arith.mulf %2269, %1863 : vector<8x256xf32>
    %2271 = arith.addf %2263, %2270 : vector<8x256xf32>
    %c418 = arith.constant 418 : index
    %2272 = memref.load %arg6[%c418] : memref<436xf32, #tpu.memory_space<smem>>
    %2273 = vector.broadcast %2272 : f32 to vector<8x256xf32>
    %2274 = arith.mulf %2273, %1863 : vector<8x256xf32>
    %2275 = arith.addf %2267, %2274 : vector<8x256xf32>
    %c373 = arith.constant 373 : index
    %2276 = memref.load %arg6[%c373] : memref<436xf32, #tpu.memory_space<smem>>
    %2277 = vector.broadcast %2276 : f32 to vector<8x256xf32>
    %2278 = arith.mulf %2277, %2139 : vector<8x256xf32>
    %2279 = arith.addf %2271, %2278 : vector<8x256xf32>
    %c427 = arith.constant 427 : index
    %2280 = memref.load %arg6[%c427] : memref<436xf32, #tpu.memory_space<smem>>
    %2281 = vector.broadcast %2280 : f32 to vector<8x256xf32>
    %2282 = arith.mulf %2281, %2139 : vector<8x256xf32>
    %2283 = arith.addf %2275, %2282 : vector<8x256xf32>
    %c255_i32_302 = arith.constant 255 : i32
    %2284 = tpu.dynamic_rotate %2137 by %c255_i32_302 dim 1 : vector<8x256xf32>, i32 -> vector<8x256xf32>
    %2285 = arith.mulf %2284, %27 : vector<8x256xf32>
    %c356 = arith.constant 356 : index
    %2286 = memref.load %arg6[%c356] : memref<436xf32, #tpu.memory_space<smem>>
    %2287 = vector.broadcast %2286 : f32 to vector<8x256xf32>
    %2288 = arith.mulf %2287, %2285 : vector<8x256xf32>
    %2289 = arith.addf %2279, %2288 : vector<8x256xf32>
    %c410 = arith.constant 410 : index
    %2290 = memref.load %arg6[%c410] : memref<436xf32, #tpu.memory_space<smem>>
    %2291 = vector.broadcast %2290 : f32 to vector<8x256xf32>
    %2292 = arith.mulf %2291, %2285 : vector<8x256xf32>
    %2293 = arith.addf %2283, %2292 : vector<8x256xf32>
    %c255_i32_303 = arith.constant 255 : i32
    %2294 = tpu.dynamic_rotate %1863 by %c255_i32_303 dim 1 : vector<8x256xf32>, i32 -> vector<8x256xf32>
    %2295 = arith.mulf %2294, %27 : vector<8x256xf32>
    %c365 = arith.constant 365 : index
    %2296 = memref.load %arg6[%c365] : memref<436xf32, #tpu.memory_space<smem>>
    %2297 = vector.broadcast %2296 : f32 to vector<8x256xf32>
    %2298 = arith.mulf %2297, %2295 : vector<8x256xf32>
    %2299 = arith.addf %2289, %2298 : vector<8x256xf32>
    %c419 = arith.constant 419 : index
    %2300 = memref.load %arg6[%c419] : memref<436xf32, #tpu.memory_space<smem>>
    %2301 = vector.broadcast %2300 : f32 to vector<8x256xf32>
    %2302 = arith.mulf %2301, %2295 : vector<8x256xf32>
    %2303 = arith.addf %2293, %2302 : vector<8x256xf32>
    %c255_i32_304 = arith.constant 255 : i32
    %2304 = tpu.dynamic_rotate %2139 by %c255_i32_304 dim 1 : vector<8x256xf32>, i32 -> vector<8x256xf32>
    %2305 = arith.mulf %2304, %27 : vector<8x256xf32>
    %c374 = arith.constant 374 : index
    %2306 = memref.load %arg6[%c374] : memref<436xf32, #tpu.memory_space<smem>>
    %2307 = vector.broadcast %2306 : f32 to vector<8x256xf32>
    %2308 = arith.mulf %2307, %2305 : vector<8x256xf32>
    %2309 = arith.addf %2299, %2308 : vector<8x256xf32>
    %c428 = arith.constant 428 : index
    %2310 = memref.load %arg6[%c428] : memref<436xf32, #tpu.memory_space<smem>>
    %2311 = vector.broadcast %2310 : f32 to vector<8x256xf32>
    %2312 = arith.mulf %2311, %2305 : vector<8x256xf32>
    %2313 = arith.addf %2303, %2312 : vector<8x256xf32>
    %c241_i32_305 = arith.constant 241 : i32
    %2314 = tpu.dynamic_rotate %2137 by %c241_i32_305 dim 1 : vector<8x256xf32>, i32 -> vector<8x256xf32>
    %2315 = arith.mulf %2314, %31 : vector<8x256xf32>
    %c357 = arith.constant 357 : index
    %2316 = memref.load %arg6[%c357] : memref<436xf32, #tpu.memory_space<smem>>
    %2317 = vector.broadcast %2316 : f32 to vector<8x256xf32>
    %2318 = arith.mulf %2317, %2315 : vector<8x256xf32>
    %2319 = arith.addf %2309, %2318 : vector<8x256xf32>
    %c411 = arith.constant 411 : index
    %2320 = memref.load %arg6[%c411] : memref<436xf32, #tpu.memory_space<smem>>
    %2321 = vector.broadcast %2320 : f32 to vector<8x256xf32>
    %2322 = arith.mulf %2321, %2315 : vector<8x256xf32>
    %2323 = arith.addf %2313, %2322 : vector<8x256xf32>
    %c241_i32_306 = arith.constant 241 : i32
    %2324 = tpu.dynamic_rotate %1863 by %c241_i32_306 dim 1 : vector<8x256xf32>, i32 -> vector<8x256xf32>
    %2325 = arith.mulf %2324, %31 : vector<8x256xf32>
    %c366 = arith.constant 366 : index
    %2326 = memref.load %arg6[%c366] : memref<436xf32, #tpu.memory_space<smem>>
    %2327 = vector.broadcast %2326 : f32 to vector<8x256xf32>
    %2328 = arith.mulf %2327, %2325 : vector<8x256xf32>
    %2329 = arith.addf %2319, %2328 : vector<8x256xf32>
    %c420 = arith.constant 420 : index
    %2330 = memref.load %arg6[%c420] : memref<436xf32, #tpu.memory_space<smem>>
    %2331 = vector.broadcast %2330 : f32 to vector<8x256xf32>
    %2332 = arith.mulf %2331, %2325 : vector<8x256xf32>
    %2333 = arith.addf %2323, %2332 : vector<8x256xf32>
    %c241_i32_307 = arith.constant 241 : i32
    %2334 = tpu.dynamic_rotate %2139 by %c241_i32_307 dim 1 : vector<8x256xf32>, i32 -> vector<8x256xf32>
    %2335 = arith.mulf %2334, %31 : vector<8x256xf32>
    %c375 = arith.constant 375 : index
    %2336 = memref.load %arg6[%c375] : memref<436xf32, #tpu.memory_space<smem>>
    %2337 = vector.broadcast %2336 : f32 to vector<8x256xf32>
    %2338 = arith.mulf %2337, %2335 : vector<8x256xf32>
    %2339 = arith.addf %2329, %2338 : vector<8x256xf32>
    %c429 = arith.constant 429 : index
    %2340 = memref.load %arg6[%c429] : memref<436xf32, #tpu.memory_space<smem>>
    %2341 = vector.broadcast %2340 : f32 to vector<8x256xf32>
    %2342 = arith.mulf %2341, %2335 : vector<8x256xf32>
    %2343 = arith.addf %2333, %2342 : vector<8x256xf32>
    %c240_i32_308 = arith.constant 240 : i32
    %2344 = tpu.dynamic_rotate %2137 by %c240_i32_308 dim 1 : vector<8x256xf32>, i32 -> vector<8x256xf32>
    %2345 = arith.mulf %2344, %35 : vector<8x256xf32>
    %c358 = arith.constant 358 : index
    %2346 = memref.load %arg6[%c358] : memref<436xf32, #tpu.memory_space<smem>>
    %2347 = vector.broadcast %2346 : f32 to vector<8x256xf32>
    %2348 = arith.mulf %2347, %2345 : vector<8x256xf32>
    %2349 = arith.addf %2339, %2348 : vector<8x256xf32>
    %c412 = arith.constant 412 : index
    %2350 = memref.load %arg6[%c412] : memref<436xf32, #tpu.memory_space<smem>>
    %2351 = vector.broadcast %2350 : f32 to vector<8x256xf32>
    %2352 = arith.mulf %2351, %2345 : vector<8x256xf32>
    %2353 = arith.addf %2343, %2352 : vector<8x256xf32>
    %c240_i32_309 = arith.constant 240 : i32
    %2354 = tpu.dynamic_rotate %1863 by %c240_i32_309 dim 1 : vector<8x256xf32>, i32 -> vector<8x256xf32>
    %2355 = arith.mulf %2354, %35 : vector<8x256xf32>
    %c367 = arith.constant 367 : index
    %2356 = memref.load %arg6[%c367] : memref<436xf32, #tpu.memory_space<smem>>
    %2357 = vector.broadcast %2356 : f32 to vector<8x256xf32>
    %2358 = arith.mulf %2357, %2355 : vector<8x256xf32>
    %2359 = arith.addf %2349, %2358 : vector<8x256xf32>
    %c421 = arith.constant 421 : index
    %2360 = memref.load %arg6[%c421] : memref<436xf32, #tpu.memory_space<smem>>
    %2361 = vector.broadcast %2360 : f32 to vector<8x256xf32>
    %2362 = arith.mulf %2361, %2355 : vector<8x256xf32>
    %2363 = arith.addf %2353, %2362 : vector<8x256xf32>
    %c240_i32_310 = arith.constant 240 : i32
    %2364 = tpu.dynamic_rotate %2139 by %c240_i32_310 dim 1 : vector<8x256xf32>, i32 -> vector<8x256xf32>
    %2365 = arith.mulf %2364, %35 : vector<8x256xf32>
    %c376 = arith.constant 376 : index
    %2366 = memref.load %arg6[%c376] : memref<436xf32, #tpu.memory_space<smem>>
    %2367 = vector.broadcast %2366 : f32 to vector<8x256xf32>
    %2368 = arith.mulf %2367, %2365 : vector<8x256xf32>
    %2369 = arith.addf %2359, %2368 : vector<8x256xf32>
    %c430 = arith.constant 430 : index
    %2370 = memref.load %arg6[%c430] : memref<436xf32, #tpu.memory_space<smem>>
    %2371 = vector.broadcast %2370 : f32 to vector<8x256xf32>
    %2372 = arith.mulf %2371, %2365 : vector<8x256xf32>
    %2373 = arith.addf %2363, %2372 : vector<8x256xf32>
    %c239_i32_311 = arith.constant 239 : i32
    %2374 = tpu.dynamic_rotate %2137 by %c239_i32_311 dim 1 : vector<8x256xf32>, i32 -> vector<8x256xf32>
    %2375 = arith.mulf %2374, %39 : vector<8x256xf32>
    %c359 = arith.constant 359 : index
    %2376 = memref.load %arg6[%c359] : memref<436xf32, #tpu.memory_space<smem>>
    %2377 = vector.broadcast %2376 : f32 to vector<8x256xf32>
    %2378 = arith.mulf %2377, %2375 : vector<8x256xf32>
    %2379 = arith.addf %2369, %2378 : vector<8x256xf32>
    %c413 = arith.constant 413 : index
    %2380 = memref.load %arg6[%c413] : memref<436xf32, #tpu.memory_space<smem>>
    %2381 = vector.broadcast %2380 : f32 to vector<8x256xf32>
    %2382 = arith.mulf %2381, %2375 : vector<8x256xf32>
    %2383 = arith.addf %2373, %2382 : vector<8x256xf32>
    %c239_i32_312 = arith.constant 239 : i32
    %2384 = tpu.dynamic_rotate %1863 by %c239_i32_312 dim 1 : vector<8x256xf32>, i32 -> vector<8x256xf32>
    %2385 = arith.mulf %2384, %39 : vector<8x256xf32>
    %c368 = arith.constant 368 : index
    %2386 = memref.load %arg6[%c368] : memref<436xf32, #tpu.memory_space<smem>>
    %2387 = vector.broadcast %2386 : f32 to vector<8x256xf32>
    %2388 = arith.mulf %2387, %2385 : vector<8x256xf32>
    %2389 = arith.addf %2379, %2388 : vector<8x256xf32>
    %c422 = arith.constant 422 : index
    %2390 = memref.load %arg6[%c422] : memref<436xf32, #tpu.memory_space<smem>>
    %2391 = vector.broadcast %2390 : f32 to vector<8x256xf32>
    %2392 = arith.mulf %2391, %2385 : vector<8x256xf32>
    %2393 = arith.addf %2383, %2392 : vector<8x256xf32>
    %c239_i32_313 = arith.constant 239 : i32
    %2394 = tpu.dynamic_rotate %2139 by %c239_i32_313 dim 1 : vector<8x256xf32>, i32 -> vector<8x256xf32>
    %2395 = arith.mulf %2394, %39 : vector<8x256xf32>
    %c377 = arith.constant 377 : index
    %2396 = memref.load %arg6[%c377] : memref<436xf32, #tpu.memory_space<smem>>
    %2397 = vector.broadcast %2396 : f32 to vector<8x256xf32>
    %2398 = arith.mulf %2397, %2395 : vector<8x256xf32>
    %2399 = arith.addf %2389, %2398 : vector<8x256xf32>
    %c431 = arith.constant 431 : index
    %2400 = memref.load %arg6[%c431] : memref<436xf32, #tpu.memory_space<smem>>
    %2401 = vector.broadcast %2400 : f32 to vector<8x256xf32>
    %2402 = arith.mulf %2401, %2395 : vector<8x256xf32>
    %2403 = arith.addf %2393, %2402 : vector<8x256xf32>
    %2404 = arith.addf %2399, %1219 : vector<8x256xf32>
    %2405 = arith.addf %2403, %1223 : vector<8x256xf32>
    %2406 = vector.shape_cast %2404 : vector<8x256xf32> to vector<1x8x256xf32>
    %cst_314 = arith.constant dense<0.000000e+00> : vector<1xf32>
    %2407 = vector.multi_reduction <add>, %2406, %cst_314 [1, 2] : vector<1x8x256xf32> to vector<1xf32>
    %2408 = vector.shape_cast %2407 : vector<1xf32> to vector<1x1x1xf32>
    %2409 = vector.extract %2408[0, 0, 0] : f32 from vector<1x1x1xf32>
    %cst_315 = arith.constant 2.048000e+03 : f32
    %2410 = arith.divf %2409, %cst_315 : f32
    %2411 = vector.broadcast %2410 : f32 to vector<8x256xf32>
    %2412 = arith.subf %2404, %2411 : vector<8x256xf32>
    %2413 = arith.mulf %2412, %2412 : vector<8x256xf32>
    %2414 = vector.shape_cast %2413 : vector<8x256xf32> to vector<1x8x256xf32>
    %cst_316 = arith.constant dense<0.000000e+00> : vector<1xf32>
    %2415 = vector.multi_reduction <add>, %2414, %cst_316 [1, 2] : vector<1x8x256xf32> to vector<1xf32>
    %2416 = vector.shape_cast %2415 : vector<1xf32> to vector<1x1x1xf32>
    %2417 = vector.extract %2416[0, 0, 0] : f32 from vector<1x1x1xf32>
    %cst_317 = arith.constant 2.048000e+03 : f32
    %2418 = arith.divf %2417, %cst_317 : f32
    %cst_318 = arith.constant 9.99999974E-6 : f32
    %2419 = arith.addf %2418, %cst_318 : f32
    %2420 = math.rsqrt %2419 : f32
    %c16_319 = arith.constant 16 : index
    %2421 = memref.load %arg5[%c16_319] : memref<20xf32, #tpu.memory_space<smem>>
    %2422 = arith.mulf %2420, %2421 : f32
    %2423 = vector.broadcast %2422 : f32 to vector<8x256xf32>
    %2424 = arith.mulf %2412, %2423 : vector<8x256xf32>
    %c18_320 = arith.constant 18 : index
    %2425 = memref.load %arg5[%c18_320] : memref<20xf32, #tpu.memory_space<smem>>
    %2426 = vector.broadcast %2425 : f32 to vector<8x256xf32>
    %2427 = arith.addf %2424, %2426 : vector<8x256xf32>
    %cst_321 = arith.constant 0.00999999977 : f32
    %2428 = vector.broadcast %cst_321 : f32 to vector<8x256xf32>
    %2429 = arith.mulf %2428, %2427 : vector<8x256xf32>
    %2430 = arith.maximumf %2427, %2429 : vector<8x256xf32>
    %2431 = vector.shape_cast %2405 : vector<8x256xf32> to vector<1x8x256xf32>
    %cst_322 = arith.constant dense<0.000000e+00> : vector<1xf32>
    %2432 = vector.multi_reduction <add>, %2431, %cst_322 [1, 2] : vector<1x8x256xf32> to vector<1xf32>
    %2433 = vector.shape_cast %2432 : vector<1xf32> to vector<1x1x1xf32>
    %2434 = vector.extract %2433[0, 0, 0] : f32 from vector<1x1x1xf32>
    %cst_323 = arith.constant 2.048000e+03 : f32
    %2435 = arith.divf %2434, %cst_323 : f32
    %2436 = vector.broadcast %2435 : f32 to vector<8x256xf32>
    %2437 = arith.subf %2405, %2436 : vector<8x256xf32>
    %2438 = arith.mulf %2437, %2437 : vector<8x256xf32>
    %2439 = vector.shape_cast %2438 : vector<8x256xf32> to vector<1x8x256xf32>
    %cst_324 = arith.constant dense<0.000000e+00> : vector<1xf32>
    %2440 = vector.multi_reduction <add>, %2439, %cst_324 [1, 2] : vector<1x8x256xf32> to vector<1xf32>
    %2441 = vector.shape_cast %2440 : vector<1xf32> to vector<1x1x1xf32>
    %2442 = vector.extract %2441[0, 0, 0] : f32 from vector<1x1x1xf32>
    %cst_325 = arith.constant 2.048000e+03 : f32
    %2443 = arith.divf %2442, %cst_325 : f32
    %cst_326 = arith.constant 9.99999974E-6 : f32
    %2444 = arith.addf %2443, %cst_326 : f32
    %2445 = math.rsqrt %2444 : f32
    %c17_327 = arith.constant 17 : index
    %2446 = memref.load %arg5[%c17_327] : memref<20xf32, #tpu.memory_space<smem>>
    %2447 = arith.mulf %2445, %2446 : f32
    %2448 = vector.broadcast %2447 : f32 to vector<8x256xf32>
    %2449 = arith.mulf %2437, %2448 : vector<8x256xf32>
    %c19_328 = arith.constant 19 : index
    %2450 = memref.load %arg5[%c19_328] : memref<20xf32, #tpu.memory_space<smem>>
    %2451 = vector.broadcast %2450 : f32 to vector<8x256xf32>
    %2452 = arith.addf %2449, %2451 : vector<8x256xf32>
    %cst_329 = arith.constant 0.00999999977 : f32
    %2453 = vector.broadcast %cst_329 : f32 to vector<8x256xf32>
    %2454 = arith.mulf %2453, %2452 : vector<8x256xf32>
    %2455 = arith.maximumf %2452, %2454 : vector<8x256xf32>
    %c6_330 = arith.constant 6 : index
    %2456 = memref.load %arg7[%c6_330] : memref<8xf32, #tpu.memory_space<smem>>
    %2457 = vector.broadcast %2456 : f32 to vector<8x256xf32>
    %c432 = arith.constant 432 : index
    %2458 = memref.load %arg6[%c432] : memref<436xf32, #tpu.memory_space<smem>>
    %2459 = vector.broadcast %2458 : f32 to vector<8x256xf32>
    %2460 = arith.mulf %2459, %2430 : vector<8x256xf32>
    %2461 = arith.addf %2457, %2460 : vector<8x256xf32>
    %c433 = arith.constant 433 : index
    %2462 = memref.load %arg6[%c433] : memref<436xf32, #tpu.memory_space<smem>>
    %2463 = vector.broadcast %2462 : f32 to vector<8x256xf32>
    %2464 = arith.mulf %2463, %2455 : vector<8x256xf32>
    %2465 = arith.addf %2461, %2464 : vector<8x256xf32>
    %2466 = arith.negf %2465 : vector<8x256xf32>
    %2467 = math.exp %2466 : vector<8x256xf32>
    %cst_331 = arith.constant 1.000000e+00 : f32
    %2468 = vector.broadcast %cst_331 : f32 to vector<8x256xf32>
    %2469 = arith.addf %2468, %2467 : vector<8x256xf32>
    %2470 = arith.divf %2468, %2469 : vector<8x256xf32>
    %c0_332 = arith.constant 0 : index
    %c0_333 = arith.constant 0 : index
    %c0_334 = arith.constant 0 : index
    %c0_335 = arith.constant 0 : index
    %2471 = vector.load %arg8[%c0_332, %c0_333, %c0_334, %c0_335] : memref<1x2x8x256xf32, #tpu.memory_space<vmem>>, vector<1x1x8x256xf32>
    %2472 = vector.shape_cast %2471 : vector<1x1x8x256xf32> to vector<8x256xf32>
    %2473 = vector.shape_cast %2470 : vector<8x256xf32> to vector<1x1x8x256xf32>
    tpu.vector_store %arg8[%c0_332, %c0_333, %c0_334, %c0_335], %2473 {strides = array<i32>} : memref<1x2x8x256xf32, #tpu.memory_space<vmem>>, vector<1x1x8x256xf32>,
    %c7_336 = arith.constant 7 : index
    %2474 = memref.load %arg7[%c7_336] : memref<8xf32, #tpu.memory_space<smem>>
    %2475 = vector.broadcast %2474 : f32 to vector<8x256xf32>
    %c434 = arith.constant 434 : index
    %2476 = memref.load %arg6[%c434] : memref<436xf32, #tpu.memory_space<smem>>
    %2477 = vector.broadcast %2476 : f32 to vector<8x256xf32>
    %2478 = arith.mulf %2477, %2430 : vector<8x256xf32>
    %2479 = arith.addf %2475, %2478 : vector<8x256xf32>
    %c435 = arith.constant 435 : index
    %2480 = memref.load %arg6[%c435] : memref<436xf32, #tpu.memory_space<smem>>
    %2481 = vector.broadcast %2480 : f32 to vector<8x256xf32>
    %2482 = arith.mulf %2481, %2455 : vector<8x256xf32>
    %2483 = arith.addf %2479, %2482 : vector<8x256xf32>
    %2484 = arith.negf %2483 : vector<8x256xf32>
    %2485 = math.exp %2484 : vector<8x256xf32>
    %cst_337 = arith.constant 1.000000e+00 : f32
    %2486 = vector.broadcast %cst_337 : f32 to vector<8x256xf32>
    %2487 = arith.addf %2486, %2485 : vector<8x256xf32>
    %2488 = arith.divf %2486, %2487 : vector<8x256xf32>
    %c0_338 = arith.constant 0 : index
    %c1_339 = arith.constant 1 : index
    %c0_340 = arith.constant 0 : index
    %c0_341 = arith.constant 0 : index
    %2489 = vector.load %arg8[%c0_338, %c1_339, %c0_340, %c0_341] : memref<1x2x8x256xf32, #tpu.memory_space<vmem>>, vector<1x1x8x256xf32>
    %2490 = vector.shape_cast %2489 : vector<1x1x8x256xf32> to vector<8x256xf32>
    %2491 = vector.shape_cast %2488 : vector<8x256xf32> to vector<1x1x8x256xf32>
    tpu.vector_store %arg8[%c0_338, %c1_339, %c0_340, %c0_341], %2491 {strides = array<i32>} : memref<1x2x8x256xf32, #tpu.memory_space<vmem>>, vector<1x1x8x256xf32>,
    return
  }
  func.func @transform_0(%arg0: i32) -> (i32, i32, i32, i32) {
    %c0_i32 = arith.constant 0 : i32
    %c0_i32_0 = arith.constant 0 : i32
    %c0_i32_1 = arith.constant 0 : i32
    %c0_i32_2 = arith.constant 0 : i32
    return %arg0, %c0_i32, %c0_i32_0, %c0_i32_1 : i32, i32, i32, i32
  }
  func.func @transform_1(%arg0: i32) -> (i32, i32, i32, i32) {
    %c0_i32 = arith.constant 0 : i32
    %c0_i32_0 = arith.constant 0 : i32
    %c0_i32_1 = arith.constant 0 : i32
    %c0_i32_2 = arith.constant 0 : i32
    return %arg0, %c0_i32, %c0_i32_0, %c0_i32_1 : i32, i32, i32, i32
  }
  func.func @transform_2(%arg0: i32) -> (i32, i32, i32) {
    %c0_i32 = arith.constant 0 : i32
    %c0_i32_0 = arith.constant 0 : i32
    %c0_i32_1 = arith.constant 0 : i32
    %c0_i32_2 = arith.constant 0 : i32
    return %c0_i32, %c0_i32_0, %c0_i32_1 : i32, i32, i32
  }
  func.func @transform_3(%arg0: i32) -> (i32, i32, i32) {
    %c0_i32 = arith.constant 0 : i32
    %c0_i32_0 = arith.constant 0 : i32
    %c0_i32_1 = arith.constant 0 : i32
    %c0_i32_2 = arith.constant 0 : i32
    return %c0_i32, %c0_i32_0, %c0_i32_1 : i32, i32, i32
  }
  func.func @transform_4(%arg0: i32) -> i32 {
    %c0_i32 = arith.constant 0 : i32
    %c0_i32_0 = arith.constant 0 : i32
    return %c0_i32 : i32
  }
  func.func @transform_5(%arg0: i32) -> i32 {
    %c0_i32 = arith.constant 0 : i32
    %c0_i32_0 = arith.constant 0 : i32
    return %c0_i32 : i32
  }
  func.func @transform_6(%arg0: i32) -> i32 {
    %c0_i32 = arith.constant 0 : i32
    %c0_i32_0 = arith.constant 0 : i32
    return %c0_i32 : i32
  }
  func.func @transform_7(%arg0: i32) -> (i32, i32, i32, i32) {
    %c0_i32 = arith.constant 0 : i32
    %c0_i32_0 = arith.constant 0 : i32
    %c0_i32_1 = arith.constant 0 : i32
    %c0_i32_2 = arith.constant 0 : i32
    return %arg0, %c0_i32, %c0_i32_0, %c0_i32_1 : i32, i32, i32, i32
  }
}

</mosaic_0001>

<llo_original>
// kernel: tpu_custom_call.1
$region0: #{tpu_custom_call.1}
  #allocation0 [shape = 'u32[]', space=smem, size = 0x4, offset = 0x4, fixed_abs, tag = 'smem constant byte address 0x4 - core index']
  #allocation1 [shape = 'u32[144,128]{1,0:T(1,128)}', space=vmem, size = 0x12000, scoped, tag = 'internal scratch']
  %s0 = inlined_call_operand.hbm [shape: f32[2,2,8,256], index: 0, kind: input, shape index: {}]
  %s1 = inlined_call_operand.hbm [shape: f32[2,2,8,256], index: 1, kind: input, shape index: {}]
  %s2 = inlined_call_operand.vmem [shape: f32[3,8,1], index: 2, kind: input, shape index: {}]
  %s3 = inlined_call_operand.vmem [shape: f32[9,1,256], index: 3, kind: input, shape index: {}]
  %s4 = inlined_call_operand.vmem [shape: f32[20], index: 4, kind: input, shape index: {}]
  %s5 = inlined_call_operand.vmem [shape: f32[436], index: 5, kind: input, shape index: {}]
  %s6 = inlined_call_operand.vmem [shape: f32[8], index: 6, kind: input, shape index: {}]
  %s7 = inlined_call_operand.hbm [shape: f32[2,2,8,256], index: 7, kind: output, shape index: {}]
  %s8 = sld [smem:[#allocation0]]
  $region81: #{tpu_custom_call.1} parent=0
    _
  %s10 = ssub.s32 1, %s8
  %s11 = scalar_select 0, %s10, %s8
  $region1: #{tpu_custom_call.1} parent=0
    #allocation2 [shape = 'u8[32768]{0}', space=vmem, size = 0x8000, scoped, tag = 'input window, operand 0']
    #allocation3 [shape = 's32[2]{0}', space=sflag, size = 0x8, scoped, tag = 'scoped memory for tpu_custom_call.1']
    #allocation4 [shape = 's32[2]{0}', space=sflag, size = 0x8, scoped, tag = 'scoped memory for tpu_custom_call.1']
    #allocation5 [shape = 's32[2]{0}', space=sflag, size = 0x8, scoped, tag = 'scoped memory for tpu_custom_call.1']
    #allocation6 [shape = 'u8[32768]{0}', space=vmem, size = 0x8000, scoped, tag = 'input window, operand 1']
    #allocation7 [shape = 's32[2]{0}', space=sflag, size = 0x8, scoped, tag = 'scoped memory for tpu_custom_call.1']
    #allocation8 [shape = 'u8[512]{0}', space=smem, size = 0x200, scoped, tag = 'input window, operand 4, single buffered']
    #allocation9 [shape = 'u8[2048]{0}', space=smem, size = 0x800, scoped, tag = 'input window, operand 5, single buffered']
    #allocation10 [shape = 's32[1]{0}', space=sflag, size = 0x4, scoped, tag = 'scoped memory for tpu_custom_call.1']
    #allocation11 [shape = 'u8[512]{0}', space=smem, size = 0x200, scoped, tag = 'input window, operand 6, single buffered']
    #allocation12 [shape = 'u8[32768]{0}', space=vmem, size = 0x8000, scoped, tag = 'output window, operand 0']
    %12 = vsyncpa [#allocation3], 0
    %s13 = scalar_lea.sflag [#allocation3], 1
    %14 = vsyncpa %s13, 0
    %15 = vsyncpa [#allocation7], 0
    %s16 = scalar_lea.sflag [#allocation7], 1
    %17 = vsyncpa %s16, 0
    %18 = vsyncpa [#allocation5], 0
    %19 = vsyncpa [#allocation10], 0
    %20 = vsyncpa [#allocation4], 0
    %s21 = scalar_lea.sflag [#allocation4], 1
    %22 = vsyncpa %s21, 0
    loop: start=0, step=1, limit=4
    $region2: #{tpu_custom_call.1} parent=1 // loop_pre_header
      _
    $region3: #{tpu_custom_call.1} parent=1 // loop_header
      %s24 = sphi 0, %s28
      %p25 = scmp.ge.s32.totalorder %s24, 4
      %s34 = sphi 0, %s36
      %s37 = sphi 0, %s34
      %s38 = sphi 0, %s37
      %s54 = sphi 0, %s38
      %s60 = sphi 0, %s62
      %s63 = sphi 0, %s60
      %s64 = sphi 0, %s63
      %s80 = sphi 0, %s64
      %s84 = sphi 0, %s84
      %s86 = sphi 0, %s84
      %s87 = sphi 0, %s86
      %s101 = sphi 0, %s87
      %s105 = sphi 0, %s105
      %s107 = sphi 0, %s105
      %s108 = sphi 0, %s107
      %s122 = sphi 0, %s108
      %s126 = sphi 0, %s126
      %s128 = sphi 0, %s126
      %s129 = sphi 0, %s128
      %s143 = sphi 0, %s129
      %s147 = sphi 0, %s147
      %s149 = sphi 0, %s147
      %s150 = sphi 0, %s149
      %s164 = sphi 0, %s150
      %s168 = sphi 0, %s168
      %s170 = sphi 0, %s168
      %s171 = sphi 0, %s170
      %s185 = sphi 0, %s171
      %s191 = sphi 0, %s193
      %s194 = sphi 0, %s191
      %s195 = sphi 0, %s194
      %s211 = sphi 0, %s195
    $region4: #{tpu_custom_call.1} parent=1 // loop_header_branch
      %27 = sbr.rel (%p25) target = $region8
    $region5: #{tpu_custom_call.1} parent=1 // loop_body
      %s29 = ssub.s32 %s24, 1
      %s30 = ssub.s32 %s24, 2
      %s31 = sadd.s32 %s24, 1
      %s32 = ssub.s32 %s24, %s31
      %p33 = scmp.eq.s32.totalorder %s32, 0
      %s35 = sadd.s32 %s34, 1
      %s36 = scalar_select %p33, %s34, %s35
      %p39 = pneg %p33
      %p40 = scmp.eq.s32.totalorder %s24, 1
      %p41 = por %p39, %p40
      %p42 = scmp.ne.s32.totalorder %s34, %s37
      %p43 = scmp.eq.s32.totalorder %s24, 0
      %p44 = por %p42, %p43
      %p45 = scmp.ne.s32.totalorder %s34, %s37
      %p46 = scmp.eq.s32.totalorder %s29, 1
      %p47 = por %p45, %p46
      %p48 = scmp.ne.s32.totalorder %s37, %s38
      %p49 = scmp.eq.s32.totalorder %s29, 0
      %p50 = por %p48, %p49
      %p51 = scmp.ne.s32.totalorder %s37, %s38
      %p52 = scmp.eq.s32.totalorder %s30, 1
      %p53 = por %p51, %p52
      %p55 = scmp.ne.s32.totalorder %s38, %s54
      %p56 = scmp.eq.s32.totalorder %s30, 0
      %p57 = por %p55, %p56
      %s58 = ssub.s32 %s24, %s31
      %p59 = scmp.eq.s32.totalorder %s58, 0
      %s61 = sadd.s32 %s60, 1
      %s62 = scalar_select %p59, %s60, %s61
      %p65 = pneg %p59
      %p66 = scmp.eq.s32.totalorder %s24, 1
      %p67 = por %p65, %p66
      %p68 = scmp.ne.s32.totalorder %s60, %s63
      %p69 = scmp.eq.s32.totalorder %s24, 0
      %p70 = por %p68, %p69
      %p71 = scmp.ne.s32.totalorder %s60, %s63
      %p72 = scmp.eq.s32.totalorder %s29, 1
      %p73 = por %p71, %p72
      %p74 = scmp.ne.s32.totalorder %s63, %s64
      %p75 = scmp.eq.s32.totalorder %s29, 0
      %p76 = por %p74, %p75
      %p77 = scmp.ne.s32.totalorder %s63, %s64
      %p78 = scmp.eq.s32.totalorder %s30, 1
      %p79 = por %p77, %p78
      %p81 = scmp.ne.s32.totalorder %s64, %s80
      %p82 = scmp.eq.s32.totalorder %s30, 0
      %p83 = por %p81, %p82
      %s85 = sadd.s32 %s84, 1
      %p88 = scmp.eq.s32.totalorder %s24, 1
      %p89 = scmp.ne.s32.totalorder %s84, %s86
      %p90 = scmp.eq.s32.totalorder %s24, 0
      %p91 = por %p89, %p90
      %p92 = scmp.ne.s32.totalorder %s84, %s86
      %p93 = scmp.eq.s32.totalorder %s29, 1
      %p94 = por %p92, %p93
      %p95 = scmp.ne.s32.totalorder %s86, %s87
      %p96 = scmp.eq.s32.totalorder %s29, 0
      %p97 = por %p95, %p96
      %p98 = scmp.ne.s32.totalorder %s86, %s87
      %p99 = scmp.eq.s32.totalorder %s30, 1
      %p100 = por %p98, %p99
      %p102 = scmp.ne.s32.totalorder %s87, %s101
      %p103 = scmp.eq.s32.totalorder %s30, 0
      %p104 = por %p102, %p103
      %s106 = sadd.s32 %s105, 1
      %p109 = scmp.eq.s32.totalorder %s24, 1
      %p110 = scmp.ne.s32.totalorder %s105, %s107
      %p111 = scmp.eq.s32.totalorder %s24, 0
      %p112 = por %p110, %p111
      %p113 = scmp.ne.s32.totalorder %s105, %s107
      %p114 = scmp.eq.s32.totalorder %s29, 1
      %p115 = por %p113, %p114
      %p116 = scmp.ne.s32.totalorder %s107, %s108
      %p117 = scmp.eq.s32.totalorder %s29, 0
      %p118 = por %p116, %p117
      %p119 = scmp.ne.s32.totalorder %s107, %s108
      %p120 = scmp.eq.s32.totalorder %s30, 1
      %p121 = por %p119, %p120
      %p123 = scmp.ne.s32.totalorder %s108, %s122
      %p124 = scmp.eq.s32.totalorder %s30, 0
      %p125 = por %p123, %p124
      %s127 = sadd.s32 %s126, 1
      %p130 = scmp.eq.s32.totalorder %s24, 1
      %p131 = scmp.ne.s32.totalorder %s126, %s128
      %p132 = scmp.eq.s32.totalorder %s24, 0
      %p133 = por %p131, %p132
      %p134 = scmp.ne.s32.totalorder %s126, %s128
      %p135 = scmp.eq.s32.totalorder %s29, 1
      %p136 = por %p134, %p135
      %p137 = scmp.ne.s32.totalorder %s128, %s129
      %p138 = scmp.eq.s32.totalorder %s29, 0
      %p139 = por %p137, %p138
      %p140 = scmp.ne.s32.totalorder %s128, %s129
      %p141 = scmp.eq.s32.totalorder %s30, 1
      %p142 = por %p140, %p141
      %p144 = scmp.ne.s32.totalorder %s129, %s143
      %p145 = scmp.eq.s32.totalorder %s30, 0
      %p146 = por %p144, %p145
      %s148 = sadd.s32 %s147, 1
      %p151 = scmp.eq.s32.totalorder %s24, 1
      %p152 = scmp.ne.s32.totalorder %s147, %s149
      %p153 = scmp.eq.s32.totalorder %s24, 0
      %p154 = por %p152, %p153
      %p155 = scmp.ne.s32.totalorder %s147, %s149
      %p156 = scmp.eq.s32.totalorder %s29, 1
      %p157 = por %p155, %p156
      %p158 = scmp.ne.s32.totalorder %s149, %s150
      %p159 = scmp.eq.s32.totalorder %s29, 0
      %p160 = por %p158, %p159
      %p161 = scmp.ne.s32.totalorder %s149, %s150
      %p162 = scmp.eq.s32.totalorder %s30, 1
      %p163 = por %p161, %p162
      %p165 = scmp.ne.s32.totalorder %s150, %s164
      %p166 = scmp.eq.s32.totalorder %s30, 0
      %p167 = por %p165, %p166
      %s169 = sadd.s32 %s168, 1
      %p172 = scmp.eq.s32.totalorder %s24, 1
      %p173 = scmp.ne.s32.totalorder %s168, %s170
      %p174 = scmp.eq.s32.totalorder %s24, 0
      %p175 = por %p173, %p174
      %p176 = scmp.ne.s32.totalorder %s168, %s170
      %p177 = scmp.eq.s32.totalorder %s29, 1
      %p178 = por %p176, %p177
      %p179 = scmp.ne.s32.totalorder %s170, %s171
      %p180 = scmp.eq.s32.totalorder %s29, 0
      %p181 = por %p179, %p180
      %p182 = scmp.ne.s32.totalorder %s170, %s171
      %p183 = scmp.eq.s32.totalorder %s30, 1
      %p184 = por %p182, %p183
      %p186 = scmp.ne.s32.totalorder %s171, %s185
      %p187 = scmp.eq.s32.totalorder %s30, 0
      %p188 = por %p186, %p187
      %s189 = ssub.s32 %s24, %s31
      %p190 = scmp.eq.s32.totalorder %s189, 0
      %s192 = sadd.s32 %s191, 1
      %s193 = scalar_select %p190, %s191, %s192
      %p196 = pneg %p190
      %p197 = scmp.eq.s32.totalorder %s24, 1
      %p198 = por %p196, %p197
      %p199 = scmp.ne.s32.totalorder %s191, %s194
      %p200 = scmp.eq.s32.totalorder %s24, 0
      %p201 = por %p199, %p200
      %p202 = scmp.ne.s32.totalorder %s191, %s194
      %p203 = scmp.eq.s32.totalorder %s29, 1
      %p204 = por %p202, %p203
      %p205 = scmp.ne.s32.totalorder %s194, %s195
      %p206 = scmp.eq.s32.totalorder %s29, 0
      %p207 = por %p205, %p206
      %p208 = scmp.ne.s32.totalorder %s194, %s195
      %p209 = scmp.eq.s32.totalorder %s30, 1
      %p210 = por %p208, %p209
      %p212 = scmp.ne.s32.totalorder %s195, %s211
      %p213 = scmp.eq.s32.totalorder %s30, 0
      %p214 = por %p212, %p213
      %p215 = scmp.le.s32.totalorder 1, %s24
      %p216 = scmp.lt.s32.totalorder %s24, 3
      %p217 = pnand %p215, %p216
      %p218 = pneg %p217
      // Predicated region
      $region9: #{tpu_custom_call.1} parent=5 // pred_check
        _
      $region10: #{tpu_custom_call.1} parent=5 // pred_check_branch
        %220 = sbr.rel (%p217) target = $region12
      $region11: #{tpu_custom_call.1} parent=5 // pred_region
        %s221 = ssub.s32 %s24, 1
        // Predicated region
        $region13: #{tpu_custom_call.1} parent=11 // pred_check
          %p222 = pneg %p97
        $region14: #{tpu_custom_call.1} parent=11 // pred_check_branch
          %224 = sbr.rel (%p222) target = $region16
        $region15: #{tpu_custom_call.1} parent=11 // pred_region
          _
        $region16: #{tpu_custom_call.1} parent=11 // pred_fallthru
          _
        // Predicated region
        $region17: #{tpu_custom_call.1} parent=11 // pred_check
          %p225 = pneg %p118
        $region18: #{tpu_custom_call.1} parent=11 // pred_check_branch
          %227 = sbr.rel (%p225) target = $region20
        $region19: #{tpu_custom_call.1} parent=11 // pred_region
          _
        $region20: #{tpu_custom_call.1} parent=11 // pred_fallthru
          _
        // Predicated region
        $region21: #{tpu_custom_call.1} parent=11 // pred_check
          %p228 = pneg %p139
        $region22: #{tpu_custom_call.1} parent=11 // pred_check_branch
          %230 = sbr.rel (%p228) target = $region24
        $region23: #{tpu_custom_call.1} parent=11 // pred_region
          %s232 = ssub.s32 16, 16
          %233 = vsyncadd [#allocation5], %s232
          %s235 = sshll.u32 %s4, 4
          %s236 = int_to_ptr.vmem [resolvable:$true] %s235
          %238 = dma.vmem_to_smem %s236, 16, [#allocation8], [#allocation5]
        $region24: #{tpu_custom_call.1} parent=11 // pred_fallthru
          _
        // Predicated region
        $region25: #{tpu_custom_call.1} parent=11 // pred_check
          %p239 = pneg %p160
        $region26: #{tpu_custom_call.1} parent=11 // pred_check_branch
          %241 = sbr.rel (%p239) target = $region28
        $region27: #{tpu_custom_call.1} parent=11 // pred_region
          %s243 = ssub.s32 64, 64
          %244 = vsyncadd [#allocation10], %s243
          %s246 = sshll.u32 %s5, 4
          %s247 = int_to_ptr.vmem [resolvable:$true] %s246
          %249 = dma.vmem_to_smem %s247, 64, [#allocation9], [#allocation10]
        $region28: #{tpu_custom_call.1} parent=11 // pred_fallthru
          _
        // Predicated region
        $region29: #{tpu_custom_call.1} parent=11 // pred_check
          %p250 = pneg %p181
        $region30: #{tpu_custom_call.1} parent=11 // pred_check_branch
          %252 = sbr.rel (%p250) target = $region32
        $region31: #{tpu_custom_call.1} parent=11 // pred_region
          %s254 = ssub.s32 16, 16
          %255 = vsyncadd [#allocation10], %s254
          %s257 = sshll.u32 %s6, 4
          %s258 = int_to_ptr.vmem [resolvable:$true] %s257
          %260 = dma.vmem_to_smem %s258, 16, [#allocation11], [#allocation10]
        $region32: #{tpu_custom_call.1} parent=11 // pred_fallthru
          _
      $region12: #{tpu_custom_call.1} parent=5 // pred_fallthru
        _
      %p261 = scmp.lt.s32.totalorder %s24, 2
      // Predicated region
      $region33: #{tpu_custom_call.1} parent=5 // pred_check
        %p262 = pneg %p261
      $region34: #{tpu_custom_call.1} parent=5 // pred_check_branch
        %264 = sbr.rel (%p262) target = $region36
      $region35: #{tpu_custom_call.1} parent=5 // pred_region
        // Predicated region
        $region37: #{tpu_custom_call.1} parent=35 // pred_check
          %p265 = pneg %p44
        $region38: #{tpu_custom_call.1} parent=35 // pred_check_branch
          %267 = sbr.rel (%p265) target = $region40
        $region39: #{tpu_custom_call.1} parent=35 // pred_region
          %s268 = sand.u32 %s34, 1
          %s269 = scalar_lea.sflag [#allocation3], %s268
          %s270 = sand.u32 %s34, 1
          %s271 = smul.addr %s270, 32
          %s272 = scalar_lea.vmem [#allocation2], %s271
          %s274 = ssub.s32 512, 512
          %275 = vsyncadd %s269, %s274
          %s276 = smul.addr %s24, 4
          %s277 = smul.addr %s276, 128
          %s278 = scalar_lea.hbm %s0, %s277
          %s279 = sshll.u32 %s272, 4
          %s280 = int_to_ptr.vmem [resolvable:$true] %s279
          %285 = dma.hbm_to_vmem [thread:$0]  %s278, 512, %s280, %s269, 256, 256, 16
        $region40: #{tpu_custom_call.1} parent=35 // pred_fallthru
          _
        // Predicated region
        $region41: #{tpu_custom_call.1} parent=35 // pred_check
          %p286 = pneg %p70
        $region42: #{tpu_custom_call.1} parent=35 // pred_check_branch
          %288 = sbr.rel (%p286) target = $region44
        $region43: #{tpu_custom_call.1} parent=35 // pred_region
          %s289 = sand.u32 %s60, 1
          %s290 = scalar_lea.sflag [#allocation7], %s289
          %s291 = sand.u32 %s60, 1
          %s292 = smul.addr %s291, 32
          %s293 = scalar_lea.vmem [#allocation6], %s292
          %s295 = ssub.s32 512, 512
          %296 = vsyncadd %s290, %s295
          %s297 = smul.addr %s24, 4
          %s298 = smul.addr %s297, 128
          %s299 = scalar_lea.hbm %s1, %s298
          %s300 = sshll.u32 %s293, 4
          %s301 = int_to_ptr.vmem [resolvable:$true] %s300
          %306 = dma.hbm_to_vmem [thread:$0]  %s299, 512, %s301, %s290, 256, 256, 16
        $region44: #{tpu_custom_call.1} parent=35 // pred_fallthru
          _
      $region36: #{tpu_custom_call.1} parent=5 // pred_fallthru
        _
      %p307 = scmp.le.s32.totalorder 1, %s24
      %p308 = scmp.lt.s32.totalorder %s24, 3
      %p309 = pnand %p307, %p308
      %p310 = pneg %p309
      // Predicated region
      $region45: #{tpu_custom_call.1} parent=5 // pred_check
        _
      $region46: #{tpu_custom_call.1} parent=5 // pred_check_branch
        %312 = sbr.rel (%p309) target = $region48
      $region47: #{tpu_custom_call.1} parent=5 // pred_region
        %s313 = ssub.s32 %s24, 1
        %s314 = sand.u32 %s37, 1
        %s315 = scalar_lea.sflag [#allocation3], %s314
        %s316 = sand.u32 %s37, 1
        %s317 = smul.addr %s316, 32
        %s318 = scalar_lea.vmem [#allocation2], %s317
        // Predicated region
        $region49: #{tpu_custom_call.1} parent=47 // pred_check
          %p319 = pneg %p50
        $region50: #{tpu_custom_call.1} parent=47 // pred_check_branch
          %321 = sbr.rel (%p319) target = $region52
        $region51: #{tpu_custom_call.1} parent=47 // pred_region
          %322 = dma.done %s315, 512
        $region52: #{tpu_custom_call.1} parent=47 // pred_fallthru
          _
        %s323 = sand.u32 %s63, 1
        %s324 = scalar_lea.sflag [#allocation7], %s323
        %s325 = sand.u32 %s63, 1
        %s326 = smul.addr %s325, 32
        %s327 = scalar_lea.vmem [#allocation6], %s326
        // Predicated region
        $region53: #{tpu_custom_call.1} parent=47 // pred_check
          %p328 = pneg %p76
        $region54: #{tpu_custom_call.1} parent=47 // pred_check_branch
          %330 = sbr.rel (%p328) target = $region56
        $region55: #{tpu_custom_call.1} parent=47 // pred_region
          %331 = dma.done %s324, 512
        $region56: #{tpu_custom_call.1} parent=47 // pred_fallthru
          _
        // Predicated region
        $region57: #{tpu_custom_call.1} parent=47 // pred_check
          %p332 = pneg %p139
        $region58: #{tpu_custom_call.1} parent=47 // pred_check_branch
          %334 = sbr.rel (%p332) target = $region60
        $region59: #{tpu_custom_call.1} parent=47 // pred_region
          %335 = dma.done [#allocation5], 16
        $region60: #{tpu_custom_call.1} parent=47 // pred_fallthru
          _
        // Predicated region
        $region61: #{tpu_custom_call.1} parent=47 // pred_check
          %p336 = pneg %p160
        $region62: #{tpu_custom_call.1} parent=47 // pred_check_branch
          %338 = sbr.rel (%p336) target = $region64
        $region63: #{tpu_custom_call.1} parent=47 // pred_region
          %339 = dma.done [#allocation10], 64
        $region64: #{tpu_custom_call.1} parent=47 // pred_fallthru
          _
        // Predicated region
        $region65: #{tpu_custom_call.1} parent=47 // pred_check
          %p340 = pneg %p181
        $region66: #{tpu_custom_call.1} parent=47 // pred_check_branch
          %342 = sbr.rel (%p340) target = $region68
        $region67: #{tpu_custom_call.1} parent=47 // pred_region
          %343 = dma.done [#allocation10], 16
        $region68: #{tpu_custom_call.1} parent=47 // pred_fallthru
          _
        %344 = sfence
        %s345 = sand.u32 %s37, 1
        %s346 = scalar_lea.sflag [#allocation3], %s345
        %s347 = sand.u32 %s37, 1
        %s348 = smul.addr %s347, 32
        %s349 = scalar_lea.vmem [#allocation2], %s348
        %p350 = pneg %p50
        %p351 = pneg %p47
        %s352 = sand.u32 %s63, 1
        %s353 = scalar_lea.sflag [#allocation7], %s352
        %s354 = sand.u32 %s63, 1
        %s355 = smul.addr %s354, 32
        %s356 = scalar_lea.vmem [#allocation6], %s355
        %p357 = pneg %p76
        %p358 = pneg %p73
        %p359 = pneg %p97
        %p360 = pneg %p94
        %p361 = pneg %p118
        %p362 = pneg %p115
        %p363 = pneg %p139
        %p364 = pneg %p136
        %p365 = pneg %p160
        %p366 = pneg %p157
        %p367 = pneg %p181
        %p368 = pneg %p178
        %p369 = pneg %p207
        %p370 = pneg %p204
        %s371 = sand.u32 %s194, 1
        %s372 = scalar_lea.sflag [#allocation4], %s371
        %s373 = sand.u32 %s194, 1
        %s374 = smul.addr %s373, 32
        %s375 = scalar_lea.vmem [#allocation12], %s374
        %v376 = vld [vmem:[%s2] sm:$0xff]
        %378 = vset.pattern.permute.xlu0 0
        %379 = vperm.xlu0 %378, %v376
        %v380 = vpop.permute.xlu0 %379
        %s382 = scalar_lea.vmem %s2, 16
        %v383 = vld [vmem:[%s382] sm:$0xff]
        %385 = vset.pattern.permute.xlu0 0
        %386 = vperm.xlu0 %385, %v383
        %v387 = vpop.permute.xlu0 %386
        %v389 = vld [vmem:[%s3] sm:$0x3]
        %v391 = vlaneseq
        %v392 = vshrl.u32 %v391, 7
        %v393 = vsub.s32 0, %v392
        %v394 = vrot.slane %v389, %v393
        %v395 = vlaneseq
        %v396 = vshrl.u32 %v395, 7
        %v397 = vsub.s32 1, %v396
        %v398 = vrot.slane %v389, %v397
        %s401 = scalar_lea.vmem %s3, 2
        %v402 = vld [vmem:[%s401] sm:$0x3]
        %v404 = vlaneseq
        %v405 = vshrl.u32 %v404, 7
        %v406 = vsub.s32 0, %v405
        %v407 = vrot.slane %v402, %v406
        %v408 = vlaneseq
        %v409 = vshrl.u32 %v408, 7
        %v410 = vsub.s32 1, %v409
        %v411 = vrot.slane %v402, %v410
        %s414 = scalar_lea.vmem %s3, 4
        %v415 = vld [vmem:[%s414] sm:$0x3]
        %v417 = vlaneseq
        %v418 = vshrl.u32 %v417, 7
        %v419 = vsub.s32 0, %v418
        %v420 = vrot.slane %v415, %v419
        %v421 = vlaneseq
        %v422 = vshrl.u32 %v421, 7
        %v423 = vsub.s32 1, %v422
        %v424 = vrot.slane %v415, %v423
        %s427 = scalar_lea.vmem %s3, 6
        %v428 = vld [vmem:[%s427] sm:$0x3]
        %v430 = vlaneseq
        %v431 = vshrl.u32 %v430, 7
        %v432 = vsub.s32 0, %v431
        %v433 = vrot.slane %v428, %v432
        %v434 = vlaneseq
        %v435 = vshrl.u32 %v434, 7
        %v436 = vsub.s32 1, %v435
        %v437 = vrot.slane %v428, %v436
        %s440 = scalar_lea.vmem %s3, 10
        %v441 = vld [vmem:[%s440] sm:$0x3]
        %v443 = vlaneseq
        %v444 = vshrl.u32 %v443, 7
        %v445 = vsub.s32 0, %v444
        %v446 = vrot.slane %v441, %v445
        %v447 = vlaneseq
        %v448 = vshrl.u32 %v447, 7
        %v449 = vsub.s32 1, %v448
        %v450 = vrot.slane %v441, %v449
        %s453 = scalar_lea.vmem %s3, 12
        %v454 = vld [vmem:[%s453] sm:$0x3]
        %v456 = vlaneseq
        %v457 = vshrl.u32 %v456, 7
        %v458 = vsub.s32 0, %v457
        %v459 = vrot.slane %v454, %v458
        %v460 = vlaneseq
        %v461 = vshrl.u32 %v460, 7
        %v462 = vsub.s32 1, %v461
        %v463 = vrot.slane %v454, %v462
        %s466 = scalar_lea.vmem %s3, 14
        %v467 = vld [vmem:[%s466] sm:$0x3]
        %v469 = vlaneseq
        %v470 = vshrl.u32 %v469, 7
        %v471 = vsub.s32 0, %v470
        %v472 = vrot.slane %v467, %v471
        %v473 = vlaneseq
        %v474 = vshrl.u32 %v473, 7
        %v475 = vsub.s32 1, %v474
        %v476 = vrot.slane %v467, %v475
        %s479 = scalar_lea.vmem %s3, 16
        %v480 = vld [vmem:[%s479] sm:$0x3]
        %v482 = vlaneseq
        %v483 = vshrl.u32 %v482, 7
        %v484 = vsub.s32 0, %v483
        %v485 = vrot.slane %v480, %v484
        %v486 = vlaneseq
        %v487 = vshrl.u32 %v486, 7
        %v488 = vsub.s32 1, %v487
        %v489 = vrot.slane %v480, %v488
        %v492 = vld [vmem:[%s318] sm:$0xff]
        %v493 = vld [vmem:[%s318 + $0x8] sm:$0xff]
        %s494 = scalar_lea.vmem %s318, 16 [#allocation2]
        %v495 = vld [vmem:[%s494] sm:$0xff]
        %v496 = vld [vmem:[%s494 + $0x8] sm:$0xff]
        %v497 = vld [vmem:[%s327] sm:$0xff]
        %v498 = vld [vmem:[%s327 + $0x8] sm:$0xff]
        %s499 = scalar_lea.vmem %s327, 16 [#allocation6]
        %v500 = vld [vmem:[%s499] sm:$0xff]
        %v501 = vld [vmem:[%s499 + $0x8] sm:$0xff]
        %v502 = vadd.f32 %v492, %v493
        %503 = vadd.xlane.f32.xlu0 %v502
        %v504 = vpop.xlane.xlu0 %503
        %v505 = vrot.slane %v504, 4
        %v506 = vadd.f32 %v504, %v505
        %v507 = vrot.slane %v506, 2
        %v508 = vadd.f32 %v506, %v507
        %v509 = vrot.slane %v508, 1
        %v510 = vadd.f32 %v508, %v509
        %s511 = vtos %v510
        %v512 = vrcp.pop 2048.0
        %s513 = vtos %v512
        %s514 = smul.f32 %s511, %s513
        %v515 = vstv %s514
        %v516 = vsub.f32 %v492, %v515
        %v517 = vsub.f32 %v493, %v515
        %v518 = vmul.f32 %v516, %v516
        %v519 = vmul.f32 %v517, %v517
        %v520 = vadd.f32 %v518, %v519
        %521 = vadd.xlane.f32.xlu0 %v520
        %v522 = vpop.xlane.xlu0 %521
        %v523 = vrot.slane %v522, 4
        %v524 = vadd.f32 %v522, %v523
        %v525 = vrot.slane %v524, 2
        %v526 = vadd.f32 %v524, %v525
        %v527 = vrot.slane %v526, 1
        %v528 = vadd.f32 %v526, %v527
        %s529 = vtos %v528
        %v530 = vrcp.pop 2048.0
        %s531 = vtos %v530
        %s532 = smul.f32 %s529, %s531
        %s533 = sadd.f32 %s532, 1e-05
        %v534 = vstv %s533
        %v535 = vrsqrt.pop %v534
        %s536 = vtos %v535
        %s537 = sld [smem:[#allocation8]]
        %s538 = smul.f32 %s536, %s537
        %v539 = vstv %s538
        %v540 = vmul.f32 %v516, %v539
        %v541 = vmul.f32 %v517, %v539
        %s542 = sld [smem:[#allocation8 + $0x4]]
        %v543 = vstv %s542
        %v544 = vadd.f32 %v540, %v543
        %v545 = vadd.f32 %v541, %v543
        %v546 = vmul.f32 %v544, 0.01
        %v547 = vmul.f32 %v545, 0.01
        %v548 = vmax.f32 %v544, %v546
        %v549 = vmax.f32 %v545, %v547
        %v550 = vadd.f32 %v495, %v496
        %551 = vadd.xlane.f32.xlu0 %v550
        %v552 = vpop.xlane.xlu0 %551
        %v553 = vrot.slane %v552, 4
        %v554 = vadd.f32 %v552, %v553
        %v555 = vrot.slane %v554, 2
        %v556 = vadd.f32 %v554, %v555
        %v557 = vrot.slane %v556, 1
        %v558 = vadd.f32 %v556, %v557
        %s559 = vtos %v558
        %v560 = vrcp.pop 2048.0
        %s561 = vtos %v560
        %s562 = smul.f32 %s559, %s561
        %v563 = vstv %s562
        %v564 = vsub.f32 %v495, %v563
        %v565 = vsub.f32 %v496, %v563
        %v566 = vmul.f32 %v564, %v564
        %v567 = vmul.f32 %v565, %v565
        %v568 = vadd.f32 %v566, %v567
        %569 = vadd.xlane.f32.xlu0 %v568
        %v570 = vpop.xlane.xlu0 %569
        %v571 = vrot.slane %v570, 4
        %v572 = vadd.f32 %v570, %v571
        %v573 = vrot.slane %v572, 2
        %v574 = vadd.f32 %v572, %v573
        %v575 = vrot.slane %v574, 1
        %v576 = vadd.f32 %v574, %v575
        %s577 = vtos %v576
        %v578 = vrcp.pop 2048.0
        %s579 = vtos %v578
        %s580 = smul.f32 %s577, %s579
        %s581 = sadd.f32 %s580, 1e-05
        %v582 = vstv %s581
        %v583 = vrsqrt.pop %v582
        %s584 = vtos %v583
        %s585 = sld [smem:[#allocation8 + $0x1]]
        %s586 = smul.f32 %s584, %s585
        %v587 = vstv %s586
        %v588 = vmul.f32 %v564, %v587
        %v589 = vmul.f32 %v565, %v587
        %s590 = sld [smem:[#allocation8 + $0x5]]
        %v591 = vstv %s590
        %v592 = vadd.f32 %v588, %v591
        %v593 = vadd.f32 %v589, %v591
        %v594 = vmul.f32 %v592, 0.01
        %v595 = vmul.f32 %v593, 0.01
        %v596 = vmax.f32 %v592, %v594
        %v597 = vmax.f32 %v593, %v595
        %v598 = vadd.f32 %v497, %v498
        %599 = vadd.xlane.f32.xlu0 %v598
        %v600 = vpop.xlane.xlu0 %599
        %v601 = vrot.slane %v600, 4
        %v602 = vadd.f32 %v600, %v601
        %v603 = vrot.slane %v602, 2
        %v604 = vadd.f32 %v602, %v603
        %v605 = vrot.slane %v604, 1
        %v606 = vadd.f32 %v604, %v605
        %s607 = vtos %v606
        %v608 = vrcp.pop 2048.0
        %s609 = vtos %v608
        %s610 = smul.f32 %s607, %s609
        %v611 = vstv %s610
        %v612 = vsub.f32 %v497, %v611
        %v613 = vsub.f32 %v498, %v611
        %v614 = vmul.f32 %v612, %v612
        %v615 = vmul.f32 %v613, %v613
        %v616 = vadd.f32 %v614, %v615
        %617 = vadd.xlane.f32.xlu0 %v616
        %v618 = vpop.xlane.xlu0 %617
        %v619 = vrot.slane %v618, 4
        %v620 = vadd.f32 %v618, %v619
        %v621 = vrot.slane %v620, 2
        %v622 = vadd.f32 %v620, %v621
        %v623 = vrot.slane %v622, 1
        %v624 = vadd.f32 %v622, %v623
        %s625 = vtos %v624
        %v626 = vrcp.pop 2048.0
        %s627 = vtos %v626
        %s628 = smul.f32 %s625, %s627
        %s629 = sadd.f32 %s628, 1e-05
        %v630 = vstv %s629
        %v631 = vrsqrt.pop %v630
        %s632 = vtos %v631
        %s633 = sld [smem:[#allocation8 + $0x2]]
        %s634 = smul.f32 %s632, %s633
        %v635 = vstv %s634
        %v636 = vmul.f32 %v612, %v635
        %v637 = vmul.f32 %v613, %v635
        %s638 = sld [smem:[#allocation8 + $0x6]]
        %v639 = vstv %s638
        %v640 = vadd.f32 %v636, %v639
        %v641 = vadd.f32 %v637, %v639
        %v642 = vmul.f32 %v640, 0.01
        %v643 = vmul.f32 %v641, 0.01
        %v644 = vmax.f32 %v640, %v642
        %v645 = vmax.f32 %v641, %v643
        %v646 = vadd.f32 %v500, %v501
        %647 = vadd.xlane.f32.xlu0 %v646
        %v648 = vpop.xlane.xlu0 %647
        %v649 = vrot.slane %v648, 4
        %v650 = vadd.f32 %v648, %v649
        %v651 = vrot.slane %v650, 2
        %v652 = vadd.f32 %v650, %v651
        %v653 = vrot.slane %v652, 1
        %v654 = vadd.f32 %v652, %v653
        %s655 = vtos %v654
        %v656 = vrcp.pop 2048.0
        %s657 = vtos %v656
        %s658 = smul.f32 %s655, %s657
        %v659 = vstv %s658
        %v660 = vsub.f32 %v500, %v659
        %v661 = vsub.f32 %v501, %v659
        %v662 = vmul.f32 %v660, %v660
        %v663 = vmul.f32 %v661, %v661
        %v664 = vadd.f32 %v662, %v663
        %665 = vadd.xlane.f32.xlu0 %v664
        %v666 = vpop.xlane.xlu0 %665
        %v667 = vrot.slane %v666, 4
        %v668 = vadd.f32 %v666, %v667
        %v669 = vrot.slane %v668, 2
        %v670 = vadd.f32 %v668, %v669
        %v671 = vrot.slane %v670, 1
        %v672 = vadd.f32 %v670, %v671
        %s673 = vtos %v672
        %v674 = vrcp.pop 2048.0
        %s675 = vtos %v674
        %s676 = smul.f32 %s673, %s675
        %s677 = sadd.f32 %s676, 1e-05
        %v678 = vstv %s677
        %v679 = vrsqrt.pop %v678
        %s680 = vtos %v679
        %s681 = sld [smem:[#allocation8 + $0x3]]
        %s682 = smul.f32 %s680, %s681
        %v683 = vstv %s682
        %v684 = vmul.f32 %v660, %v683
        %v685 = vmul.f32 %v661, %v683
        %s686 = sld [smem:[#allocation8 + $0x7]]
        %v687 = vstv %s686
        %v688 = vadd.f32 %v684, %v687
        %v689 = vadd.f32 %v685, %v687
        %v690 = vmul.f32 %v688, 0.01
        %v691 = vmul.f32 %v689, 0.01
        %v692 = vmax.f32 %v688, %v690
        %v693 = vmax.f32 %v689, %v691
        %s694 = sld [smem:[#allocation11]]
        %v695 = vstv %s694
        %s696 = sld [smem:[#allocation11 + $0x1]]
        %v697 = vstv %s696
        %v698 = vrot.slane %v548, 7
        %v699 = vrot.slane %v549, 7
        %v700 = vmul.f32 %v698, %v380
        %v701 = vmul.f32 %v699, %v380
        %v702 = vrot.slane %v548, 1
        %v703 = vrot.slane %v549, 1
        %v704 = vmul.f32 %v702, %v387
        %v705 = vmul.f32 %v703, %v387
        %706 = vrot.lane.b32.xlu0 %v700, 17
        %v707 = vpop.permute.xlu0 %706
        %708 = vrot.lane.b32.xlu0 %v701, 17
        %v709 = vpop.permute.xlu0 %708
        %v710 = vlaneseq
        %v711 = vand.u32 %v710, 127
        %vm712 = vcmp.lt.s32.totalorder %v711, 17
        %v713 = vsel %vm712, %v707, %v709
        %v714 = vsel %vm712, %v709, %v707
        %v715 = vmul.f32 %v714, %v394
        %v716 = vmul.f32 %v713, %v398
        %s717 = sld [smem:[#allocation9]]
        %v718 = vstv %s717
        %v719 = vmul.f32 %v718, %v715
        %v720 = vmul.f32 %v718, %v716
        %v721 = vadd.f32 %v695, %v719
        %v722 = vadd.f32 %v695, %v720
        %s723 = sld [smem:[#allocation9 + $0x6c]]
        %v724 = vstv %s723
        %v725 = vmul.f32 %v724, %v715
        %v726 = vmul.f32 %v724, %v716
        %v727 = vadd.f32 %v697, %v725
        %v728 = vadd.f32 %v697, %v726
        %729 = vrot.lane.b32.xlu0 %v548, 17
        %v730 = vpop.permute.xlu0 %729
        %731 = vrot.lane.b32.xlu0 %v549, 17
        %v732 = vpop.permute.xlu0 %731
        %v733 = vsel %vm712, %v730, %v732
        %v734 = vsel %vm712, %v732, %v730
        %v735 = vmul.f32 %v734, %v394
        %v736 = vmul.f32 %v733, %v398
        %s737 = sld [smem:[#allocation9 + $0x9]]
        %v738 = vstv %s737
        %v739 = vmul.f32 %v738, %v735
        %v740 = vmul.f32 %v738, %v736
        %v741 = vadd.f32 %v721, %v739
        %v742 = vadd.f32 %v722, %v740
        %s743 = sld [smem:[#allocation9 + $0x75]]
        %v744 = vstv %s743
        %v745 = vmul.f32 %v744, %v735
        %v746 = vmul.f32 %v744, %v736
        %v747 = vadd.f32 %v727, %v745
        %v748 = vadd.f32 %v728, %v746
        %749 = vrot.lane.b32.xlu0 %v704, 17
        %v750 = vpop.permute.xlu0 %749
        %751 = vrot.lane.b32.xlu0 %v705, 17
        %v752 = vpop.permute.xlu0 %751
        %v753 = vsel %vm712, %v750, %v752
        %v754 = vsel %vm712, %v752, %v750
        %v755 = vmul.f32 %v754, %v394
        %v756 = vmul.f32 %v753, %v398
        %s757 = sld [smem:[#allocation9 + $0x12]]
        %v758 = vstv %s757
        %v759 = vmul.f32 %v758, %v755
        %v760 = vmul.f32 %v758, %v756
        %v761 = vadd.f32 %v741, %v759
        %v762 = vadd.f32 %v742, %v760
        %s763 = sld [smem:[#allocation9 + $0x7e]]
        %v764 = vstv %s763
        %v765 = vmul.f32 %v764, %v755
        %v766 = vmul.f32 %v764, %v756
        %v767 = vadd.f32 %v747, %v765
        %v768 = vadd.f32 %v748, %v766
        %769 = vrot.lane.b32.xlu0 %v700, 16
        %v770 = vpop.permute.xlu0 %769
        %771 = vrot.lane.b32.xlu0 %v701, 16
        %v772 = vpop.permute.xlu0 %771
        %vm773 = vcmp.lt.s32.totalorder %v711, 16
        %v774 = vsel %vm773, %v770, %v772
        %v775 = vsel %vm773, %v772, %v770
        %v776 = vmul.f32 %v775, %v407
        %v777 = vmul.f32 %v774, %v411
        %s778 = sld [smem:[#allocation9 + $0x1]]
        %v779 = vstv %s778
        %v780 = vmul.f32 %v779, %v776
        %v781 = vmul.f32 %v779, %v777
        %v782 = vadd.f32 %v761, %v780
        %v783 = vadd.f32 %v762, %v781
        %s784 = sld [smem:[#allocation9 + $0x6d]]
        %v785 = vstv %s784
        %v786 = vmul.f32 %v785, %v776
        %v787 = vmul.f32 %v785, %v777
        %v788 = vadd.f32 %v767, %v786
        %v789 = vadd.f32 %v768, %v787
        %790 = vrot.lane.b32.xlu0 %v548, 16
        %v791 = vpop.permute.xlu0 %790
        %792 = vrot.lane.b32.xlu0 %v549, 16
        %v793 = vpop.permute.xlu0 %792
        %v794 = vsel %vm773, %v791, %v793
        %v795 = vsel %vm773, %v793, %v791
        %v796 = vmul.f32 %v795, %v407
        %v797 = vmul.f32 %v794, %v411
        %s798 = sld [smem:[#allocation9 + $0xa]]
        %v799 = vstv %s798
        %v800 = vmul.f32 %v799, %v796
        %v801 = vmul.f32 %v799, %v797
        %v802 = vadd.f32 %v782, %v800
        %v803 = vadd.f32 %v783, %v801
        %s804 = sld [smem:[#allocation9 + $0x76]]
        %v805 = vstv %s804
        %v806 = vmul.f32 %v805, %v796
        %v807 = vmul.f32 %v805, %v797
        %v808 = vadd.f32 %v788, %v806
        %v809 = vadd.f32 %v789, %v807
        %810 = vrot.lane.b32.xlu0 %v704, 16
        %v811 = vpop.permute.xlu0 %810
        %812 = vrot.lane.b32.xlu0 %v705, 16
        %v813 = vpop.permute.xlu0 %812
        %v814 = vsel %vm773, %v811, %v813
        %v815 = vsel %vm773, %v813, %v811
        %v816 = vmul.f32 %v815, %v407
        %v817 = vmul.f32 %v814, %v411
        %s818 = sld [smem:[#allocation9 + $0x13]]
        %v819 = vstv %s818
        %v820 = vmul.f32 %v819, %v816
        %v821 = vmul.f32 %v819, %v817
        %v822 = vadd.f32 %v802, %v820
        %v823 = vadd.f32 %v803, %v821
        %s824 = sld [smem:[#allocation9 + $0x7f]]
        %v825 = vstv %s824
        %v826 = vmul.f32 %v825, %v816
        %v827 = vmul.f32 %v825, %v817
        %v828 = vadd.f32 %v808, %v826
        %v829 = vadd.f32 %v809, %v827
        %830 = vrot.lane.b32.xlu0 %v700, 15
        %v831 = vpop.permute.xlu0 %830
        %832 = vrot.lane.b32.xlu0 %v701, 15
        %v833 = vpop.permute.xlu0 %832
        %vm834 = vcmp.lt.s32.totalorder %v711, 15
        %v835 = vsel %vm834, %v831, %v833
        %v836 = vsel %vm834, %v833, %v831
        %v837 = vmul.f32 %v836, %v420
        %v838 = vmul.f32 %v835, %v424
        %s839 = sld [smem:[#allocation9 + $0x2]]
        %v840 = vstv %s839
        %v841 = vmul.f32 %v840, %v837
        %v842 = vmul.f32 %v840, %v838
        %v843 = vadd.f32 %v822, %v841
        %v844 = vadd.f32 %v823, %v842
        %s845 = sld [smem:[#allocation9 + $0x6e]]
        %v846 = vstv %s845
        %v847 = vmul.f32 %v846, %v837
        %v848 = vmul.f32 %v846, %v838
        %v849 = vadd.f32 %v828, %v847
        %v850 = vadd.f32 %v829, %v848
        %851 = vrot.lane.b32.xlu0 %v548, 15
        %v852 = vpop.permute.xlu0 %851
        %853 = vrot.lane.b32.xlu0 %v549, 15
        %v854 = vpop.permute.xlu0 %853
        %v855 = vsel %vm834, %v852, %v854
        %v856 = vsel %vm834, %v854, %v852
        %v857 = vmul.f32 %v856, %v420
        %v858 = vmul.f32 %v855, %v424
        %s859 = sld [smem:[#allocation9 + $0xb]]
        %v860 = vstv %s859
        %v861 = vmul.f32 %v860, %v857
        %v862 = vmul.f32 %v860, %v858
        %v863 = vadd.f32 %v843, %v861
        %v864 = vadd.f32 %v844, %v862
        %s865 = sld [smem:[#allocation9 + $0x77]]
        %v866 = vstv %s865
        %v867 = vmul.f32 %v866, %v857
        %v868 = vmul.f32 %v866, %v858
        %v869 = vadd.f32 %v849, %v867
        %v870 = vadd.f32 %v850, %v868
        %871 = vrot.lane.b32.xlu0 %v704, 15
        %v872 = vpop.permute.xlu0 %871
        %873 = vrot.lane.b32.xlu0 %v705, 15
        %v874 = vpop.permute.xlu0 %873
        %v875 = vsel %vm834, %v872, %v874
        %v876 = vsel %vm834, %v874, %v872
        %v877 = vmul.f32 %v876, %v420
        %v878 = vmul.f32 %v875, %v424
        %s879 = sld [smem:[#allocation9 + $0x14]]
        %v880 = vstv %s879
        %v881 = vmul.f32 %v880, %v877
        %v882 = vmul.f32 %v880, %v878
        %v883 = vadd.f32 %v863, %v881
        %v884 = vadd.f32 %v864, %v882
        %s885 = sld [smem:[#allocation9 + $0x80]]
        %v886 = vstv %s885
        %v887 = vmul.f32 %v886, %v877
        %v888 = vmul.f32 %v886, %v878
        %v889 = vadd.f32 %v869, %v887
        %v890 = vadd.f32 %v870, %v888
        %891 = vrot.lane.b32.xlu0 %v700, 1
        %v892 = vpop.permute.xlu0 %891
        %893 = vrot.lane.b32.xlu0 %v701, 1
        %v894 = vpop.permute.xlu0 %893
        %vm895 = vcmp.lt.s32.totalorder %v711, 1
        %v896 = vsel %vm895, %v892, %v894
        %v897 = vsel %vm895, %v894, %v892
        %v898 = vmul.f32 %v897, %v433
        %v899 = vmul.f32 %v896, %v437
        %s900 = sld [smem:[#allocation9 + $0x3]]
        %v901 = vstv %s900
        %v902 = vmul.f32 %v901, %v898
        %v903 = vmul.f32 %v901, %v899
        %v904 = vadd.f32 %v883, %v902
        %v905 = vadd.f32 %v884, %v903
        %s906 = sld [smem:[#allocation9 + $0x6f]]
        %v907 = vstv %s906
        %v908 = vmul.f32 %v907, %v898
        %v909 = vmul.f32 %v907, %v899
        %v910 = vadd.f32 %v889, %v908
        %v911 = vadd.f32 %v890, %v909
        %912 = vrot.lane.b32.xlu0 %v548, 1
        %v913 = vpop.permute.xlu0 %912
        %914 = vrot.lane.b32.xlu0 %v549, 1
        %v915 = vpop.permute.xlu0 %914
        %v916 = vsel %vm895, %v913, %v915
        %v917 = vsel %vm895, %v915, %v913
        %v918 = vmul.f32 %v917, %v433
        %v919 = vmul.f32 %v916, %v437
        %s920 = sld [smem:[#allocation9 + $0xc]]
        %v921 = vstv %s920
        %v922 = vmul.f32 %v921, %v918
        %v923 = vmul.f32 %v921, %v919
        %v924 = vadd.f32 %v904, %v922
        %v925 = vadd.f32 %v905, %v923
        %s926 = sld [smem:[#allocation9 + $0x78]]
        %v927 = vstv %s926
        %v928 = vmul.f32 %v927, %v918
        %v929 = vmul.f32 %v927, %v919
        %v930 = vadd.f32 %v910, %v928
        %v931 = vadd.f32 %v911, %v929
        %932 = vrot.lane.b32.xlu0 %v704, 1
        %v933 = vpop.permute.xlu0 %932
        %934 = vrot.lane.b32.xlu0 %v705, 1
        %v935 = vpop.permute.xlu0 %934
        %v936 = vsel %vm895, %v933, %v935
        %v937 = vsel %vm895, %v935, %v933
        %v938 = vmul.f32 %v937, %v433
        %v939 = vmul.f32 %v936, %v437
        %s940 = sld [smem:[#allocation9 + $0x15]]
        %v941 = vstv %s940
        %v942 = vmul.f32 %v941, %v938
        %v943 = vmul.f32 %v941, %v939
        %v944 = vadd.f32 %v924, %v942
        %v945 = vadd.f32 %v925, %v943
        %s946 = sld [smem:[#allocation9 + $0x81]]
        %v947 = vstv %s946
        %v948 = vmul.f32 %v947, %v938
        %v949 = vmul.f32 %v947, %v939
        %v950 = vadd.f32 %v930, %v948
        %v951 = vadd.f32 %v931, %v949
        %s952 = sld [smem:[#allocation9 + $0x4]]
        %v953 = vstv %s952
        %v954 = vmul.f32 %v953, %v700
        %v955 = vmul.f32 %v953, %v701
        %v956 = vadd.f32 %v944, %v954
        %v957 = vadd.f32 %v945, %v955
        %s958 = sld [smem:[#allocation9 + $0x70]]
        %v959 = vstv %s958
        %v960 = vmul.f32 %v959, %v700
        %v961 = vmul.f32 %v959, %v701
        %v962 = vadd.f32 %v950, %v960
        %v963 = vadd.f32 %v951, %v961
        %s964 = sld [smem:[#allocation9 + $0xd]]
        %v965 = vstv %s964
        %v966 = vmul.f32 %v965, %v548
        %v967 = vmul.f32 %v965, %v549
        %v968 = vadd.f32 %v956, %v966
        %v969 = vadd.f32 %v957, %v967
        %s970 = sld [smem:[#allocation9 + $0x79]]
        %v971 = vstv %s970
        %v972 = vmul.f32 %v971, %v548
        %v973 = vmul.f32 %v971, %v549
        %v974 = vadd.f32 %v962, %v972
        %v975 = vadd.f32 %v963, %v973
        %s976 = sld [smem:[#allocation9 + $0x16]]
        %v977 = vstv %s976
        %v978 = vmul.f32 %v977, %v704
        %v979 = vmul.f32 %v977, %v705
        %v980 = vadd.f32 %v968, %v978
        %v981 = vadd.f32 %v969, %v979
        %s982 = sld [smem:[#allocation9 + $0x82]]
        %v983 = vstv %s982
        %v984 = vmul.f32 %v983, %v704
        %v985 = vmul.f32 %v983, %v705
        %v986 = vadd.f32 %v974, %v984
        %v987 = vadd.f32 %v975, %v985
        %988 = vrot.lane.b32.xlu0 %v700, 127
        %v989 = vpop.permute.xlu0 %988
        %990 = vrot.lane.b32.xlu0 %v701, 127
        %v991 = vpop.permute.xlu0 %990
        %vm992 = vcmp.lt.s32.totalorder %v711, 127
        %v993 = vsel %vm992, %v989, %v991
        %v994 = vsel %vm992, %v991, %v989
        %v995 = vmul.f32 %v993, %v446
        %v996 = vmul.f32 %v994, %v450
        %s997 = sld [smem:[#allocation9 + $0x5]]
        %v998 = vstv %s997
        %v999 = vmul.f32 %v998, %v995
        %v1000 = vmul.f32 %v998, %v996
        %v1001 = vadd.f32 %v980, %v999
        %v1002 = vadd.f32 %v981, %v1000
        %s1003 = sld [smem:[#allocation9 + $0x71]]
        %v1004 = vstv %s1003
        %v1005 = vmul.f32 %v1004, %v995
        %v1006 = vmul.f32 %v1004, %v996
        %v1007 = vadd.f32 %v986, %v1005
        %v1008 = vadd.f32 %v987, %v1006
        %1009 = vrot.lane.b32.xlu0 %v548, 127
        %v1010 = vpop.permute.xlu0 %1009
        %1011 = vrot.lane.b32.xlu0 %v549, 127
        %v1012 = vpop.permute.xlu0 %1011
        %v1013 = vsel %vm992, %v1010, %v1012
        %v1014 = vsel %vm992, %v1012, %v1010
        %v1015 = vmul.f32 %v1013, %v446
        %v1016 = vmul.f32 %v1014, %v450
        %s1017 = sld [smem:[#allocation9 + $0xe]]
        %v1018 = vstv %s1017
        %v1019 = vmul.f32 %v1018, %v1015
        %v1020 = vmul.f32 %v1018, %v1016
        %v1021 = vadd.f32 %v1001, %v1019
        %v1022 = vadd.f32 %v1002, %v1020
        %s1023 = sld [smem:[#allocation9 + $0x7a]]
        %v1024 = vstv %s1023
        %v1025 = vmul.f32 %v1024, %v1015
        %v1026 = vmul.f32 %v1024, %v1016
        %v1027 = vadd.f32 %v1007, %v1025
        %v1028 = vadd.f32 %v1008, %v1026
        %1029 = vrot.lane.b32.xlu0 %v704, 127
        %v1030 = vpop.permute.xlu0 %1029
        %1031 = vrot.lane.b32.xlu0 %v705, 127
        %v1032 = vpop.permute.xlu0 %1031
        %v1033 = vsel %vm992, %v1030, %v1032
        %v1034 = vsel %vm992, %v1032, %v1030
        %v1035 = vmul.f32 %v1033, %v446
        %v1036 = vmul.f32 %v1034, %v450
        %s1037 = sld [smem:[#allocation9 + $0x17]]
        %v1038 = vstv %s1037
        %v1039 = vmul.f32 %v1038, %v1035
        %v1040 = vmul.f32 %v1038, %v1036
        %v1041 = vadd.f32 %v1021, %v1039
        %v1042 = vadd.f32 %v1022, %v1040
        %s1043 = sld [smem:[#allocation9 + $0x83]]
        %v1044 = vstv %s1043
        %v1045 = vmul.f32 %v1044, %v1035
        %v1046 = vmul.f32 %v1044, %v1036
        %v1047 = vadd.f32 %v1027, %v1045
        %v1048 = vadd.f32 %v1028, %v1046
        %1049 = vrot.lane.b32.xlu0 %v700, 113
        %v1050 = vpop.permute.xlu0 %1049
        %1051 = vrot.lane.b32.xlu0 %v701, 113
        %v1052 = vpop.permute.xlu0 %1051
        %vm1053 = vcmp.lt.s32.totalorder %v711, 113
        %v1054 = vsel %vm1053, %v1050, %v1052
        %v1055 = vsel %vm1053, %v1052, %v1050
        %v1056 = vmul.f32 %v1054, %v459
        %v1057 = vmul.f32 %v1055, %v463
        %s1058 = sld [smem:[#allocation9 + $0x6]]
        %v1059 = vstv %s1058
        %v1060 = vmul.f32 %v1059, %v1056
        %v1061 = vmul.f32 %v1059, %v1057
        %v1062 = vadd.f32 %v1041, %v1060
        %v1063 = vadd.f32 %v1042, %v1061
        %s1064 = sld [smem:[#allocation9 + $0x72]]
        %v1065 = vstv %s1064
        %v1066 = vmul.f32 %v1065, %v1056
        %v1067 = vmul.f32 %v1065, %v1057
        %v1068 = vadd.f32 %v1047, %v1066
        %v1069 = vadd.f32 %v1048, %v1067
        %1070 = vrot.lane.b32.xlu0 %v548, 113
        %v1071 = vpop.permute.xlu0 %1070
        %1072 = vrot.lane.b32.xlu0 %v549, 113
        %v1073 = vpop.permute.xlu0 %1072
        %v1074 = vsel %vm1053, %v1071, %v1073
        %v1075 = vsel %vm1053, %v1073, %v1071
        %v1076 = vmul.f32 %v1074, %v459
        %v1077 = vmul.f32 %v1075, %v463
        %s1078 = sld [smem:[#allocation9 + $0xf]]
        %v1079 = vstv %s1078
        %v1080 = vmul.f32 %v1079, %v1076
        %v1081 = vmul.f32 %v1079, %v1077
        %v1082 = vadd.f32 %v1062, %v1080
        %v1083 = vadd.f32 %v1063, %v1081
        %s1084 = sld [smem:[#allocation9 + $0x7b]]
        %v1085 = vstv %s1084
        %v1086 = vmul.f32 %v1085, %v1076
        %v1087 = vmul.f32 %v1085, %v1077
        %v1088 = vadd.f32 %v1068, %v1086
        %v1089 = vadd.f32 %v1069, %v1087
        %1090 = vrot.lane.b32.xlu0 %v704, 113
        %v1091 = vpop.permute.xlu0 %1090
        %1092 = vrot.lane.b32.xlu0 %v705, 113
        %v1093 = vpop.permute.xlu0 %1092
        %v1094 = vsel %vm1053, %v1091, %v1093
        %v1095 = vsel %vm1053, %v1093, %v1091
        %v1096 = vmul.f32 %v1094, %v459
        %v1097 = vmul.f32 %v1095, %v463
        %s1098 = sld [smem:[#allocation9 + $0x18]]
        %v1099 = vstv %s1098
        %v1100 = vmul.f32 %v1099, %v1096
        %v1101 = vmul.f32 %v1099, %v1097
        %v1102 = vadd.f32 %v1082, %v1100
        %v1103 = vadd.f32 %v1083, %v1101
        %s1104 = sld [smem:[#allocation9 + $0x84]]
        %v1105 = vstv %s1104
        %v1106 = vmul.f32 %v1105, %v1096
        %v1107 = vmul.f32 %v1105, %v1097
        %v1108 = vadd.f32 %v1088, %v1106
        %v1109 = vadd.f32 %v1089, %v1107
        %1110 = vrot.lane.b32.xlu0 %v700, 112
        %v1111 = vpop.permute.xlu0 %1110
        %1112 = vrot.lane.b32.xlu0 %v701, 112
        %v1113 = vpop.permute.xlu0 %1112
        %vm1114 = vcmp.lt.s32.totalorder %v711, 112
        %v1115 = vsel %vm1114, %v1111, %v1113
        %v1116 = vsel %vm1114, %v1113, %v1111
        %v1117 = vmul.f32 %v1115, %v472
        %v1118 = vmul.f32 %v1116, %v476
        %s1119 = sld [smem:[#allocation9 + $0x7]]
        %v1120 = vstv %s1119
        %v1121 = vmul.f32 %v1120, %v1117
        %v1122 = vmul.f32 %v1120, %v1118
        %v1123 = vadd.f32 %v1102, %v1121
        %v1124 = vadd.f32 %v1103, %v1122
        %s1125 = sld [smem:[#allocation9 + $0x73]]
        %v1126 = vstv %s1125
        %v1127 = vmul.f32 %v1126, %v1117
        %v1128 = vmul.f32 %v1126, %v1118
        %v1129 = vadd.f32 %v1108, %v1127
        %v1130 = vadd.f32 %v1109, %v1128
        %1131 = vrot.lane.b32.xlu0 %v548, 112
        %v1132 = vpop.permute.xlu0 %1131
        %1133 = vrot.lane.b32.xlu0 %v549, 112
        %v1134 = vpop.permute.xlu0 %1133
        %v1135 = vsel %vm1114, %v1132, %v1134
        %v1136 = vsel %vm1114, %v1134, %v1132
        %v1137 = vmul.f32 %v1135, %v472
        %v1138 = vmul.f32 %v1136, %v476
        %s1139 = sld [smem:[#allocation9 + $0x10]]
        %v1140 = vstv %s1139
        %v1141 = vmul.f32 %v1140, %v1137
        %v1142 = vmul.f32 %v1140, %v1138
        %v1143 = vadd.f32 %v1123, %v1141
        %v1144 = vadd.f32 %v1124, %v1142
        %s1145 = sld [smem:[#allocation9 + $0x7c]]
        %v1146 = vstv %s1145
        %v1147 = vmul.f32 %v1146, %v1137
        %v1148 = vmul.f32 %v1146, %v1138
        %v1149 = vadd.f32 %v1129, %v1147
        %v1150 = vadd.f32 %v1130, %v1148
        %1151 = vrot.lane.b32.xlu0 %v704, 112
        %v1152 = vpop.permute.xlu0 %1151
        %1153 = vrot.lane.b32.xlu0 %v705, 112
        %v1154 = vpop.permute.xlu0 %1153
        %v1155 = vsel %vm1114, %v1152, %v1154
        %v1156 = vsel %vm1114, %v1154, %v1152
        %v1157 = vmul.f32 %v1155, %v472
        %v1158 = vmul.f32 %v1156, %v476
        %s1159 = sld [smem:[#allocation9 + $0x19]]
        %v1160 = vstv %s1159
        %v1161 = vmul.f32 %v1160, %v1157
        %v1162 = vmul.f32 %v1160, %v1158
        %v1163 = vadd.f32 %v1143, %v1161
        %v1164 = vadd.f32 %v1144, %v1162
        %s1165 = sld [smem:[#allocation9 + $0x85]]
        %v1166 = vstv %s1165
        %v1167 = vmul.f32 %v1166, %v1157
        %v1168 = vmul.f32 %v1166, %v1158
        %v1169 = vadd.f32 %v1149, %v1167
        %v1170 = vadd.f32 %v1150, %v1168
        %1171 = vrot.lane.b32.xlu0 %v700, 111
        %v1172 = vpop.permute.xlu0 %1171
        %1173 = vrot.lane.b32.xlu0 %v701, 111
        %v1174 = vpop.permute.xlu0 %1173
        %vm1175 = vcmp.lt.s32.totalorder %v711, 111
        %v1176 = vsel %vm1175, %v1172, %v1174
        %v1177 = vsel %vm1175, %v1174, %v1172
        %v1178 = vmul.f32 %v1176, %v485
        %v1179 = vmul.f32 %v1177, %v489
        %s1180 = sld [smem:[#allocation9 + $0x8]]
        %v1181 = vstv %s1180
        %v1182 = vmul.f32 %v1181, %v1178
        %v1183 = vmul.f32 %v1181, %v1179
        %v1184 = vadd.f32 %v1163, %v1182
        %v1185 = vadd.f32 %v1164, %v1183
        %s1186 = sld [smem:[#allocation9 + $0x74]]
        %v1187 = vstv %s1186
        %v1188 = vmul.f32 %v1187, %v1178
        %v1189 = vmul.f32 %v1187, %v1179
        %v1190 = vadd.f32 %v1169, %v1188
        %v1191 = vadd.f32 %v1170, %v1189
        %1192 = vrot.lane.b32.xlu0 %v548, 111
        %v1193 = vpop.permute.xlu0 %1192
        %1194 = vrot.lane.b32.xlu0 %v549, 111
        %v1195 = vpop.permute.xlu0 %1194
        %v1196 = vsel %vm1175, %v1193, %v1195
        %v1197 = vsel %vm1175, %v1195, %v1193
        %v1198 = vmul.f32 %v1196, %v485
        %v1199 = vmul.f32 %v1197, %v489
        %s1200 = sld [smem:[#allocation9 + $0x11]]
        %v1201 = vstv %s1200
        %v1202 = vmul.f32 %v1201, %v1198
        %v1203 = vmul.f32 %v1201, %v1199
        %v1204 = vadd.f32 %v1184, %v1202
        %v1205 = vadd.f32 %v1185, %v1203
        %s1206 = sld [smem:[#allocation9 + $0x7d]]
        %v1207 = vstv %s1206
        %v1208 = vmul.f32 %v1207, %v1198
        %v1209 = vmul.f32 %v1207, %v1199
        %v1210 = vadd.f32 %v1190, %v1208
        %v1211 = vadd.f32 %v1191, %v1209
        %1212 = vrot.lane.b32.xlu0 %v704, 111
        %v1213 = vpop.permute.xlu0 %1212
        %1214 = vrot.lane.b32.xlu0 %v705, 111
        %v1215 = vpop.permute.xlu0 %1214
        %v1216 = vsel %vm1175, %v1213, %v1215
        %v1217 = vsel %vm1175, %v1215, %v1213
        %v1218 = vmul.f32 %v1216, %v485
        %v1219 = vmul.f32 %v1217, %v489
        %s1220 = sld [smem:[#allocation9 + $0x1a]]
        %v1221 = vstv %s1220
        %v1222 = vmul.f32 %v1221, %v1218
        %v1223 = vmul.f32 %v1221, %v1219
        %v1224 = vadd.f32 %v1204, %v1222
        %v1225 = vadd.f32 %v1205, %v1223
        %s1226 = sld [smem:[#allocation9 + $0x86]]
        %v1227 = vstv %s1226
        %v1228 = vmul.f32 %v1227, %v1218
        %v1229 = vmul.f32 %v1227, %v1219
        %v1230 = vadd.f32 %v1210, %v1228
        %v1231 = vadd.f32 %v1211, %v1229
        %v1232 = vrot.slane %v596, 7
        %v1233 = vrot.slane %v597, 7
        %v1234 = vmul.f32 %v1232, %v380
        %v1235 = vmul.f32 %v1233, %v380
        %v1236 = vrot.slane %v596, 1
        %v1237 = vrot.slane %v597, 1
        %v1238 = vmul.f32 %v1236, %v387
        %v1239 = vmul.f32 %v1237, %v387
        %1240 = vrot.lane.b32.xlu0 %v1234, 17
        %v1241 = vpop.permute.xlu0 %1240
        %1242 = vrot.lane.b32.xlu0 %v1235, 17
        %v1243 = vpop.permute.xlu0 %1242
        %v1244 = vsel %vm712, %v1241, %v1243
        %v1245 = vsel %vm712, %v1243, %v1241
        %v1246 = vmul.f32 %v1245, %v394
        %v1247 = vmul.f32 %v1244, %v398
        %s1248 = sld [smem:[#allocation9 + $0x1b]]
        %v1249 = vstv %s1248
        %v1250 = vmul.f32 %v1249, %v1246
        %v1251 = vmul.f32 %v1249, %v1247
        %v1252 = vadd.f32 %v1224, %v1250
        %v1253 = vadd.f32 %v1225, %v1251
        %s1254 = sld [smem:[#allocation9 + $0x87]]
        %v1255 = vstv %s1254
        %v1256 = vmul.f32 %v1255, %v1246
        %v1257 = vmul.f32 %v1255, %v1247
        %v1258 = vadd.f32 %v1230, %v1256
        %v1259 = vadd.f32 %v1231, %v1257
        %1260 = vrot.lane.b32.xlu0 %v596, 17
        %v1261 = vpop.permute.xlu0 %1260
        %1262 = vrot.lane.b32.xlu0 %v597, 17
        %v1263 = vpop.permute.xlu0 %1262
        %v1264 = vsel %vm712, %v1261, %v1263
        %v1265 = vsel %vm712, %v1263, %v1261
        %v1266 = vmul.f32 %v1265, %v394
        %v1267 = vmul.f32 %v1264, %v398
        %s1268 = sld [smem:[#allocation9 + $0x24]]
        %v1269 = vstv %s1268
        %v1270 = vmul.f32 %v1269, %v1266
        %v1271 = vmul.f32 %v1269, %v1267
        %v1272 = vadd.f32 %v1252, %v1270
        %v1273 = vadd.f32 %v1253, %v1271
        %s1274 = sld [smem:[#allocation9 + $0x90]]
        %v1275 = vstv %s1274
        %v1276 = vmul.f32 %v1275, %v1266
        %v1277 = vmul.f32 %v1275, %v1267
        %v1278 = vadd.f32 %v1258, %v1276
        %v1279 = vadd.f32 %v1259, %v1277
        %1280 = vrot.lane.b32.xlu0 %v1238, 17
        %v1281 = vpop.permute.xlu0 %1280
        %1282 = vrot.lane.b32.xlu0 %v1239, 17
        %v1283 = vpop.permute.xlu0 %1282
        %v1284 = vsel %vm712, %v1281, %v1283
        %v1285 = vsel %vm712, %v1283, %v1281
        %v1286 = vmul.f32 %v1285, %v394
        %v1287 = vmul.f32 %v1284, %v398
        %s1288 = sld [smem:[#allocation9 + $0x2d]]
        %v1289 = vstv %s1288
        %v1290 = vmul.f32 %v1289, %v1286
        %v1291 = vmul.f32 %v1289, %v1287
        %v1292 = vadd.f32 %v1272, %v1290
        %v1293 = vadd.f32 %v1273, %v1291
        %s1294 = sld [smem:[#allocation9 + $0x99]]
        %v1295 = vstv %s1294
        %v1296 = vmul.f32 %v1295, %v1286
        %v1297 = vmul.f32 %v1295, %v1287
        %v1298 = vadd.f32 %v1278, %v1296
        %v1299 = vadd.f32 %v1279, %v1297
        %1300 = vrot.lane.b32.xlu0 %v1234, 16
        %v1301 = vpop.permute.xlu0 %1300
        %1302 = vrot.lane.b32.xlu0 %v1235, 16
        %v1303 = vpop.permute.xlu0 %1302
        %v1304 = vsel %vm773, %v1301, %v1303
        %v1305 = vsel %vm773, %v1303, %v1301
        %v1306 = vmul.f32 %v1305, %v407
        %v1307 = vmul.f32 %v1304, %v411
        %s1308 = sld [smem:[#allocation9 + $0x1c]]
        %v1309 = vstv %s1308
        %v1310 = vmul.f32 %v1309, %v1306
        %v1311 = vmul.f32 %v1309, %v1307
        %v1312 = vadd.f32 %v1292, %v1310
        %v1313 = vadd.f32 %v1293, %v1311
        %s1314 = sld [smem:[#allocation9 + $0x88]]
        %v1315 = vstv %s1314
        %v1316 = vmul.f32 %v1315, %v1306
        %v1317 = vmul.f32 %v1315, %v1307
        %v1318 = vadd.f32 %v1298, %v1316
        %v1319 = vadd.f32 %v1299, %v1317
        %1320 = vrot.lane.b32.xlu0 %v596, 16
        %v1321 = vpop.permute.xlu0 %1320
        %1322 = vrot.lane.b32.xlu0 %v597, 16
        %v1323 = vpop.permute.xlu0 %1322
        %v1324 = vsel %vm773, %v1321, %v1323
        %v1325 = vsel %vm773, %v1323, %v1321
        %v1326 = vmul.f32 %v1325, %v407
        %v1327 = vmul.f32 %v1324, %v411
        %s1328 = sld [smem:[#allocation9 + $0x25]]
        %v1329 = vstv %s1328
        %v1330 = vmul.f32 %v1329, %v1326
        %v1331 = vmul.f32 %v1329, %v1327
        %v1332 = vadd.f32 %v1312, %v1330
        %v1333 = vadd.f32 %v1313, %v1331
        %s1334 = sld [smem:[#allocation9 + $0x91]]
        %v1335 = vstv %s1334
        %v1336 = vmul.f32 %v1335, %v1326
        %v1337 = vmul.f32 %v1335, %v1327
        %v1338 = vadd.f32 %v1318, %v1336
        %v1339 = vadd.f32 %v1319, %v1337
        %1340 = vrot.lane.b32.xlu0 %v1238, 16
        %v1341 = vpop.permute.xlu0 %1340
        %1342 = vrot.lane.b32.xlu0 %v1239, 16
        %v1343 = vpop.permute.xlu0 %1342
        %v1344 = vsel %vm773, %v1341, %v1343
        %v1345 = vsel %vm773, %v1343, %v1341
        %v1346 = vmul.f32 %v1345, %v407
        %v1347 = vmul.f32 %v1344, %v411
        %s1348 = sld [smem:[#allocation9 + $0x2e]]
        %v1349 = vstv %s1348
        %v1350 = vmul.f32 %v1349, %v1346
        %v1351 = vmul.f32 %v1349, %v1347
        %v1352 = vadd.f32 %v1332, %v1350
        %v1353 = vadd.f32 %v1333, %v1351
        %s1354 = sld [smem:[#allocation9 + $0x9a]]
        %v1355 = vstv %s1354
        %v1356 = vmul.f32 %v1355, %v1346
        %v1357 = vmul.f32 %v1355, %v1347
        %v1358 = vadd.f32 %v1338, %v1356
        %v1359 = vadd.f32 %v1339, %v1357
        %1360 = vrot.lane.b32.xlu0 %v1234, 15
        %v1361 = vpop.permute.xlu0 %1360
        %1362 = vrot.lane.b32.xlu0 %v1235, 15
        %v1363 = vpop.permute.xlu0 %1362
        %v1364 = vsel %vm834, %v1361, %v1363
        %v1365 = vsel %vm834, %v1363, %v1361
        %v1366 = vmul.f32 %v1365, %v420
        %v1367 = vmul.f32 %v1364, %v424
        %s1368 = sld [smem:[#allocation9 + $0x1d]]
        %v1369 = vstv %s1368
        %v1370 = vmul.f32 %v1369, %v1366
        %v1371 = vmul.f32 %v1369, %v1367
        %v1372 = vadd.f32 %v1352, %v1370
        %v1373 = vadd.f32 %v1353, %v1371
        %s1374 = sld [smem:[#allocation9 + $0x89]]
        %v1375 = vstv %s1374
        %v1376 = vmul.f32 %v1375, %v1366
        %v1377 = vmul.f32 %v1375, %v1367
        %v1378 = vadd.f32 %v1358, %v1376
        %v1379 = vadd.f32 %v1359, %v1377
        %1380 = vrot.lane.b32.xlu0 %v596, 15
        %v1381 = vpop.permute.xlu0 %1380
        %1382 = vrot.lane.b32.xlu0 %v597, 15
        %v1383 = vpop.permute.xlu0 %1382
        %v1384 = vsel %vm834, %v1381, %v1383
        %v1385 = vsel %vm834, %v1383, %v1381
        %v1386 = vmul.f32 %v1385, %v420
        %v1387 = vmul.f32 %v1384, %v424
        %s1388 = sld [smem:[#allocation9 + $0x26]]
        %v1389 = vstv %s1388
        %v1390 = vmul.f32 %v1389, %v1386
        %v1391 = vmul.f32 %v1389, %v1387
        %v1392 = vadd.f32 %v1372, %v1390
        %v1393 = vadd.f32 %v1373, %v1391
        %s1394 = sld [smem:[#allocation9 + $0x92]]
        %v1395 = vstv %s1394
        %v1396 = vmul.f32 %v1395, %v1386
        %v1397 = vmul.f32 %v1395, %v1387
        %v1398 = vadd.f32 %v1378, %v1396
        %v1399 = vadd.f32 %v1379, %v1397
        %1400 = vrot.lane.b32.xlu0 %v1238, 15
        %v1401 = vpop.permute.xlu0 %1400
        %1402 = vrot.lane.b32.xlu0 %v1239, 15
        %v1403 = vpop.permute.xlu0 %1402
        %v1404 = vsel %vm834, %v1401, %v1403
        %v1405 = vsel %vm834, %v1403, %v1401
        %v1406 = vmul.f32 %v1405, %v420
        %v1407 = vmul.f32 %v1404, %v424
        %s1408 = sld [smem:[#allocation9 + $0x2f]]
        %v1409 = vstv %s1408
        %v1410 = vmul.f32 %v1409, %v1406
        %v1411 = vmul.f32 %v1409, %v1407
        %v1412 = vadd.f32 %v1392, %v1410
        %v1413 = vadd.f32 %v1393, %v1411
        %s1414 = sld [smem:[#allocation9 + $0x9b]]
        %v1415 = vstv %s1414
        %v1416 = vmul.f32 %v1415, %v1406
        %v1417 = vmul.f32 %v1415, %v1407
        %v1418 = vadd.f32 %v1398, %v1416
        %v1419 = vadd.f32 %v1399, %v1417
        %1420 = vrot.lane.b32.xlu0 %v1234, 1
        %v1421 = vpop.permute.xlu0 %1420
        %1422 = vrot.lane.b32.xlu0 %v1235, 1
        %v1423 = vpop.permute.xlu0 %1422
        %v1424 = vsel %vm895, %v1421, %v1423
        %v1425 = vsel %vm895, %v1423, %v1421
        %v1426 = vmul.f32 %v1425, %v433
        %v1427 = vmul.f32 %v1424, %v437
        %s1428 = sld [smem:[#allocation9 + $0x1e]]
        %v1429 = vstv %s1428
        %v1430 = vmul.f32 %v1429, %v1426
        %v1431 = vmul.f32 %v1429, %v1427
        %v1432 = vadd.f32 %v1412, %v1430
        %v1433 = vadd.f32 %v1413, %v1431
        %s1434 = sld [smem:[#allocation9 + $0x8a]]
        %v1435 = vstv %s1434
        %v1436 = vmul.f32 %v1435, %v1426
        %v1437 = vmul.f32 %v1435, %v1427
        %v1438 = vadd.f32 %v1418, %v1436
        %v1439 = vadd.f32 %v1419, %v1437
        %1440 = vrot.lane.b32.xlu0 %v596, 1
        %v1441 = vpop.permute.xlu0 %1440
        %1442 = vrot.lane.b32.xlu0 %v597, 1
        %v1443 = vpop.permute.xlu0 %1442
        %v1444 = vsel %vm895, %v1441, %v1443
        %v1445 = vsel %vm895, %v1443, %v1441
        %v1446 = vmul.f32 %v1445, %v433
        %v1447 = vmul.f32 %v1444, %v437
        %s1448 = sld [smem:[#allocation9 + $0x27]]
        %v1449 = vstv %s1448
        %v1450 = vmul.f32 %v1449, %v1446
        %v1451 = vmul.f32 %v1449, %v1447
        %v1452 = vadd.f32 %v1432, %v1450
        %v1453 = vadd.f32 %v1433, %v1451
        %s1454 = sld [smem:[#allocation9 + $0x93]]
        %v1455 = vstv %s1454
        %v1456 = vmul.f32 %v1455, %v1446
        %v1457 = vmul.f32 %v1455, %v1447
        %v1458 = vadd.f32 %v1438, %v1456
        %v1459 = vadd.f32 %v1439, %v1457
        %1460 = vrot.lane.b32.xlu0 %v1238, 1
        %v1461 = vpop.permute.xlu0 %1460
        %1462 = vrot.lane.b32.xlu0 %v1239, 1
        %v1463 = vpop.permute.xlu0 %1462
        %v1464 = vsel %vm895, %v1461, %v1463
        %v1465 = vsel %vm895, %v1463, %v1461
        %v1466 = vmul.f32 %v1465, %v433
        %v1467 = vmul.f32 %v1464, %v437
        %s1468 = sld [smem:[#allocation9 + $0x30]]
        %v1469 = vstv %s1468
        %v1470 = vmul.f32 %v1469, %v1466
        %v1471 = vmul.f32 %v1469, %v1467
        %v1472 = vadd.f32 %v1452, %v1470
        %v1473 = vadd.f32 %v1453, %v1471
        %s1474 = sld [smem:[#allocation9 + $0x9c]]
        %v1475 = vstv %s1474
        %v1476 = vmul.f32 %v1475, %v1466
        %v1477 = vmul.f32 %v1475, %v1467
        %v1478 = vadd.f32 %v1458, %v1476
        %v1479 = vadd.f32 %v1459, %v1477
        %s1480 = sld [smem:[#allocation9 + $0x1f]]
        %v1481 = vstv %s1480
        %v1482 = vmul.f32 %v1481, %v1234
        %v1483 = vmul.f32 %v1481, %v1235
        %v1484 = vadd.f32 %v1472, %v1482
        %v1485 = vadd.f32 %v1473, %v1483
        %s1486 = sld [smem:[#allocation9 + $0x8b]]
        %v1487 = vstv %s1486
        %v1488 = vmul.f32 %v1487, %v1234
        %v1489 = vmul.f32 %v1487, %v1235
        %v1490 = vadd.f32 %v1478, %v1488
        %v1491 = vadd.f32 %v1479, %v1489
        %s1492 = sld [smem:[#allocation9 + $0x28]]
        %v1493 = vstv %s1492
        %v1494 = vmul.f32 %v1493, %v596
        %v1495 = vmul.f32 %v1493, %v597
        %v1496 = vadd.f32 %v1484, %v1494
        %v1497 = vadd.f32 %v1485, %v1495
        %s1498 = sld [smem:[#allocation9 + $0x94]]
        %v1499 = vstv %s1498
        %v1500 = vmul.f32 %v1499, %v596
        %v1501 = vmul.f32 %v1499, %v597
        %v1502 = vadd.f32 %v1490, %v1500
        %v1503 = vadd.f32 %v1491, %v1501
        %s1504 = sld [smem:[#allocation9 + $0x31]]
        %v1505 = vstv %s1504
        %v1506 = vmul.f32 %v1505, %v1238
        %v1507 = vmul.f32 %v1505, %v1239
        %v1508 = vadd.f32 %v1496, %v1506
        %v1509 = vadd.f32 %v1497, %v1507
        %s1510 = sld [smem:[#allocation9 + $0x9d]]
        %v1511 = vstv %s1510
        %v1512 = vmul.f32 %v1511, %v1238
        %v1513 = vmul.f32 %v1511, %v1239
        %v1514 = vadd.f32 %v1502, %v1512
        %v1515 = vadd.f32 %v1503, %v1513
        %1516 = vrot.lane.b32.xlu0 %v1234, 127
        %v1517 = vpop.permute.xlu0 %1516
        %1518 = vrot.lane.b32.xlu0 %v1235, 127
        %v1519 = vpop.permute.xlu0 %1518
        %v1520 = vsel %vm992, %v1517, %v1519
        %v1521 = vsel %vm992, %v1519, %v1517
        %v1522 = vmul.f32 %v1520, %v446
        %v1523 = vmul.f32 %v1521, %v450
        %s1524 = sld [smem:[#allocation9 + $0x20]]
        %v1525 = vstv %s1524
        %v1526 = vmul.f32 %v1525, %v1522
        %v1527 = vmul.f32 %v1525, %v1523
        %v1528 = vadd.f32 %v1508, %v1526
        %v1529 = vadd.f32 %v1509, %v1527
        %s1530 = sld [smem:[#allocation9 + $0x8c]]
        %v1531 = vstv %s1530
        %v1532 = vmul.f32 %v1531, %v1522
        %v1533 = vmul.f32 %v1531, %v1523
        %v1534 = vadd.f32 %v1514, %v1532
        %v1535 = vadd.f32 %v1515, %v1533
        %1536 = vrot.lane.b32.xlu0 %v596, 127
        %v1537 = vpop.permute.xlu0 %1536
        %1538 = vrot.lane.b32.xlu0 %v597, 127
        %v1539 = vpop.permute.xlu0 %1538
        %v1540 = vsel %vm992, %v1537, %v1539
        %v1541 = vsel %vm992, %v1539, %v1537
        %v1542 = vmul.f32 %v1540, %v446
        %v1543 = vmul.f32 %v1541, %v450
        %s1544 = sld [smem:[#allocation9 + $0x29]]
        %v1545 = vstv %s1544
        %v1546 = vmul.f32 %v1545, %v1542
        %v1547 = vmul.f32 %v1545, %v1543
        %v1548 = vadd.f32 %v1528, %v1546
        %v1549 = vadd.f32 %v1529, %v1547
        %s1550 = sld [smem:[#allocation9 + $0x95]]
        %v1551 = vstv %s1550
        %v1552 = vmul.f32 %v1551, %v1542
        %v1553 = vmul.f32 %v1551, %v1543
        %v1554 = vadd.f32 %v1534, %v1552
        %v1555 = vadd.f32 %v1535, %v1553
        %1556 = vrot.lane.b32.xlu0 %v1238, 127
        %v1557 = vpop.permute.xlu0 %1556
        %1558 = vrot.lane.b32.xlu0 %v1239, 127
        %v1559 = vpop.permute.xlu0 %1558
        %v1560 = vsel %vm992, %v1557, %v1559
        %v1561 = vsel %vm992, %v1559, %v1557
        %v1562 = vmul.f32 %v1560, %v446
        %v1563 = vmul.f32 %v1561, %v450
        %s1564 = sld [smem:[#allocation9 + $0x32]]
        %v1565 = vstv %s1564
        %v1566 = vmul.f32 %v1565, %v1562
        %v1567 = vmul.f32 %v1565, %v1563
        %v1568 = vadd.f32 %v1548, %v1566
        %v1569 = vadd.f32 %v1549, %v1567
        %s1570 = sld [smem:[#allocation9 + $0x9e]]
        %v1571 = vstv %s1570
        %v1572 = vmul.f32 %v1571, %v1562
        %v1573 = vmul.f32 %v1571, %v1563
        %v1574 = vadd.f32 %v1554, %v1572
        %v1575 = vadd.f32 %v1555, %v1573
        %1576 = vrot.lane.b32.xlu0 %v1234, 113
        %v1577 = vpop.permute.xlu0 %1576
        %1578 = vrot.lane.b32.xlu0 %v1235, 113
        %v1579 = vpop.permute.xlu0 %1578
        %v1580 = vsel %vm1053, %v1577, %v1579
        %v1581 = vsel %vm1053, %v1579, %v1577
        %v1582 = vmul.f32 %v1580, %v459
        %v1583 = vmul.f32 %v1581, %v463
        %s1584 = sld [smem:[#allocation9 + $0x21]]
        %v1585 = vstv %s1584
        %v1586 = vmul.f32 %v1585, %v1582
        %v1587 = vmul.f32 %v1585, %v1583
        %v1588 = vadd.f32 %v1568, %v1586
        %v1589 = vadd.f32 %v1569, %v1587
        %s1590 = sld [smem:[#allocation9 + $0x8d]]
        %v1591 = vstv %s1590
        %v1592 = vmul.f32 %v1591, %v1582
        %v1593 = vmul.f32 %v1591, %v1583
        %v1594 = vadd.f32 %v1574, %v1592
        %v1595 = vadd.f32 %v1575, %v1593
        %1596 = vrot.lane.b32.xlu0 %v596, 113
        %v1597 = vpop.permute.xlu0 %1596
        %1598 = vrot.lane.b32.xlu0 %v597, 113
        %v1599 = vpop.permute.xlu0 %1598
        %v1600 = vsel %vm1053, %v1597, %v1599
        %v1601 = vsel %vm1053, %v1599, %v1597
        %v1602 = vmul.f32 %v1600, %v459
        %v1603 = vmul.f32 %v1601, %v463
        %s1604 = sld [smem:[#allocation9 + $0x2a]]
        %v1605 = vstv %s1604
        %v1606 = vmul.f32 %v1605, %v1602
        %v1607 = vmul.f32 %v1605, %v1603
        %v1608 = vadd.f32 %v1588, %v1606
        %v1609 = vadd.f32 %v1589, %v1607
        %s1610 = sld [smem:[#allocation9 + $0x96]]
        %v1611 = vstv %s1610
        %v1612 = vmul.f32 %v1611, %v1602
        %v1613 = vmul.f32 %v1611, %v1603
        %v1614 = vadd.f32 %v1594, %v1612
        %v1615 = vadd.f32 %v1595, %v1613
        %1616 = vrot.lane.b32.xlu0 %v1238, 113
        %v1617 = vpop.permute.xlu0 %1616
        %1618 = vrot.lane.b32.xlu0 %v1239, 113
        %v1619 = vpop.permute.xlu0 %1618
        %v1620 = vsel %vm1053, %v1617, %v1619
        %v1621 = vsel %vm1053, %v1619, %v1617
        %v1622 = vmul.f32 %v1620, %v459
        %v1623 = vmul.f32 %v1621, %v463
        %s1624 = sld [smem:[#allocation9 + $0x33]]
        %v1625 = vstv %s1624
        %v1626 = vmul.f32 %v1625, %v1622
        %v1627 = vmul.f32 %v1625, %v1623
        %v1628 = vadd.f32 %v1608, %v1626
        %v1629 = vadd.f32 %v1609, %v1627
        %s1630 = sld [smem:[#allocation9 + $0x9f]]
        %v1631 = vstv %s1630
        %v1632 = vmul.f32 %v1631, %v1622
        %v1633 = vmul.f32 %v1631, %v1623
        %v1634 = vadd.f32 %v1614, %v1632
        %v1635 = vadd.f32 %v1615, %v1633
        %1636 = vrot.lane.b32.xlu0 %v1234, 112
        %v1637 = vpop.permute.xlu0 %1636
        %1638 = vrot.lane.b32.xlu0 %v1235, 112
        %v1639 = vpop.permute.xlu0 %1638
        %v1640 = vsel %vm1114, %v1637, %v1639
        %v1641 = vsel %vm1114, %v1639, %v1637
        %v1642 = vmul.f32 %v1640, %v472
        %v1643 = vmul.f32 %v1641, %v476
        %s1644 = sld [smem:[#allocation9 + $0x22]]
        %v1645 = vstv %s1644
        %v1646 = vmul.f32 %v1645, %v1642
        %v1647 = vmul.f32 %v1645, %v1643
        %v1648 = vadd.f32 %v1628, %v1646
        %v1649 = vadd.f32 %v1629, %v1647
        %s1650 = sld [smem:[#allocation9 + $0x8e]]
        %v1651 = vstv %s1650
        %v1652 = vmul.f32 %v1651, %v1642
        %v1653 = vmul.f32 %v1651, %v1643
        %v1654 = vadd.f32 %v1634, %v1652
        %v1655 = vadd.f32 %v1635, %v1653
        %1656 = vrot.lane.b32.xlu0 %v596, 112
        %v1657 = vpop.permute.xlu0 %1656
        %1658 = vrot.lane.b32.xlu0 %v597, 112
        %v1659 = vpop.permute.xlu0 %1658
        %v1660 = vsel %vm1114, %v1657, %v1659
        %v1661 = vsel %vm1114, %v1659, %v1657
        %v1662 = vmul.f32 %v1660, %v472
        %v1663 = vmul.f32 %v1661, %v476
        %s1664 = sld [smem:[#allocation9 + $0x2b]]
        %v1665 = vstv %s1664
        %v1666 = vmul.f32 %v1665, %v1662
        %v1667 = vmul.f32 %v1665, %v1663
        %v1668 = vadd.f32 %v1648, %v1666
        %v1669 = vadd.f32 %v1649, %v1667
        %s1670 = sld [smem:[#allocation9 + $0x97]]
        %v1671 = vstv %s1670
        %v1672 = vmul.f32 %v1671, %v1662
        %v1673 = vmul.f32 %v1671, %v1663
        %v1674 = vadd.f32 %v1654, %v1672
        %v1675 = vadd.f32 %v1655, %v1673
        %1676 = vrot.lane.b32.xlu0 %v1238, 112
        %v1677 = vpop.permute.xlu0 %1676
        %1678 = vrot.lane.b32.xlu0 %v1239, 112
        %v1679 = vpop.permute.xlu0 %1678
        %v1680 = vsel %vm1114, %v1677, %v1679
        %v1681 = vsel %vm1114, %v1679, %v1677
        %v1682 = vmul.f32 %v1680, %v472
        %v1683 = vmul.f32 %v1681, %v476
        %s1684 = sld [smem:[#allocation9 + $0x34]]
        %v1685 = vstv %s1684
        %v1686 = vmul.f32 %v1685, %v1682
        %v1687 = vmul.f32 %v1685, %v1683
        %v1688 = vadd.f32 %v1668, %v1686
        %v1689 = vadd.f32 %v1669, %v1687
        %s1690 = sld [smem:[#allocation9 + $0xa0]]
        %v1691 = vstv %s1690
        %v1692 = vmul.f32 %v1691, %v1682
        %v1693 = vmul.f32 %v1691, %v1683
        %v1694 = vadd.f32 %v1674, %v1692
        %v1695 = vadd.f32 %v1675, %v1693
        %1696 = vrot.lane.b32.xlu0 %v1234, 111
        %v1697 = vpop.permute.xlu0 %1696
        %1698 = vrot.lane.b32.xlu0 %v1235, 111
        %v1699 = vpop.permute.xlu0 %1698
        %v1700 = vsel %vm1175, %v1697, %v1699
        %v1701 = vsel %vm1175, %v1699, %v1697
        %v1702 = vmul.f32 %v1700, %v485
        %v1703 = vmul.f32 %v1701, %v489
        %s1704 = sld [smem:[#allocation9 + $0x23]]
        %v1705 = vstv %s1704
        %v1706 = vmul.f32 %v1705, %v1702
        %v1707 = vmul.f32 %v1705, %v1703
        %v1708 = vadd.f32 %v1688, %v1706
        %v1709 = vadd.f32 %v1689, %v1707
        %s1710 = sld [smem:[#allocation9 + $0x8f]]
        %v1711 = vstv %s1710
        %v1712 = vmul.f32 %v1711, %v1702
        %v1713 = vmul.f32 %v1711, %v1703
        %v1714 = vadd.f32 %v1694, %v1712
        %v1715 = vadd.f32 %v1695, %v1713
        %1716 = vrot.lane.b32.xlu0 %v596, 111
        %v1717 = vpop.permute.xlu0 %1716
        %1718 = vrot.lane.b32.xlu0 %v597, 111
        %v1719 = vpop.permute.xlu0 %1718
        %v1720 = vsel %vm1175, %v1717, %v1719
        %v1721 = vsel %vm1175, %v1719, %v1717
        %v1722 = vmul.f32 %v1720, %v485
        %v1723 = vmul.f32 %v1721, %v489
        %s1724 = sld [smem:[#allocation9 + $0x2c]]
        %v1725 = vstv %s1724
        %v1726 = vmul.f32 %v1725, %v1722
        %v1727 = vmul.f32 %v1725, %v1723
        %v1728 = vadd.f32 %v1708, %v1726
        %v1729 = vadd.f32 %v1709, %v1727
        %s1730 = sld [smem:[#allocation9 + $0x98]]
        %v1731 = vstv %s1730
        %v1732 = vmul.f32 %v1731, %v1722
        %v1733 = vmul.f32 %v1731, %v1723
        %v1734 = vadd.f32 %v1714, %v1732
        %v1735 = vadd.f32 %v1715, %v1733
        %1736 = vrot.lane.b32.xlu0 %v1238, 111
        %v1737 = vpop.permute.xlu0 %1736
        %1738 = vrot.lane.b32.xlu0 %v1239, 111
        %v1739 = vpop.permute.xlu0 %1738
        %v1740 = vsel %vm1175, %v1737, %v1739
        %v1741 = vsel %vm1175, %v1739, %v1737
        %v1742 = vmul.f32 %v1740, %v485
        %v1743 = vmul.f32 %v1741, %v489
        %s1744 = sld [smem:[#allocation9 + $0x35]]
        %v1745 = vstv %s1744
        %v1746 = vmul.f32 %v1745, %v1742
        %v1747 = vmul.f32 %v1745, %v1743
        %v1748 = vadd.f32 %v1728, %v1746
        %v1749 = vadd.f32 %v1729, %v1747
        %s1750 = sld [smem:[#allocation9 + $0xa1]]
        %v1751 = vstv %s1750
        %v1752 = vmul.f32 %v1751, %v1742
        %v1753 = vmul.f32 %v1751, %v1743
        %v1754 = vadd.f32 %v1734, %v1752
        %v1755 = vadd.f32 %v1735, %v1753
        %v1756 = vrot.slane %v644, 7
        %v1757 = vrot.slane %v645, 7
        %v1758 = vmul.f32 %v1756, %v380
        %v1759 = vmul.f32 %v1757, %v380
        %v1760 = vrot.slane %v644, 1
        %v1761 = vrot.slane %v645, 1
        %v1762 = vmul.f32 %v1760, %v387
        %v1763 = vmul.f32 %v1761, %v387
        %1764 = vrot.lane.b32.xlu0 %v1758, 17
        %v1765 = vpop.permute.xlu0 %1764
        %1766 = vrot.lane.b32.xlu0 %v1759, 17
        %v1767 = vpop.permute.xlu0 %1766
        %v1768 = vsel %vm712, %v1765, %v1767
        %v1769 = vsel %vm712, %v1767, %v1765
        %v1770 = vmul.f32 %v1769, %v394
        %v1771 = vmul.f32 %v1768, %v398
        %s1772 = sld [smem:[#allocation9 + $0x36]]
        %v1773 = vstv %s1772
        %v1774 = vmul.f32 %v1773, %v1770
        %v1775 = vmul.f32 %v1773, %v1771
        %v1776 = vadd.f32 %v1748, %v1774
        %v1777 = vadd.f32 %v1749, %v1775
        %s1778 = sld [smem:[#allocation9 + $0xa2]]
        %v1779 = vstv %s1778
        %v1780 = vmul.f32 %v1779, %v1770
        %v1781 = vmul.f32 %v1779, %v1771
        %v1782 = vadd.f32 %v1754, %v1780
        %v1783 = vadd.f32 %v1755, %v1781
        %1784 = vrot.lane.b32.xlu0 %v644, 17
        %v1785 = vpop.permute.xlu0 %1784
        %1786 = vrot.lane.b32.xlu0 %v645, 17
        %v1787 = vpop.permute.xlu0 %1786
        %v1788 = vsel %vm712, %v1785, %v1787
        %v1789 = vsel %vm712, %v1787, %v1785
        %v1790 = vmul.f32 %v1789, %v394
        %v1791 = vmul.f32 %v1788, %v398
        %s1792 = sld [smem:[#allocation9 + $0x3f]]
        %v1793 = vstv %s1792
        %v1794 = vmul.f32 %v1793, %v1790
        %v1795 = vmul.f32 %v1793, %v1791
        %v1796 = vadd.f32 %v1776, %v1794
        %v1797 = vadd.f32 %v1777, %v1795
        %s1798 = sld [smem:[#allocation9 + $0xab]]
        %v1799 = vstv %s1798
        %v1800 = vmul.f32 %v1799, %v1790
        %v1801 = vmul.f32 %v1799, %v1791
        %v1802 = vadd.f32 %v1782, %v1800
        %v1803 = vadd.f32 %v1783, %v1801
        %1804 = vrot.lane.b32.xlu0 %v1762, 17
        %v1805 = vpop.permute.xlu0 %1804
        %1806 = vrot.lane.b32.xlu0 %v1763, 17
        %v1807 = vpop.permute.xlu0 %1806
        %v1808 = vsel %vm712, %v1805, %v1807
        %v1809 = vsel %vm712, %v1807, %v1805
        %v1810 = vmul.f32 %v1809, %v394
        %v1811 = vmul.f32 %v1808, %v398
        %s1812 = sld [smem:[#allocation9 + $0x48]]
        %v1813 = vstv %s1812
        %v1814 = vmul.f32 %v1813, %v1810
        %v1815 = vmul.f32 %v1813, %v1811
        %v1816 = vadd.f32 %v1796, %v1814
        %v1817 = vadd.f32 %v1797, %v1815
        %s1818 = sld [smem:[#allocation9 + $0xb4]]
        %v1819 = vstv %s1818
        %v1820 = vmul.f32 %v1819, %v1810
        %v1821 = vmul.f32 %v1819, %v1811
        %v1822 = vadd.f32 %v1802, %v1820
        %v1823 = vadd.f32 %v1803, %v1821
        %1824 = vrot.lane.b32.xlu0 %v1758, 16
        %v1825 = vpop.permute.xlu0 %1824
        %1826 = vrot.lane.b32.xlu0 %v1759, 16
        %v1827 = vpop.permute.xlu0 %1826
        %v1828 = vsel %vm773, %v1825, %v1827
        %v1829 = vsel %vm773, %v1827, %v1825
        %v1830 = vmul.f32 %v1829, %v407
        %v1831 = vmul.f32 %v1828, %v411
        %s1832 = sld [smem:[#allocation9 + $0x37]]
        %v1833 = vstv %s1832
        %v1834 = vmul.f32 %v1833, %v1830
        %v1835 = vmul.f32 %v1833, %v1831
        %v1836 = vadd.f32 %v1816, %v1834
        %v1837 = vadd.f32 %v1817, %v1835
        %s1838 = sld [smem:[#allocation9 + $0xa3]]
        %v1839 = vstv %s1838
        %v1840 = vmul.f32 %v1839, %v1830
        %v1841 = vmul.f32 %v1839, %v1831
        %v1842 = vadd.f32 %v1822, %v1840
        %v1843 = vadd.f32 %v1823, %v1841
        %1844 = vrot.lane.b32.xlu0 %v644, 16
        %v1845 = vpop.permute.xlu0 %1844
        %1846 = vrot.lane.b32.xlu0 %v645, 16
        %v1847 = vpop.permute.xlu0 %1846
        %v1848 = vsel %vm773, %v1845, %v1847
        %v1849 = vsel %vm773, %v1847, %v1845
        %v1850 = vmul.f32 %v1849, %v407
        %v1851 = vmul.f32 %v1848, %v411
        %s1852 = sld [smem:[#allocation9 + $0x40]]
        %v1853 = vstv %s1852
        %v1854 = vmul.f32 %v1853, %v1850
        %v1855 = vmul.f32 %v1853, %v1851
        %v1856 = vadd.f32 %v1836, %v1854
        %v1857 = vadd.f32 %v1837, %v1855
        %s1858 = sld [smem:[#allocation9 + $0xac]]
        %v1859 = vstv %s1858
        %v1860 = vmul.f32 %v1859, %v1850
        %v1861 = vmul.f32 %v1859, %v1851
        %v1862 = vadd.f32 %v1842, %v1860
        %v1863 = vadd.f32 %v1843, %v1861
        %1864 = vrot.lane.b32.xlu0 %v1762, 16
        %v1865 = vpop.permute.xlu0 %1864
        %1866 = vrot.lane.b32.xlu0 %v1763, 16
        %v1867 = vpop.permute.xlu0 %1866
        %v1868 = vsel %vm773, %v1865, %v1867
        %v1869 = vsel %vm773, %v1867, %v1865
        %v1870 = vmul.f32 %v1869, %v407
        %v1871 = vmul.f32 %v1868, %v411
        %s1872 = sld [smem:[#allocation9 + $0x49]]
        %v1873 = vstv %s1872
        %v1874 = vmul.f32 %v1873, %v1870
        %v1875 = vmul.f32 %v1873, %v1871
        %v1876 = vadd.f32 %v1856, %v1874
        %v1877 = vadd.f32 %v1857, %v1875
        %s1878 = sld [smem:[#allocation9 + $0xb5]]
        %v1879 = vstv %s1878
        %v1880 = vmul.f32 %v1879, %v1870
        %v1881 = vmul.f32 %v1879, %v1871
        %v1882 = vadd.f32 %v1862, %v1880
        %v1883 = vadd.f32 %v1863, %v1881
        %1884 = vrot.lane.b32.xlu0 %v1758, 15
        %v1885 = vpop.permute.xlu0 %1884
        %1886 = vrot.lane.b32.xlu0 %v1759, 15
        %v1887 = vpop.permute.xlu0 %1886
        %v1888 = vsel %vm834, %v1885, %v1887
        %v1889 = vsel %vm834, %v1887, %v1885
        %v1890 = vmul.f32 %v1889, %v420
        %v1891 = vmul.f32 %v1888, %v424
        %s1892 = sld [smem:[#allocation9 + $0x38]]
        %v1893 = vstv %s1892
        %v1894 = vmul.f32 %v1893, %v1890
        %v1895 = vmul.f32 %v1893, %v1891
        %v1896 = vadd.f32 %v1876, %v1894
        %v1897 = vadd.f32 %v1877, %v1895
        %s1898 = sld [smem:[#allocation9 + $0xa4]]
        %v1899 = vstv %s1898
        %v1900 = vmul.f32 %v1899, %v1890
        %v1901 = vmul.f32 %v1899, %v1891
        %v1902 = vadd.f32 %v1882, %v1900
        %v1903 = vadd.f32 %v1883, %v1901
        %1904 = vrot.lane.b32.xlu0 %v644, 15
        %v1905 = vpop.permute.xlu0 %1904
        %1906 = vrot.lane.b32.xlu0 %v645, 15
        %v1907 = vpop.permute.xlu0 %1906
        %v1908 = vsel %vm834, %v1905, %v1907
        %v1909 = vsel %vm834, %v1907, %v1905
        %v1910 = vmul.f32 %v1909, %v420
        %v1911 = vmul.f32 %v1908, %v424
        %s1912 = sld [smem:[#allocation9 + $0x41]]
        %v1913 = vstv %s1912
        %v1914 = vmul.f32 %v1913, %v1910
        %v1915 = vmul.f32 %v1913, %v1911
        %v1916 = vadd.f32 %v1896, %v1914
        %v1917 = vadd.f32 %v1897, %v1915
        %s1918 = sld [smem:[#allocation9 + $0xad]]
        %v1919 = vstv %s1918
        %v1920 = vmul.f32 %v1919, %v1910
        %v1921 = vmul.f32 %v1919, %v1911
        %v1922 = vadd.f32 %v1902, %v1920
        %v1923 = vadd.f32 %v1903, %v1921
        %1924 = vrot.lane.b32.xlu0 %v1762, 15
        %v1925 = vpop.permute.xlu0 %1924
        %1926 = vrot.lane.b32.xlu0 %v1763, 15
        %v1927 = vpop.permute.xlu0 %1926
        %v1928 = vsel %vm834, %v1925, %v1927
        %v1929 = vsel %vm834, %v1927, %v1925
        %v1930 = vmul.f32 %v1929, %v420
        %v1931 = vmul.f32 %v1928, %v424
        %s1932 = sld [smem:[#allocation9 + $0x4a]]
        %v1933 = vstv %s1932
        %v1934 = vmul.f32 %v1933, %v1930
        %v1935 = vmul.f32 %v1933, %v1931
        %v1936 = vadd.f32 %v1916, %v1934
        %v1937 = vadd.f32 %v1917, %v1935
        %s1938 = sld [smem:[#allocation9 + $0xb6]]
        %v1939 = vstv %s1938
        %v1940 = vmul.f32 %v1939, %v1930
        %v1941 = vmul.f32 %v1939, %v1931
        %v1942 = vadd.f32 %v1922, %v1940
        %v1943 = vadd.f32 %v1923, %v1941
        %1944 = vrot.lane.b32.xlu0 %v1758, 1
        %v1945 = vpop.permute.xlu0 %1944
        %1946 = vrot.lane.b32.xlu0 %v1759, 1
        %v1947 = vpop.permute.xlu0 %1946
        %v1948 = vsel %vm895, %v1945, %v1947
        %v1949 = vsel %vm895, %v1947, %v1945
        %v1950 = vmul.f32 %v1949, %v433
        %v1951 = vmul.f32 %v1948, %v437
        %s1952 = sld [smem:[#allocation9 + $0x39]]
        %v1953 = vstv %s1952
        %v1954 = vmul.f32 %v1953, %v1950
        %v1955 = vmul.f32 %v1953, %v1951
        %v1956 = vadd.f32 %v1936, %v1954
        %v1957 = vadd.f32 %v1937, %v1955
        %s1958 = sld [smem:[#allocation9 + $0xa5]]
        %v1959 = vstv %s1958
        %v1960 = vmul.f32 %v1959, %v1950
        %v1961 = vmul.f32 %v1959, %v1951
        %v1962 = vadd.f32 %v1942, %v1960
        %v1963 = vadd.f32 %v1943, %v1961
        %1964 = vrot.lane.b32.xlu0 %v644, 1
        %v1965 = vpop.permute.xlu0 %1964
        %1966 = vrot.lane.b32.xlu0 %v645, 1
        %v1967 = vpop.permute.xlu0 %1966
        %v1968 = vsel %vm895, %v1965, %v1967
        %v1969 = vsel %vm895, %v1967, %v1965
        %v1970 = vmul.f32 %v1969, %v433
        %v1971 = vmul.f32 %v1968, %v437
        %s1972 = sld [smem:[#allocation9 + $0x42]]
        %v1973 = vstv %s1972
        %v1974 = vmul.f32 %v1973, %v1970
        %v1975 = vmul.f32 %v1973, %v1971
        %v1976 = vadd.f32 %v1956, %v1974
        %v1977 = vadd.f32 %v1957, %v1975
        %s1978 = sld [smem:[#allocation9 + $0xae]]
        %v1979 = vstv %s1978
        %v1980 = vmul.f32 %v1979, %v1970
        %v1981 = vmul.f32 %v1979, %v1971
        %v1982 = vadd.f32 %v1962, %v1980
        %v1983 = vadd.f32 %v1963, %v1981
        %1984 = vrot.lane.b32.xlu0 %v1762, 1
        %v1985 = vpop.permute.xlu0 %1984
        %1986 = vrot.lane.b32.xlu0 %v1763, 1
        %v1987 = vpop.permute.xlu0 %1986
        %v1988 = vsel %vm895, %v1985, %v1987
        %v1989 = vsel %vm895, %v1987, %v1985
        %v1990 = vmul.f32 %v1989, %v433
        %v1991 = vmul.f32 %v1988, %v437
        %s1992 = sld [smem:[#allocation9 + $0x4b]]
        %v1993 = vstv %s1992
        %v1994 = vmul.f32 %v1993, %v1990
        %v1995 = vmul.f32 %v1993, %v1991
        %v1996 = vadd.f32 %v1976, %v1994
        %v1997 = vadd.f32 %v1977, %v1995
        %s1998 = sld [smem:[#allocation9 + $0xb7]]
        %v1999 = vstv %s1998
        %v2000 = vmul.f32 %v1999, %v1990
        %v2001 = vmul.f32 %v1999, %v1991
        %v2002 = vadd.f32 %v1982, %v2000
        %v2003 = vadd.f32 %v1983, %v2001
        %s2004 = sld [smem:[#allocation9 + $0x3a]]
        %v2005 = vstv %s2004
        %v2006 = vmul.f32 %v2005, %v1758
        %v2007 = vmul.f32 %v2005, %v1759
        %v2008 = vadd.f32 %v1996, %v2006
        %v2009 = vadd.f32 %v1997, %v2007
        %s2010 = sld [smem:[#allocation9 + $0xa6]]
        %v2011 = vstv %s2010
        %v2012 = vmul.f32 %v2011, %v1758
        %v2013 = vmul.f32 %v2011, %v1759
        %v2014 = vadd.f32 %v2002, %v2012
        %v2015 = vadd.f32 %v2003, %v2013
        %s2016 = sld [smem:[#allocation9 + $0x43]]
        %v2017 = vstv %s2016
        %v2018 = vmul.f32 %v2017, %v644
        %v2019 = vmul.f32 %v2017, %v645
        %v2020 = vadd.f32 %v2008, %v2018
        %v2021 = vadd.f32 %v2009, %v2019
        %s2022 = sld [smem:[#allocation9 + $0xaf]]
        %v2023 = vstv %s2022
        %v2024 = vmul.f32 %v2023, %v644
        %v2025 = vmul.f32 %v2023, %v645
        %v2026 = vadd.f32 %v2014, %v2024
        %v2027 = vadd.f32 %v2015, %v2025
        %s2028 = sld [smem:[#allocation9 + $0x4c]]
        %v2029 = vstv %s2028
        %v2030 = vmul.f32 %v2029, %v1762
        %v2031 = vmul.f32 %v2029, %v1763
        %v2032 = vadd.f32 %v2020, %v2030
        %v2033 = vadd.f32 %v2021, %v2031
        %s2034 = sld [smem:[#allocation9 + $0xb8]]
        %v2035 = vstv %s2034
        %v2036 = vmul.f32 %v2035, %v1762
        %v2037 = vmul.f32 %v2035, %v1763
        %v2038 = vadd.f32 %v2026, %v2036
        %v2039 = vadd.f32 %v2027, %v2037
        %2040 = vrot.lane.b32.xlu0 %v1758, 127
        %v2041 = vpop.permute.xlu0 %2040
        %2042 = vrot.lane.b32.xlu0 %v1759, 127
        %v2043 = vpop.permute.xlu0 %2042
        %v2044 = vsel %vm992, %v2041, %v2043
        %v2045 = vsel %vm992, %v2043, %v2041
        %v2046 = vmul.f32 %v2044, %v446
        %v2047 = vmul.f32 %v2045, %v450
        %s2048 = sld [smem:[#allocation9 + $0x3b]]
        %v2049 = vstv %s2048
        %v2050 = vmul.f32 %v2049, %v2046
        %v2051 = vmul.f32 %v2049, %v2047
        %v2052 = vadd.f32 %v2032, %v2050
        %v2053 = vadd.f32 %v2033, %v2051
        %s2054 = sld [smem:[#allocation9 + $0xa7]]
        %v2055 = vstv %s2054
        %v2056 = vmul.f32 %v2055, %v2046
        %v2057 = vmul.f32 %v2055, %v2047
        %v2058 = vadd.f32 %v2038, %v2056
        %v2059 = vadd.f32 %v2039, %v2057
        %2060 = vrot.lane.b32.xlu0 %v644, 127
        %v2061 = vpop.permute.xlu0 %2060
        %2062 = vrot.lane.b32.xlu0 %v645, 127
        %v2063 = vpop.permute.xlu0 %2062
        %v2064 = vsel %vm992, %v2061, %v2063
        %v2065 = vsel %vm992, %v2063, %v2061
        %v2066 = vmul.f32 %v2064, %v446
        %v2067 = vmul.f32 %v2065, %v450
        %s2068 = sld [smem:[#allocation9 + $0x44]]
        %v2069 = vstv %s2068
        %v2070 = vmul.f32 %v2069, %v2066
        %v2071 = vmul.f32 %v2069, %v2067
        %v2072 = vadd.f32 %v2052, %v2070
        %v2073 = vadd.f32 %v2053, %v2071
        %s2074 = sld [smem:[#allocation9 + $0xb0]]
        %v2075 = vstv %s2074
        %v2076 = vmul.f32 %v2075, %v2066
        %v2077 = vmul.f32 %v2075, %v2067
        %v2078 = vadd.f32 %v2058, %v2076
        %v2079 = vadd.f32 %v2059, %v2077
        %2080 = vrot.lane.b32.xlu0 %v1762, 127
        %v2081 = vpop.permute.xlu0 %2080
        %2082 = vrot.lane.b32.xlu0 %v1763, 127
        %v2083 = vpop.permute.xlu0 %2082
        %v2084 = vsel %vm992, %v2081, %v2083
        %v2085 = vsel %vm992, %v2083, %v2081
        %v2086 = vmul.f32 %v2084, %v446
        %v2087 = vmul.f32 %v2085, %v450
        %s2088 = sld [smem:[#allocation9 + $0x4d]]
        %v2089 = vstv %s2088
        %v2090 = vmul.f32 %v2089, %v2086
        %v2091 = vmul.f32 %v2089, %v2087
        %v2092 = vadd.f32 %v2072, %v2090
        %v2093 = vadd.f32 %v2073, %v2091
        %s2094 = sld [smem:[#allocation9 + $0xb9]]
        %v2095 = vstv %s2094
        %v2096 = vmul.f32 %v2095, %v2086
        %v2097 = vmul.f32 %v2095, %v2087
        %v2098 = vadd.f32 %v2078, %v2096
        %v2099 = vadd.f32 %v2079, %v2097
        %2100 = vrot.lane.b32.xlu0 %v1758, 113
        %v2101 = vpop.permute.xlu0 %2100
        %2102 = vrot.lane.b32.xlu0 %v1759, 113
        %v2103 = vpop.permute.xlu0 %2102
        %v2104 = vsel %vm1053, %v2101, %v2103
        %v2105 = vsel %vm1053, %v2103, %v2101
        %v2106 = vmul.f32 %v2104, %v459
        %v2107 = vmul.f32 %v2105, %v463
        %s2108 = sld [smem:[#allocation9 + $0x3c]]
        %v2109 = vstv %s2108
        %v2110 = vmul.f32 %v2109, %v2106
        %v2111 = vmul.f32 %v2109, %v2107
        %v2112 = vadd.f32 %v2092, %v2110
        %v2113 = vadd.f32 %v2093, %v2111
        %s2114 = sld [smem:[#allocation9 + $0xa8]]
        %v2115 = vstv %s2114
        %v2116 = vmul.f32 %v2115, %v2106
        %v2117 = vmul.f32 %v2115, %v2107
        %v2118 = vadd.f32 %v2098, %v2116
        %v2119 = vadd.f32 %v2099, %v2117
        %2120 = vrot.lane.b32.xlu0 %v644, 113
        %v2121 = vpop.permute.xlu0 %2120
        %2122 = vrot.lane.b32.xlu0 %v645, 113
        %v2123 = vpop.permute.xlu0 %2122
        %v2124 = vsel %vm1053, %v2121, %v2123
        %v2125 = vsel %vm1053, %v2123, %v2121
        %v2126 = vmul.f32 %v2124, %v459
        %v2127 = vmul.f32 %v2125, %v463
        %s2128 = sld [smem:[#allocation9 + $0x45]]
        %v2129 = vstv %s2128
        %v2130 = vmul.f32 %v2129, %v2126
        %v2131 = vmul.f32 %v2129, %v2127
        %v2132 = vadd.f32 %v2112, %v2130
        %v2133 = vadd.f32 %v2113, %v2131
        %s2134 = sld [smem:[#allocation9 + $0xb1]]
        %v2135 = vstv %s2134
        %v2136 = vmul.f32 %v2135, %v2126
        %v2137 = vmul.f32 %v2135, %v2127
        %v2138 = vadd.f32 %v2118, %v2136
        %v2139 = vadd.f32 %v2119, %v2137
        %2140 = vrot.lane.b32.xlu0 %v1762, 113
        %v2141 = vpop.permute.xlu0 %2140
        %2142 = vrot.lane.b32.xlu0 %v1763, 113
        %v2143 = vpop.permute.xlu0 %2142
        %v2144 = vsel %vm1053, %v2141, %v2143
        %v2145 = vsel %vm1053, %v2143, %v2141
        %v2146 = vmul.f32 %v2144, %v459
        %v2147 = vmul.f32 %v2145, %v463
        %s2148 = sld [smem:[#allocation9 + $0x4e]]
        %v2149 = vstv %s2148
        %v2150 = vmul.f32 %v2149, %v2146
        %v2151 = vmul.f32 %v2149, %v2147
        %v2152 = vadd.f32 %v2132, %v2150
        %v2153 = vadd.f32 %v2133, %v2151
        %s2154 = sld [smem:[#allocation9 + $0xba]]
        %v2155 = vstv %s2154
        %v2156 = vmul.f32 %v2155, %v2146
        %v2157 = vmul.f32 %v2155, %v2147
        %v2158 = vadd.f32 %v2138, %v2156
        %v2159 = vadd.f32 %v2139, %v2157
        %2160 = vrot.lane.b32.xlu0 %v1758, 112
        %v2161 = vpop.permute.xlu0 %2160
        %2162 = vrot.lane.b32.xlu0 %v1759, 112
        %v2163 = vpop.permute.xlu0 %2162
        %v2164 = vsel %vm1114, %v2161, %v2163
        %v2165 = vsel %vm1114, %v2163, %v2161
        %v2166 = vmul.f32 %v2164, %v472
        %v2167 = vmul.f32 %v2165, %v476
        %s2168 = sld [smem:[#allocation9 + $0x3d]]
        %v2169 = vstv %s2168
        %v2170 = vmul.f32 %v2169, %v2166
        %v2171 = vmul.f32 %v2169, %v2167
        %v2172 = vadd.f32 %v2152, %v2170
        %v2173 = vadd.f32 %v2153, %v2171
        %s2174 = sld [smem:[#allocation9 + $0xa9]]
        %v2175 = vstv %s2174
        %v2176 = vmul.f32 %v2175, %v2166
        %v2177 = vmul.f32 %v2175, %v2167
        %v2178 = vadd.f32 %v2158, %v2176
        %v2179 = vadd.f32 %v2159, %v2177
        %2180 = vrot.lane.b32.xlu0 %v644, 112
        %v2181 = vpop.permute.xlu0 %2180
        %2182 = vrot.lane.b32.xlu0 %v645, 112
        %v2183 = vpop.permute.xlu0 %2182
        %v2184 = vsel %vm1114, %v2181, %v2183
        %v2185 = vsel %vm1114, %v2183, %v2181
        %v2186 = vmul.f32 %v2184, %v472
        %v2187 = vmul.f32 %v2185, %v476
        %s2188 = sld [smem:[#allocation9 + $0x46]]
        %v2189 = vstv %s2188
        %v2190 = vmul.f32 %v2189, %v2186
        %v2191 = vmul.f32 %v2189, %v2187
        %v2192 = vadd.f32 %v2172, %v2190
        %v2193 = vadd.f32 %v2173, %v2191
        %s2194 = sld [smem:[#allocation9 + $0xb2]]
        %v2195 = vstv %s2194
        %v2196 = vmul.f32 %v2195, %v2186
        %v2197 = vmul.f32 %v2195, %v2187
        %v2198 = vadd.f32 %v2178, %v2196
        %v2199 = vadd.f32 %v2179, %v2197
        %2200 = vrot.lane.b32.xlu0 %v1762, 112
        %v2201 = vpop.permute.xlu0 %2200
        %2202 = vrot.lane.b32.xlu0 %v1763, 112
        %v2203 = vpop.permute.xlu0 %2202
        %v2204 = vsel %vm1114, %v2201, %v2203
        %v2205 = vsel %vm1114, %v2203, %v2201
        %v2206 = vmul.f32 %v2204, %v472
        %v2207 = vmul.f32 %v2205, %v476
        %s2208 = sld [smem:[#allocation9 + $0x4f]]
        %v2209 = vstv %s2208
        %v2210 = vmul.f32 %v2209, %v2206
        %v2211 = vmul.f32 %v2209, %v2207
        %v2212 = vadd.f32 %v2192, %v2210
        %v2213 = vadd.f32 %v2193, %v2211
        %s2214 = sld [smem:[#allocation9 + $0xbb]]
        %v2215 = vstv %s2214
        %v2216 = vmul.f32 %v2215, %v2206
        %v2217 = vmul.f32 %v2215, %v2207
        %v2218 = vadd.f32 %v2198, %v2216
        %v2219 = vadd.f32 %v2199, %v2217
        %2220 = vrot.lane.b32.xlu0 %v1758, 111
        %v2221 = vpop.permute.xlu0 %2220
        %2222 = vrot.lane.b32.xlu0 %v1759, 111
        %v2223 = vpop.permute.xlu0 %2222
        %v2224 = vsel %vm1175, %v2221, %v2223
        %v2225 = vsel %vm1175, %v2223, %v2221
        %v2226 = vmul.f32 %v2224, %v485
        %v2227 = vmul.f32 %v2225, %v489
        %s2228 = sld [smem:[#allocation9 + $0x3e]]
        %v2229 = vstv %s2228
        %v2230 = vmul.f32 %v2229, %v2226
        %v2231 = vmul.f32 %v2229, %v2227
        %v2232 = vadd.f32 %v2212, %v2230
        %v2233 = vadd.f32 %v2213, %v2231
        %s2234 = sld [smem:[#allocation9 + $0xaa]]
        %v2235 = vstv %s2234
        %v2236 = vmul.f32 %v2235, %v2226
        %v2237 = vmul.f32 %v2235, %v2227
        %v2238 = vadd.f32 %v2218, %v2236
        %v2239 = vadd.f32 %v2219, %v2237
        %2240 = vrot.lane.b32.xlu0 %v644, 111
        %v2241 = vpop.permute.xlu0 %2240
        %2242 = vrot.lane.b32.xlu0 %v645, 111
        %v2243 = vpop.permute.xlu0 %2242
        %v2244 = vsel %vm1175, %v2241, %v2243
        %v2245 = vsel %vm1175, %v2243, %v2241
        %v2246 = vmul.f32 %v2244, %v485
        %v2247 = vmul.f32 %v2245, %v489
        %s2248 = sld [smem:[#allocation9 + $0x47]]
        %v2249 = vstv %s2248
        %v2250 = vmul.f32 %v2249, %v2246
        %v2251 = vmul.f32 %v2249, %v2247
        %v2252 = vadd.f32 %v2232, %v2250
        %v2253 = vadd.f32 %v2233, %v2251
        %s2254 = sld [smem:[#allocation9 + $0xb3]]
        %v2255 = vstv %s2254
        %v2256 = vmul.f32 %v2255, %v2246
        %v2257 = vmul.f32 %v2255, %v2247
        %v2258 = vadd.f32 %v2238, %v2256
        %v2259 = vadd.f32 %v2239, %v2257
        %2260 = vrot.lane.b32.xlu0 %v1762, 111
        %v2261 = vpop.permute.xlu0 %2260
        %2262 = vrot.lane.b32.xlu0 %v1763, 111
        %v2263 = vpop.permute.xlu0 %2262
        %v2264 = vsel %vm1175, %v2261, %v2263
        %v2265 = vsel %vm1175, %v2263, %v2261
        %v2266 = vmul.f32 %v2264, %v485
        %v2267 = vmul.f32 %v2265, %v489
        %s2268 = sld [smem:[#allocation9 + $0x50]]
        %v2269 = vstv %s2268
        %v2270 = vmul.f32 %v2269, %v2266
        %v2271 = vmul.f32 %v2269, %v2267
        %v2272 = vadd.f32 %v2252, %v2270
        %v2273 = vadd.f32 %v2253, %v2271
        %s2274 = sld [smem:[#allocation9 + $0xbc]]
        %v2275 = vstv %s2274
        %v2276 = vmul.f32 %v2275, %v2266
        %v2277 = vmul.f32 %v2275, %v2267
        %v2278 = vadd.f32 %v2258, %v2276
        %v2279 = vadd.f32 %v2259, %v2277
        %v2280 = vrot.slane %v692, 7
        %v2281 = vrot.slane %v693, 7
        %v2282 = vmul.f32 %v2280, %v380
        %v2283 = vmul.f32 %v2281, %v380
        %v2284 = vrot.slane %v692, 1
        %v2285 = vrot.slane %v693, 1
        %v2286 = vmul.f32 %v2284, %v387
        %v2287 = vmul.f32 %v2285, %v387
        %2288 = vrot.lane.b32.xlu0 %v2282, 17
        %v2289 = vpop.permute.xlu0 %2288
        %2290 = vrot.lane.b32.xlu0 %v2283, 17
        %v2291 = vpop.permute.xlu0 %2290
        %v2292 = vsel %vm712, %v2289, %v2291
        %v2293 = vsel %vm712, %v2291, %v2289
        %v2294 = vmul.f32 %v2293, %v394
        %v2295 = vmul.f32 %v2292, %v398
        %s2296 = sld [smem:[#allocation9 + $0x51]]
        %v2297 = vstv %s2296
        %v2298 = vmul.f32 %v2297, %v2294
        %v2299 = vmul.f32 %v2297, %v2295
        %v2300 = vadd.f32 %v2272, %v2298
        %v2301 = vadd.f32 %v2273, %v2299
        %s2302 = sld [smem:[#allocation9 + $0xbd]]
        %v2303 = vstv %s2302
        %v2304 = vmul.f32 %v2303, %v2294
        %v2305 = vmul.f32 %v2303, %v2295
        %v2306 = vadd.f32 %v2278, %v2304
        %v2307 = vadd.f32 %v2279, %v2305
        %2308 = vrot.lane.b32.xlu0 %v692, 17
        %v2309 = vpop.permute.xlu0 %2308
        %2310 = vrot.lane.b32.xlu0 %v693, 17
        %v2311 = vpop.permute.xlu0 %2310
        %v2312 = vsel %vm712, %v2309, %v2311
        %v2313 = vsel %vm712, %v2311, %v2309
        %v2314 = vmul.f32 %v2313, %v394
        %v2315 = vmul.f32 %v2312, %v398
        %s2316 = sld [smem:[#allocation9 + $0x5a]]
        %v2317 = vstv %s2316
        %v2318 = vmul.f32 %v2317, %v2314
        %v2319 = vmul.f32 %v2317, %v2315
        %v2320 = vadd.f32 %v2300, %v2318
        %v2321 = vadd.f32 %v2301, %v2319
        %s2322 = sld [smem:[#allocation9 + $0xc6]]
        %v2323 = vstv %s2322
        %v2324 = vmul.f32 %v2323, %v2314
        %v2325 = vmul.f32 %v2323, %v2315
        %v2326 = vadd.f32 %v2306, %v2324
        %v2327 = vadd.f32 %v2307, %v2325
        %2328 = vrot.lane.b32.xlu0 %v2286, 17
        %v2329 = vpop.permute.xlu0 %2328
        %2330 = vrot.lane.b32.xlu0 %v2287, 17
        %v2331 = vpop.permute.xlu0 %2330
        %v2332 = vsel %vm712, %v2329, %v2331
        %v2333 = vsel %vm712, %v2331, %v2329
        %v2334 = vmul.f32 %v2333, %v394
        %v2335 = vmul.f32 %v2332, %v398
        %s2336 = sld [smem:[#allocation9 + $0x63]]
        %v2337 = vstv %s2336
        %v2338 = vmul.f32 %v2337, %v2334
        %v2339 = vmul.f32 %v2337, %v2335
        %v2340 = vadd.f32 %v2320, %v2338
        %v2341 = vadd.f32 %v2321, %v2339
        %s2342 = sld [smem:[#allocation9 + $0xcf]]
        %v2343 = vstv %s2342
        %v2344 = vmul.f32 %v2343, %v2334
        %v2345 = vmul.f32 %v2343, %v2335
        %v2346 = vadd.f32 %v2326, %v2344
        %v2347 = vadd.f32 %v2327, %v2345
        %2348 = vrot.lane.b32.xlu0 %v2282, 16
        %v2349 = vpop.permute.xlu0 %2348
        %2350 = vrot.lane.b32.xlu0 %v2283, 16
        %v2351 = vpop.permute.xlu0 %2350
        %v2352 = vsel %vm773, %v2349, %v2351
        %v2353 = vsel %vm773, %v2351, %v2349
        %v2354 = vmul.f32 %v2353, %v407
        %v2355 = vmul.f32 %v2352, %v411
        %s2356 = sld [smem:[#allocation9 + $0x52]]
        %v2357 = vstv %s2356
        %v2358 = vmul.f32 %v2357, %v2354
        %v2359 = vmul.f32 %v2357, %v2355
        %v2360 = vadd.f32 %v2340, %v2358
        %v2361 = vadd.f32 %v2341, %v2359
        %s2362 = sld [smem:[#allocation9 + $0xbe]]
        %v2363 = vstv %s2362
        %v2364 = vmul.f32 %v2363, %v2354
        %v2365 = vmul.f32 %v2363, %v2355
        %v2366 = vadd.f32 %v2346, %v2364
        %v2367 = vadd.f32 %v2347, %v2365
        %2368 = vrot.lane.b32.xlu0 %v692, 16
        %v2369 = vpop.permute.xlu0 %2368
        %2370 = vrot.lane.b32.xlu0 %v693, 16
        %v2371 = vpop.permute.xlu0 %2370
        %v2372 = vsel %vm773, %v2369, %v2371
        %v2373 = vsel %vm773, %v2371, %v2369
        %v2374 = vmul.f32 %v2373, %v407
        %v2375 = vmul.f32 %v2372, %v411
        %s2376 = sld [smem:[#allocation9 + $0x5b]]
        %v2377 = vstv %s2376
        %v2378 = vmul.f32 %v2377, %v2374
        %v2379 = vmul.f32 %v2377, %v2375
        %v2380 = vadd.f32 %v2360, %v2378
        %v2381 = vadd.f32 %v2361, %v2379
        %s2382 = sld [smem:[#allocation9 + $0xc7]]
        %v2383 = vstv %s2382
        %v2384 = vmul.f32 %v2383, %v2374
        %v2385 = vmul.f32 %v2383, %v2375
        %v2386 = vadd.f32 %v2366, %v2384
        %v2387 = vadd.f32 %v2367, %v2385
        %2388 = vrot.lane.b32.xlu0 %v2286, 16
        %v2389 = vpop.permute.xlu0 %2388
        %2390 = vrot.lane.b32.xlu0 %v2287, 16
        %v2391 = vpop.permute.xlu0 %2390
        %v2392 = vsel %vm773, %v2389, %v2391
        %v2393 = vsel %vm773, %v2391, %v2389
        %v2394 = vmul.f32 %v2393, %v407
        %v2395 = vmul.f32 %v2392, %v411
        %s2396 = sld [smem:[#allocation9 + $0x64]]
        %v2397 = vstv %s2396
        %v2398 = vmul.f32 %v2397, %v2394
        %v2399 = vmul.f32 %v2397, %v2395
        %v2400 = vadd.f32 %v2380, %v2398
        %v2401 = vadd.f32 %v2381, %v2399
        %s2402 = sld [smem:[#allocation9 + $0xd0]]
        %v2403 = vstv %s2402
        %v2404 = vmul.f32 %v2403, %v2394
        %v2405 = vmul.f32 %v2403, %v2395
        %v2406 = vadd.f32 %v2386, %v2404
        %v2407 = vadd.f32 %v2387, %v2405
        %2408 = vrot.lane.b32.xlu0 %v2282, 15
        %v2409 = vpop.permute.xlu0 %2408
        %2410 = vrot.lane.b32.xlu0 %v2283, 15
        %v2411 = vpop.permute.xlu0 %2410
        %v2412 = vsel %vm834, %v2409, %v2411
        %v2413 = vsel %vm834, %v2411, %v2409
        %v2414 = vmul.f32 %v2413, %v420
        %v2415 = vmul.f32 %v2412, %v424
        %s2416 = sld [smem:[#allocation9 + $0x53]]
        %v2417 = vstv %s2416
        %v2418 = vmul.f32 %v2417, %v2414
        %v2419 = vmul.f32 %v2417, %v2415
        %v2420 = vadd.f32 %v2400, %v2418
        %v2421 = vadd.f32 %v2401, %v2419
        %s2422 = sld [smem:[#allocation9 + $0xbf]]
        %v2423 = vstv %s2422
        %v2424 = vmul.f32 %v2423, %v2414
        %v2425 = vmul.f32 %v2423, %v2415
        %v2426 = vadd.f32 %v2406, %v2424
        %v2427 = vadd.f32 %v2407, %v2425
        %2428 = vrot.lane.b32.xlu0 %v692, 15
        %v2429 = vpop.permute.xlu0 %2428
        %2430 = vrot.lane.b32.xlu0 %v693, 15
        %v2431 = vpop.permute.xlu0 %2430
        %v2432 = vsel %vm834, %v2429, %v2431
        %v2433 = vsel %vm834, %v2431, %v2429
        %v2434 = vmul.f32 %v2433, %v420
        %v2435 = vmul.f32 %v2432, %v424
        %s2436 = sld [smem:[#allocation9 + $0x5c]]
        %v2437 = vstv %s2436
        %v2438 = vmul.f32 %v2437, %v2434
        %v2439 = vmul.f32 %v2437, %v2435
        %v2440 = vadd.f32 %v2420, %v2438
        %v2441 = vadd.f32 %v2421, %v2439
        %s2442 = sld [smem:[#allocation9 + $0xc8]]
        %v2443 = vstv %s2442
        %v2444 = vmul.f32 %v2443, %v2434
        %v2445 = vmul.f32 %v2443, %v2435
        %v2446 = vadd.f32 %v2426, %v2444
        %v2447 = vadd.f32 %v2427, %v2445
        %2448 = vrot.lane.b32.xlu0 %v2286, 15
        %v2449 = vpop.permute.xlu0 %2448
        %2450 = vrot.lane.b32.xlu0 %v2287, 15
        %v2451 = vpop.permute.xlu0 %2450
        %v2452 = vsel %vm834, %v2449, %v2451
        %v2453 = vsel %vm834, %v2451, %v2449
        %v2454 = vmul.f32 %v2453, %v420
        %v2455 = vmul.f32 %v2452, %v424
        %s2456 = sld [smem:[#allocation9 + $0x65]]
        %v2457 = vstv %s2456
        %v2458 = vmul.f32 %v2457, %v2454
        %v2459 = vmul.f32 %v2457, %v2455
        %v2460 = vadd.f32 %v2440, %v2458
        %v2461 = vadd.f32 %v2441, %v2459
        %s2462 = sld [smem:[#allocation9 + $0xd1]]
        %v2463 = vstv %s2462
        %v2464 = vmul.f32 %v2463, %v2454
        %v2465 = vmul.f32 %v2463, %v2455
        %v2466 = vadd.f32 %v2446, %v2464
        %v2467 = vadd.f32 %v2447, %v2465
        %2468 = vrot.lane.b32.xlu0 %v2282, 1
        %v2469 = vpop.permute.xlu0 %2468
        %2470 = vrot.lane.b32.xlu0 %v2283, 1
        %v2471 = vpop.permute.xlu0 %2470
        %v2472 = vsel %vm895, %v2469, %v2471
        %v2473 = vsel %vm895, %v2471, %v2469
        %v2474 = vmul.f32 %v2473, %v433
        %v2475 = vmul.f32 %v2472, %v437
        %s2476 = sld [smem:[#allocation9 + $0x54]]
        %v2477 = vstv %s2476
        %v2478 = vmul.f32 %v2477, %v2474
        %v2479 = vmul.f32 %v2477, %v2475
        %v2480 = vadd.f32 %v2460, %v2478
        %v2481 = vadd.f32 %v2461, %v2479
        %s2482 = sld [smem:[#allocation9 + $0xc0]]
        %v2483 = vstv %s2482
        %v2484 = vmul.f32 %v2483, %v2474
        %v2485 = vmul.f32 %v2483, %v2475
        %v2486 = vadd.f32 %v2466, %v2484
        %v2487 = vadd.f32 %v2467, %v2485
        %2488 = vrot.lane.b32.xlu0 %v692, 1
        %v2489 = vpop.permute.xlu0 %2488
        %2490 = vrot.lane.b32.xlu0 %v693, 1
        %v2491 = vpop.permute.xlu0 %2490
        %v2492 = vsel %vm895, %v2489, %v2491
        %v2493 = vsel %vm895, %v2491, %v2489
        %v2494 = vmul.f32 %v2493, %v433
        %v2495 = vmul.f32 %v2492, %v437
        %s2496 = sld [smem:[#allocation9 + $0x5d]]
        %v2497 = vstv %s2496
        %v2498 = vmul.f32 %v2497, %v2494
        %v2499 = vmul.f32 %v2497, %v2495
        %v2500 = vadd.f32 %v2480, %v2498
        %v2501 = vadd.f32 %v2481, %v2499
        %s2502 = sld [smem:[#allocation9 + $0xc9]]
        %v2503 = vstv %s2502
        %v2504 = vmul.f32 %v2503, %v2494
        %v2505 = vmul.f32 %v2503, %v2495
        %v2506 = vadd.f32 %v2486, %v2504
        %v2507 = vadd.f32 %v2487, %v2505
        %2508 = vrot.lane.b32.xlu0 %v2286, 1
        %v2509 = vpop.permute.xlu0 %2508
        %2510 = vrot.lane.b32.xlu0 %v2287, 1
        %v2511 = vpop.permute.xlu0 %2510
        %v2512 = vsel %vm895, %v2509, %v2511
        %v2513 = vsel %vm895, %v2511, %v2509
        %v2514 = vmul.f32 %v2513, %v433
        %v2515 = vmul.f32 %v2512, %v437
        %s2516 = sld [smem:[#allocation9 + $0x66]]
        %v2517 = vstv %s2516
        %v2518 = vmul.f32 %v2517, %v2514
        %v2519 = vmul.f32 %v2517, %v2515
        %v2520 = vadd.f32 %v2500, %v2518
        %v2521 = vadd.f32 %v2501, %v2519
        %s2522 = sld [smem:[#allocation9 + $0xd2]]
        %v2523 = vstv %s2522
        %v2524 = vmul.f32 %v2523, %v2514
        %v2525 = vmul.f32 %v2523, %v2515
        %v2526 = vadd.f32 %v2506, %v2524
        %v2527 = vadd.f32 %v2507, %v2525
        %s2528 = sld [smem:[#allocation9 + $0x55]]
        %v2529 = vstv %s2528
        %v2530 = vmul.f32 %v2529, %v2282
        %v2531 = vmul.f32 %v2529, %v2283
        %v2532 = vadd.f32 %v2520, %v2530
        %v2533 = vadd.f32 %v2521, %v2531
        %s2534 = sld [smem:[#allocation9 + $0xc1]]
        %v2535 = vstv %s2534
        %v2536 = vmul.f32 %v2535, %v2282
        %v2537 = vmul.f32 %v2535, %v2283
        %v2538 = vadd.f32 %v2526, %v2536
        %v2539 = vadd.f32 %v2527, %v2537
        %s2540 = sld [smem:[#allocation9 + $0x5e]]
        %v2541 = vstv %s2540
        %v2542 = vmul.f32 %v2541, %v692
        %v2543 = vmul.f32 %v2541, %v693
        %v2544 = vadd.f32 %v2532, %v2542
        %v2545 = vadd.f32 %v2533, %v2543
        %s2546 = sld [smem:[#allocation9 + $0xca]]
        %v2547 = vstv %s2546
        %v2548 = vmul.f32 %v2547, %v692
        %v2549 = vmul.f32 %v2547, %v693
        %v2550 = vadd.f32 %v2538, %v2548
        %v2551 = vadd.f32 %v2539, %v2549
        %s2552 = sld [smem:[#allocation9 + $0x67]]
        %v2553 = vstv %s2552
        %v2554 = vmul.f32 %v2553, %v2286
        %v2555 = vmul.f32 %v2553, %v2287
        %v2556 = vadd.f32 %v2544, %v2554
        %v2557 = vadd.f32 %v2545, %v2555
        %s2558 = sld [smem:[#allocation9 + $0xd3]]
        %v2559 = vstv %s2558
        %v2560 = vmul.f32 %v2559, %v2286
        %v2561 = vmul.f32 %v2559, %v2287
        %v2562 = vadd.f32 %v2550, %v2560
        %v2563 = vadd.f32 %v2551, %v2561
        %2564 = vrot.lane.b32.xlu0 %v2282, 127
        %v2565 = vpop.permute.xlu0 %2564
        %2566 = vrot.lane.b32.xlu0 %v2283, 127
        %v2567 = vpop.permute.xlu0 %2566
        %v2568 = vsel %vm992, %v2565, %v2567
        %v2569 = vsel %vm992, %v2567, %v2565
        %v2570 = vmul.f32 %v2568, %v446
        %v2571 = vmul.f32 %v2569, %v450
        %s2572 = sld [smem:[#allocation9 + $0x56]]
        %v2573 = vstv %s2572
        %v2574 = vmul.f32 %v2573, %v2570
        %v2575 = vmul.f32 %v2573, %v2571
        %v2576 = vadd.f32 %v2556, %v2574
        %v2577 = vadd.f32 %v2557, %v2575
        %s2578 = sld [smem:[#allocation9 + $0xc2]]
        %v2579 = vstv %s2578
        %v2580 = vmul.f32 %v2579, %v2570
        %v2581 = vmul.f32 %v2579, %v2571
        %v2582 = vadd.f32 %v2562, %v2580
        %v2583 = vadd.f32 %v2563, %v2581
        %2584 = vrot.lane.b32.xlu0 %v692, 127
        %v2585 = vpop.permute.xlu0 %2584
        %2586 = vrot.lane.b32.xlu0 %v693, 127
        %v2587 = vpop.permute.xlu0 %2586
        %v2588 = vsel %vm992, %v2585, %v2587
        %v2589 = vsel %vm992, %v2587, %v2585
        %v2590 = vmul.f32 %v2588, %v446
        %v2591 = vmul.f32 %v2589, %v450
        %s2592 = sld [smem:[#allocation9 + $0x5f]]
        %v2593 = vstv %s2592
        %v2594 = vmul.f32 %v2593, %v2590
        %v2595 = vmul.f32 %v2593, %v2591
        %v2596 = vadd.f32 %v2576, %v2594
        %v2597 = vadd.f32 %v2577, %v2595
        %s2598 = sld [smem:[#allocation9 + $0xcb]]
        %v2599 = vstv %s2598
        %v2600 = vmul.f32 %v2599, %v2590
        %v2601 = vmul.f32 %v2599, %v2591
        %v2602 = vadd.f32 %v2582, %v2600
        %v2603 = vadd.f32 %v2583, %v2601
        %2604 = vrot.lane.b32.xlu0 %v2286, 127
        %v2605 = vpop.permute.xlu0 %2604
        %2606 = vrot.lane.b32.xlu0 %v2287, 127
        %v2607 = vpop.permute.xlu0 %2606
        %v2608 = vsel %vm992, %v2605, %v2607
        %v2609 = vsel %vm992, %v2607, %v2605
        %v2610 = vmul.f32 %v2608, %v446
        %v2611 = vmul.f32 %v2609, %v450
        %s2612 = sld [smem:[#allocation9 + $0x68]]
        %v2613 = vstv %s2612
        %v2614 = vmul.f32 %v2613, %v2610
        %v2615 = vmul.f32 %v2613, %v2611
        %v2616 = vadd.f32 %v2596, %v2614
        %v2617 = vadd.f32 %v2597, %v2615
        %s2618 = sld [smem:[#allocation9 + $0xd4]]
        %v2619 = vstv %s2618
        %v2620 = vmul.f32 %v2619, %v2610
        %v2621 = vmul.f32 %v2619, %v2611
        %v2622 = vadd.f32 %v2602, %v2620
        %v2623 = vadd.f32 %v2603, %v2621
        %2624 = vrot.lane.b32.xlu0 %v2282, 113
        %v2625 = vpop.permute.xlu0 %2624
        %2626 = vrot.lane.b32.xlu0 %v2283, 113
        %v2627 = vpop.permute.xlu0 %2626
        %v2628 = vsel %vm1053, %v2625, %v2627
        %v2629 = vsel %vm1053, %v2627, %v2625
        %v2630 = vmul.f32 %v2628, %v459
        %v2631 = vmul.f32 %v2629, %v463
        %s2632 = sld [smem:[#allocation9 + $0x57]]
        %v2633 = vstv %s2632
        %v2634 = vmul.f32 %v2633, %v2630
        %v2635 = vmul.f32 %v2633, %v2631
        %v2636 = vadd.f32 %v2616, %v2634
        %v2637 = vadd.f32 %v2617, %v2635
        %s2638 = sld [smem:[#allocation9 + $0xc3]]
        %v2639 = vstv %s2638
        %v2640 = vmul.f32 %v2639, %v2630
        %v2641 = vmul.f32 %v2639, %v2631
        %v2642 = vadd.f32 %v2622, %v2640
        %v2643 = vadd.f32 %v2623, %v2641
        %2644 = vrot.lane.b32.xlu0 %v692, 113
        %v2645 = vpop.permute.xlu0 %2644
        %2646 = vrot.lane.b32.xlu0 %v693, 113
        %v2647 = vpop.permute.xlu0 %2646
        %v2648 = vsel %vm1053, %v2645, %v2647
        %v2649 = vsel %vm1053, %v2647, %v2645
        %v2650 = vmul.f32 %v2648, %v459
        %v2651 = vmul.f32 %v2649, %v463
        %s2652 = sld [smem:[#allocation9 + $0x60]]
        %v2653 = vstv %s2652
        %v2654 = vmul.f32 %v2653, %v2650
        %v2655 = vmul.f32 %v2653, %v2651
        %v2656 = vadd.f32 %v2636, %v2654
        %v2657 = vadd.f32 %v2637, %v2655
        %s2658 = sld [smem:[#allocation9 + $0xcc]]
        %v2659 = vstv %s2658
        %v2660 = vmul.f32 %v2659, %v2650
        %v2661 = vmul.f32 %v2659, %v2651
        %v2662 = vadd.f32 %v2642, %v2660
        %v2663 = vadd.f32 %v2643, %v2661
        %2664 = vrot.lane.b32.xlu0 %v2286, 113
        %v2665 = vpop.permute.xlu0 %2664
        %2666 = vrot.lane.b32.xlu0 %v2287, 113
        %v2667 = vpop.permute.xlu0 %2666
        %v2668 = vsel %vm1053, %v2665, %v2667
        %v2669 = vsel %vm1053, %v2667, %v2665
        %v2670 = vmul.f32 %v2668, %v459
        %v2671 = vmul.f32 %v2669, %v463
        %s2672 = sld [smem:[#allocation9 + $0x69]]
        %v2673 = vstv %s2672
        %v2674 = vmul.f32 %v2673, %v2670
        %v2675 = vmul.f32 %v2673, %v2671
        %v2676 = vadd.f32 %v2656, %v2674
        %v2677 = vadd.f32 %v2657, %v2675
        %s2678 = sld [smem:[#allocation9 + $0xd5]]
        %v2679 = vstv %s2678
        %v2680 = vmul.f32 %v2679, %v2670
        %v2681 = vmul.f32 %v2679, %v2671
        %v2682 = vadd.f32 %v2662, %v2680
        %v2683 = vadd.f32 %v2663, %v2681
        %2684 = vrot.lane.b32.xlu0 %v2282, 112
        %v2685 = vpop.permute.xlu0 %2684
        %2686 = vrot.lane.b32.xlu0 %v2283, 112
        %v2687 = vpop.permute.xlu0 %2686
        %v2688 = vsel %vm1114, %v2685, %v2687
        %v2689 = vsel %vm1114, %v2687, %v2685
        %v2690 = vmul.f32 %v2688, %v472
        %v2691 = vmul.f32 %v2689, %v476
        %s2692 = sld [smem:[#allocation9 + $0x58]]
        %v2693 = vstv %s2692
        %v2694 = vmul.f32 %v2693, %v2690
        %v2695 = vmul.f32 %v2693, %v2691
        %v2696 = vadd.f32 %v2676, %v2694
        %v2697 = vadd.f32 %v2677, %v2695
        %s2698 = sld [smem:[#allocation9 + $0xc4]]
        %v2699 = vstv %s2698
        %v2700 = vmul.f32 %v2699, %v2690
        %v2701 = vmul.f32 %v2699, %v2691
        %v2702 = vadd.f32 %v2682, %v2700
        %v2703 = vadd.f32 %v2683, %v2701
        %2704 = vrot.lane.b32.xlu0 %v692, 112
        %v2705 = vpop.permute.xlu0 %2704
        %2706 = vrot.lane.b32.xlu0 %v693, 112
        %v2707 = vpop.permute.xlu0 %2706
        %v2708 = vsel %vm1114, %v2705, %v2707
        %v2709 = vsel %vm1114, %v2707, %v2705
        %v2710 = vmul.f32 %v2708, %v472
        %v2711 = vmul.f32 %v2709, %v476
        %s2712 = sld [smem:[#allocation9 + $0x61]]
        %v2713 = vstv %s2712
        %v2714 = vmul.f32 %v2713, %v2710
        %v2715 = vmul.f32 %v2713, %v2711
        %v2716 = vadd.f32 %v2696, %v2714
        %v2717 = vadd.f32 %v2697, %v2715
        %s2718 = sld [smem:[#allocation9 + $0xcd]]
        %v2719 = vstv %s2718
        %v2720 = vmul.f32 %v2719, %v2710
        %v2721 = vmul.f32 %v2719, %v2711
        %v2722 = vadd.f32 %v2702, %v2720
        %v2723 = vadd.f32 %v2703, %v2721
        %2724 = vrot.lane.b32.xlu0 %v2286, 112
        %v2725 = vpop.permute.xlu0 %2724
        %2726 = vrot.lane.b32.xlu0 %v2287, 112
        %v2727 = vpop.permute.xlu0 %2726
        %v2728 = vsel %vm1114, %v2725, %v2727
        %v2729 = vsel %vm1114, %v2727, %v2725
        %v2730 = vmul.f32 %v2728, %v472
        %v2731 = vmul.f32 %v2729, %v476
        %s2732 = sld [smem:[#allocation9 + $0x6a]]
        %v2733 = vstv %s2732
        %v2734 = vmul.f32 %v2733, %v2730
        %v2735 = vmul.f32 %v2733, %v2731
        %v2736 = vadd.f32 %v2716, %v2734
        %v2737 = vadd.f32 %v2717, %v2735
        %s2738 = sld [smem:[#allocation9 + $0xd6]]
        %v2739 = vstv %s2738
        %v2740 = vmul.f32 %v2739, %v2730
        %v2741 = vmul.f32 %v2739, %v2731
        %v2742 = vadd.f32 %v2722, %v2740
        %v2743 = vadd.f32 %v2723, %v2741
        %2744 = vrot.lane.b32.xlu0 %v2282, 111
        %v2745 = vpop.permute.xlu0 %2744
        %2746 = vrot.lane.b32.xlu0 %v2283, 111
        %v2747 = vpop.permute.xlu0 %2746
        %v2748 = vsel %vm1175, %v2745, %v2747
        %v2749 = vsel %vm1175, %v2747, %v2745
        %v2750 = vmul.f32 %v2748, %v485
        %v2751 = vmul.f32 %v2749, %v489
        %s2752 = sld [smem:[#allocation9 + $0x59]]
        %v2753 = vstv %s2752
        %v2754 = vmul.f32 %v2753, %v2750
        %v2755 = vmul.f32 %v2753, %v2751
        %v2756 = vadd.f32 %v2736, %v2754
        %v2757 = vadd.f32 %v2737, %v2755
        %s2758 = sld [smem:[#allocation9 + $0xc5]]
        %v2759 = vstv %s2758
        %v2760 = vmul.f32 %v2759, %v2750
        %v2761 = vmul.f32 %v2759, %v2751
        %v2762 = vadd.f32 %v2742, %v2760
        %v2763 = vadd.f32 %v2743, %v2761
        %2764 = vrot.lane.b32.xlu0 %v692, 111
        %v2765 = vpop.permute.xlu0 %2764
        %2766 = vrot.lane.b32.xlu0 %v693, 111
        %v2767 = vpop.permute.xlu0 %2766
        %v2768 = vsel %vm1175, %v2765, %v2767
        %v2769 = vsel %vm1175, %v2767, %v2765
        %v2770 = vmul.f32 %v2768, %v485
        %v2771 = vmul.f32 %v2769, %v489
        %s2772 = sld [smem:[#allocation9 + $0x62]]
        %v2773 = vstv %s2772
        %v2774 = vmul.f32 %v2773, %v2770
        %v2775 = vmul.f32 %v2773, %v2771
        %v2776 = vadd.f32 %v2756, %v2774
        %v2777 = vadd.f32 %v2757, %v2775
        %s2778 = sld [smem:[#allocation9 + $0xce]]
        %v2779 = vstv %s2778
        %v2780 = vmul.f32 %v2779, %v2770
        %v2781 = vmul.f32 %v2779, %v2771
        %v2782 = vadd.f32 %v2762, %v2780
        %v2783 = vadd.f32 %v2763, %v2781
        %2784 = vrot.lane.b32.xlu0 %v2286, 111
        %v2785 = vpop.permute.xlu0 %2784
        %2786 = vrot.lane.b32.xlu0 %v2287, 111
        %v2787 = vpop.permute.xlu0 %2786
        %v2788 = vsel %vm1175, %v2785, %v2787
        %v2789 = vsel %vm1175, %v2787, %v2785
        %v2790 = vmul.f32 %v2788, %v485
        %v2791 = vmul.f32 %v2789, %v489
        %s2792 = sld [smem:[#allocation9 + $0x6b]]
        %v2793 = vstv %s2792
        %v2794 = vmul.f32 %v2793, %v2790
        %v2795 = vmul.f32 %v2793, %v2791
        %v2796 = vadd.f32 %v2776, %v2794
        %v2797 = vadd.f32 %v2777, %v2795
        %s2798 = sld [smem:[#allocation9 + $0xd7]]
        %v2799 = vstv %s2798
        %v2800 = vmul.f32 %v2799, %v2790
        %v2801 = vmul.f32 %v2799, %v2791
        %v2802 = vadd.f32 %v2782, %v2800
        %v2803 = vadd.f32 %v2783, %v2801
        %v2804 = vadd.f32 %v2796, %v2797
        %2805 = vadd.xlane.f32.xlu0 %v2804
        %v2806 = vpop.xlane.xlu0 %2805
        %v2807 = vrot.slane %v2806, 4
        %v2808 = vadd.f32 %v2806, %v2807
        %v2809 = vrot.slane %v2808, 2
        %v2810 = vadd.f32 %v2808, %v2809
        %v2811 = vrot.slane %v2810, 1
        %v2812 = vadd.f32 %v2810, %v2811
        %s2813 = vtos %v2812
        %v2814 = vrcp.pop 2048.0
        %s2815 = vtos %v2814
        %s2816 = smul.f32 %s2813, %s2815
        %v2817 = vstv %s2816
        %v2818 = vsub.f32 %v2796, %v2817
        %v2819 = vsub.f32 %v2797, %v2817
        %v2820 = vmul.f32 %v2818, %v2818
        %v2821 = vmul.f32 %v2819, %v2819
        %v2822 = vadd.f32 %v2820, %v2821
        %2823 = vadd.xlane.f32.xlu0 %v2822
        %v2824 = vpop.xlane.xlu0 %2823
        %v2825 = vrot.slane %v2824, 4
        %v2826 = vadd.f32 %v2824, %v2825
        %v2827 = vrot.slane %v2826, 2
        %v2828 = vadd.f32 %v2826, %v2827
        %v2829 = vrot.slane %v2828, 1
        %v2830 = vadd.f32 %v2828, %v2829
        %s2831 = vtos %v2830
        %v2832 = vrcp.pop 2048.0
        %s2833 = vtos %v2832
        %s2834 = smul.f32 %s2831, %s2833
        %s2835 = sadd.f32 %s2834, 1e-05
        %v2836 = vstv %s2835
        %v2837 = vrsqrt.pop %v2836
        %s2838 = vtos %v2837
        %s2839 = sld [smem:[#allocation8 + $0x8]]
        %s2840 = smul.f32 %s2838, %s2839
        %v2841 = vstv %s2840
        %v2842 = vmul.f32 %v2818, %v2841
        %v2843 = vmul.f32 %v2819, %v2841
        %s2844 = sld [smem:[#allocation8 + $0xa]]
        %v2845 = vstv %s2844
        %v2846 = vadd.f32 %v2842, %v2845
        %v2847 = vadd.f32 %v2843, %v2845
        %v2848 = vmul.f32 %v2846, 0.01
        %v2849 = vmul.f32 %v2847, 0.01
        %v2850 = vmax.f32 %v2846, %v2848
        %v2851 = vmax.f32 %v2847, %v2849
        %v2852 = vadd.f32 %v2802, %v2803
        %2853 = vadd.xlane.f32.xlu0 %v2852
        %v2854 = vpop.xlane.xlu0 %2853
        %v2855 = vrot.slane %v2854, 4
        %v2856 = vadd.f32 %v2854, %v2855
        %v2857 = vrot.slane %v2856, 2
        %v2858 = vadd.f32 %v2856, %v2857
        %v2859 = vrot.slane %v2858, 1
        %v2860 = vadd.f32 %v2858, %v2859
        %s2861 = vtos %v2860
        %v2862 = vrcp.pop 2048.0
        %s2863 = vtos %v2862
        %s2864 = smul.f32 %s2861, %s2863
        %v2865 = vstv %s2864
        %v2866 = vsub.f32 %v2802, %v2865
        %v2867 = vsub.f32 %v2803, %v2865
        %v2868 = vmul.f32 %v2866, %v2866
        %v2869 = vmul.f32 %v2867, %v2867
        %v2870 = vadd.f32 %v2868, %v2869
        %2871 = vadd.xlane.f32.xlu0 %v2870
        %v2872 = vpop.xlane.xlu0 %2871
        %v2873 = vrot.slane %v2872, 4
        %v2874 = vadd.f32 %v2872, %v2873
        %v2875 = vrot.slane %v2874, 2
        %v2876 = vadd.f32 %v2874, %v2875
        %v2877 = vrot.slane %v2876, 1
        %v2878 = vadd.f32 %v2876, %v2877
        %s2879 = vtos %v2878
        %v2880 = vrcp.pop 2048.0
        %s2881 = vtos %v2880
        %s2882 = smul.f32 %s2879, %s2881
        %s2883 = sadd.f32 %s2882, 1e-05
        %v2884 = vstv %s2883
        %v2885 = vrsqrt.pop %v2884
        %s2886 = vtos %v2885
        %s2887 = sld [smem:[#allocation8 + $0x9]]
        %s2888 = smul.f32 %s2886, %s2887
        %v2889 = vstv %s2888
        %v2890 = vmul.f32 %v2866, %v2889
        %v2891 = vmul.f32 %v2867, %v2889
        %s2892 = sld [smem:[#allocation8 + $0xb]]
        %v2893 = vstv %s2892
        %v2894 = vadd.f32 %v2890, %v2893
        %v2895 = vadd.f32 %v2891, %v2893
        %v2896 = vmul.f32 %v2894, 0.01
        %v2897 = vmul.f32 %v2895, 0.01
        %v2898 = vmax.f32 %v2894, %v2896
        %v2899 = vmax.f32 %v2895, %v2897
        %s2900 = sld [smem:[#allocation11 + $0x2]]
        %v2901 = vstv %s2900
        %s2902 = sld [smem:[#allocation11 + $0x3]]
        %v2903 = vstv %s2902
        %v2904 = vrot.slane %v2850, 7
        %v2905 = vrot.slane %v2851, 7
        %v2906 = vmul.f32 %v2904, %v380
        %v2907 = vmul.f32 %v2905, %v380
        %v2908 = vrot.slane %v2850, 1
        %v2909 = vrot.slane %v2851, 1
        %v2910 = vmul.f32 %v2908, %v387
        %v2911 = vmul.f32 %v2909, %v387
        %2912 = vrot.lane.b32.xlu0 %v2906, 17
        %v2913 = vpop.permute.xlu0 %2912
        %2914 = vrot.lane.b32.xlu0 %v2907, 17
        %v2915 = vpop.permute.xlu0 %2914
        %v2916 = vsel %vm712, %v2913, %v2915
        %v2917 = vsel %vm712, %v2915, %v2913
        %v2918 = vmul.f32 %v2917, %v394
        %v2919 = vmul.f32 %v2916, %v398
        %s2920 = sld [smem:[#allocation9 + $0xd8]]
        %v2921 = vstv %s2920
        %v2922 = vmul.f32 %v2921, %v2918
        %v2923 = vmul.f32 %v2921, %v2919
        %v2924 = vadd.f32 %v2901, %v2922
        %v2925 = vadd.f32 %v2901, %v2923
        %s2926 = sld [smem:[#allocation9 + $0x10e]]
        %v2927 = vstv %s2926
        %v2928 = vmul.f32 %v2927, %v2918
        %v2929 = vmul.f32 %v2927, %v2919
        %v2930 = vadd.f32 %v2903, %v2928
        %v2931 = vadd.f32 %v2903, %v2929
        %2932 = vrot.lane.b32.xlu0 %v2850, 17
        %v2933 = vpop.permute.xlu0 %2932
        %2934 = vrot.lane.b32.xlu0 %v2851, 17
        %v2935 = vpop.permute.xlu0 %2934
        %v2936 = vsel %vm712, %v2933, %v2935
        %v2937 = vsel %vm712, %v2935, %v2933
        %v2938 = vmul.f32 %v2937, %v394
        %v2939 = vmul.f32 %v2936, %v398
        %s2940 = sld [smem:[#allocation9 + $0xe1]]
        %v2941 = vstv %s2940
        %v2942 = vmul.f32 %v2941, %v2938
        %v2943 = vmul.f32 %v2941, %v2939
        %v2944 = vadd.f32 %v2924, %v2942
        %v2945 = vadd.f32 %v2925, %v2943
        %s2946 = sld [smem:[#allocation9 + $0x117]]
        %v2947 = vstv %s2946
        %v2948 = vmul.f32 %v2947, %v2938
        %v2949 = vmul.f32 %v2947, %v2939
        %v2950 = vadd.f32 %v2930, %v2948
        %v2951 = vadd.f32 %v2931, %v2949
        %2952 = vrot.lane.b32.xlu0 %v2910, 17
        %v2953 = vpop.permute.xlu0 %2952
        %2954 = vrot.lane.b32.xlu0 %v2911, 17
        %v2955 = vpop.permute.xlu0 %2954
        %v2956 = vsel %vm712, %v2953, %v2955
        %v2957 = vsel %vm712, %v2955, %v2953
        %v2958 = vmul.f32 %v2957, %v394
        %v2959 = vmul.f32 %v2956, %v398
        %s2960 = sld [smem:[#allocation9 + $0xea]]
        %v2961 = vstv %s2960
        %v2962 = vmul.f32 %v2961, %v2958
        %v2963 = vmul.f32 %v2961, %v2959
        %v2964 = vadd.f32 %v2944, %v2962
        %v2965 = vadd.f32 %v2945, %v2963
        %s2966 = sld [smem:[#allocation9 + $0x120]]
        %v2967 = vstv %s2966
        %v2968 = vmul.f32 %v2967, %v2958
        %v2969 = vmul.f32 %v2967, %v2959
        %v2970 = vadd.f32 %v2950, %v2968
        %v2971 = vadd.f32 %v2951, %v2969
        %2972 = vrot.lane.b32.xlu0 %v2906, 16
        %v2973 = vpop.permute.xlu0 %2972
        %2974 = vrot.lane.b32.xlu0 %v2907, 16
        %v2975 = vpop.permute.xlu0 %2974
        %v2976 = vsel %vm773, %v2973, %v2975
        %v2977 = vsel %vm773, %v2975, %v2973
        %v2978 = vmul.f32 %v2977, %v407
        %v2979 = vmul.f32 %v2976, %v411
        %s2980 = sld [smem:[#allocation9 + $0xd9]]
        %v2981 = vstv %s2980
        %v2982 = vmul.f32 %v2981, %v2978
        %v2983 = vmul.f32 %v2981, %v2979
        %v2984 = vadd.f32 %v2964, %v2982
        %v2985 = vadd.f32 %v2965, %v2983
        %s2986 = sld [smem:[#allocation9 + $0x10f]]
        %v2987 = vstv %s2986
        %v2988 = vmul.f32 %v2987, %v2978
        %v2989 = vmul.f32 %v2987, %v2979
        %v2990 = vadd.f32 %v2970, %v2988
        %v2991 = vadd.f32 %v2971, %v2989
        %2992 = vrot.lane.b32.xlu0 %v2850, 16
        %v2993 = vpop.permute.xlu0 %2992
        %2994 = vrot.lane.b32.xlu0 %v2851, 16
        %v2995 = vpop.permute.xlu0 %2994
        %v2996 = vsel %vm773, %v2993, %v2995
        %v2997 = vsel %vm773, %v2995, %v2993
        %v2998 = vmul.f32 %v2997, %v407
        %v2999 = vmul.f32 %v2996, %v411
        %s3000 = sld [smem:[#allocation9 + $0xe2]]
        %v3001 = vstv %s3000
        %v3002 = vmul.f32 %v3001, %v2998
        %v3003 = vmul.f32 %v3001, %v2999
        %v3004 = vadd.f32 %v2984, %v3002
        %v3005 = vadd.f32 %v2985, %v3003
        %s3006 = sld [smem:[#allocation9 + $0x118]]
        %v3007 = vstv %s3006
        %v3008 = vmul.f32 %v3007, %v2998
        %v3009 = vmul.f32 %v3007, %v2999
        %v3010 = vadd.f32 %v2990, %v3008
        %v3011 = vadd.f32 %v2991, %v3009
        %3012 = vrot.lane.b32.xlu0 %v2910, 16
        %v3013 = vpop.permute.xlu0 %3012
        %3014 = vrot.lane.b32.xlu0 %v2911, 16
        %v3015 = vpop.permute.xlu0 %3014
        %v3016 = vsel %vm773, %v3013, %v3015
        %v3017 = vsel %vm773, %v3015, %v3013
        %v3018 = vmul.f32 %v3017, %v407
        %v3019 = vmul.f32 %v3016, %v411
        %s3020 = sld [smem:[#allocation9 + $0xeb]]
        %v3021 = vstv %s3020
        %v3022 = vmul.f32 %v3021, %v3018
        %v3023 = vmul.f32 %v3021, %v3019
        %v3024 = vadd.f32 %v3004, %v3022
        %v3025 = vadd.f32 %v3005, %v3023
        %s3026 = sld [smem:[#allocation9 + $0x121]]
        %v3027 = vstv %s3026
        %v3028 = vmul.f32 %v3027, %v3018
        %v3029 = vmul.f32 %v3027, %v3019
        %v3030 = vadd.f32 %v3010, %v3028
        %v3031 = vadd.f32 %v3011, %v3029
        %3032 = vrot.lane.b32.xlu0 %v2906, 15
        %v3033 = vpop.permute.xlu0 %3032
        %3034 = vrot.lane.b32.xlu0 %v2907, 15
        %v3035 = vpop.permute.xlu0 %3034
        %v3036 = vsel %vm834, %v3033, %v3035
        %v3037 = vsel %vm834, %v3035, %v3033
        %v3038 = vmul.f32 %v3037, %v420
        %v3039 = vmul.f32 %v3036, %v424
        %s3040 = sld [smem:[#allocation9 + $0xda]]
        %v3041 = vstv %s3040
        %v3042 = vmul.f32 %v3041, %v3038
        %v3043 = vmul.f32 %v3041, %v3039
        %v3044 = vadd.f32 %v3024, %v3042
        %v3045 = vadd.f32 %v3025, %v3043
        %s3046 = sld [smem:[#allocation9 + $0x110]]
        %v3047 = vstv %s3046
        %v3048 = vmul.f32 %v3047, %v3038
        %v3049 = vmul.f32 %v3047, %v3039
        %v3050 = vadd.f32 %v3030, %v3048
        %v3051 = vadd.f32 %v3031, %v3049
        %3052 = vrot.lane.b32.xlu0 %v2850, 15
        %v3053 = vpop.permute.xlu0 %3052
        %3054 = vrot.lane.b32.xlu0 %v2851, 15
        %v3055 = vpop.permute.xlu0 %3054
        %v3056 = vsel %vm834, %v3053, %v3055
        %v3057 = vsel %vm834, %v3055, %v3053
        %v3058 = vmul.f32 %v3057, %v420
        %v3059 = vmul.f32 %v3056, %v424
        %s3060 = sld [smem:[#allocation9 + $0xe3]]
        %v3061 = vstv %s3060
        %v3062 = vmul.f32 %v3061, %v3058
        %v3063 = vmul.f32 %v3061, %v3059
        %v3064 = vadd.f32 %v3044, %v3062
        %v3065 = vadd.f32 %v3045, %v3063
        %s3066 = sld [smem:[#allocation9 + $0x119]]
        %v3067 = vstv %s3066
        %v3068 = vmul.f32 %v3067, %v3058
        %v3069 = vmul.f32 %v3067, %v3059
        %v3070 = vadd.f32 %v3050, %v3068
        %v3071 = vadd.f32 %v3051, %v3069
        %3072 = vrot.lane.b32.xlu0 %v2910, 15
        %v3073 = vpop.permute.xlu0 %3072
        %3074 = vrot.lane.b32.xlu0 %v2911, 15
        %v3075 = vpop.permute.xlu0 %3074
        %v3076 = vsel %vm834, %v3073, %v3075
        %v3077 = vsel %vm834, %v3075, %v3073
        %v3078 = vmul.f32 %v3077, %v420
        %v3079 = vmul.f32 %v3076, %v424
        %s3080 = sld [smem:[#allocation9 + $0xec]]
        %v3081 = vstv %s3080
        %v3082 = vmul.f32 %v3081, %v3078
        %v3083 = vmul.f32 %v3081, %v3079
        %v3084 = vadd.f32 %v3064, %v3082
        %v3085 = vadd.f32 %v3065, %v3083
        %s3086 = sld [smem:[#allocation9 + $0x122]]
        %v3087 = vstv %s3086
        %v3088 = vmul.f32 %v3087, %v3078
        %v3089 = vmul.f32 %v3087, %v3079
        %v3090 = vadd.f32 %v3070, %v3088
        %v3091 = vadd.f32 %v3071, %v3089
        %3092 = vrot.lane.b32.xlu0 %v2906, 1
        %v3093 = vpop.permute.xlu0 %3092
        %3094 = vrot.lane.b32.xlu0 %v2907, 1
        %v3095 = vpop.permute.xlu0 %3094
        %v3096 = vsel %vm895, %v3093, %v3095
        %v3097 = vsel %vm895, %v3095, %v3093
        %v3098 = vmul.f32 %v3097, %v433
        %v3099 = vmul.f32 %v3096, %v437
        %s3100 = sld [smem:[#allocation9 + $0xdb]]
        %v3101 = vstv %s3100
        %v3102 = vmul.f32 %v3101, %v3098
        %v3103 = vmul.f32 %v3101, %v3099
        %v3104 = vadd.f32 %v3084, %v3102
        %v3105 = vadd.f32 %v3085, %v3103
        %s3106 = sld [smem:[#allocation9 + $0x111]]
        %v3107 = vstv %s3106
        %v3108 = vmul.f32 %v3107, %v3098
        %v3109 = vmul.f32 %v3107, %v3099
        %v3110 = vadd.f32 %v3090, %v3108
        %v3111 = vadd.f32 %v3091, %v3109
        %3112 = vrot.lane.b32.xlu0 %v2850, 1
        %v3113 = vpop.permute.xlu0 %3112
        %3114 = vrot.lane.b32.xlu0 %v2851, 1
        %v3115 = vpop.permute.xlu0 %3114
        %v3116 = vsel %vm895, %v3113, %v3115
        %v3117 = vsel %vm895, %v3115, %v3113
        %v3118 = vmul.f32 %v3117, %v433
        %v3119 = vmul.f32 %v3116, %v437
        %s3120 = sld [smem:[#allocation9 + $0xe4]]
        %v3121 = vstv %s3120
        %v3122 = vmul.f32 %v3121, %v3118
        %v3123 = vmul.f32 %v3121, %v3119
        %v3124 = vadd.f32 %v3104, %v3122
        %v3125 = vadd.f32 %v3105, %v3123
        %s3126 = sld [smem:[#allocation9 + $0x11a]]
        %v3127 = vstv %s3126
        %v3128 = vmul.f32 %v3127, %v3118
        %v3129 = vmul.f32 %v3127, %v3119
        %v3130 = vadd.f32 %v3110, %v3128
        %v3131 = vadd.f32 %v3111, %v3129
        %3132 = vrot.lane.b32.xlu0 %v2910, 1
        %v3133 = vpop.permute.xlu0 %3132
        %3134 = vrot.lane.b32.xlu0 %v2911, 1
        %v3135 = vpop.permute.xlu0 %3134
        %v3136 = vsel %vm895, %v3133, %v3135
        %v3137 = vsel %vm895, %v3135, %v3133
        %v3138 = vmul.f32 %v3137, %v433
        %v3139 = vmul.f32 %v3136, %v437
        %s3140 = sld [smem:[#allocation9 + $0xed]]
        %v3141 = vstv %s3140
        %v3142 = vmul.f32 %v3141, %v3138
        %v3143 = vmul.f32 %v3141, %v3139
        %v3144 = vadd.f32 %v3124, %v3142
        %v3145 = vadd.f32 %v3125, %v3143
        %s3146 = sld [smem:[#allocation9 + $0x123]]
        %v3147 = vstv %s3146
        %v3148 = vmul.f32 %v3147, %v3138
        %v3149 = vmul.f32 %v3147, %v3139
        %v3150 = vadd.f32 %v3130, %v3148
        %v3151 = vadd.f32 %v3131, %v3149
        %s3152 = sld [smem:[#allocation9 + $0xdc]]
        %v3153 = vstv %s3152
        %v3154 = vmul.f32 %v3153, %v2906
        %v3155 = vmul.f32 %v3153, %v2907
        %v3156 = vadd.f32 %v3144, %v3154
        %v3157 = vadd.f32 %v3145, %v3155
        %s3158 = sld [smem:[#allocation9 + $0x112]]
        %v3159 = vstv %s3158
        %v3160 = vmul.f32 %v3159, %v2906
        %v3161 = vmul.f32 %v3159, %v2907
        %v3162 = vadd.f32 %v3150, %v3160
        %v3163 = vadd.f32 %v3151, %v3161
        %s3164 = sld [smem:[#allocation9 + $0xe5]]
        %v3165 = vstv %s3164
        %v3166 = vmul.f32 %v3165, %v2850
        %v3167 = vmul.f32 %v3165, %v2851
        %v3168 = vadd.f32 %v3156, %v3166
        %v3169 = vadd.f32 %v3157, %v3167
        %s3170 = sld [smem:[#allocation9 + $0x11b]]
        %v3171 = vstv %s3170
        %v3172 = vmul.f32 %v3171, %v2850
        %v3173 = vmul.f32 %v3171, %v2851
        %v3174 = vadd.f32 %v3162, %v3172
        %v3175 = vadd.f32 %v3163, %v3173
        %s3176 = sld [smem:[#allocation9 + $0xee]]
        %v3177 = vstv %s3176
        %v3178 = vmul.f32 %v3177, %v2910
        %v3179 = vmul.f32 %v3177, %v2911
        %v3180 = vadd.f32 %v3168, %v3178
        %v3181 = vadd.f32 %v3169, %v3179
        %s3182 = sld [smem:[#allocation9 + $0x124]]
        %v3183 = vstv %s3182
        %v3184 = vmul.f32 %v3183, %v2910
        %v3185 = vmul.f32 %v3183, %v2911
        %v3186 = vadd.f32 %v3174, %v3184
        %v3187 = vadd.f32 %v3175, %v3185
        %3188 = vrot.lane.b32.xlu0 %v2906, 127
        %v3189 = vpop.permute.xlu0 %3188
        %3190 = vrot.lane.b32.xlu0 %v2907, 127
        %v3191 = vpop.permute.xlu0 %3190
        %v3192 = vsel %vm992, %v3189, %v3191
        %v3193 = vsel %vm992, %v3191, %v3189
        %v3194 = vmul.f32 %v3192, %v446
        %v3195 = vmul.f32 %v3193, %v450
        %s3196 = sld [smem:[#allocation9 + $0xdd]]
        %v3197 = vstv %s3196
        %v3198 = vmul.f32 %v3197, %v3194
        %v3199 = vmul.f32 %v3197, %v3195
        %v3200 = vadd.f32 %v3180, %v3198
        %v3201 = vadd.f32 %v3181, %v3199
        %s3202 = sld [smem:[#allocation9 + $0x113]]
        %v3203 = vstv %s3202
        %v3204 = vmul.f32 %v3203, %v3194
        %v3205 = vmul.f32 %v3203, %v3195
        %v3206 = vadd.f32 %v3186, %v3204
        %v3207 = vadd.f32 %v3187, %v3205
        %3208 = vrot.lane.b32.xlu0 %v2850, 127
        %v3209 = vpop.permute.xlu0 %3208
        %3210 = vrot.lane.b32.xlu0 %v2851, 127
        %v3211 = vpop.permute.xlu0 %3210
        %v3212 = vsel %vm992, %v3209, %v3211
        %v3213 = vsel %vm992, %v3211, %v3209
        %v3214 = vmul.f32 %v3212, %v446
        %v3215 = vmul.f32 %v3213, %v450
        %s3216 = sld [smem:[#allocation9 + $0xe6]]
        %v3217 = vstv %s3216
        %v3218 = vmul.f32 %v3217, %v3214
        %v3219 = vmul.f32 %v3217, %v3215
        %v3220 = vadd.f32 %v3200, %v3218
        %v3221 = vadd.f32 %v3201, %v3219
        %s3222 = sld [smem:[#allocation9 + $0x11c]]
        %v3223 = vstv %s3222
        %v3224 = vmul.f32 %v3223, %v3214
        %v3225 = vmul.f32 %v3223, %v3215
        %v3226 = vadd.f32 %v3206, %v3224
        %v3227 = vadd.f32 %v3207, %v3225
        %3228 = vrot.lane.b32.xlu0 %v2910, 127
        %v3229 = vpop.permute.xlu0 %3228
        %3230 = vrot.lane.b32.xlu0 %v2911, 127
        %v3231 = vpop.permute.xlu0 %3230
        %v3232 = vsel %vm992, %v3229, %v3231
        %v3233 = vsel %vm992, %v3231, %v3229
        %v3234 = vmul.f32 %v3232, %v446
        %v3235 = vmul.f32 %v3233, %v450
        %s3236 = sld [smem:[#allocation9 + $0xef]]
        %v3237 = vstv %s3236
        %v3238 = vmul.f32 %v3237, %v3234
        %v3239 = vmul.f32 %v3237, %v3235
        %v3240 = vadd.f32 %v3220, %v3238
        %v3241 = vadd.f32 %v3221, %v3239
        %s3242 = sld [smem:[#allocation9 + $0x125]]
        %v3243 = vstv %s3242
        %v3244 = vmul.f32 %v3243, %v3234
        %v3245 = vmul.f32 %v3243, %v3235
        %v3246 = vadd.f32 %v3226, %v3244
        %v3247 = vadd.f32 %v3227, %v3245
        %3248 = vrot.lane.b32.xlu0 %v2906, 113
        %v3249 = vpop.permute.xlu0 %3248
        %3250 = vrot.lane.b32.xlu0 %v2907, 113
        %v3251 = vpop.permute.xlu0 %3250
        %v3252 = vsel %vm1053, %v3249, %v3251
        %v3253 = vsel %vm1053, %v3251, %v3249
        %v3254 = vmul.f32 %v3252, %v459
        %v3255 = vmul.f32 %v3253, %v463
        %s3256 = sld [smem:[#allocation9 + $0xde]]
        %v3257 = vstv %s3256
        %v3258 = vmul.f32 %v3257, %v3254
        %v3259 = vmul.f32 %v3257, %v3255
        %v3260 = vadd.f32 %v3240, %v3258
        %v3261 = vadd.f32 %v3241, %v3259
        %s3262 = sld [smem:[#allocation9 + $0x114]]
        %v3263 = vstv %s3262
        %v3264 = vmul.f32 %v3263, %v3254
        %v3265 = vmul.f32 %v3263, %v3255
        %v3266 = vadd.f32 %v3246, %v3264
        %v3267 = vadd.f32 %v3247, %v3265
        %3268 = vrot.lane.b32.xlu0 %v2850, 113
        %v3269 = vpop.permute.xlu0 %3268
        %3270 = vrot.lane.b32.xlu0 %v2851, 113
        %v3271 = vpop.permute.xlu0 %3270
        %v3272 = vsel %vm1053, %v3269, %v3271
        %v3273 = vsel %vm1053, %v3271, %v3269
        %v3274 = vmul.f32 %v3272, %v459
        %v3275 = vmul.f32 %v3273, %v463
        %s3276 = sld [smem:[#allocation9 + $0xe7]]
        %v3277 = vstv %s3276
        %v3278 = vmul.f32 %v3277, %v3274
        %v3279 = vmul.f32 %v3277, %v3275
        %v3280 = vadd.f32 %v3260, %v3278
        %v3281 = vadd.f32 %v3261, %v3279
        %s3282 = sld [smem:[#allocation9 + $0x11d]]
        %v3283 = vstv %s3282
        %v3284 = vmul.f32 %v3283, %v3274
        %v3285 = vmul.f32 %v3283, %v3275
        %v3286 = vadd.f32 %v3266, %v3284
        %v3287 = vadd.f32 %v3267, %v3285
        %3288 = vrot.lane.b32.xlu0 %v2910, 113
        %v3289 = vpop.permute.xlu0 %3288
        %3290 = vrot.lane.b32.xlu0 %v2911, 113
        %v3291 = vpop.permute.xlu0 %3290
        %v3292 = vsel %vm1053, %v3289, %v3291
        %v3293 = vsel %vm1053, %v3291, %v3289
        %v3294 = vmul.f32 %v3292, %v459
        %v3295 = vmul.f32 %v3293, %v463
        %s3296 = sld [smem:[#allocation9 + $0xf0]]
        %v3297 = vstv %s3296
        %v3298 = vmul.f32 %v3297, %v3294
        %v3299 = vmul.f32 %v3297, %v3295
        %v3300 = vadd.f32 %v3280, %v3298
        %v3301 = vadd.f32 %v3281, %v3299
        %s3302 = sld [smem:[#allocation9 + $0x126]]
        %v3303 = vstv %s3302
        %v3304 = vmul.f32 %v3303, %v3294
        %v3305 = vmul.f32 %v3303, %v3295
        %v3306 = vadd.f32 %v3286, %v3304
        %v3307 = vadd.f32 %v3287, %v3305
        %3308 = vrot.lane.b32.xlu0 %v2906, 112
        %v3309 = vpop.permute.xlu0 %3308
        %3310 = vrot.lane.b32.xlu0 %v2907, 112
        %v3311 = vpop.permute.xlu0 %3310
        %v3312 = vsel %vm1114, %v3309, %v3311
        %v3313 = vsel %vm1114, %v3311, %v3309
        %v3314 = vmul.f32 %v3312, %v472
        %v3315 = vmul.f32 %v3313, %v476
        %s3316 = sld [smem:[#allocation9 + $0xdf]]
        %v3317 = vstv %s3316
        %v3318 = vmul.f32 %v3317, %v3314
        %v3319 = vmul.f32 %v3317, %v3315
        %v3320 = vadd.f32 %v3300, %v3318
        %v3321 = vadd.f32 %v3301, %v3319
        %s3322 = sld [smem:[#allocation9 + $0x115]]
        %v3323 = vstv %s3322
        %v3324 = vmul.f32 %v3323, %v3314
        %v3325 = vmul.f32 %v3323, %v3315
        %v3326 = vadd.f32 %v3306, %v3324
        %v3327 = vadd.f32 %v3307, %v3325
        %3328 = vrot.lane.b32.xlu0 %v2850, 112
        %v3329 = vpop.permute.xlu0 %3328
        %3330 = vrot.lane.b32.xlu0 %v2851, 112
        %v3331 = vpop.permute.xlu0 %3330
        %v3332 = vsel %vm1114, %v3329, %v3331
        %v3333 = vsel %vm1114, %v3331, %v3329
        %v3334 = vmul.f32 %v3332, %v472
        %v3335 = vmul.f32 %v3333, %v476
        %s3336 = sld [smem:[#allocation9 + $0xe8]]
        %v3337 = vstv %s3336
        %v3338 = vmul.f32 %v3337, %v3334
        %v3339 = vmul.f32 %v3337, %v3335
        %v3340 = vadd.f32 %v3320, %v3338
        %v3341 = vadd.f32 %v3321, %v3339
        %s3342 = sld [smem:[#allocation9 + $0x11e]]
        %v3343 = vstv %s3342
        %v3344 = vmul.f32 %v3343, %v3334
        %v3345 = vmul.f32 %v3343, %v3335
        %v3346 = vadd.f32 %v3326, %v3344
        %v3347 = vadd.f32 %v3327, %v3345
        %3348 = vrot.lane.b32.xlu0 %v2910, 112
        %v3349 = vpop.permute.xlu0 %3348
        %3350 = vrot.lane.b32.xlu0 %v2911, 112
        %v3351 = vpop.permute.xlu0 %3350
        %v3352 = vsel %vm1114, %v3349, %v3351
        %v3353 = vsel %vm1114, %v3351, %v3349
        %v3354 = vmul.f32 %v3352, %v472
        %v3355 = vmul.f32 %v3353, %v476
        %s3356 = sld [smem:[#allocation9 + $0xf1]]
        %v3357 = vstv %s3356
        %v3358 = vmul.f32 %v3357, %v3354
        %v3359 = vmul.f32 %v3357, %v3355
        %v3360 = vadd.f32 %v3340, %v3358
        %v3361 = vadd.f32 %v3341, %v3359
        %s3362 = sld [smem:[#allocation9 + $0x127]]
        %v3363 = vstv %s3362
        %v3364 = vmul.f32 %v3363, %v3354
        %v3365 = vmul.f32 %v3363, %v3355
        %v3366 = vadd.f32 %v3346, %v3364
        %v3367 = vadd.f32 %v3347, %v3365
        %3368 = vrot.lane.b32.xlu0 %v2906, 111
        %v3369 = vpop.permute.xlu0 %3368
        %3370 = vrot.lane.b32.xlu0 %v2907, 111
        %v3371 = vpop.permute.xlu0 %3370
        %v3372 = vsel %vm1175, %v3369, %v3371
        %v3373 = vsel %vm1175, %v3371, %v3369
        %v3374 = vmul.f32 %v3372, %v485
        %v3375 = vmul.f32 %v3373, %v489
        %s3376 = sld [smem:[#allocation9 + $0xe0]]
        %v3377 = vstv %s3376
        %v3378 = vmul.f32 %v3377, %v3374
        %v3379 = vmul.f32 %v3377, %v3375
        %v3380 = vadd.f32 %v3360, %v3378
        %v3381 = vadd.f32 %v3361, %v3379
        %s3382 = sld [smem:[#allocation9 + $0x116]]
        %v3383 = vstv %s3382
        %v3384 = vmul.f32 %v3383, %v3374
        %v3385 = vmul.f32 %v3383, %v3375
        %v3386 = vadd.f32 %v3366, %v3384
        %v3387 = vadd.f32 %v3367, %v3385
        %3388 = vrot.lane.b32.xlu0 %v2850, 111
        %v3389 = vpop.permute.xlu0 %3388
        %3390 = vrot.lane.b32.xlu0 %v2851, 111
        %v3391 = vpop.permute.xlu0 %3390
        %v3392 = vsel %vm1175, %v3389, %v3391
        %v3393 = vsel %vm1175, %v3391, %v3389
        %v3394 = vmul.f32 %v3392, %v485
        %v3395 = vmul.f32 %v3393, %v489
        %s3396 = sld [smem:[#allocation9 + $0xe9]]
        %v3397 = vstv %s3396
        %v3398 = vmul.f32 %v3397, %v3394
        %v3399 = vmul.f32 %v3397, %v3395
        %v3400 = vadd.f32 %v3380, %v3398
        %v3401 = vadd.f32 %v3381, %v3399
        %s3402 = sld [smem:[#allocation9 + $0x11f]]
        %v3403 = vstv %s3402
        %v3404 = vmul.f32 %v3403, %v3394
        %v3405 = vmul.f32 %v3403, %v3395
        %v3406 = vadd.f32 %v3386, %v3404
        %v3407 = vadd.f32 %v3387, %v3405
        %3408 = vrot.lane.b32.xlu0 %v2910, 111
        %v3409 = vpop.permute.xlu0 %3408
        %3410 = vrot.lane.b32.xlu0 %v2911, 111
        %v3411 = vpop.permute.xlu0 %3410
        %v3412 = vsel %vm1175, %v3409, %v3411
        %v3413 = vsel %vm1175, %v3411, %v3409
        %v3414 = vmul.f32 %v3412, %v485
        %v3415 = vmul.f32 %v3413, %v489
        %s3416 = sld [smem:[#allocation9 + $0xf2]]
        %v3417 = vstv %s3416
        %v3418 = vmul.f32 %v3417, %v3414
        %v3419 = vmul.f32 %v3417, %v3415
        %v3420 = vadd.f32 %v3400, %v3418
        %v3421 = vadd.f32 %v3401, %v3419
        %s3422 = sld [smem:[#allocation9 + $0x128]]
        %v3423 = vstv %s3422
        %v3424 = vmul.f32 %v3423, %v3414
        %v3425 = vmul.f32 %v3423, %v3415
        %v3426 = vadd.f32 %v3406, %v3424
        %v3427 = vadd.f32 %v3407, %v3425
        %v3428 = vrot.slane %v2898, 7
        %v3429 = vrot.slane %v2899, 7
        %v3430 = vmul.f32 %v3428, %v380
        %v3431 = vmul.f32 %v3429, %v380
        %v3432 = vrot.slane %v2898, 1
        %v3433 = vrot.slane %v2899, 1
        %v3434 = vmul.f32 %v3432, %v387
        %v3435 = vmul.f32 %v3433, %v387
        %3436 = vrot.lane.b32.xlu0 %v3430, 17
        %v3437 = vpop.permute.xlu0 %3436
        %3438 = vrot.lane.b32.xlu0 %v3431, 17
        %v3439 = vpop.permute.xlu0 %3438
        %v3440 = vsel %vm712, %v3437, %v3439
        %v3441 = vsel %vm712, %v3439, %v3437
        %v3442 = vmul.f32 %v3441, %v394
        %v3443 = vmul.f32 %v3440, %v398
        %s3444 = sld [smem:[#allocation9 + $0xf3]]
        %v3445 = vstv %s3444
        %v3446 = vmul.f32 %v3445, %v3442
        %v3447 = vmul.f32 %v3445, %v3443
        %v3448 = vadd.f32 %v3420, %v3446
        %v3449 = vadd.f32 %v3421, %v3447
        %s3450 = sld [smem:[#allocation9 + $0x129]]
        %v3451 = vstv %s3450
        %v3452 = vmul.f32 %v3451, %v3442
        %v3453 = vmul.f32 %v3451, %v3443
        %v3454 = vadd.f32 %v3426, %v3452
        %v3455 = vadd.f32 %v3427, %v3453
        %3456 = vrot.lane.b32.xlu0 %v2898, 17
        %v3457 = vpop.permute.xlu0 %3456
        %3458 = vrot.lane.b32.xlu0 %v2899, 17
        %v3459 = vpop.permute.xlu0 %3458
        %v3460 = vsel %vm712, %v3457, %v3459
        %v3461 = vsel %vm712, %v3459, %v3457
        %v3462 = vmul.f32 %v3461, %v394
        %v3463 = vmul.f32 %v3460, %v398
        %s3464 = sld [smem:[#allocation9 + $0xfc]]
        %v3465 = vstv %s3464
        %v3466 = vmul.f32 %v3465, %v3462
        %v3467 = vmul.f32 %v3465, %v3463
        %v3468 = vadd.f32 %v3448, %v3466
        %v3469 = vadd.f32 %v3449, %v3467
        %s3470 = sld [smem:[#allocation9 + $0x132]]
        %v3471 = vstv %s3470
        %v3472 = vmul.f32 %v3471, %v3462
        %v3473 = vmul.f32 %v3471, %v3463
        %v3474 = vadd.f32 %v3454, %v3472
        %v3475 = vadd.f32 %v3455, %v3473
        %3476 = vrot.lane.b32.xlu0 %v3434, 17
        %v3477 = vpop.permute.xlu0 %3476
        %3478 = vrot.lane.b32.xlu0 %v3435, 17
        %v3479 = vpop.permute.xlu0 %3478
        %v3480 = vsel %vm712, %v3477, %v3479
        %v3481 = vsel %vm712, %v3479, %v3477
        %v3482 = vmul.f32 %v3481, %v394
        %v3483 = vmul.f32 %v3480, %v398
        %s3484 = sld [smem:[#allocation9 + $0x105]]
        %v3485 = vstv %s3484
        %v3486 = vmul.f32 %v3485, %v3482
        %v3487 = vmul.f32 %v3485, %v3483
        %v3488 = vadd.f32 %v3468, %v3486
        %v3489 = vadd.f32 %v3469, %v3487
        %s3490 = sld [smem:[#allocation9 + $0x13b]]
        %v3491 = vstv %s3490
        %v3492 = vmul.f32 %v3491, %v3482
        %v3493 = vmul.f32 %v3491, %v3483
        %v3494 = vadd.f32 %v3474, %v3492
        %v3495 = vadd.f32 %v3475, %v3493
        %3496 = vrot.lane.b32.xlu0 %v3430, 16
        %v3497 = vpop.permute.xlu0 %3496
        %3498 = vrot.lane.b32.xlu0 %v3431, 16
        %v3499 = vpop.permute.xlu0 %3498
        %v3500 = vsel %vm773, %v3497, %v3499
        %v3501 = vsel %vm773, %v3499, %v3497
        %v3502 = vmul.f32 %v3501, %v407
        %v3503 = vmul.f32 %v3500, %v411
        %s3504 = sld [smem:[#allocation9 + $0xf4]]
        %v3505 = vstv %s3504
        %v3506 = vmul.f32 %v3505, %v3502
        %v3507 = vmul.f32 %v3505, %v3503
        %v3508 = vadd.f32 %v3488, %v3506
        %v3509 = vadd.f32 %v3489, %v3507
        %s3510 = sld [smem:[#allocation9 + $0x12a]]
        %v3511 = vstv %s3510
        %v3512 = vmul.f32 %v3511, %v3502
        %v3513 = vmul.f32 %v3511, %v3503
        %v3514 = vadd.f32 %v3494, %v3512
        %v3515 = vadd.f32 %v3495, %v3513
        %3516 = vrot.lane.b32.xlu0 %v2898, 16
        %v3517 = vpop.permute.xlu0 %3516
        %3518 = vrot.lane.b32.xlu0 %v2899, 16
        %v3519 = vpop.permute.xlu0 %3518
        %v3520 = vsel %vm773, %v3517, %v3519
        %v3521 = vsel %vm773, %v3519, %v3517
        %v3522 = vmul.f32 %v3521, %v407
        %v3523 = vmul.f32 %v3520, %v411
        %s3524 = sld [smem:[#allocation9 + $0xfd]]
        %v3525 = vstv %s3524
        %v3526 = vmul.f32 %v3525, %v3522
        %v3527 = vmul.f32 %v3525, %v3523
        %v3528 = vadd.f32 %v3508, %v3526
        %v3529 = vadd.f32 %v3509, %v3527
        %s3530 = sld [smem:[#allocation9 + $0x133]]
        %v3531 = vstv %s3530
        %v3532 = vmul.f32 %v3531, %v3522
        %v3533 = vmul.f32 %v3531, %v3523
        %v3534 = vadd.f32 %v3514, %v3532
        %v3535 = vadd.f32 %v3515, %v3533
        %3536 = vrot.lane.b32.xlu0 %v3434, 16
        %v3537 = vpop.permute.xlu0 %3536
        %3538 = vrot.lane.b32.xlu0 %v3435, 16
        %v3539 = vpop.permute.xlu0 %3538
        %v3540 = vsel %vm773, %v3537, %v3539
        %v3541 = vsel %vm773, %v3539, %v3537
        %v3542 = vmul.f32 %v3541, %v407
        %v3543 = vmul.f32 %v3540, %v411
        %s3544 = sld [smem:[#allocation9 + $0x106]]
        %v3545 = vstv %s3544
        %v3546 = vmul.f32 %v3545, %v3542
        %v3547 = vmul.f32 %v3545, %v3543
        %v3548 = vadd.f32 %v3528, %v3546
        %v3549 = vadd.f32 %v3529, %v3547
        %s3550 = sld [smem:[#allocation9 + $0x13c]]
        %v3551 = vstv %s3550
        %v3552 = vmul.f32 %v3551, %v3542
        %v3553 = vmul.f32 %v3551, %v3543
        %v3554 = vadd.f32 %v3534, %v3552
        %v3555 = vadd.f32 %v3535, %v3553
        %3556 = vrot.lane.b32.xlu0 %v3430, 15
        %v3557 = vpop.permute.xlu0 %3556
        %3558 = vrot.lane.b32.xlu0 %v3431, 15
        %v3559 = vpop.permute.xlu0 %3558
        %v3560 = vsel %vm834, %v3557, %v3559
        %v3561 = vsel %vm834, %v3559, %v3557
        %v3562 = vmul.f32 %v3561, %v420
        %v3563 = vmul.f32 %v3560, %v424
        %s3564 = sld [smem:[#allocation9 + $0xf5]]
        %v3565 = vstv %s3564
        %v3566 = vmul.f32 %v3565, %v3562
        %v3567 = vmul.f32 %v3565, %v3563
        %v3568 = vadd.f32 %v3548, %v3566
        %v3569 = vadd.f32 %v3549, %v3567
        %s3570 = sld [smem:[#allocation9 + $0x12b]]
        %v3571 = vstv %s3570
        %v3572 = vmul.f32 %v3571, %v3562
        %v3573 = vmul.f32 %v3571, %v3563
        %v3574 = vadd.f32 %v3554, %v3572
        %v3575 = vadd.f32 %v3555, %v3573
        %3576 = vrot.lane.b32.xlu0 %v2898, 15
        %v3577 = vpop.permute.xlu0 %3576
        %3578 = vrot.lane.b32.xlu0 %v2899, 15
        %v3579 = vpop.permute.xlu0 %3578
        %v3580 = vsel %vm834, %v3577, %v3579
        %v3581 = vsel %vm834, %v3579, %v3577
        %v3582 = vmul.f32 %v3581, %v420
        %v3583 = vmul.f32 %v3580, %v424
        %s3584 = sld [smem:[#allocation9 + $0xfe]]
        %v3585 = vstv %s3584
        %v3586 = vmul.f32 %v3585, %v3582
        %v3587 = vmul.f32 %v3585, %v3583
        %v3588 = vadd.f32 %v3568, %v3586
        %v3589 = vadd.f32 %v3569, %v3587
        %s3590 = sld [smem:[#allocation9 + $0x134]]
        %v3591 = vstv %s3590
        %v3592 = vmul.f32 %v3591, %v3582
        %v3593 = vmul.f32 %v3591, %v3583
        %v3594 = vadd.f32 %v3574, %v3592
        %v3595 = vadd.f32 %v3575, %v3593
        %3596 = vrot.lane.b32.xlu0 %v3434, 15
        %v3597 = vpop.permute.xlu0 %3596
        %3598 = vrot.lane.b32.xlu0 %v3435, 15
        %v3599 = vpop.permute.xlu0 %3598
        %v3600 = vsel %vm834, %v3597, %v3599
        %v3601 = vsel %vm834, %v3599, %v3597
        %v3602 = vmul.f32 %v3601, %v420
        %v3603 = vmul.f32 %v3600, %v424
        %s3604 = sld [smem:[#allocation9 + $0x107]]
        %v3605 = vstv %s3604
        %v3606 = vmul.f32 %v3605, %v3602
        %v3607 = vmul.f32 %v3605, %v3603
        %v3608 = vadd.f32 %v3588, %v3606
        %v3609 = vadd.f32 %v3589, %v3607
        %s3610 = sld [smem:[#allocation9 + $0x13d]]
        %v3611 = vstv %s3610
        %v3612 = vmul.f32 %v3611, %v3602
        %v3613 = vmul.f32 %v3611, %v3603
        %v3614 = vadd.f32 %v3594, %v3612
        %v3615 = vadd.f32 %v3595, %v3613
        %3616 = vrot.lane.b32.xlu0 %v3430, 1
        %v3617 = vpop.permute.xlu0 %3616
        %3618 = vrot.lane.b32.xlu0 %v3431, 1
        %v3619 = vpop.permute.xlu0 %3618
        %v3620 = vsel %vm895, %v3617, %v3619
        %v3621 = vsel %vm895, %v3619, %v3617
        %v3622 = vmul.f32 %v3621, %v433
        %v3623 = vmul.f32 %v3620, %v437
        %s3624 = sld [smem:[#allocation9 + $0xf6]]
        %v3625 = vstv %s3624
        %v3626 = vmul.f32 %v3625, %v3622
        %v3627 = vmul.f32 %v3625, %v3623
        %v3628 = vadd.f32 %v3608, %v3626
        %v3629 = vadd.f32 %v3609, %v3627
        %s3630 = sld [smem:[#allocation9 + $0x12c]]
        %v3631 = vstv %s3630
        %v3632 = vmul.f32 %v3631, %v3622
        %v3633 = vmul.f32 %v3631, %v3623
        %v3634 = vadd.f32 %v3614, %v3632
        %v3635 = vadd.f32 %v3615, %v3633
        %3636 = vrot.lane.b32.xlu0 %v2898, 1
        %v3637 = vpop.permute.xlu0 %3636
        %3638 = vrot.lane.b32.xlu0 %v2899, 1
        %v3639 = vpop.permute.xlu0 %3638
        %v3640 = vsel %vm895, %v3637, %v3639
        %v3641 = vsel %vm895, %v3639, %v3637
        %v3642 = vmul.f32 %v3641, %v433
        %v3643 = vmul.f32 %v3640, %v437
        %s3644 = sld [smem:[#allocation9 + $0xff]]
        %v3645 = vstv %s3644
        %v3646 = vmul.f32 %v3645, %v3642
        %v3647 = vmul.f32 %v3645, %v3643
        %v3648 = vadd.f32 %v3628, %v3646
        %v3649 = vadd.f32 %v3629, %v3647
        %s3650 = sld [smem:[#allocation9 + $0x135]]
        %v3651 = vstv %s3650
        %v3652 = vmul.f32 %v3651, %v3642
        %v3653 = vmul.f32 %v3651, %v3643
        %v3654 = vadd.f32 %v3634, %v3652
        %v3655 = vadd.f32 %v3635, %v3653
        %3656 = vrot.lane.b32.xlu0 %v3434, 1
        %v3657 = vpop.permute.xlu0 %3656
        %3658 = vrot.lane.b32.xlu0 %v3435, 1
        %v3659 = vpop.permute.xlu0 %3658
        %v3660 = vsel %vm895, %v3657, %v3659
        %v3661 = vsel %vm895, %v3659, %v3657
        %v3662 = vmul.f32 %v3661, %v433
        %v3663 = vmul.f32 %v3660, %v437
        %s3664 = sld [smem:[#allocation9 + $0x108]]
        %v3665 = vstv %s3664
        %v3666 = vmul.f32 %v3665, %v3662
        %v3667 = vmul.f32 %v3665, %v3663
        %v3668 = vadd.f32 %v3648, %v3666
        %v3669 = vadd.f32 %v3649, %v3667
        %s3670 = sld [smem:[#allocation9 + $0x13e]]
        %v3671 = vstv %s3670
        %v3672 = vmul.f32 %v3671, %v3662
        %v3673 = vmul.f32 %v3671, %v3663
        %v3674 = vadd.f32 %v3654, %v3672
        %v3675 = vadd.f32 %v3655, %v3673
        %s3676 = sld [smem:[#allocation9 + $0xf7]]
        %v3677 = vstv %s3676
        %v3678 = vmul.f32 %v3677, %v3430
        %v3679 = vmul.f32 %v3677, %v3431
        %v3680 = vadd.f32 %v3668, %v3678
        %v3681 = vadd.f32 %v3669, %v3679
        %s3682 = sld [smem:[#allocation9 + $0x12d]]
        %v3683 = vstv %s3682
        %v3684 = vmul.f32 %v3683, %v3430
        %v3685 = vmul.f32 %v3683, %v3431
        %v3686 = vadd.f32 %v3674, %v3684
        %v3687 = vadd.f32 %v3675, %v3685
        %s3688 = sld [smem:[#allocation9 + $0x100]]
        %v3689 = vstv %s3688
        %v3690 = vmul.f32 %v3689, %v2898
        %v3691 = vmul.f32 %v3689, %v2899
        %v3692 = vadd.f32 %v3680, %v3690
        %v3693 = vadd.f32 %v3681, %v3691
        %s3694 = sld [smem:[#allocation9 + $0x136]]
        %v3695 = vstv %s3694
        %v3696 = vmul.f32 %v3695, %v2898
        %v3697 = vmul.f32 %v3695, %v2899
        %v3698 = vadd.f32 %v3686, %v3696
        %v3699 = vadd.f32 %v3687, %v3697
        %s3700 = sld [smem:[#allocation9 + $0x109]]
        %v3701 = vstv %s3700
        %v3702 = vmul.f32 %v3701, %v3434
        %v3703 = vmul.f32 %v3701, %v3435
        %v3704 = vadd.f32 %v3692, %v3702
        %v3705 = vadd.f32 %v3693, %v3703
        %s3706 = sld [smem:[#allocation9 + $0x13f]]
        %v3707 = vstv %s3706
        %v3708 = vmul.f32 %v3707, %v3434
        %v3709 = vmul.f32 %v3707, %v3435
        %v3710 = vadd.f32 %v3698, %v3708
        %v3711 = vadd.f32 %v3699, %v3709
        %3712 = vrot.lane.b32.xlu0 %v3430, 127
        %v3713 = vpop.permute.xlu0 %3712
        %3714 = vrot.lane.b32.xlu0 %v3431, 127
        %v3715 = vpop.permute.xlu0 %3714
        %v3716 = vsel %vm992, %v3713, %v3715
        %v3717 = vsel %vm992, %v3715, %v3713
        %v3718 = vmul.f32 %v3716, %v446
        %v3719 = vmul.f32 %v3717, %v450
        %s3720 = sld [smem:[#allocation9 + $0xf8]]
        %v3721 = vstv %s3720
        %v3722 = vmul.f32 %v3721, %v3718
        %v3723 = vmul.f32 %v3721, %v3719
        %v3724 = vadd.f32 %v3704, %v3722
        %v3725 = vadd.f32 %v3705, %v3723
        %s3726 = sld [smem:[#allocation9 + $0x12e]]
        %v3727 = vstv %s3726
        %v3728 = vmul.f32 %v3727, %v3718
        %v3729 = vmul.f32 %v3727, %v3719
        %v3730 = vadd.f32 %v3710, %v3728
        %v3731 = vadd.f32 %v3711, %v3729
        %3732 = vrot.lane.b32.xlu0 %v2898, 127
        %v3733 = vpop.permute.xlu0 %3732
        %3734 = vrot.lane.b32.xlu0 %v2899, 127
        %v3735 = vpop.permute.xlu0 %3734
        %v3736 = vsel %vm992, %v3733, %v3735
        %v3737 = vsel %vm992, %v3735, %v3733
        %v3738 = vmul.f32 %v3736, %v446
        %v3739 = vmul.f32 %v3737, %v450
        %s3740 = sld [smem:[#allocation9 + $0x101]]
        %v3741 = vstv %s3740
        %v3742 = vmul.f32 %v3741, %v3738
        %v3743 = vmul.f32 %v3741, %v3739
        %v3744 = vadd.f32 %v3724, %v3742
        %v3745 = vadd.f32 %v3725, %v3743
        %s3746 = sld [smem:[#allocation9 + $0x137]]
        %v3747 = vstv %s3746
        %v3748 = vmul.f32 %v3747, %v3738
        %v3749 = vmul.f32 %v3747, %v3739
        %v3750 = vadd.f32 %v3730, %v3748
        %v3751 = vadd.f32 %v3731, %v3749
        %3752 = vrot.lane.b32.xlu0 %v3434, 127
        %v3753 = vpop.permute.xlu0 %3752
        %3754 = vrot.lane.b32.xlu0 %v3435, 127
        %v3755 = vpop.permute.xlu0 %3754
        %v3756 = vsel %vm992, %v3753, %v3755
        %v3757 = vsel %vm992, %v3755, %v3753
        %v3758 = vmul.f32 %v3756, %v446
        %v3759 = vmul.f32 %v3757, %v450
        %s3760 = sld [smem:[#allocation9 + $0x10a]]
        %v3761 = vstv %s3760
        %v3762 = vmul.f32 %v3761, %v3758
        %v3763 = vmul.f32 %v3761, %v3759
        %v3764 = vadd.f32 %v3744, %v3762
        %v3765 = vadd.f32 %v3745, %v3763
        %s3766 = sld [smem:[#allocation9 + $0x140]]
        %v3767 = vstv %s3766
        %v3768 = vmul.f32 %v3767, %v3758
        %v3769 = vmul.f32 %v3767, %v3759
        %v3770 = vadd.f32 %v3750, %v3768
        %v3771 = vadd.f32 %v3751, %v3769
        %3772 = vrot.lane.b32.xlu0 %v3430, 113
        %v3773 = vpop.permute.xlu0 %3772
        %3774 = vrot.lane.b32.xlu0 %v3431, 113
        %v3775 = vpop.permute.xlu0 %3774
        %v3776 = vsel %vm1053, %v3773, %v3775
        %v3777 = vsel %vm1053, %v3775, %v3773
        %v3778 = vmul.f32 %v3776, %v459
        %v3779 = vmul.f32 %v3777, %v463
        %s3780 = sld [smem:[#allocation9 + $0xf9]]
        %v3781 = vstv %s3780
        %v3782 = vmul.f32 %v3781, %v3778
        %v3783 = vmul.f32 %v3781, %v3779
        %v3784 = vadd.f32 %v3764, %v3782
        %v3785 = vadd.f32 %v3765, %v3783
        %s3786 = sld [smem:[#allocation9 + $0x12f]]
        %v3787 = vstv %s3786
        %v3788 = vmul.f32 %v3787, %v3778
        %v3789 = vmul.f32 %v3787, %v3779
        %v3790 = vadd.f32 %v3770, %v3788
        %v3791 = vadd.f32 %v3771, %v3789
        %3792 = vrot.lane.b32.xlu0 %v2898, 113
        %v3793 = vpop.permute.xlu0 %3792
        %3794 = vrot.lane.b32.xlu0 %v2899, 113
        %v3795 = vpop.permute.xlu0 %3794
        %v3796 = vsel %vm1053, %v3793, %v3795
        %v3797 = vsel %vm1053, %v3795, %v3793
        %v3798 = vmul.f32 %v3796, %v459
        %v3799 = vmul.f32 %v3797, %v463
        %s3800 = sld [smem:[#allocation9 + $0x102]]
        %v3801 = vstv %s3800
        %v3802 = vmul.f32 %v3801, %v3798
        %v3803 = vmul.f32 %v3801, %v3799
        %v3804 = vadd.f32 %v3784, %v3802
        %v3805 = vadd.f32 %v3785, %v3803
        %s3806 = sld [smem:[#allocation9 + $0x138]]
        %v3807 = vstv %s3806
        %v3808 = vmul.f32 %v3807, %v3798
        %v3809 = vmul.f32 %v3807, %v3799
        %v3810 = vadd.f32 %v3790, %v3808
        %v3811 = vadd.f32 %v3791, %v3809
        %3812 = vrot.lane.b32.xlu0 %v3434, 113
        %v3813 = vpop.permute.xlu0 %3812
        %3814 = vrot.lane.b32.xlu0 %v3435, 113
        %v3815 = vpop.permute.xlu0 %3814
        %v3816 = vsel %vm1053, %v3813, %v3815
        %v3817 = vsel %vm1053, %v3815, %v3813
        %v3818 = vmul.f32 %v3816, %v459
        %v3819 = vmul.f32 %v3817, %v463
        %s3820 = sld [smem:[#allocation9 + $0x10b]]
        %v3821 = vstv %s3820
        %v3822 = vmul.f32 %v3821, %v3818
        %v3823 = vmul.f32 %v3821, %v3819
        %v3824 = vadd.f32 %v3804, %v3822
        %v3825 = vadd.f32 %v3805, %v3823
        %s3826 = sld [smem:[#allocation9 + $0x141]]
        %v3827 = vstv %s3826
        %v3828 = vmul.f32 %v3827, %v3818
        %v3829 = vmul.f32 %v3827, %v3819
        %v3830 = vadd.f32 %v3810, %v3828
        %v3831 = vadd.f32 %v3811, %v3829
        %3832 = vrot.lane.b32.xlu0 %v3430, 112
        %v3833 = vpop.permute.xlu0 %3832
        %3834 = vrot.lane.b32.xlu0 %v3431, 112
        %v3835 = vpop.permute.xlu0 %3834
        %v3836 = vsel %vm1114, %v3833, %v3835
        %v3837 = vsel %vm1114, %v3835, %v3833
        %v3838 = vmul.f32 %v3836, %v472
        %v3839 = vmul.f32 %v3837, %v476
        %s3840 = sld [smem:[#allocation9 + $0xfa]]
        %v3841 = vstv %s3840
        %v3842 = vmul.f32 %v3841, %v3838
        %v3843 = vmul.f32 %v3841, %v3839
        %v3844 = vadd.f32 %v3824, %v3842
        %v3845 = vadd.f32 %v3825, %v3843
        %s3846 = sld [smem:[#allocation9 + $0x130]]
        %v3847 = vstv %s3846
        %v3848 = vmul.f32 %v3847, %v3838
        %v3849 = vmul.f32 %v3847, %v3839
        %v3850 = vadd.f32 %v3830, %v3848
        %v3851 = vadd.f32 %v3831, %v3849
        %3852 = vrot.lane.b32.xlu0 %v2898, 112
        %v3853 = vpop.permute.xlu0 %3852
        %3854 = vrot.lane.b32.xlu0 %v2899, 112
        %v3855 = vpop.permute.xlu0 %3854
        %v3856 = vsel %vm1114, %v3853, %v3855
        %v3857 = vsel %vm1114, %v3855, %v3853
        %v3858 = vmul.f32 %v3856, %v472
        %v3859 = vmul.f32 %v3857, %v476
        %s3860 = sld [smem:[#allocation9 + $0x103]]
        %v3861 = vstv %s3860
        %v3862 = vmul.f32 %v3861, %v3858
        %v3863 = vmul.f32 %v3861, %v3859
        %v3864 = vadd.f32 %v3844, %v3862
        %v3865 = vadd.f32 %v3845, %v3863
        %s3866 = sld [smem:[#allocation9 + $0x139]]
        %v3867 = vstv %s3866
        %v3868 = vmul.f32 %v3867, %v3858
        %v3869 = vmul.f32 %v3867, %v3859
        %v3870 = vadd.f32 %v3850, %v3868
        %v3871 = vadd.f32 %v3851, %v3869
        %3872 = vrot.lane.b32.xlu0 %v3434, 112
        %v3873 = vpop.permute.xlu0 %3872
        %3874 = vrot.lane.b32.xlu0 %v3435, 112
        %v3875 = vpop.permute.xlu0 %3874
        %v3876 = vsel %vm1114, %v3873, %v3875
        %v3877 = vsel %vm1114, %v3875, %v3873
        %v3878 = vmul.f32 %v3876, %v472
        %v3879 = vmul.f32 %v3877, %v476
        %s3880 = sld [smem:[#allocation9 + $0x10c]]
        %v3881 = vstv %s3880
        %v3882 = vmul.f32 %v3881, %v3878
        %v3883 = vmul.f32 %v3881, %v3879
        %v3884 = vadd.f32 %v3864, %v3882
        %v3885 = vadd.f32 %v3865, %v3883
        %s3886 = sld [smem:[#allocation9 + $0x142]]
        %v3887 = vstv %s3886
        %v3888 = vmul.f32 %v3887, %v3878
        %v3889 = vmul.f32 %v3887, %v3879
        %v3890 = vadd.f32 %v3870, %v3888
        %v3891 = vadd.f32 %v3871, %v3889
        %3892 = vrot.lane.b32.xlu0 %v3430, 111
        %v3893 = vpop.permute.xlu0 %3892
        %3894 = vrot.lane.b32.xlu0 %v3431, 111
        %v3895 = vpop.permute.xlu0 %3894
        %v3896 = vsel %vm1175, %v3893, %v3895
        %v3897 = vsel %vm1175, %v3895, %v3893
        %v3898 = vmul.f32 %v3896, %v485
        %v3899 = vmul.f32 %v3897, %v489
        %s3900 = sld [smem:[#allocation9 + $0xfb]]
        %v3901 = vstv %s3900
        %v3902 = vmul.f32 %v3901, %v3898
        %v3903 = vmul.f32 %v3901, %v3899
        %v3904 = vadd.f32 %v3884, %v3902
        %v3905 = vadd.f32 %v3885, %v3903
        %s3906 = sld [smem:[#allocation9 + $0x131]]
        %v3907 = vstv %s3906
        %v3908 = vmul.f32 %v3907, %v3898
        %v3909 = vmul.f32 %v3907, %v3899
        %v3910 = vadd.f32 %v3890, %v3908
        %v3911 = vadd.f32 %v3891, %v3909
        %3912 = vrot.lane.b32.xlu0 %v2898, 111
        %v3913 = vpop.permute.xlu0 %3912
        %3914 = vrot.lane.b32.xlu0 %v2899, 111
        %v3915 = vpop.permute.xlu0 %3914
        %v3916 = vsel %vm1175, %v3913, %v3915
        %v3917 = vsel %vm1175, %v3915, %v3913
        %v3918 = vmul.f32 %v3916, %v485
        %v3919 = vmul.f32 %v3917, %v489
        %s3920 = sld [smem:[#allocation9 + $0x104]]
        %v3921 = vstv %s3920
        %v3922 = vmul.f32 %v3921, %v3918
        %v3923 = vmul.f32 %v3921, %v3919
        %v3924 = vadd.f32 %v3904, %v3922
        %v3925 = vadd.f32 %v3905, %v3923
        %s3926 = sld [smem:[#allocation9 + $0x13a]]
        %v3927 = vstv %s3926
        %v3928 = vmul.f32 %v3927, %v3918
        %v3929 = vmul.f32 %v3927, %v3919
        %v3930 = vadd.f32 %v3910, %v3928
        %v3931 = vadd.f32 %v3911, %v3929
        %3932 = vrot.lane.b32.xlu0 %v3434, 111
        %v3933 = vpop.permute.xlu0 %3932
        %3934 = vrot.lane.b32.xlu0 %v3435, 111
        %v3935 = vpop.permute.xlu0 %3934
        %v3936 = vsel %vm1175, %v3933, %v3935
        %v3937 = vsel %vm1175, %v3935, %v3933
        %v3938 = vmul.f32 %v3936, %v485
        %v3939 = vmul.f32 %v3937, %v489
        %s3940 = sld [smem:[#allocation9 + $0x10d]]
        %v3941 = vstv %s3940
        %v3942 = vmul.f32 %v3941, %v3938
        %v3943 = vmul.f32 %v3941, %v3939
        %v3944 = vadd.f32 %v3924, %v3942
        %v3945 = vadd.f32 %v3925, %v3943
        %s3946 = sld [smem:[#allocation9 + $0x143]]
        %v3947 = vstv %s3946
        %v3948 = vmul.f32 %v3947, %v3938
        %v3949 = vmul.f32 %v3947, %v3939
        %v3950 = vadd.f32 %v3930, %v3948
        %v3951 = vadd.f32 %v3931, %v3949
        %v3952 = vadd.f32 %v3944, %v3945
        %3953 = vadd.xlane.f32.xlu0 %v3952
        %v3954 = vpop.xlane.xlu0 %3953
        %v3955 = vrot.slane %v3954, 4
        %v3956 = vadd.f32 %v3954, %v3955
        %v3957 = vrot.slane %v3956, 2
        %v3958 = vadd.f32 %v3956, %v3957
        %v3959 = vrot.slane %v3958, 1
        %v3960 = vadd.f32 %v3958, %v3959
        %s3961 = vtos %v3960
        %v3962 = vrcp.pop 2048.0
        %s3963 = vtos %v3962
        %s3964 = smul.f32 %s3961, %s3963
        %v3965 = vstv %s3964
        %v3966 = vsub.f32 %v3944, %v3965
        %v3967 = vsub.f32 %v3945, %v3965
        %v3968 = vmul.f32 %v3966, %v3966
        %v3969 = vmul.f32 %v3967, %v3967
        %v3970 = vadd.f32 %v3968, %v3969
        %3971 = vadd.xlane.f32.xlu0 %v3970
        %v3972 = vpop.xlane.xlu0 %3971
        %v3973 = vrot.slane %v3972, 4
        %v3974 = vadd.f32 %v3972, %v3973
        %v3975 = vrot.slane %v3974, 2
        %v3976 = vadd.f32 %v3974, %v3975
        %v3977 = vrot.slane %v3976, 1
        %v3978 = vadd.f32 %v3976, %v3977
        %s3979 = vtos %v3978
        %v3980 = vrcp.pop 2048.0
        %s3981 = vtos %v3980
        %s3982 = smul.f32 %s3979, %s3981
        %s3983 = sadd.f32 %s3982, 1e-05
        %v3984 = vstv %s3983
        %v3985 = vrsqrt.pop %v3984
        %s3986 = vtos %v3985
        %s3987 = sld [smem:[#allocation8 + $0xc]]
        %s3988 = smul.f32 %s3986, %s3987
        %v3989 = vstv %s3988
        %v3990 = vmul.f32 %v3966, %v3989
        %v3991 = vmul.f32 %v3967, %v3989
        %s3992 = sld [smem:[#allocation8 + $0xe]]
        %v3993 = vstv %s3992
        %v3994 = vadd.f32 %v3990, %v3993
        %v3995 = vadd.f32 %v3991, %v3993
        %v3996 = vmul.f32 %v3994, 0.01
        %v3997 = vmul.f32 %v3995, 0.01
        %v3998 = vmax.f32 %v3994, %v3996
        %v3999 = vmax.f32 %v3995, %v3997
        %v4000 = vadd.f32 %v3950, %v3951
        %4001 = vadd.xlane.f32.xlu0 %v4000
        %v4002 = vpop.xlane.xlu0 %4001
        %v4003 = vrot.slane %v4002, 4
        %v4004 = vadd.f32 %v4002, %v4003
        %v4005 = vrot.slane %v4004, 2
        %v4006 = vadd.f32 %v4004, %v4005
        %v4007 = vrot.slane %v4006, 1
        %v4008 = vadd.f32 %v4006, %v4007
        %s4009 = vtos %v4008
        %v4010 = vrcp.pop 2048.0
        %s4011 = vtos %v4010
        %s4012 = smul.f32 %s4009, %s4011
        %v4013 = vstv %s4012
        %v4014 = vsub.f32 %v3950, %v4013
        %v4015 = vsub.f32 %v3951, %v4013
        %v4016 = vmul.f32 %v4014, %v4014
        %v4017 = vmul.f32 %v4015, %v4015
        %v4018 = vadd.f32 %v4016, %v4017
        %4019 = vadd.xlane.f32.xlu0 %v4018
        %v4020 = vpop.xlane.xlu0 %4019
        %v4021 = vrot.slane %v4020, 4
        %v4022 = vadd.f32 %v4020, %v4021
        %v4023 = vrot.slane %v4022, 2
        %v4024 = vadd.f32 %v4022, %v4023
        %v4025 = vrot.slane %v4024, 1
        %v4026 = vadd.f32 %v4024, %v4025
        %s4027 = vtos %v4026
        %v4028 = vrcp.pop 2048.0
        %s4029 = vtos %v4028
        %s4030 = smul.f32 %s4027, %s4029
        %s4031 = sadd.f32 %s4030, 1e-05
        %v4032 = vstv %s4031
        %v4033 = vrsqrt.pop %v4032
        %s4034 = vtos %v4033
        %s4035 = sld [smem:[#allocation8 + $0xd]]
        %s4036 = smul.f32 %s4034, %s4035
        %v4037 = vstv %s4036
        %v4038 = vmul.f32 %v4014, %v4037
        %v4039 = vmul.f32 %v4015, %v4037
        %s4040 = sld [smem:[#allocation8 + $0xf]]
        %v4041 = vstv %s4040
        %v4042 = vadd.f32 %v4038, %v4041
        %v4043 = vadd.f32 %v4039, %v4041
        %v4044 = vmul.f32 %v4042, 0.01
        %v4045 = vmul.f32 %v4043, 0.01
        %v4046 = vmax.f32 %v4042, %v4044
        %v4047 = vmax.f32 %v4043, %v4045
        %s4048 = sld [smem:[#allocation11 + $0x4]]
        %v4049 = vstv %s4048
        %s4050 = sld [smem:[#allocation11 + $0x5]]
        %v4051 = vstv %s4050
        %v4052 = vrot.slane %v3998, 7
        %v4053 = vrot.slane %v3999, 7
        %v4054 = vmul.f32 %v4052, %v380
        %v4055 = vmul.f32 %v4053, %v380
        %v4056 = vrot.slane %v3998, 1
        %v4057 = vrot.slane %v3999, 1
        %v4058 = vmul.f32 %v4056, %v387
        %v4059 = vmul.f32 %v4057, %v387
        %4060 = vrot.lane.b32.xlu0 %v4054, 17
        %v4061 = vpop.permute.xlu0 %4060
        %4062 = vrot.lane.b32.xlu0 %v4055, 17
        %v4063 = vpop.permute.xlu0 %4062
        %v4064 = vsel %vm712, %v4061, %v4063
        %v4065 = vsel %vm712, %v4063, %v4061
        %v4066 = vmul.f32 %v4065, %v394
        %v4067 = vmul.f32 %v4064, %v398
        %s4068 = sld [smem:[#allocation9 + $0x144]]
        %v4069 = vstv %s4068
        %v4070 = vmul.f32 %v4069, %v4066
        %v4071 = vmul.f32 %v4069, %v4067
        %v4072 = vadd.f32 %v4049, %v4070
        %v4073 = vadd.f32 %v4049, %v4071
        %s4074 = sld [smem:[#allocation9 + $0x17a]]
        %v4075 = vstv %s4074
        %v4076 = vmul.f32 %v4075, %v4066
        %v4077 = vmul.f32 %v4075, %v4067
        %v4078 = vadd.f32 %v4051, %v4076
        %v4079 = vadd.f32 %v4051, %v4077
        %4080 = vrot.lane.b32.xlu0 %v3998, 17
        %v4081 = vpop.permute.xlu0 %4080
        %4082 = vrot.lane.b32.xlu0 %v3999, 17
        %v4083 = vpop.permute.xlu0 %4082
        %v4084 = vsel %vm712, %v4081, %v4083
        %v4085 = vsel %vm712, %v4083, %v4081
        %v4086 = vmul.f32 %v4085, %v394
        %v4087 = vmul.f32 %v4084, %v398
        %s4088 = sld [smem:[#allocation9 + $0x14d]]
        %v4089 = vstv %s4088
        %v4090 = vmul.f32 %v4089, %v4086
        %v4091 = vmul.f32 %v4089, %v4087
        %v4092 = vadd.f32 %v4072, %v4090
        %v4093 = vadd.f32 %v4073, %v4091
        %s4094 = sld [smem:[#allocation9 + $0x183]]
        %v4095 = vstv %s4094
        %v4096 = vmul.f32 %v4095, %v4086
        %v4097 = vmul.f32 %v4095, %v4087
        %v4098 = vadd.f32 %v4078, %v4096
        %v4099 = vadd.f32 %v4079, %v4097
        %4100 = vrot.lane.b32.xlu0 %v4058, 17
        %v4101 = vpop.permute.xlu0 %4100
        %4102 = vrot.lane.b32.xlu0 %v4059, 17
        %v4103 = vpop.permute.xlu0 %4102
        %v4104 = vsel %vm712, %v4101, %v4103
        %v4105 = vsel %vm712, %v4103, %v4101
        %v4106 = vmul.f32 %v4105, %v394
        %v4107 = vmul.f32 %v4104, %v398
        %s4108 = sld [smem:[#allocation9 + $0x156]]
        %v4109 = vstv %s4108
        %v4110 = vmul.f32 %v4109, %v4106
        %v4111 = vmul.f32 %v4109, %v4107
        %v4112 = vadd.f32 %v4092, %v4110
        %v4113 = vadd.f32 %v4093, %v4111
        %s4114 = sld [smem:[#allocation9 + $0x18c]]
        %v4115 = vstv %s4114
        %v4116 = vmul.f32 %v4115, %v4106
        %v4117 = vmul.f32 %v4115, %v4107
        %v4118 = vadd.f32 %v4098, %v4116
        %v4119 = vadd.f32 %v4099, %v4117
        %4120 = vrot.lane.b32.xlu0 %v4054, 16
        %v4121 = vpop.permute.xlu0 %4120
        %4122 = vrot.lane.b32.xlu0 %v4055, 16
        %v4123 = vpop.permute.xlu0 %4122
        %v4124 = vsel %vm773, %v4121, %v4123
        %v4125 = vsel %vm773, %v4123, %v4121
        %v4126 = vmul.f32 %v4125, %v407
        %v4127 = vmul.f32 %v4124, %v411
        %s4128 = sld [smem:[#allocation9 + $0x145]]
        %v4129 = vstv %s4128
        %v4130 = vmul.f32 %v4129, %v4126
        %v4131 = vmul.f32 %v4129, %v4127
        %v4132 = vadd.f32 %v4112, %v4130
        %v4133 = vadd.f32 %v4113, %v4131
        %s4134 = sld [smem:[#allocation9 + $0x17b]]
        %v4135 = vstv %s4134
        %v4136 = vmul.f32 %v4135, %v4126
        %v4137 = vmul.f32 %v4135, %v4127
        %v4138 = vadd.f32 %v4118, %v4136
        %v4139 = vadd.f32 %v4119, %v4137
        %4140 = vrot.lane.b32.xlu0 %v3998, 16
        %v4141 = vpop.permute.xlu0 %4140
        %4142 = vrot.lane.b32.xlu0 %v3999, 16
        %v4143 = vpop.permute.xlu0 %4142
        %v4144 = vsel %vm773, %v4141, %v4143
        %v4145 = vsel %vm773, %v4143, %v4141
        %v4146 = vmul.f32 %v4145, %v407
        %v4147 = vmul.f32 %v4144, %v411
        %s4148 = sld [smem:[#allocation9 + $0x14e]]
        %v4149 = vstv %s4148
        %v4150 = vmul.f32 %v4149, %v4146
        %v4151 = vmul.f32 %v4149, %v4147
        %v4152 = vadd.f32 %v4132, %v4150
        %v4153 = vadd.f32 %v4133, %v4151
        %s4154 = sld [smem:[#allocation9 + $0x184]]
        %v4155 = vstv %s4154
        %v4156 = vmul.f32 %v4155, %v4146
        %v4157 = vmul.f32 %v4155, %v4147
        %v4158 = vadd.f32 %v4138, %v4156
        %v4159 = vadd.f32 %v4139, %v4157
        %4160 = vrot.lane.b32.xlu0 %v4058, 16
        %v4161 = vpop.permute.xlu0 %4160
        %4162 = vrot.lane.b32.xlu0 %v4059, 16
        %v4163 = vpop.permute.xlu0 %4162
        %v4164 = vsel %vm773, %v4161, %v4163
        %v4165 = vsel %vm773, %v4163, %v4161
        %v4166 = vmul.f32 %v4165, %v407
        %v4167 = vmul.f32 %v4164, %v411
        %s4168 = sld [smem:[#allocation9 + $0x157]]
        %v4169 = vstv %s4168
        %v4170 = vmul.f32 %v4169, %v4166
        %v4171 = vmul.f32 %v4169, %v4167
        %v4172 = vadd.f32 %v4152, %v4170
        %v4173 = vadd.f32 %v4153, %v4171
        %s4174 = sld [smem:[#allocation9 + $0x18d]]
        %v4175 = vstv %s4174
        %v4176 = vmul.f32 %v4175, %v4166
        %v4177 = vmul.f32 %v4175, %v4167
        %v4178 = vadd.f32 %v4158, %v4176
        %v4179 = vadd.f32 %v4159, %v4177
        %4180 = vrot.lane.b32.xlu0 %v4054, 15
        %v4181 = vpop.permute.xlu0 %4180
        %4182 = vrot.lane.b32.xlu0 %v4055, 15
        %v4183 = vpop.permute.xlu0 %4182
        %v4184 = vsel %vm834, %v4181, %v4183
        %v4185 = vsel %vm834, %v4183, %v4181
        %v4186 = vmul.f32 %v4185, %v420
        %v4187 = vmul.f32 %v4184, %v424
        %s4188 = sld [smem:[#allocation9 + $0x146]]
        %v4189 = vstv %s4188
        %v4190 = vmul.f32 %v4189, %v4186
        %v4191 = vmul.f32 %v4189, %v4187
        %v4192 = vadd.f32 %v4172, %v4190
        %v4193 = vadd.f32 %v4173, %v4191
        %s4194 = sld [smem:[#allocation9 + $0x17c]]
        %v4195 = vstv %s4194
        %v4196 = vmul.f32 %v4195, %v4186
        %v4197 = vmul.f32 %v4195, %v4187
        %v4198 = vadd.f32 %v4178, %v4196
        %v4199 = vadd.f32 %v4179, %v4197
        %4200 = vrot.lane.b32.xlu0 %v3998, 15
        %v4201 = vpop.permute.xlu0 %4200
        %4202 = vrot.lane.b32.xlu0 %v3999, 15
        %v4203 = vpop.permute.xlu0 %4202
        %v4204 = vsel %vm834, %v4201, %v4203
        %v4205 = vsel %vm834, %v4203, %v4201
        %v4206 = vmul.f32 %v4205, %v420
        %v4207 = vmul.f32 %v4204, %v424
        %s4208 = sld [smem:[#allocation9 + $0x14f]]
        %v4209 = vstv %s4208
        %v4210 = vmul.f32 %v4209, %v4206
        %v4211 = vmul.f32 %v4209, %v4207
        %v4212 = vadd.f32 %v4192, %v4210
        %v4213 = vadd.f32 %v4193, %v4211
        %s4214 = sld [smem:[#allocation9 + $0x185]]
        %v4215 = vstv %s4214
        %v4216 = vmul.f32 %v4215, %v4206
        %v4217 = vmul.f32 %v4215, %v4207
        %v4218 = vadd.f32 %v4198, %v4216
        %v4219 = vadd.f32 %v4199, %v4217
        %4220 = vrot.lane.b32.xlu0 %v4058, 15
        %v4221 = vpop.permute.xlu0 %4220
        %4222 = vrot.lane.b32.xlu0 %v4059, 15
        %v4223 = vpop.permute.xlu0 %4222
        %v4224 = vsel %vm834, %v4221, %v4223
        %v4225 = vsel %vm834, %v4223, %v4221
        %v4226 = vmul.f32 %v4225, %v420
        %v4227 = vmul.f32 %v4224, %v424
        %s4228 = sld [smem:[#allocation9 + $0x158]]
        %v4229 = vstv %s4228
        %v4230 = vmul.f32 %v4229, %v4226
        %v4231 = vmul.f32 %v4229, %v4227
        %v4232 = vadd.f32 %v4212, %v4230
        %v4233 = vadd.f32 %v4213, %v4231
        %s4234 = sld [smem:[#allocation9 + $0x18e]]
        %v4235 = vstv %s4234
        %v4236 = vmul.f32 %v4235, %v4226
        %v4237 = vmul.f32 %v4235, %v4227
        %v4238 = vadd.f32 %v4218, %v4236
        %v4239 = vadd.f32 %v4219, %v4237
        %4240 = vrot.lane.b32.xlu0 %v4054, 1
        %v4241 = vpop.permute.xlu0 %4240
        %4242 = vrot.lane.b32.xlu0 %v4055, 1
        %v4243 = vpop.permute.xlu0 %4242
        %v4244 = vsel %vm895, %v4241, %v4243
        %v4245 = vsel %vm895, %v4243, %v4241
        %v4246 = vmul.f32 %v4245, %v433
        %v4247 = vmul.f32 %v4244, %v437
        %s4248 = sld [smem:[#allocation9 + $0x147]]
        %v4249 = vstv %s4248
        %v4250 = vmul.f32 %v4249, %v4246
        %v4251 = vmul.f32 %v4249, %v4247
        %v4252 = vadd.f32 %v4232, %v4250
        %v4253 = vadd.f32 %v4233, %v4251
        %s4254 = sld [smem:[#allocation9 + $0x17d]]
        %v4255 = vstv %s4254
        %v4256 = vmul.f32 %v4255, %v4246
        %v4257 = vmul.f32 %v4255, %v4247
        %v4258 = vadd.f32 %v4238, %v4256
        %v4259 = vadd.f32 %v4239, %v4257
        %4260 = vrot.lane.b32.xlu0 %v3998, 1
        %v4261 = vpop.permute.xlu0 %4260
        %4262 = vrot.lane.b32.xlu0 %v3999, 1
        %v4263 = vpop.permute.xlu0 %4262
        %v4264 = vsel %vm895, %v4261, %v4263
        %v4265 = vsel %vm895, %v4263, %v4261
        %v4266 = vmul.f32 %v4265, %v433
        %v4267 = vmul.f32 %v4264, %v437
        %s4268 = sld [smem:[#allocation9 + $0x150]]
        %v4269 = vstv %s4268
        %v4270 = vmul.f32 %v4269, %v4266
        %v4271 = vmul.f32 %v4269, %v4267
        %v4272 = vadd.f32 %v4252, %v4270
        %v4273 = vadd.f32 %v4253, %v4271
        %s4274 = sld [smem:[#allocation9 + $0x186]]
        %v4275 = vstv %s4274
        %v4276 = vmul.f32 %v4275, %v4266
        %v4277 = vmul.f32 %v4275, %v4267
        %v4278 = vadd.f32 %v4258, %v4276
        %v4279 = vadd.f32 %v4259, %v4277
        %4280 = vrot.lane.b32.xlu0 %v4058, 1
        %v4281 = vpop.permute.xlu0 %4280
        %4282 = vrot.lane.b32.xlu0 %v4059, 1
        %v4283 = vpop.permute.xlu0 %4282
        %v4284 = vsel %vm895, %v4281, %v4283
        %v4285 = vsel %vm895, %v4283, %v4281
        %v4286 = vmul.f32 %v4285, %v433
        %v4287 = vmul.f32 %v4284, %v437
        %s4288 = sld [smem:[#allocation9 + $0x159]]
        %v4289 = vstv %s4288
        %v4290 = vmul.f32 %v4289, %v4286
        %v4291 = vmul.f32 %v4289, %v4287
        %v4292 = vadd.f32 %v4272, %v4290
        %v4293 = vadd.f32 %v4273, %v4291
        %s4294 = sld [smem:[#allocation9 + $0x18f]]
        %v4295 = vstv %s4294
        %v4296 = vmul.f32 %v4295, %v4286
        %v4297 = vmul.f32 %v4295, %v4287
        %v4298 = vadd.f32 %v4278, %v4296
        %v4299 = vadd.f32 %v4279, %v4297
        %s4300 = sld [smem:[#allocation9 + $0x148]]
        %v4301 = vstv %s4300
        %v4302 = vmul.f32 %v4301, %v4054
        %v4303 = vmul.f32 %v4301, %v4055
        %v4304 = vadd.f32 %v4292, %v4302
        %v4305 = vadd.f32 %v4293, %v4303
        %s4306 = sld [smem:[#allocation9 + $0x17e]]
        %v4307 = vstv %s4306
        %v4308 = vmul.f32 %v4307, %v4054
        %v4309 = vmul.f32 %v4307, %v4055
        %v4310 = vadd.f32 %v4298, %v4308
        %v4311 = vadd.f32 %v4299, %v4309
        %s4312 = sld [smem:[#allocation9 + $0x151]]
        %v4313 = vstv %s4312
        %v4314 = vmul.f32 %v4313, %v3998
        %v4315 = vmul.f32 %v4313, %v3999
        %v4316 = vadd.f32 %v4304, %v4314
        %v4317 = vadd.f32 %v4305, %v4315
        %s4318 = sld [smem:[#allocation9 + $0x187]]
        %v4319 = vstv %s4318
        %v4320 = vmul.f32 %v4319, %v3998
        %v4321 = vmul.f32 %v4319, %v3999
        %v4322 = vadd.f32 %v4310, %v4320
        %v4323 = vadd.f32 %v4311, %v4321
        %s4324 = sld [smem:[#allocation9 + $0x15a]]
        %v4325 = vstv %s4324
        %v4326 = vmul.f32 %v4325, %v4058
        %v4327 = vmul.f32 %v4325, %v4059
        %v4328 = vadd.f32 %v4316, %v4326
        %v4329 = vadd.f32 %v4317, %v4327
        %s4330 = sld [smem:[#allocation9 + $0x190]]
        %v4331 = vstv %s4330
        %v4332 = vmul.f32 %v4331, %v4058
        %v4333 = vmul.f32 %v4331, %v4059
        %v4334 = vadd.f32 %v4322, %v4332
        %v4335 = vadd.f32 %v4323, %v4333
        %4336 = vrot.lane.b32.xlu0 %v4054, 127
        %v4337 = vpop.permute.xlu0 %4336
        %4338 = vrot.lane.b32.xlu0 %v4055, 127
        %v4339 = vpop.permute.xlu0 %4338
        %v4340 = vsel %vm992, %v4337, %v4339
        %v4341 = vsel %vm992, %v4339, %v4337
        %v4342 = vmul.f32 %v4340, %v446
        %v4343 = vmul.f32 %v4341, %v450
        %s4344 = sld [smem:[#allocation9 + $0x149]]
        %v4345 = vstv %s4344
        %v4346 = vmul.f32 %v4345, %v4342
        %v4347 = vmul.f32 %v4345, %v4343
        %v4348 = vadd.f32 %v4328, %v4346
        %v4349 = vadd.f32 %v4329, %v4347
        %s4350 = sld [smem:[#allocation9 + $0x17f]]
        %v4351 = vstv %s4350
        %v4352 = vmul.f32 %v4351, %v4342
        %v4353 = vmul.f32 %v4351, %v4343
        %v4354 = vadd.f32 %v4334, %v4352
        %v4355 = vadd.f32 %v4335, %v4353
        %4356 = vrot.lane.b32.xlu0 %v3998, 127
        %v4357 = vpop.permute.xlu0 %4356
        %4358 = vrot.lane.b32.xlu0 %v3999, 127
        %v4359 = vpop.permute.xlu0 %4358
        %v4360 = vsel %vm992, %v4357, %v4359
        %v4361 = vsel %vm992, %v4359, %v4357
        %v4362 = vmul.f32 %v4360, %v446
        %v4363 = vmul.f32 %v4361, %v450
        %s4364 = sld [smem:[#allocation9 + $0x152]]
        %v4365 = vstv %s4364
        %v4366 = vmul.f32 %v4365, %v4362
        %v4367 = vmul.f32 %v4365, %v4363
        %v4368 = vadd.f32 %v4348, %v4366
        %v4369 = vadd.f32 %v4349, %v4367
        %s4370 = sld [smem:[#allocation9 + $0x188]]
        %v4371 = vstv %s4370
        %v4372 = vmul.f32 %v4371, %v4362
        %v4373 = vmul.f32 %v4371, %v4363
        %v4374 = vadd.f32 %v4354, %v4372
        %v4375 = vadd.f32 %v4355, %v4373
        %4376 = vrot.lane.b32.xlu0 %v4058, 127
        %v4377 = vpop.permute.xlu0 %4376
        %4378 = vrot.lane.b32.xlu0 %v4059, 127
        %v4379 = vpop.permute.xlu0 %4378
        %v4380 = vsel %vm992, %v4377, %v4379
        %v4381 = vsel %vm992, %v4379, %v4377
        %v4382 = vmul.f32 %v4380, %v446
        %v4383 = vmul.f32 %v4381, %v450
        %s4384 = sld [smem:[#allocation9 + $0x15b]]
        %v4385 = vstv %s4384
        %v4386 = vmul.f32 %v4385, %v4382
        %v4387 = vmul.f32 %v4385, %v4383
        %v4388 = vadd.f32 %v4368, %v4386
        %v4389 = vadd.f32 %v4369, %v4387
        %s4390 = sld [smem:[#allocation9 + $0x191]]
        %v4391 = vstv %s4390
        %v4392 = vmul.f32 %v4391, %v4382
        %v4393 = vmul.f32 %v4391, %v4383
        %v4394 = vadd.f32 %v4374, %v4392
        %v4395 = vadd.f32 %v4375, %v4393
        %4396 = vrot.lane.b32.xlu0 %v4054, 113
        %v4397 = vpop.permute.xlu0 %4396
        %4398 = vrot.lane.b32.xlu0 %v4055, 113
        %v4399 = vpop.permute.xlu0 %4398
        %v4400 = vsel %vm1053, %v4397, %v4399
        %v4401 = vsel %vm1053, %v4399, %v4397
        %v4402 = vmul.f32 %v4400, %v459
        %v4403 = vmul.f32 %v4401, %v463
        %s4404 = sld [smem:[#allocation9 + $0x14a]]
        %v4405 = vstv %s4404
        %v4406 = vmul.f32 %v4405, %v4402
        %v4407 = vmul.f32 %v4405, %v4403
        %v4408 = vadd.f32 %v4388, %v4406
        %v4409 = vadd.f32 %v4389, %v4407
        %s4410 = sld [smem:[#allocation9 + $0x180]]
        %v4411 = vstv %s4410
        %v4412 = vmul.f32 %v4411, %v4402
        %v4413 = vmul.f32 %v4411, %v4403
        %v4414 = vadd.f32 %v4394, %v4412
        %v4415 = vadd.f32 %v4395, %v4413
        %4416 = vrot.lane.b32.xlu0 %v3998, 113
        %v4417 = vpop.permute.xlu0 %4416
        %4418 = vrot.lane.b32.xlu0 %v3999, 113
        %v4419 = vpop.permute.xlu0 %4418
        %v4420 = vsel %vm1053, %v4417, %v4419
        %v4421 = vsel %vm1053, %v4419, %v4417
        %v4422 = vmul.f32 %v4420, %v459
        %v4423 = vmul.f32 %v4421, %v463
        %s4424 = sld [smem:[#allocation9 + $0x153]]
        %v4425 = vstv %s4424
        %v4426 = vmul.f32 %v4425, %v4422
        %v4427 = vmul.f32 %v4425, %v4423
        %v4428 = vadd.f32 %v4408, %v4426
        %v4429 = vadd.f32 %v4409, %v4427
        %s4430 = sld [smem:[#allocation9 + $0x189]]
        %v4431 = vstv %s4430
        %v4432 = vmul.f32 %v4431, %v4422
        %v4433 = vmul.f32 %v4431, %v4423
        %v4434 = vadd.f32 %v4414, %v4432
        %v4435 = vadd.f32 %v4415, %v4433
        %4436 = vrot.lane.b32.xlu0 %v4058, 113
        %v4437 = vpop.permute.xlu0 %4436
        %4438 = vrot.lane.b32.xlu0 %v4059, 113
        %v4439 = vpop.permute.xlu0 %4438
        %v4440 = vsel %vm1053, %v4437, %v4439
        %v4441 = vsel %vm1053, %v4439, %v4437
        %v4442 = vmul.f32 %v4440, %v459
        %v4443 = vmul.f32 %v4441, %v463
        %s4444 = sld [smem:[#allocation9 + $0x15c]]
        %v4445 = vstv %s4444
        %v4446 = vmul.f32 %v4445, %v4442
        %v4447 = vmul.f32 %v4445, %v4443
        %v4448 = vadd.f32 %v4428, %v4446
        %v4449 = vadd.f32 %v4429, %v4447
        %s4450 = sld [smem:[#allocation9 + $0x192]]
        %v4451 = vstv %s4450
        %v4452 = vmul.f32 %v4451, %v4442
        %v4453 = vmul.f32 %v4451, %v4443
        %v4454 = vadd.f32 %v4434, %v4452
        %v4455 = vadd.f32 %v4435, %v4453
        %4456 = vrot.lane.b32.xlu0 %v4054, 112
        %v4457 = vpop.permute.xlu0 %4456
        %4458 = vrot.lane.b32.xlu0 %v4055, 112
        %v4459 = vpop.permute.xlu0 %4458
        %v4460 = vsel %vm1114, %v4457, %v4459
        %v4461 = vsel %vm1114, %v4459, %v4457
        %v4462 = vmul.f32 %v4460, %v472
        %v4463 = vmul.f32 %v4461, %v476
        %s4464 = sld [smem:[#allocation9 + $0x14b]]
        %v4465 = vstv %s4464
        %v4466 = vmul.f32 %v4465, %v4462
        %v4467 = vmul.f32 %v4465, %v4463
        %v4468 = vadd.f32 %v4448, %v4466
        %v4469 = vadd.f32 %v4449, %v4467
        %s4470 = sld [smem:[#allocation9 + $0x181]]
        %v4471 = vstv %s4470
        %v4472 = vmul.f32 %v4471, %v4462
        %v4473 = vmul.f32 %v4471, %v4463
        %v4474 = vadd.f32 %v4454, %v4472
        %v4475 = vadd.f32 %v4455, %v4473
        %4476 = vrot.lane.b32.xlu0 %v3998, 112
        %v4477 = vpop.permute.xlu0 %4476
        %4478 = vrot.lane.b32.xlu0 %v3999, 112
        %v4479 = vpop.permute.xlu0 %4478
        %v4480 = vsel %vm1114, %v4477, %v4479
        %v4481 = vsel %vm1114, %v4479, %v4477
        %v4482 = vmul.f32 %v4480, %v472
        %v4483 = vmul.f32 %v4481, %v476
        %s4484 = sld [smem:[#allocation9 + $0x154]]
        %v4485 = vstv %s4484
        %v4486 = vmul.f32 %v4485, %v4482
        %v4487 = vmul.f32 %v4485, %v4483
        %v4488 = vadd.f32 %v4468, %v4486
        %v4489 = vadd.f32 %v4469, %v4487
        %s4490 = sld [smem:[#allocation9 + $0x18a]]
        %v4491 = vstv %s4490
        %v4492 = vmul.f32 %v4491, %v4482
        %v4493 = vmul.f32 %v4491, %v4483
        %v4494 = vadd.f32 %v4474, %v4492
        %v4495 = vadd.f32 %v4475, %v4493
        %4496 = vrot.lane.b32.xlu0 %v4058, 112
        %v4497 = vpop.permute.xlu0 %4496
        %4498 = vrot.lane.b32.xlu0 %v4059, 112
        %v4499 = vpop.permute.xlu0 %4498
        %v4500 = vsel %vm1114, %v4497, %v4499
        %v4501 = vsel %vm1114, %v4499, %v4497
        %v4502 = vmul.f32 %v4500, %v472
        %v4503 = vmul.f32 %v4501, %v476
        %s4504 = sld [smem:[#allocation9 + $0x15d]]
        %v4505 = vstv %s4504
        %v4506 = vmul.f32 %v4505, %v4502
        %v4507 = vmul.f32 %v4505, %v4503
        %v4508 = vadd.f32 %v4488, %v4506
        %v4509 = vadd.f32 %v4489, %v4507
        %s4510 = sld [smem:[#allocation9 + $0x193]]
        %v4511 = vstv %s4510
        %v4512 = vmul.f32 %v4511, %v4502
        %v4513 = vmul.f32 %v4511, %v4503
        %v4514 = vadd.f32 %v4494, %v4512
        %v4515 = vadd.f32 %v4495, %v4513
        %4516 = vrot.lane.b32.xlu0 %v4054, 111
        %v4517 = vpop.permute.xlu0 %4516
        %4518 = vrot.lane.b32.xlu0 %v4055, 111
        %v4519 = vpop.permute.xlu0 %4518
        %v4520 = vsel %vm1175, %v4517, %v4519
        %v4521 = vsel %vm1175, %v4519, %v4517
        %v4522 = vmul.f32 %v4520, %v485
        %v4523 = vmul.f32 %v4521, %v489
        %s4524 = sld [smem:[#allocation9 + $0x14c]]
        %v4525 = vstv %s4524
        %v4526 = vmul.f32 %v4525, %v4522
        %v4527 = vmul.f32 %v4525, %v4523
        %v4528 = vadd.f32 %v4508, %v4526
        %v4529 = vadd.f32 %v4509, %v4527
        %s4530 = sld [smem:[#allocation9 + $0x182]]
        %v4531 = vstv %s4530
        %v4532 = vmul.f32 %v4531, %v4522
        %v4533 = vmul.f32 %v4531, %v4523
        %v4534 = vadd.f32 %v4514, %v4532
        %v4535 = vadd.f32 %v4515, %v4533
        %4536 = vrot.lane.b32.xlu0 %v3998, 111
        %v4537 = vpop.permute.xlu0 %4536
        %4538 = vrot.lane.b32.xlu0 %v3999, 111
        %v4539 = vpop.permute.xlu0 %4538
        %v4540 = vsel %vm1175, %v4537, %v4539
        %v4541 = vsel %vm1175, %v4539, %v4537
        %v4542 = vmul.f32 %v4540, %v485
        %v4543 = vmul.f32 %v4541, %v489
        %s4544 = sld [smem:[#allocation9 + $0x155]]
        %v4545 = vstv %s4544
        %v4546 = vmul.f32 %v4545, %v4542
        %v4547 = vmul.f32 %v4545, %v4543
        %v4548 = vadd.f32 %v4528, %v4546
        %v4549 = vadd.f32 %v4529, %v4547
        %s4550 = sld [smem:[#allocation9 + $0x18b]]
        %v4551 = vstv %s4550
        %v4552 = vmul.f32 %v4551, %v4542
        %v4553 = vmul.f32 %v4551, %v4543
        %v4554 = vadd.f32 %v4534, %v4552
        %v4555 = vadd.f32 %v4535, %v4553
        %4556 = vrot.lane.b32.xlu0 %v4058, 111
        %v4557 = vpop.permute.xlu0 %4556
        %4558 = vrot.lane.b32.xlu0 %v4059, 111
        %v4559 = vpop.permute.xlu0 %4558
        %v4560 = vsel %vm1175, %v4557, %v4559
        %v4561 = vsel %vm1175, %v4559, %v4557
        %v4562 = vmul.f32 %v4560, %v485
        %v4563 = vmul.f32 %v4561, %v489
        %s4564 = sld [smem:[#allocation9 + $0x15e]]
        %v4565 = vstv %s4564
        %v4566 = vmul.f32 %v4565, %v4562
        %v4567 = vmul.f32 %v4565, %v4563
        %v4568 = vadd.f32 %v4548, %v4566
        %v4569 = vadd.f32 %v4549, %v4567
        %s4570 = sld [smem:[#allocation9 + $0x194]]
        %v4571 = vstv %s4570
        %v4572 = vmul.f32 %v4571, %v4562
        %v4573 = vmul.f32 %v4571, %v4563
        %v4574 = vadd.f32 %v4554, %v4572
        %v4575 = vadd.f32 %v4555, %v4573
        %v4576 = vrot.slane %v4046, 7
        %v4577 = vrot.slane %v4047, 7
        %v4578 = vmul.f32 %v4576, %v380
        %v4579 = vmul.f32 %v4577, %v380
        %v4580 = vrot.slane %v4046, 1
        %v4581 = vrot.slane %v4047, 1
        %v4582 = vmul.f32 %v4580, %v387
        %v4583 = vmul.f32 %v4581, %v387
        %4584 = vrot.lane.b32.xlu0 %v4578, 17
        %v4585 = vpop.permute.xlu0 %4584
        %4586 = vrot.lane.b32.xlu0 %v4579, 17
        %v4587 = vpop.permute.xlu0 %4586
        %v4588 = vsel %vm712, %v4585, %v4587
        %v4589 = vsel %vm712, %v4587, %v4585
        %v4590 = vmul.f32 %v4589, %v394
        %v4591 = vmul.f32 %v4588, %v398
        %s4592 = sld [smem:[#allocation9 + $0x15f]]
        %v4593 = vstv %s4592
        %v4594 = vmul.f32 %v4593, %v4590
        %v4595 = vmul.f32 %v4593, %v4591
        %v4596 = vadd.f32 %v4568, %v4594
        %v4597 = vadd.f32 %v4569, %v4595
        %s4598 = sld [smem:[#allocation9 + $0x195]]
        %v4599 = vstv %s4598
        %v4600 = vmul.f32 %v4599, %v4590
        %v4601 = vmul.f32 %v4599, %v4591
        %v4602 = vadd.f32 %v4574, %v4600
        %v4603 = vadd.f32 %v4575, %v4601
        %4604 = vrot.lane.b32.xlu0 %v4046, 17
        %v4605 = vpop.permute.xlu0 %4604
        %4606 = vrot.lane.b32.xlu0 %v4047, 17
        %v4607 = vpop.permute.xlu0 %4606
        %v4608 = vsel %vm712, %v4605, %v4607
        %v4609 = vsel %vm712, %v4607, %v4605
        %v4610 = vmul.f32 %v4609, %v394
        %v4611 = vmul.f32 %v4608, %v398
        %s4612 = sld [smem:[#allocation9 + $0x168]]
        %v4613 = vstv %s4612
        %v4614 = vmul.f32 %v4613, %v4610
        %v4615 = vmul.f32 %v4613, %v4611
        %v4616 = vadd.f32 %v4596, %v4614
        %v4617 = vadd.f32 %v4597, %v4615
        %s4618 = sld [smem:[#allocation9 + $0x19e]]
        %v4619 = vstv %s4618
        %v4620 = vmul.f32 %v4619, %v4610
        %v4621 = vmul.f32 %v4619, %v4611
        %v4622 = vadd.f32 %v4602, %v4620
        %v4623 = vadd.f32 %v4603, %v4621
        %4624 = vrot.lane.b32.xlu0 %v4582, 17
        %v4625 = vpop.permute.xlu0 %4624
        %4626 = vrot.lane.b32.xlu0 %v4583, 17
        %v4627 = vpop.permute.xlu0 %4626
        %v4628 = vsel %vm712, %v4625, %v4627
        %v4629 = vsel %vm712, %v4627, %v4625
        %v4630 = vmul.f32 %v4629, %v394
        %v4631 = vmul.f32 %v4628, %v398
        %s4632 = sld [smem:[#allocation9 + $0x171]]
        %v4633 = vstv %s4632
        %v4634 = vmul.f32 %v4633, %v4630
        %v4635 = vmul.f32 %v4633, %v4631
        %v4636 = vadd.f32 %v4616, %v4634
        %v4637 = vadd.f32 %v4617, %v4635
        %s4638 = sld [smem:[#allocation9 + $0x1a7]]
        %v4639 = vstv %s4638
        %v4640 = vmul.f32 %v4639, %v4630
        %v4641 = vmul.f32 %v4639, %v4631
        %v4642 = vadd.f32 %v4622, %v4640
        %v4643 = vadd.f32 %v4623, %v4641
        %4644 = vrot.lane.b32.xlu0 %v4578, 16
        %v4645 = vpop.permute.xlu0 %4644
        %4646 = vrot.lane.b32.xlu0 %v4579, 16
        %v4647 = vpop.permute.xlu0 %4646
        %v4648 = vsel %vm773, %v4645, %v4647
        %v4649 = vsel %vm773, %v4647, %v4645
        %v4650 = vmul.f32 %v4649, %v407
        %v4651 = vmul.f32 %v4648, %v411
        %s4652 = sld [smem:[#allocation9 + $0x160]]
        %v4653 = vstv %s4652
        %v4654 = vmul.f32 %v4653, %v4650
        %v4655 = vmul.f32 %v4653, %v4651
        %v4656 = vadd.f32 %v4636, %v4654
        %v4657 = vadd.f32 %v4637, %v4655
        %s4658 = sld [smem:[#allocation9 + $0x196]]
        %v4659 = vstv %s4658
        %v4660 = vmul.f32 %v4659, %v4650
        %v4661 = vmul.f32 %v4659, %v4651
        %v4662 = vadd.f32 %v4642, %v4660
        %v4663 = vadd.f32 %v4643, %v4661
        %4664 = vrot.lane.b32.xlu0 %v4046, 16
        %v4665 = vpop.permute.xlu0 %4664
        %4666 = vrot.lane.b32.xlu0 %v4047, 16
        %v4667 = vpop.permute.xlu0 %4666
        %v4668 = vsel %vm773, %v4665, %v4667
        %v4669 = vsel %vm773, %v4667, %v4665
        %v4670 = vmul.f32 %v4669, %v407
        %v4671 = vmul.f32 %v4668, %v411
        %s4672 = sld [smem:[#allocation9 + $0x169]]
        %v4673 = vstv %s4672
        %v4674 = vmul.f32 %v4673, %v4670
        %v4675 = vmul.f32 %v4673, %v4671
        %v4676 = vadd.f32 %v4656, %v4674
        %v4677 = vadd.f32 %v4657, %v4675
        %s4678 = sld [smem:[#allocation9 + $0x19f]]
        %v4679 = vstv %s4678
        %v4680 = vmul.f32 %v4679, %v4670
        %v4681 = vmul.f32 %v4679, %v4671
        %v4682 = vadd.f32 %v4662, %v4680
        %v4683 = vadd.f32 %v4663, %v4681
        %4684 = vrot.lane.b32.xlu0 %v4582, 16
        %v4685 = vpop.permute.xlu0 %4684
        %4686 = vrot.lane.b32.xlu0 %v4583, 16
        %v4687 = vpop.permute.xlu0 %4686
        %v4688 = vsel %vm773, %v4685, %v4687
        %v4689 = vsel %vm773, %v4687, %v4685
        %v4690 = vmul.f32 %v4689, %v407
        %v4691 = vmul.f32 %v4688, %v411
        %s4692 = sld [smem:[#allocation9 + $0x172]]
        %v4693 = vstv %s4692
        %v4694 = vmul.f32 %v4693, %v4690
        %v4695 = vmul.f32 %v4693, %v4691
        %v4696 = vadd.f32 %v4676, %v4694
        %v4697 = vadd.f32 %v4677, %v4695
        %s4698 = sld [smem:[#allocation9 + $0x1a8]]
        %v4699 = vstv %s4698
        %v4700 = vmul.f32 %v4699, %v4690
        %v4701 = vmul.f32 %v4699, %v4691
        %v4702 = vadd.f32 %v4682, %v4700
        %v4703 = vadd.f32 %v4683, %v4701
        %4704 = vrot.lane.b32.xlu0 %v4578, 15
        %v4705 = vpop.permute.xlu0 %4704
        %4706 = vrot.lane.b32.xlu0 %v4579, 15
        %v4707 = vpop.permute.xlu0 %4706
        %v4708 = vsel %vm834, %v4705, %v4707
        %v4709 = vsel %vm834, %v4707, %v4705
        %v4710 = vmul.f32 %v4709, %v420
        %v4711 = vmul.f32 %v4708, %v424
        %s4712 = sld [smem:[#allocation9 + $0x161]]
        %v4713 = vstv %s4712
        %v4714 = vmul.f32 %v4713, %v4710
        %v4715 = vmul.f32 %v4713, %v4711
        %v4716 = vadd.f32 %v4696, %v4714
        %v4717 = vadd.f32 %v4697, %v4715
        %s4718 = sld [smem:[#allocation9 + $0x197]]
        %v4719 = vstv %s4718
        %v4720 = vmul.f32 %v4719, %v4710
        %v4721 = vmul.f32 %v4719, %v4711
        %v4722 = vadd.f32 %v4702, %v4720
        %v4723 = vadd.f32 %v4703, %v4721
        %4724 = vrot.lane.b32.xlu0 %v4046, 15
        %v4725 = vpop.permute.xlu0 %4724
        %4726 = vrot.lane.b32.xlu0 %v4047, 15
        %v4727 = vpop.permute.xlu0 %4726
        %v4728 = vsel %vm834, %v4725, %v4727
        %v4729 = vsel %vm834, %v4727, %v4725
        %v4730 = vmul.f32 %v4729, %v420
        %v4731 = vmul.f32 %v4728, %v424
        %s4732 = sld [smem:[#allocation9 + $0x16a]]
        %v4733 = vstv %s4732
        %v4734 = vmul.f32 %v4733, %v4730
        %v4735 = vmul.f32 %v4733, %v4731
        %v4736 = vadd.f32 %v4716, %v4734
        %v4737 = vadd.f32 %v4717, %v4735
        %s4738 = sld [smem:[#allocation9 + $0x1a0]]
        %v4739 = vstv %s4738
        %v4740 = vmul.f32 %v4739, %v4730
        %v4741 = vmul.f32 %v4739, %v4731
        %v4742 = vadd.f32 %v4722, %v4740
        %v4743 = vadd.f32 %v4723, %v4741
        %4744 = vrot.lane.b32.xlu0 %v4582, 15
        %v4745 = vpop.permute.xlu0 %4744
        %4746 = vrot.lane.b32.xlu0 %v4583, 15
        %v4747 = vpop.permute.xlu0 %4746
        %v4748 = vsel %vm834, %v4745, %v4747
        %v4749 = vsel %vm834, %v4747, %v4745
        %v4750 = vmul.f32 %v4749, %v420
        %v4751 = vmul.f32 %v4748, %v424
        %s4752 = sld [smem:[#allocation9 + $0x173]]
        %v4753 = vstv %s4752
        %v4754 = vmul.f32 %v4753, %v4750
        %v4755 = vmul.f32 %v4753, %v4751
        %v4756 = vadd.f32 %v4736, %v4754
        %v4757 = vadd.f32 %v4737, %v4755
        %s4758 = sld [smem:[#allocation9 + $0x1a9]]
        %v4759 = vstv %s4758
        %v4760 = vmul.f32 %v4759, %v4750
        %v4761 = vmul.f32 %v4759, %v4751
        %v4762 = vadd.f32 %v4742, %v4760
        %v4763 = vadd.f32 %v4743, %v4761
        %4764 = vrot.lane.b32.xlu0 %v4578, 1
        %v4765 = vpop.permute.xlu0 %4764
        %4766 = vrot.lane.b32.xlu0 %v4579, 1
        %v4767 = vpop.permute.xlu0 %4766
        %v4768 = vsel %vm895, %v4765, %v4767
        %v4769 = vsel %vm895, %v4767, %v4765
        %v4770 = vmul.f32 %v4769, %v433
        %v4771 = vmul.f32 %v4768, %v437
        %s4772 = sld [smem:[#allocation9 + $0x162]]
        %v4773 = vstv %s4772
        %v4774 = vmul.f32 %v4773, %v4770
        %v4775 = vmul.f32 %v4773, %v4771
        %v4776 = vadd.f32 %v4756, %v4774
        %v4777 = vadd.f32 %v4757, %v4775
        %s4778 = sld [smem:[#allocation9 + $0x198]]
        %v4779 = vstv %s4778
        %v4780 = vmul.f32 %v4779, %v4770
        %v4781 = vmul.f32 %v4779, %v4771
        %v4782 = vadd.f32 %v4762, %v4780
        %v4783 = vadd.f32 %v4763, %v4781
        %4784 = vrot.lane.b32.xlu0 %v4046, 1
        %v4785 = vpop.permute.xlu0 %4784
        %4786 = vrot.lane.b32.xlu0 %v4047, 1
        %v4787 = vpop.permute.xlu0 %4786
        %v4788 = vsel %vm895, %v4785, %v4787
        %v4789 = vsel %vm895, %v4787, %v4785
        %v4790 = vmul.f32 %v4789, %v433
        %v4791 = vmul.f32 %v4788, %v437
        %s4792 = sld [smem:[#allocation9 + $0x16b]]
        %v4793 = vstv %s4792
        %v4794 = vmul.f32 %v4793, %v4790
        %v4795 = vmul.f32 %v4793, %v4791
        %v4796 = vadd.f32 %v4776, %v4794
        %v4797 = vadd.f32 %v4777, %v4795
        %s4798 = sld [smem:[#allocation9 + $0x1a1]]
        %v4799 = vstv %s4798
        %v4800 = vmul.f32 %v4799, %v4790
        %v4801 = vmul.f32 %v4799, %v4791
        %v4802 = vadd.f32 %v4782, %v4800
        %v4803 = vadd.f32 %v4783, %v4801
        %4804 = vrot.lane.b32.xlu0 %v4582, 1
        %v4805 = vpop.permute.xlu0 %4804
        %4806 = vrot.lane.b32.xlu0 %v4583, 1
        %v4807 = vpop.permute.xlu0 %4806
        %v4808 = vsel %vm895, %v4805, %v4807
        %v4809 = vsel %vm895, %v4807, %v4805
        %v4810 = vmul.f32 %v4809, %v433
        %v4811 = vmul.f32 %v4808, %v437
        %s4812 = sld [smem:[#allocation9 + $0x174]]
        %v4813 = vstv %s4812
        %v4814 = vmul.f32 %v4813, %v4810
        %v4815 = vmul.f32 %v4813, %v4811
        %v4816 = vadd.f32 %v4796, %v4814
        %v4817 = vadd.f32 %v4797, %v4815
        %s4818 = sld [smem:[#allocation9 + $0x1aa]]
        %v4819 = vstv %s4818
        %v4820 = vmul.f32 %v4819, %v4810
        %v4821 = vmul.f32 %v4819, %v4811
        %v4822 = vadd.f32 %v4802, %v4820
        %v4823 = vadd.f32 %v4803, %v4821
        %s4824 = sld [smem:[#allocation9 + $0x163]]
        %v4825 = vstv %s4824
        %v4826 = vmul.f32 %v4825, %v4578
        %v4827 = vmul.f32 %v4825, %v4579
        %v4828 = vadd.f32 %v4816, %v4826
        %v4829 = vadd.f32 %v4817, %v4827
        %s4830 = sld [smem:[#allocation9 + $0x199]]
        %v4831 = vstv %s4830
        %v4832 = vmul.f32 %v4831, %v4578
        %v4833 = vmul.f32 %v4831, %v4579
        %v4834 = vadd.f32 %v4822, %v4832
        %v4835 = vadd.f32 %v4823, %v4833
        %s4836 = sld [smem:[#allocation9 + $0x16c]]
        %v4837 = vstv %s4836
        %v4838 = vmul.f32 %v4837, %v4046
        %v4839 = vmul.f32 %v4837, %v4047
        %v4840 = vadd.f32 %v4828, %v4838
        %v4841 = vadd.f32 %v4829, %v4839
        %s4842 = sld [smem:[#allocation9 + $0x1a2]]
        %v4843 = vstv %s4842
        %v4844 = vmul.f32 %v4843, %v4046
        %v4845 = vmul.f32 %v4843, %v4047
        %v4846 = vadd.f32 %v4834, %v4844
        %v4847 = vadd.f32 %v4835, %v4845
        %s4848 = sld [smem:[#allocation9 + $0x175]]
        %v4849 = vstv %s4848
        %v4850 = vmul.f32 %v4849, %v4582
        %v4851 = vmul.f32 %v4849, %v4583
        %v4852 = vadd.f32 %v4840, %v4850
        %v4853 = vadd.f32 %v4841, %v4851
        %s4854 = sld [smem:[#allocation9 + $0x1ab]]
        %v4855 = vstv %s4854
        %v4856 = vmul.f32 %v4855, %v4582
        %v4857 = vmul.f32 %v4855, %v4583
        %v4858 = vadd.f32 %v4846, %v4856
        %v4859 = vadd.f32 %v4847, %v4857
        %4860 = vrot.lane.b32.xlu0 %v4578, 127
        %v4861 = vpop.permute.xlu0 %4860
        %4862 = vrot.lane.b32.xlu0 %v4579, 127
        %v4863 = vpop.permute.xlu0 %4862
        %v4864 = vsel %vm992, %v4861, %v4863
        %v4865 = vsel %vm992, %v4863, %v4861
        %v4866 = vmul.f32 %v4864, %v446
        %v4867 = vmul.f32 %v4865, %v450
        %s4868 = sld [smem:[#allocation9 + $0x164]]
        %v4869 = vstv %s4868
        %v4870 = vmul.f32 %v4869, %v4866
        %v4871 = vmul.f32 %v4869, %v4867
        %v4872 = vadd.f32 %v4852, %v4870
        %v4873 = vadd.f32 %v4853, %v4871
        %s4874 = sld [smem:[#allocation9 + $0x19a]]
        %v4875 = vstv %s4874
        %v4876 = vmul.f32 %v4875, %v4866
        %v4877 = vmul.f32 %v4875, %v4867
        %v4878 = vadd.f32 %v4858, %v4876
        %v4879 = vadd.f32 %v4859, %v4877
        %4880 = vrot.lane.b32.xlu0 %v4046, 127
        %v4881 = vpop.permute.xlu0 %4880
        %4882 = vrot.lane.b32.xlu0 %v4047, 127
        %v4883 = vpop.permute.xlu0 %4882
        %v4884 = vsel %vm992, %v4881, %v4883
        %v4885 = vsel %vm992, %v4883, %v4881
        %v4886 = vmul.f32 %v4884, %v446
        %v4887 = vmul.f32 %v4885, %v450
        %s4888 = sld [smem:[#allocation9 + $0x16d]]
        %v4889 = vstv %s4888
        %v4890 = vmul.f32 %v4889, %v4886
        %v4891 = vmul.f32 %v4889, %v4887
        %v4892 = vadd.f32 %v4872, %v4890
        %v4893 = vadd.f32 %v4873, %v4891
        %s4894 = sld [smem:[#allocation9 + $0x1a3]]
        %v4895 = vstv %s4894
        %v4896 = vmul.f32 %v4895, %v4886
        %v4897 = vmul.f32 %v4895, %v4887
        %v4898 = vadd.f32 %v4878, %v4896
        %v4899 = vadd.f32 %v4879, %v4897
        %4900 = vrot.lane.b32.xlu0 %v4582, 127
        %v4901 = vpop.permute.xlu0 %4900
        %4902 = vrot.lane.b32.xlu0 %v4583, 127
        %v4903 = vpop.permute.xlu0 %4902
        %v4904 = vsel %vm992, %v4901, %v4903
        %v4905 = vsel %vm992, %v4903, %v4901
        %v4906 = vmul.f32 %v4904, %v446
        %v4907 = vmul.f32 %v4905, %v450
        %s4908 = sld [smem:[#allocation9 + $0x176]]
        %v4909 = vstv %s4908
        %v4910 = vmul.f32 %v4909, %v4906
        %v4911 = vmul.f32 %v4909, %v4907
        %v4912 = vadd.f32 %v4892, %v4910
        %v4913 = vadd.f32 %v4893, %v4911
        %s4914 = sld [smem:[#allocation9 + $0x1ac]]
        %v4915 = vstv %s4914
        %v4916 = vmul.f32 %v4915, %v4906
        %v4917 = vmul.f32 %v4915, %v4907
        %v4918 = vadd.f32 %v4898, %v4916
        %v4919 = vadd.f32 %v4899, %v4917
        %4920 = vrot.lane.b32.xlu0 %v4578, 113
        %v4921 = vpop.permute.xlu0 %4920
        %4922 = vrot.lane.b32.xlu0 %v4579, 113
        %v4923 = vpop.permute.xlu0 %4922
        %v4924 = vsel %vm1053, %v4921, %v4923
        %v4925 = vsel %vm1053, %v4923, %v4921
        %v4926 = vmul.f32 %v4924, %v459
        %v4927 = vmul.f32 %v4925, %v463
        %s4928 = sld [smem:[#allocation9 + $0x165]]
        %v4929 = vstv %s4928
        %v4930 = vmul.f32 %v4929, %v4926
        %v4931 = vmul.f32 %v4929, %v4927
        %v4932 = vadd.f32 %v4912, %v4930
        %v4933 = vadd.f32 %v4913, %v4931
        %s4934 = sld [smem:[#allocation9 + $0x19b]]
        %v4935 = vstv %s4934
        %v4936 = vmul.f32 %v4935, %v4926
        %v4937 = vmul.f32 %v4935, %v4927
        %v4938 = vadd.f32 %v4918, %v4936
        %v4939 = vadd.f32 %v4919, %v4937
        %4940 = vrot.lane.b32.xlu0 %v4046, 113
        %v4941 = vpop.permute.xlu0 %4940
        %4942 = vrot.lane.b32.xlu0 %v4047, 113
        %v4943 = vpop.permute.xlu0 %4942
        %v4944 = vsel %vm1053, %v4941, %v4943
        %v4945 = vsel %vm1053, %v4943, %v4941
        %v4946 = vmul.f32 %v4944, %v459
        %v4947 = vmul.f32 %v4945, %v463
        %s4948 = sld [smem:[#allocation9 + $0x16e]]
        %v4949 = vstv %s4948
        %v4950 = vmul.f32 %v4949, %v4946
        %v4951 = vmul.f32 %v4949, %v4947
        %v4952 = vadd.f32 %v4932, %v4950
        %v4953 = vadd.f32 %v4933, %v4951
        %s4954 = sld [smem:[#allocation9 + $0x1a4]]
        %v4955 = vstv %s4954
        %v4956 = vmul.f32 %v4955, %v4946
        %v4957 = vmul.f32 %v4955, %v4947
        %v4958 = vadd.f32 %v4938, %v4956
        %v4959 = vadd.f32 %v4939, %v4957
        %4960 = vrot.lane.b32.xlu0 %v4582, 113
        %v4961 = vpop.permute.xlu0 %4960
        %4962 = vrot.lane.b32.xlu0 %v4583, 113
        %v4963 = vpop.permute.xlu0 %4962
        %v4964 = vsel %vm1053, %v4961, %v4963
        %v4965 = vsel %vm1053, %v4963, %v4961
        %v4966 = vmul.f32 %v4964, %v459
        %v4967 = vmul.f32 %v4965, %v463
        %s4968 = sld [smem:[#allocation9 + $0x177]]
        %v4969 = vstv %s4968
        %v4970 = vmul.f32 %v4969, %v4966
        %v4971 = vmul.f32 %v4969, %v4967
        %v4972 = vadd.f32 %v4952, %v4970
        %v4973 = vadd.f32 %v4953, %v4971
        %s4974 = sld [smem:[#allocation9 + $0x1ad]]
        %v4975 = vstv %s4974
        %v4976 = vmul.f32 %v4975, %v4966
        %v4977 = vmul.f32 %v4975, %v4967
        %v4978 = vadd.f32 %v4958, %v4976
        %v4979 = vadd.f32 %v4959, %v4977
        %4980 = vrot.lane.b32.xlu0 %v4578, 112
        %v4981 = vpop.permute.xlu0 %4980
        %4982 = vrot.lane.b32.xlu0 %v4579, 112
        %v4983 = vpop.permute.xlu0 %4982
        %v4984 = vsel %vm1114, %v4981, %v4983
        %v4985 = vsel %vm1114, %v4983, %v4981
        %v4986 = vmul.f32 %v4984, %v472
        %v4987 = vmul.f32 %v4985, %v476
        %s4988 = sld [smem:[#allocation9 + $0x166]]
        %v4989 = vstv %s4988
        %v4990 = vmul.f32 %v4989, %v4986
        %v4991 = vmul.f32 %v4989, %v4987
        %v4992 = vadd.f32 %v4972, %v4990
        %v4993 = vadd.f32 %v4973, %v4991
        %s4994 = sld [smem:[#allocation9 + $0x19c]]
        %v4995 = vstv %s4994
        %v4996 = vmul.f32 %v4995, %v4986
        %v4997 = vmul.f32 %v4995, %v4987
        %v4998 = vadd.f32 %v4978, %v4996
        %v4999 = vadd.f32 %v4979, %v4997
        %5000 = vrot.lane.b32.xlu0 %v4046, 112
        %v5001 = vpop.permute.xlu0 %5000
        %5002 = vrot.lane.b32.xlu0 %v4047, 112
        %v5003 = vpop.permute.xlu0 %5002
        %v5004 = vsel %vm1114, %v5001, %v5003
        %v5005 = vsel %vm1114, %v5003, %v5001
        %v5006 = vmul.f32 %v5004, %v472
        %v5007 = vmul.f32 %v5005, %v476
        %s5008 = sld [smem:[#allocation9 + $0x16f]]
        %v5009 = vstv %s5008
        %v5010 = vmul.f32 %v5009, %v5006
        %v5011 = vmul.f32 %v5009, %v5007
        %v5012 = vadd.f32 %v4992, %v5010
        %v5013 = vadd.f32 %v4993, %v5011
        %s5014 = sld [smem:[#allocation9 + $0x1a5]]
        %v5015 = vstv %s5014
        %v5016 = vmul.f32 %v5015, %v5006
        %v5017 = vmul.f32 %v5015, %v5007
        %v5018 = vadd.f32 %v4998, %v5016
        %v5019 = vadd.f32 %v4999, %v5017
        %5020 = vrot.lane.b32.xlu0 %v4582, 112
        %v5021 = vpop.permute.xlu0 %5020
        %5022 = vrot.lane.b32.xlu0 %v4583, 112
        %v5023 = vpop.permute.xlu0 %5022
        %v5024 = vsel %vm1114, %v5021, %v5023
        %v5025 = vsel %vm1114, %v5023, %v5021
        %v5026 = vmul.f32 %v5024, %v472
        %v5027 = vmul.f32 %v5025, %v476
        %s5028 = sld [smem:[#allocation9 + $0x178]]
        %v5029 = vstv %s5028
        %v5030 = vmul.f32 %v5029, %v5026
        %v5031 = vmul.f32 %v5029, %v5027
        %v5032 = vadd.f32 %v5012, %v5030
        %v5033 = vadd.f32 %v5013, %v5031
        %s5034 = sld [smem:[#allocation9 + $0x1ae]]
        %v5035 = vstv %s5034
        %v5036 = vmul.f32 %v5035, %v5026
        %v5037 = vmul.f32 %v5035, %v5027
        %v5038 = vadd.f32 %v5018, %v5036
        %v5039 = vadd.f32 %v5019, %v5037
        %5040 = vrot.lane.b32.xlu0 %v4578, 111
        %v5041 = vpop.permute.xlu0 %5040
        %5042 = vrot.lane.b32.xlu0 %v4579, 111
        %v5043 = vpop.permute.xlu0 %5042
        %v5044 = vsel %vm1175, %v5041, %v5043
        %v5045 = vsel %vm1175, %v5043, %v5041
        %v5046 = vmul.f32 %v5044, %v485
        %v5047 = vmul.f32 %v5045, %v489
        %s5048 = sld [smem:[#allocation9 + $0x167]]
        %v5049 = vstv %s5048
        %v5050 = vmul.f32 %v5049, %v5046
        %v5051 = vmul.f32 %v5049, %v5047
        %v5052 = vadd.f32 %v5032, %v5050
        %v5053 = vadd.f32 %v5033, %v5051
        %s5054 = sld [smem:[#allocation9 + $0x19d]]
        %v5055 = vstv %s5054
        %v5056 = vmul.f32 %v5055, %v5046
        %v5057 = vmul.f32 %v5055, %v5047
        %v5058 = vadd.f32 %v5038, %v5056
        %v5059 = vadd.f32 %v5039, %v5057
        %5060 = vrot.lane.b32.xlu0 %v4046, 111
        %v5061 = vpop.permute.xlu0 %5060
        %5062 = vrot.lane.b32.xlu0 %v4047, 111
        %v5063 = vpop.permute.xlu0 %5062
        %v5064 = vsel %vm1175, %v5061, %v5063
        %v5065 = vsel %vm1175, %v5063, %v5061
        %v5066 = vmul.f32 %v5064, %v485
        %v5067 = vmul.f32 %v5065, %v489
        %s5068 = sld [smem:[#allocation9 + $0x170]]
        %v5069 = vstv %s5068
        %v5070 = vmul.f32 %v5069, %v5066
        %v5071 = vmul.f32 %v5069, %v5067
        %v5072 = vadd.f32 %v5052, %v5070
        %v5073 = vadd.f32 %v5053, %v5071
        %s5074 = sld [smem:[#allocation9 + $0x1a6]]
        %v5075 = vstv %s5074
        %v5076 = vmul.f32 %v5075, %v5066
        %v5077 = vmul.f32 %v5075, %v5067
        %v5078 = vadd.f32 %v5058, %v5076
        %v5079 = vadd.f32 %v5059, %v5077
        %5080 = vrot.lane.b32.xlu0 %v4582, 111
        %v5081 = vpop.permute.xlu0 %5080
        %5082 = vrot.lane.b32.xlu0 %v4583, 111
        %v5083 = vpop.permute.xlu0 %5082
        %v5084 = vsel %vm1175, %v5081, %v5083
        %v5085 = vsel %vm1175, %v5083, %v5081
        %v5086 = vmul.f32 %v5084, %v485
        %v5087 = vmul.f32 %v5085, %v489
        %s5088 = sld [smem:[#allocation9 + $0x179]]
        %v5089 = vstv %s5088
        %v5090 = vmul.f32 %v5089, %v5086
        %v5091 = vmul.f32 %v5089, %v5087
        %v5092 = vadd.f32 %v5072, %v5090
        %v5093 = vadd.f32 %v5073, %v5091
        %s5094 = sld [smem:[#allocation9 + $0x1af]]
        %v5095 = vstv %s5094
        %v5096 = vmul.f32 %v5095, %v5086
        %v5097 = vmul.f32 %v5095, %v5087
        %v5098 = vadd.f32 %v5078, %v5096
        %v5099 = vadd.f32 %v5079, %v5097
        %v5100 = vadd.f32 %v5092, %v2796
        %v5101 = vadd.f32 %v5093, %v2797
        %v5102 = vadd.f32 %v5098, %v2802
        %v5103 = vadd.f32 %v5099, %v2803
        %v5104 = vadd.f32 %v5100, %v5101
        %5105 = vadd.xlane.f32.xlu0 %v5104
        %v5106 = vpop.xlane.xlu0 %5105
        %v5107 = vrot.slane %v5106, 4
        %v5108 = vadd.f32 %v5106, %v5107
        %v5109 = vrot.slane %v5108, 2
        %v5110 = vadd.f32 %v5108, %v5109
        %v5111 = vrot.slane %v5110, 1
        %v5112 = vadd.f32 %v5110, %v5111
        %s5113 = vtos %v5112
        %v5114 = vrcp.pop 2048.0
        %s5115 = vtos %v5114
        %s5116 = smul.f32 %s5113, %s5115
        %v5117 = vstv %s5116
        %v5118 = vsub.f32 %v5100, %v5117
        %v5119 = vsub.f32 %v5101, %v5117
        %v5120 = vmul.f32 %v5118, %v5118
        %v5121 = vmul.f32 %v5119, %v5119
        %v5122 = vadd.f32 %v5120, %v5121
        %5123 = vadd.xlane.f32.xlu0 %v5122
        %v5124 = vpop.xlane.xlu0 %5123
        %v5125 = vrot.slane %v5124, 4
        %v5126 = vadd.f32 %v5124, %v5125
        %v5127 = vrot.slane %v5126, 2
        %v5128 = vadd.f32 %v5126, %v5127
        %v5129 = vrot.slane %v5128, 1
        %v5130 = vadd.f32 %v5128, %v5129
        %s5131 = vtos %v5130
        %v5132 = vrcp.pop 2048.0
        %s5133 = vtos %v5132
        %s5134 = smul.f32 %s5131, %s5133
        %s5135 = sadd.f32 %s5134, 1e-05
        %v5136 = vstv %s5135
        %v5137 = vrsqrt.pop %v5136
        %s5138 = vtos %v5137
        %s5139 = sld [smem:[#allocation8 + $0x10]]
        %s5140 = smul.f32 %s5138, %s5139
        %v5141 = vstv %s5140
        %v5142 = vmul.f32 %v5118, %v5141
        %v5143 = vmul.f32 %v5119, %v5141
        %s5144 = sld [smem:[#allocation8 + $0x12]]
        %v5145 = vstv %s5144
        %v5146 = vadd.f32 %v5142, %v5145
        %v5147 = vadd.f32 %v5143, %v5145
        %v5148 = vmul.f32 %v5146, 0.01
        %v5149 = vmul.f32 %v5147, 0.01
        %v5150 = vmax.f32 %v5146, %v5148
        %v5151 = vmax.f32 %v5147, %v5149
        %v5152 = vadd.f32 %v5102, %v5103
        %5153 = vadd.xlane.f32.xlu0 %v5152
        %v5154 = vpop.xlane.xlu0 %5153
        %v5155 = vrot.slane %v5154, 4
        %v5156 = vadd.f32 %v5154, %v5155
        %v5157 = vrot.slane %v5156, 2
        %v5158 = vadd.f32 %v5156, %v5157
        %v5159 = vrot.slane %v5158, 1
        %v5160 = vadd.f32 %v5158, %v5159
        %s5161 = vtos %v5160
        %v5162 = vrcp.pop 2048.0
        %s5163 = vtos %v5162
        %s5164 = smul.f32 %s5161, %s5163
        %v5165 = vstv %s5164
        %v5166 = vsub.f32 %v5102, %v5165
        %v5167 = vsub.f32 %v5103, %v5165
        %v5168 = vmul.f32 %v5166, %v5166
        %v5169 = vmul.f32 %v5167, %v5167
        %v5170 = vadd.f32 %v5168, %v5169
        %5171 = vadd.xlane.f32.xlu0 %v5170
        %v5172 = vpop.xlane.xlu0 %5171
        %v5173 = vrot.slane %v5172, 4
        %v5174 = vadd.f32 %v5172, %v5173
        %v5175 = vrot.slane %v5174, 2
        %v5176 = vadd.f32 %v5174, %v5175
        %v5177 = vrot.slane %v5176, 1
        %v5178 = vadd.f32 %v5176, %v5177
        %s5179 = vtos %v5178
        %v5180 = vrcp.pop 2048.0
        %s5181 = vtos %v5180
        %s5182 = smul.f32 %s5179, %s5181
        %s5183 = sadd.f32 %s5182, 1e-05
        %v5184 = vstv %s5183
        %v5185 = vrsqrt.pop %v5184
        %s5186 = vtos %v5185
        %s5187 = sld [smem:[#allocation8 + $0x11]]
        %s5188 = smul.f32 %s5186, %s5187
        %v5189 = vstv %s5188
        %v5190 = vmul.f32 %v5166, %v5189
        %v5191 = vmul.f32 %v5167, %v5189
        %s5192 = sld [smem:[#allocation8 + $0x13]]
        %v5193 = vstv %s5192
        %v5194 = vadd.f32 %v5190, %v5193
        %v5195 = vadd.f32 %v5191, %v5193
        %v5196 = vmul.f32 %v5194, 0.01
        %v5197 = vmul.f32 %v5195, 0.01
        %v5198 = vmax.f32 %v5194, %v5196
        %v5199 = vmax.f32 %v5195, %v5197
        %s5200 = sld [smem:[#allocation11 + $0x6]]
        %v5201 = vstv %s5200
        %s5202 = sld [smem:[#allocation9 + $0x1b0]]
        %v5203 = vstv %s5202
        %v5204 = vmul.f32 %v5203, %v5150
        %v5205 = vmul.f32 %v5203, %v5151
        %v5206 = vadd.f32 %v5201, %v5204
        %v5207 = vadd.f32 %v5201, %v5205
        %s5208 = sld [smem:[#allocation9 + $0x1b1]]
        %v5209 = vstv %s5208
        %v5210 = vmul.f32 %v5209, %v5198
        %v5211 = vmul.f32 %v5209, %v5199
        %v5212 = vadd.f32 %v5206, %v5210
        %v5213 = vadd.f32 %v5207, %v5211
        %v5214 = vxor.u32 %v5212, 2147483648
        %v5215 = vxor.u32 %v5213, 2147483648
        %v5216 = vmul.f32 %v5214, 1.442695
        %v5217 = vpow.pop %v5216
        %v5218 = vmul.f32 %v5215, 1.442695
        %v5219 = vpow.pop %v5218
        %v5220 = vadd.f32 %v5217, 1.0
        %v5221 = vadd.f32 %v5219, 1.0
        %v5222 = vrcp.pop %v5220
        %v5223 = vmul.f32 1.0, %v5222
        %v5224 = vrcp.pop %v5221
        %v5225 = vmul.f32 1.0, %v5224
        %5226 = vst [vmem:[%s375] sm:$0xff] %v5223
        %5227 = vst [vmem:[%s375 + $0x8] sm:$0xff] %v5225
        %s5228 = sld [smem:[#allocation11 + $0x7]]
        %v5229 = vstv %s5228
        %s5230 = sld [smem:[#allocation9 + $0x1b2]]
        %v5231 = vstv %s5230
        %v5232 = vmul.f32 %v5231, %v5150
        %v5233 = vmul.f32 %v5231, %v5151
        %v5234 = vadd.f32 %v5229, %v5232
        %v5235 = vadd.f32 %v5229, %v5233
        %s5236 = sld [smem:[#allocation9 + $0x1b3]]
        %v5237 = vstv %s5236
        %v5238 = vmul.f32 %v5237, %v5198
        %v5239 = vmul.f32 %v5237, %v5199
        %v5240 = vadd.f32 %v5234, %v5238
        %v5241 = vadd.f32 %v5235, %v5239
        %v5242 = vxor.u32 %v5240, 2147483648
        %v5243 = vxor.u32 %v5241, 2147483648
        %v5244 = vmul.f32 %v5242, 1.442695
        %v5245 = vpow.pop %v5244
        %v5246 = vmul.f32 %v5243, 1.442695
        %v5247 = vpow.pop %v5246
        %v5248 = vadd.f32 %v5245, 1.0
        %v5249 = vadd.f32 %v5247, 1.0
        %v5250 = vrcp.pop %v5248
        %v5251 = vmul.f32 1.0, %v5250
        %v5252 = vrcp.pop %v5249
        %v5253 = vmul.f32 1.0, %v5252
        %s5254 = scalar_lea.vmem %s375, 16 [#allocation12]
        %5255 = vst [vmem:[%s5254] sm:$0xff] %v5251
        %5256 = vst [vmem:[%s5254 + $0x8] sm:$0xff] %v5253
        %s5257 = sand.u32 %s194, 1
        %s5258 = scalar_lea.sflag [#allocation4], %s5257
        %s5259 = sand.u32 %s194, 1
        %s5260 = smul.addr %s5259, 32
        %s5261 = scalar_lea.vmem [#allocation12], %s5260
        // Predicated region
        $region69: #{tpu_custom_call.1} parent=47 // pred_check
          %p5262 = pneg %p204
        $region70: #{tpu_custom_call.1} parent=47 // pred_check_branch
          %5264 = sbr.rel (%p5262) target = $region72
        $region71: #{tpu_custom_call.1} parent=47 // pred_region
          %s5266 = ssub.s32 512, 512
          %5267 = vsyncadd %s5258, %s5266
          %s5268 = smul.addr %s29, 4
          %s5269 = smul.addr %s5268, 128
          %s5270 = scalar_lea.hbm %s7, %s5269
          %s5271 = sshll.u32 %s5261, 4
          %s5272 = int_to_ptr.vmem [resolvable:$true] %s5271
          %5277 = dma.vmem_to_hbm [thread:$0]  %s5272, 512, %s5270, %s5258, 256, 256, 16
        $region72: #{tpu_custom_call.1} parent=47 // pred_fallthru
          _
      $region48: #{tpu_custom_call.1} parent=5 // pred_fallthru
        _
      %p5278 = scmp.le.s32.totalorder 2, %s24
      // Predicated region
      $region73: #{tpu_custom_call.1} parent=5 // pred_check
        %p5279 = pneg %p5278
      $region74: #{tpu_custom_call.1} parent=5 // pred_check_branch
        %5281 = sbr.rel (%p5279) target = $region76
      $region75: #{tpu_custom_call.1} parent=5 // pred_region
        %s5282 = ssub.s32 %s24, 2
        // Predicated region
        $region77: #{tpu_custom_call.1} parent=75 // pred_check
          %p5283 = pneg %p210
        $region78: #{tpu_custom_call.1} parent=75 // pred_check_branch
          %5285 = sbr.rel (%p5283) target = $region80
        $region79: #{tpu_custom_call.1} parent=75 // pred_region
          %s5286 = sand.u32 %s195, 1
          %s5287 = scalar_lea.sflag [#allocation4], %s5286
          %s5288 = sand.u32 %s195, 1
          %s5289 = smul.addr %s5288, 32
          %s5290 = scalar_lea.vmem [#allocation12], %s5289
          %5291 = dma.done %s5287, 512
        $region80: #{tpu_custom_call.1} parent=75 // pred_fallthru
          _
      $region76: #{tpu_custom_call.1} parent=5 // pred_fallthru
        _
    $region6: #{tpu_custom_call.1} parent=1 // loop_footer
      %s28 = sadd.s32 1, %s24
    $region7: #{tpu_custom_call.1} parent=1 // loop_footer_branch
      %23 = sbr.rel target = $region3
    $region8: #{tpu_custom_call.1} parent=1 // loop_exit
      _
    %5292 = vsyncpa [#allocation3], 1
    %s5293 = scalar_lea.sflag [#allocation3], 1
    %5294 = vsyncpa %s5293, 1
    %5295 = vsyncpa [#allocation7], 1
    %s5296 = scalar_lea.sflag [#allocation7], 1
    %5297 = vsyncpa %s5296, 1
    %5298 = vsyncpa [#allocation4], 1
    %s5299 = scalar_lea.sflag [#allocation4], 1
    %5300 = vsyncpa %s5299, 1
    %5301 = vsyncpa [#allocation5], 1
    %s5302 = scalar_lea.sflag [#allocation5], 1
    %5303 = vsyncpa %s5302, 1
    %5304 = vsyncpa [#allocation10], 1

</llo_original>
